<compile_context>
chip_gen: v5e
topology: v5e:2x2
jax: 0.10.0
libtpu: 0.0.40
codegen_flags: <defaults>
</compile_context>

<pallas_src>
import math
from functools import partial

import jax
import jax.numpy as jnp
import numpy as np
from jax.experimental import pallas as pl
from jax.experimental.pallas import tpu as pltpu


# ----------------------------------------------------------------------------
# Fused kernel: patch-embed + GELU + masked mean-pool (accumulated over patch
#               tiles) -> bottleneck Linear+ReLU+norm -> normalized classifier
# ----------------------------------------------------------------------------
def fas_fused_kernel(patches_ref, wp_ref, bp_ref, w1_ref, b1_ref,
                     wc_ref, bc_ref, out_ref, emb_ref, acc_ref,
                     *, norm_flag, inv_n, n_patches, needs_mask, gelu_dtype):
    k = pl.program_id(1)
    bB, tn, P = patches_ref.shape
    D = wp_ref.shape[1]

    @pl.when(k == 0)
    def _init():
        acc_ref[...] = jnp.zeros_like(acc_ref)

    # ---- backbone stand-in: bf16 patch-embed on the MXU, f32 accumulation ---
    # Flatten the image block into the matmul M dimension: (bB*tn, P) @ (P, D)
    x = patches_ref[...].reshape(bB * tn, P)                  # bf16
    tok = jnp.dot(x, wp_ref[...],
                  preferred_element_type=jnp.float32) + bp_ref[...]

    # tanh-approx GELU; bf16 on v6e/v7x (bf16 VPU/EUP), f32 on v5e.
    # TODO(synk): the real ViT-B/16 uses exact erf GELU; stand-in keeps tanh.
    c = math.sqrt(2.0 / math.pi)
    t = tok.astype(gelu_dtype)
    g = 0.5 * t * (1.0 + jnp.tanh(c * (t + 0.044715 * t * t * t)))
    g = g.astype(jnp.float32).reshape(bB, tn, D)

    if needs_mask:
        # zero the contribution of zero-padded patch rows (GELU(bias) != 0)
        idx = jax.lax.broadcasted_iota(jnp.int32, (1, tn, 1), 1) + k * tn
        g = g * (idx < n_patches).astype(jnp.float32)

    # partial mean-pool: per-image tile sums into the resident accumulator
    acc_ref[...] += jnp.sum(g, axis=1)                        # (bB, D) f32

    # ---- head epilogue (runs once per image block, on the last patch tile) --
    @pl.when(k == pl.num_programs(1) - 1)
    def _epilogue():
        feat = acc_ref[...] * inv_n                           # (bB, D) mean

        # feature_embedder: Linear(768,512) + ReLU (Dropout(0.5) = id in eval)
        h = jnp.dot(feat.astype(w1_ref.dtype), w1_ref[...],
                    preferred_element_type=jnp.float32) + b1_ref[...]
        h = jnp.maximum(h, 0.0)

        if norm_flag:
            # torch: feature / (norm(p=2,dim=1,keepdim).clamp(1e-12)**0.5 * 2**0.5)
            s = jnp.sum(h * h, axis=1, keepdims=True)
            h = h * jax.lax.rsqrt(jnp.maximum(jnp.sqrt(s), 1e-12) * 2.0)

        # classifier (weight already l2-normalized & lane-padded in wrapper)
        out = jnp.dot(h, wc_ref[...],
                      preferred_element_type=jnp.float32) + bc_ref[...]

        emb_ref[0] = h                                        # (bB, 512)
        out_ref[0] = out                                      # (bB, 128) lane-dense


# ----------------------------------------------------------------------------
# Wrapper
# ----------------------------------------------------------------------------
def _gelu_dtype_for_device():
    # bf16 VPU/EUP exists on v6e/v7x; keep f32 elsewhere (v5e and older).
    try:
        kind = jax.devices()[0].device_kind.lower()
    except Exception:
        return jnp.float32
    if ("v6" in kind) or ("v7" in kind) or ("tpu7" in kind):
        return jnp.bfloat16
    return jnp.float32


def _round_up(x, m):
    return ((x + m - 1) // m) * m


def fas_model_adapt_forward(x_nchw, params, norm_flag=True, patch_size=16,
                            patch_tile=512, batch_block=8):
    B, C, H, W = x_nchw.shape
    nh, nw = H // patch_size, W // patch_size
    N = nh * nw
    P = C * patch_size * patch_size
    D = params["wp"].shape[1]

    # ---- patch extraction in bf16 (halves the XLA transpose HBM traffic) ----
    # TODO(synk): fold this reorder upstream into the data pipeline.
    xb = x_nchw.astype(jnp.bfloat16)
    patches = xb.reshape(B, C, nh, patch_size, nw, patch_size)
    patches = patches.transpose(0, 2, 4, 1, 3, 5).reshape(B, N, P)

    # ---- patch-axis tiling: tn multiple of 16, N padded to multiple of tn ---
    tile = max(16, (patch_tile // 16) * 16)
    if N <= tile:
        tn = _round_up(N, 16)
        n_pad = tn
    else:
        tn = tile
        n_pad = _round_up(N, tn)
    nk = n_pad // tn

    # ---- batch-axis blocking ------------------------------------------------
    bB = max(1, min(batch_block, B))
    b_pad = _round_up(B, bB)
    nb = b_pad // bB

    if (b_pad != B) or (n_pad != N):
        patches = jnp.pad(patches, ((0, b_pad - B), (0, n_pad - N), (0, 0)))

    wp = params["wp"].astype(jnp.bfloat16)
    w1 = params["w1"].astype(jnp.bfloat16)

    # classifier weight: torch l2_norm(weight, axis=0) normalizes each input-
    # feature column across the 2 class outputs. wc is stored as weight.T
    # ([512, 2]), so that is axis=1 here. Parameter-only -> precompute, and
    # pad to 128 output lanes for a lane-dense MXU result / unmasked store.
    wc = params["wc"].astype(jnp.float32)
    if norm_flag:
        wc = wc / jnp.sqrt(jnp.sum(wc * wc, axis=1, keepdims=True))
    ncls = wc.shape[1]
    wc_pad = jnp.zeros((wc.shape[0], 128), jnp.float32).at[:, :ncls].set(wc)
    bc_pad = jnp.zeros((1, 128), jnp.float32).at[:, :ncls].set(params["bc"])

    gelu_dtype = _gelu_dtype_for_device()

    kernel = partial(fas_fused_kernel, norm_flag=norm_flag, inv_n=1.0 / N,
                     n_patches=N, needs_mask=(n_pad != N), gelu_dtype=gelu_dtype)

    out_pad, emb = pl.pallas_call(
        kernel,
        out_shape=(
            jax.ShapeDtypeStruct((nb, bB, 128), jnp.float32),
            jax.ShapeDtypeStruct((nb, bB, 512), jnp.float32),
        ),
        grid_spec=pltpu.PrefetchScalarGridSpec(
            num_scalar_prefetch=0,
            grid=(nb, nk),
            in_specs=[
                pl.BlockSpec((bB, tn, P), lambda b, k: (b, k, 0)),   # patches
                pl.BlockSpec((P, D), lambda b, k: (0, 0)),           # wp (resident)
                pl.BlockSpec((1, D), lambda b, k: (0, 0)),           # bp
                pl.BlockSpec((D, 512), lambda b, k: (0, 0)),         # w1 (resident)
                pl.BlockSpec((1, 512), lambda b, k: (0, 0)),         # b1
                pl.BlockSpec((512, 128), lambda b, k: (0, 0)),       # wc (padded)
                pl.BlockSpec((1, 128), lambda b, k: (0, 0)),         # bc (padded)
            ],
            out_specs=(
                pl.BlockSpec((1, bB, 128), lambda b, k: (b, 0, 0)),  # logits
                pl.BlockSpec((1, bB, 512), lambda b, k: (b, 0, 0)),  # feature
            ),
            scratch_shapes=[pltpu.VMEM((bB, D), jnp.float32)],       # pool accum
        ),
        compiler_params=pltpu.CompilerParams(
            dimension_semantics=("parallel", "arbitrary"),  # image blocks across TCs
            vmem_limit_bytes=32 * 1024 * 1024,
        ),
    )(patches, wp, params["bp"], w1, params["b1"], wc_pad, bc_pad)

    classifier_out = out_pad.reshape(b_pad, 128)[:B, :ncls]
    feature = emb.reshape(b_pad, 512)[:B, :]

    # TODO(synk): gamma/beta adapter loss of the third-party ViT backbone is
    # external code not provided; total_loss is returned as 0.0.
    total_loss = jnp.asarray(0.0, jnp.float32)
    return classifier_out, feature, total_loss


# ----------------------------------------------------------------------------
# Pure-JAX reference (same bf16 casts / GELU dtype as the kernel) + param init
# ----------------------------------------------------------------------------
def fas_reference(x_nchw, params, norm_flag=True, patch_size=16,
                  gelu_dtype=jnp.float32):
    B, C, H, W = x_nchw.shape
    nh, nw = H // patch_size, W // patch_size
    N = nh * nw
    P = C * patch_size * patch_size
    patches = (x_nchw.astype(jnp.bfloat16).astype(jnp.float32)
               .reshape(B, C, nh, patch_size, nw, patch_size)
               .transpose(0, 2, 4, 1, 3, 5).reshape(B, N, P))
    wp = params["wp"].astype(jnp.bfloat16).astype(jnp.float32)
    tok = patches @ wp + params["bp"]
    c = math.sqrt(2.0 / math.pi)
    t = tok.astype(gelu_dtype)
    tok = (0.5 * t * (1.0 + jnp.tanh(c * (t + 0.044715 * t ** 3)))
           ).astype(jnp.float32)
    feat = tok.mean(axis=1)
    w1 = params["w1"].astype(jnp.bfloat16).astype(jnp.float32)
    h = jnp.maximum(
        feat.astype(jnp.bfloat16).astype(jnp.float32) @ w1 + params["b1"], 0.0)
    if norm_flag:
        nrm = jnp.sqrt(jnp.sum(h * h, axis=1, keepdims=True))
        h = h / (jnp.sqrt(jnp.maximum(nrm, 1e-12)) * math.sqrt(2.0))
    wc = params["wc"]
    if norm_flag:
        wc = wc / jnp.sqrt(jnp.sum(wc * wc, axis=1, keepdims=True))
    out = h @ wc + params["bc"]
    return out, h


def init_params(key):
    k_p, k_1, k_c = jax.random.split(key, 3)
    P = 3 * 16 * 16        # flattened patch dim = 768
    D = 768                # ViT-base embed dim
    return {
        # backbone stand-in patch-embed
        "wp": (0.02 * jax.random.normal(k_p, (P, D))).astype(jnp.float32),
        "bp": jnp.zeros((1, D), jnp.float32),
        # feature_embedder: Linear(768, 512), weight ~ N(0, 0.005), bias = 0.1
        "w1": (0.005 * jax.random.normal(k_1, (768, 512))).astype(jnp.float32),
        "b1": jnp.full((1, 512), 0.1, jnp.float32),
        # classifier: Linear(512, 2), weight ~ N(0, 0.01), bias = 0
        # stored transposed ([in, out]) for the in-kernel matmul
        "wc": (0.01 * jax.random.normal(k_c, (512, 2))).astype(jnp.float32),
        "bc": jnp.zeros((1, 2), jnp.float32),
    }


if __name__ == "__main__":
    key = jax.random.PRNGKey(0)
    k_x, k_w = jax.random.split(key)

    # B=3, C=3, 112x112 -> 7x7 = 49 patches: N is not a multiple of 16, so the
    # padded/masked patch path is exercised; B=3 exercises batch-block padding.
    x = jax.random.normal(k_x, (3, 3, 112, 112), jnp.float32)
    params = init_params(k_w)

    gelu_dtype = _gelu_dtype_for_device()
    ref_out, ref_feat = fas_reference(x, params, norm_flag=True,
                                      gelu_dtype=gelu_dtype)

    # 1) default config: single padded patch tile (tn=64, nk=1), bB=3
    out1, feat1, loss1 = fas_model_adapt_forward(x, params, norm_flag=True)
    # 2) small tiles: multi-tile accumulation (tn=16, nk=4) + batch padding
    #    (bB=2 -> B padded 3->4), exercising both masked paths.
    out2, feat2, loss2 = fas_model_adapt_forward(
        x, params, norm_flag=True, patch_tile=16, batch_block=2)
    jax.block_until_ready((out1, feat1, loss1, out2, feat2, loss2))

    assert out1.shape == (3, 2) and feat1.shape == (3, 512)
    assert out2.shape == (3, 2) and feat2.shape == (3, 512)
    assert loss1.shape == ()

    np.testing.assert_allclose(np.asarray(out1), np.asarray(ref_out),
                               rtol=2e-2, atol=2e-2)
    np.testing.assert_allclose(np.asarray(feat1), np.asarray(ref_feat),
                               rtol=2e-2, atol=2e-2)
    np.testing.assert_allclose(np.asarray(out2), np.asarray(ref_out),
                               rtol=2e-2, atol=2e-2)
    np.testing.assert_allclose(np.asarray(feat2), np.asarray(ref_feat),
                               rtol=2e-2, atol=2e-2)
    print("KERNEL_OK")
</pallas_src>

<mosaic_0001>
module attributes {stable_mosaic.version = 11 : i64} {
  func.func @fas_fused_kernel(%arg0: i32, %arg1: i32, %arg2: memref<3x64x768xbf16, #tpu.memory_space<vmem>>, %arg3: memref<768x768xbf16, #tpu.memory_space<vmem>>, %arg4: memref<1x768xf32, #tpu.memory_space<vmem>>, %arg5: memref<768x512xbf16, #tpu.memory_space<vmem>>, %arg6: memref<1x512xf32, #tpu.memory_space<vmem>>, %arg7: memref<512x128xf32, #tpu.memory_space<vmem>>, %arg8: memref<1x128xf32, #tpu.memory_space<vmem>>, %arg9: memref<1x3x128xf32, #tpu.memory_space<vmem>>, %arg10: memref<1x3x512xf32, #tpu.memory_space<vmem>>, %arg11: memref<3x768xf32, #tpu.memory_space<vmem>>) attributes {dimension_semantics = [#tpu.dimension_semantics<parallel>, #tpu.dimension_semantics<arbitrary>], iteration_bounds = array<i64: 1, 1>, scalar_prefetch = 0 : i64, scratch_operands = 1 : i64, tpu.core_type = #tpu.core_type<tc>, window_params = [{transform_indices = @transform_0, window_bounds = array<i64: 3, 64, 768>}, {pipeline_mode = #tpu.pipeline_mode<synchronous>, transform_indices = @transform_1, window_bounds = array<i64: 768, 768>}, {pipeline_mode = #tpu.pipeline_mode<synchronous>, transform_indices = @transform_2, window_bounds = array<i64: 1, 768>}, {pipeline_mode = #tpu.pipeline_mode<synchronous>, transform_indices = @transform_3, window_bounds = array<i64: 768, 512>}, {pipeline_mode = #tpu.pipeline_mode<synchronous>, transform_indices = @transform_4, window_bounds = array<i64: 1, 512>}, {pipeline_mode = #tpu.pipeline_mode<synchronous>, transform_indices = @transform_5, window_bounds = array<i64: 512, 128>}, {pipeline_mode = #tpu.pipeline_mode<synchronous>, transform_indices = @transform_6, window_bounds = array<i64: 1, 128>}, {transform_indices = @transform_7, window_bounds = array<i64: 1, 3, 128>}, {transform_indices = @transform_8, window_bounds = array<i64: 1, 3, 512>}]} {
    %c0_i32 = arith.constant 0 : i32
    %0 = arith.cmpi eq, %arg1, %c0_i32 : i32
    %1 = arith.extui %0 : i1 to i32
    %c0_i32_0 = arith.constant 0 : i32
    %2 = arith.cmpi ne, %1, %c0_i32_0 : i32
    scf.if %2 {
      %cst_18 = arith.constant 0.000000e+00 : f32
      %41 = vector.broadcast %cst_18 : f32 to vector<3x768xf32>
      %c0_19 = arith.constant 0 : index
      %c0_20 = arith.constant 0 : index
      %42 = vector.load %arg11[%c0_19, %c0_20] : memref<3x768xf32, #tpu.memory_space<vmem>>, vector<3x768xf32>
      tpu.vector_store %arg11[%c0_19, %c0_20], %41 {strides = array<i32>} : memref<3x768xf32, #tpu.memory_space<vmem>>, vector<3x768xf32>,
    } else {
    }
    %c0 = arith.constant 0 : index
    %c0_1 = arith.constant 0 : index
    %c0_2 = arith.constant 0 : index
    %3 = vector.load %arg2[%c0, %c0_1, %c0_2] : memref<3x64x768xbf16, #tpu.memory_space<vmem>>, vector<3x64x768xbf16>
    %4 = vector.shape_cast %3 : vector<3x64x768xbf16> to vector<192x768xbf16>
    %c0_3 = arith.constant 0 : index
    %c0_4 = arith.constant 0 : index
    %5 = vector.load %arg3[%c0_3, %c0_4] : memref<768x768xbf16, #tpu.memory_space<vmem>>, vector<768x768xbf16>
    %cst = arith.constant dense<0.000000e+00> : vector<192x768xf32>
    %6 = tpu.matmul %4, %5, %cst {dimension_numbers = #tpu.dot_dimension_numbers<[1], [0], [0], [1], [0, 0, 1, 1], [], []>} : vector<192x768xbf16>, vector<768x768xbf16>, vector<192x768xf32> -> vector<192x768xf32>
    %c0_5 = arith.constant 0 : index
    %c0_6 = arith.constant 0 : index
    %7 = vector.load %arg4[%c0_5, %c0_6] : memref<1x768xf32, #tpu.memory_space<vmem>>, vector<1x768xf32>
    %8 = vector.broadcast %7 : vector<1x768xf32> to vector<192x768xf32>
    %9 = arith.addf %6, %8 : vector<192x768xf32>
    %cst_7 = arith.constant 5.000000e-01 : f32
    %10 = vector.broadcast %cst_7 : f32 to vector<192x768xf32>
    %11 = arith.mulf %10, %9 : vector<192x768xf32>
    %cst_8 = arith.constant 4.471500e-02 : f32
    %12 = vector.broadcast %cst_8 : f32 to vector<192x768xf32>
    %13 = arith.mulf %12, %9 : vector<192x768xf32>
    %14 = arith.mulf %13, %9 : vector<192x768xf32>
    %15 = arith.mulf %14, %9 : vector<192x768xf32>
    %16 = arith.addf %9, %15 : vector<192x768xf32>
    %cst_9 = arith.constant 0.797884583 : f32
    %17 = vector.broadcast %cst_9 : f32 to vector<192x768xf32>
    %18 = arith.mulf %17, %16 : vector<192x768xf32>
    %19 = math.tanh %18 : vector<192x768xf32>
    %cst_10 = arith.constant 1.000000e+00 : f32
    %20 = vector.broadcast %cst_10 : f32 to vector<192x768xf32>
    %21 = arith.addf %20, %19 : vector<192x768xf32>
    %22 = arith.mulf %11, %21 : vector<192x768xf32>
    %23 = vector.shape_cast %22 : vector<192x768xf32> to vector<3x64x768xf32>
    %24 = tpu.iota {dimensions = array<i32: 1>} : vector<1x64x1xi32>
    %c64_i32 = arith.constant 64 : i32
    %25 = arith.muli %arg1, %c64_i32 : i32
    %26 = vector.broadcast %25 : i32 to vector<1x64x1xi32>
    %27 = arith.addi %24, %26 : vector<1x64x1xi32>
    %c49_i32 = arith.constant 49 : i32
    %28 = vector.broadcast %c49_i32 : i32 to vector<1x64x1xi32>
    %29 = arith.cmpi slt, %27, %28 : vector<1x64x1xi32>
    %30 = arith.extui %29 : vector<1x64x1xi1> to vector<1x64x1xi32>
    %31 = arith.sitofp %30 : vector<1x64x1xi32> to vector<1x64x1xf32>
    %32 = vector.broadcast %31 : vector<1x64x1xf32> to vector<3x64x768xf32>
    %33 = arith.mulf %23, %32 : vector<3x64x768xf32>
    %c0_11 = arith.constant 0 : index
    %c0_12 = arith.constant 0 : index
    %34 = vector.load %arg11[%c0_11, %c0_12] : memref<3x768xf32, #tpu.memory_space<vmem>>, vector<3x768xf32>
    %cst_13 = arith.constant dense<0.000000e+00> : vector<3x768xf32>
    %35 = vector.multi_reduction <add>, %33, %cst_13 [1] : vector<3x64x768xf32> to vector<3x768xf32>
    %36 = arith.addf %34, %35 : vector<3x768xf32>
    %c0_14 = arith.constant 0 : index
    %c0_15 = arith.constant 0 : index
    %37 = vector.load %arg11[%c0_14, %c0_15] : memref<3x768xf32, #tpu.memory_space<vmem>>, vector<3x768xf32>
    tpu.vector_store %arg11[%c0_14, %c0_15], %36 {strides = array<i32>} : memref<3x768xf32, #tpu.memory_space<vmem>>, vector<3x768xf32>,
    %c0_i32_16 = arith.constant 0 : i32
    %38 = arith.cmpi eq, %arg1, %c0_i32_16 : i32
    %39 = arith.extui %38 : i1 to i32
    %c0_i32_17 = arith.constant 0 : i32
    %40 = arith.cmpi ne, %39, %c0_i32_17 : i32
    scf.if %40 {
      %c0_18 = arith.constant 0 : index
      %c0_19 = arith.constant 0 : index
      %41 = vector.load %arg11[%c0_18, %c0_19] : memref<3x768xf32, #tpu.memory_space<vmem>>, vector<3x768xf32>
      %cst_20 = arith.constant 0.0204081628 : f32
      %42 = vector.broadcast %cst_20 : f32 to vector<3x768xf32>
      %43 = arith.mulf %41, %42 : vector<3x768xf32>
      %44 = arith.truncf %43 : vector<3x768xf32> to vector<3x768xbf16>
      %c0_21 = arith.constant 0 : index
      %c0_22 = arith.constant 0 : index
      %45 = vector.load %arg5[%c0_21, %c0_22] : memref<768x512xbf16, #tpu.memory_space<vmem>>, vector<768x512xbf16>
      %cst_23 = arith.constant dense<0.000000e+00> : vector<3x512xf32>
      %46 = tpu.matmul %44, %45, %cst_23 {dimension_numbers = #tpu.dot_dimension_numbers<[1], [0], [0], [1], [0, 0, 1, 1], [], []>} : vector<3x768xbf16>, vector<768x512xbf16>, vector<3x512xf32> -> vector<3x512xf32>
      %c0_24 = arith.constant 0 : index
      %c0_25 = arith.constant 0 : index
      %47 = vector.load %arg6[%c0_24, %c0_25] : memref<1x512xf32, #tpu.memory_space<vmem>>, vector<1x512xf32>
      %48 = vector.broadcast %47 : vector<1x512xf32> to vector<3x512xf32>
      %49 = arith.addf %46, %48 : vector<3x512xf32>
      %cst_26 = arith.constant 0.000000e+00 : f32
      %50 = vector.broadcast %cst_26 : f32 to vector<3x512xf32>
      %51 = arith.maximumf %49, %50 : vector<3x512xf32>
      %52 = arith.mulf %51, %51 : vector<3x512xf32>
      %cst_27 = arith.constant dense<0.000000e+00> : vector<3xf32>
      %53 = vector.multi_reduction <add>, %52, %cst_27 [1] : vector<3x512xf32> to vector<3xf32>
      %54 = vector.shape_cast %53 : vector<3xf32> to vector<3x1xf32>
      %55 = math.sqrt %54 : vector<3x1xf32>
      %cst_28 = arith.constant 9.99999996E-13 : f32
      %56 = vector.broadcast %cst_28 : f32 to vector<3x1xf32>
      %57 = arith.maximumf %55, %56 : vector<3x1xf32>
      %cst_29 = arith.constant 2.000000e+00 : f32
      %58 = vector.broadcast %cst_29 : f32 to vector<3x1xf32>
      %59 = arith.mulf %57, %58 : vector<3x1xf32>
      %60 = math.rsqrt %59 : vector<3x1xf32>
      %61 = vector.broadcast %60 : vector<3x1xf32> to vector<3x512xf32>
      %62 = arith.mulf %51, %61 : vector<3x512xf32>
      %c0_30 = arith.constant 0 : index
      %c0_31 = arith.constant 0 : index
      %63 = vector.load %arg7[%c0_30, %c0_31] : memref<512x128xf32, #tpu.memory_space<vmem>>, vector<512x128xf32>
      %cst_32 = arith.constant dense<0.000000e+00> : vector<3x128xf32>
      %64 = tpu.matmul %62, %63, %cst_32 {dimension_numbers = #tpu.dot_dimension_numbers<[1], [0], [0], [1], [0, 0, 1, 1], [], []>} : vector<3x512xf32>, vector<512x128xf32>, vector<3x128xf32> -> vector<3x128xf32>
      %c0_33 = arith.constant 0 : index
      %c0_34 = arith.constant 0 : index
      %65 = vector.load %arg8[%c0_33, %c0_34] : memref<1x128xf32, #tpu.memory_space<vmem>>, vector<1x128xf32>
      %66 = vector.broadcast %65 : vector<1x128xf32> to vector<3x128xf32>
      %67 = arith.addf %64, %66 : vector<3x128xf32>
      %c0_35 = arith.constant 0 : index
      %c0_36 = arith.constant 0 : index
      %c0_37 = arith.constant 0 : index
      %68 = vector.load %arg10[%c0_35, %c0_36, %c0_37] : memref<1x3x512xf32, #tpu.memory_space<vmem>>, vector<1x3x512xf32>
      %69 = vector.shape_cast %68 : vector<1x3x512xf32> to vector<3x512xf32>
      %70 = vector.shape_cast %62 : vector<3x512xf32> to vector<1x3x512xf32>
      tpu.vector_store %arg10[%c0_35, %c0_36, %c0_37], %70 {strides = array<i32>} : memref<1x3x512xf32, #tpu.memory_space<vmem>>, vector<1x3x512xf32>,
      %c0_38 = arith.constant 0 : index
      %c0_39 = arith.constant 0 : index
      %c0_40 = arith.constant 0 : index
      %71 = vector.load %arg9[%c0_38, %c0_39, %c0_40] : memref<1x3x128xf32, #tpu.memory_space<vmem>>, vector<1x3x128xf32>
      %72 = vector.shape_cast %71 : vector<1x3x128xf32> to vector<3x128xf32>
      %73 = vector.shape_cast %67 : vector<3x128xf32> to vector<1x3x128xf32>
      tpu.vector_store %arg9[%c0_38, %c0_39, %c0_40], %73 {strides = array<i32>} : memref<1x3x128xf32, #tpu.memory_space<vmem>>, vector<1x3x128xf32>,
    } else {
    }
    return
  }
  func.func @transform_0(%arg0: i32, %arg1: i32) -> (i32, i32, i32) {
    %c0_i32 = arith.constant 0 : i32
    %c0_i32_0 = arith.constant 0 : i32
    return %arg0, %arg1, %c0_i32 : i32, i32, i32
  }
  func.func @transform_1(%arg0: i32, %arg1: i32) -> (i32, i32) {
    %c0_i32 = arith.constant 0 : i32
    %c0_i32_0 = arith.constant 0 : i32
    %c0_i32_1 = arith.constant 0 : i32
    return %c0_i32, %c0_i32_0 : i32, i32
  }
  func.func @transform_2(%arg0: i32, %arg1: i32) -> (i32, i32) {
    %c0_i32 = arith.constant 0 : i32
    %c0_i32_0 = arith.constant 0 : i32
    %c0_i32_1 = arith.constant 0 : i32
    return %c0_i32, %c0_i32_0 : i32, i32
  }
  func.func @transform_3(%arg0: i32, %arg1: i32) -> (i32, i32) {
    %c0_i32 = arith.constant 0 : i32
    %c0_i32_0 = arith.constant 0 : i32
    %c0_i32_1 = arith.constant 0 : i32
    return %c0_i32, %c0_i32_0 : i32, i32
  }
  func.func @transform_4(%arg0: i32, %arg1: i32) -> (i32, i32) {
    %c0_i32 = arith.constant 0 : i32
    %c0_i32_0 = arith.constant 0 : i32
    %c0_i32_1 = arith.constant 0 : i32
    return %c0_i32, %c0_i32_0 : i32, i32
  }
  func.func @transform_5(%arg0: i32, %arg1: i32) -> (i32, i32) {
    %c0_i32 = arith.constant 0 : i32
    %c0_i32_0 = arith.constant 0 : i32
    %c0_i32_1 = arith.constant 0 : i32
    return %c0_i32, %c0_i32_0 : i32, i32
  }
  func.func @transform_6(%arg0: i32, %arg1: i32) -> (i32, i32) {
    %c0_i32 = arith.constant 0 : i32
    %c0_i32_0 = arith.constant 0 : i32
    %c0_i32_1 = arith.constant 0 : i32
    return %c0_i32, %c0_i32_0 : i32, i32
  }
  func.func @transform_7(%arg0: i32, %arg1: i32) -> (i32, i32, i32) {
    %c0_i32 = arith.constant 0 : i32
    %c0_i32_0 = arith.constant 0 : i32
    %c0_i32_1 = arith.constant 0 : i32
    return %arg0, %c0_i32, %c0_i32_0 : i32, i32, i32
  }
  func.func @transform_8(%arg0: i32, %arg1: i32) -> (i32, i32, i32) {
    %c0_i32 = arith.constant 0 : i32
    %c0_i32_0 = arith.constant 0 : i32
    %c0_i32_1 = arith.constant 0 : i32
    return %arg0, %c0_i32, %c0_i32_0 : i32, i32, i32
  }
}

</mosaic_0001>

<llo_original>
// kernel: tpu_custom_call.1
$region0: #{tpu_custom_call.1}
  #allocation0 [shape = 'u32[]', space=smem, size = 0x4, offset = 0x4, fixed_abs, tag = 'smem constant byte address 0x4 - core index']
  #allocation1 [shape = 'u32[72,128]{1,0:T(1,128)}', space=vmem, size = 0x9000, scoped, tag = 'internal scratch']
  #allocation2 [shape = 'f32[3,768]{1,0:T(4,128)}', space=vmem, size = 0x3000, scoped, tag = 'scratch operand']
  %s0 = inlined_call_operand.hbm [shape: bf16[3,64,768], index: 0, kind: input, shape index: {}]
  %s1 = inlined_call_operand.hbm [shape: bf16[768,768], index: 1, kind: input, shape index: {}]
  %s2 = inlined_call_operand.hbm [shape: f32[1,768], index: 2, kind: input, shape index: {}]
  %s3 = inlined_call_operand.hbm [shape: bf16[768,512], index: 3, kind: input, shape index: {}]
  %s4 = inlined_call_operand.hbm [shape: f32[1,512], index: 4, kind: input, shape index: {}]
  %s5 = inlined_call_operand.hbm [shape: f32[512,128], index: 5, kind: input, shape index: {}]
  %s6 = inlined_call_operand.hbm [shape: f32[1,128], index: 6, kind: input, shape index: {}]
  %s7 = inlined_call_operand.vmem [shape: f32[1,3,128], index: 7, kind: output, shape index: {0}]
  %s8 = inlined_call_operand.vmem [shape: f32[1,3,512], index: 8, kind: output, shape index: {1}]
  %9 = xla_tuple %s7, %s8
  %s10 = sld [smem:[#allocation0]]
  $region82: #{tpu_custom_call.1} parent=0
    _
  %s12 = ssub.s32 1, %s10
  %s13 = scalar_select 0, %s12, %s10
  $region1: #{tpu_custom_call.1} parent=0
    #allocation3 [shape = 'u8[294912]{0}', space=vmem, size = 0x48000, scoped, tag = 'input window, operand 0, single buffered']
    #allocation4 [shape = 's32[1]{0}', space=sflag, size = 0x4, scoped, tag = 'scoped memory for tpu_custom_call.1']
    #allocation5 [shape = 'u8[1179648]{0}', space=vmem, size = 0x120000, scoped, tag = 'input window, operand 1, single buffered']
    #allocation6 [shape = 's32[1]{0}', space=sflag, size = 0x4, scoped, tag = 'scoped memory for tpu_custom_call.1']
    #allocation7 [shape = 'u8[3072]{0}', space=vmem, size = 0xc00, scoped, tag = 'input window, operand 2, single buffered']
    #allocation8 [shape = 'u8[786432]{0}', space=vmem, size = 0xc0000, scoped, tag = 'input window, operand 3, single buffered']
    #allocation9 [shape = 's32[1]{0}', space=sflag, size = 0x4, scoped, tag = 'scoped memory for tpu_custom_call.1']
    #allocation10 [shape = 'u8[2048]{0}', space=vmem, size = 0x800, scoped, tag = 'input window, operand 4, single buffered']
    #allocation11 [shape = 'u8[262144]{0}', space=vmem, size = 0x40000, scoped, tag = 'input window, operand 5, single buffered']
    #allocation12 [shape = 's32[1]{0}', space=sflag, size = 0x4, scoped, tag = 'scoped memory for tpu_custom_call.1']
    #allocation13 [shape = 'u8[512]{0}', space=vmem, size = 0x400, scoped, tag = 'input window, operand 6, single buffered']
    %14 = vsyncpa [#allocation4], 0
    %15 = vsyncpa [#allocation6], 0
    %16 = vsyncpa [#allocation9], 0
    %17 = vsyncpa [#allocation12], 0
    // Predicated region
    $region2: #{tpu_custom_call.1} parent=1 // pred_check
      _
    $region3: #{tpu_custom_call.1} parent=1 // pred_check_branch
      %19 = sbr.rel (0) target = $region5
    $region4: #{tpu_custom_call.1} parent=1 // pred_region
      %21 = vsyncadd [#allocation4], 0
      %s22 = sshll.u32 %s0, 4
      %s23 = int_to_ptr.hbm [resolvable:$true] %s22
      %s24 = sshll.u32 [#allocation3], 4
      %s25 = int_to_ptr.vmem [resolvable:$true] %s24
      %30 = dma.hbm_to_vmem [thread:$0]  %s23, 9216, %s25, [#allocation4], 384, 384, 24
    $region5: #{tpu_custom_call.1} parent=1 // pred_fallthru
      _
    // Predicated region
    $region6: #{tpu_custom_call.1} parent=1 // pred_check
      _
    $region7: #{tpu_custom_call.1} parent=1 // pred_check_branch
      %32 = sbr.rel (0) target = $region9
    $region8: #{tpu_custom_call.1} parent=1 // pred_region
      %34 = vsyncadd [#allocation6], 0
      %s35 = sshll.u32 %s1, 4
      %s36 = int_to_ptr.hbm [resolvable:$true] %s35
      %s37 = sshll.u32 [#allocation5], 4
      %s38 = int_to_ptr.vmem [resolvable:$true] %s37
      %43 = dma.hbm_to_vmem [thread:$0]  %s36, 36864, %s38, [#allocation6], 384, 384, 24
    $region9: #{tpu_custom_call.1} parent=1 // pred_fallthru
      _
    // Predicated region
    $region10: #{tpu_custom_call.1} parent=1 // pred_check
      _
    $region11: #{tpu_custom_call.1} parent=1 // pred_check_branch
      %45 = sbr.rel (0) target = $region13
    $region12: #{tpu_custom_call.1} parent=1 // pred_region
      %47 = vsyncadd [#allocation6], 0
      %s49 = sshll.u32 %s2, 4
      %s50 = int_to_ptr.hbm [resolvable:$true] %s49
      %s51 = sshll.u32 [#allocation7], 4
      %s52 = int_to_ptr.vmem [resolvable:$true] %s51
      %54 = dma.hbm_to_vmem [thread:$0]  %s50, 96, %s52, [#allocation6]
    $region13: #{tpu_custom_call.1} parent=1 // pred_fallthru
      _
    // Predicated region
    $region14: #{tpu_custom_call.1} parent=1 // pred_check
      _
    $region15: #{tpu_custom_call.1} parent=1 // pred_check_branch
      %56 = sbr.rel (0) target = $region17
    $region16: #{tpu_custom_call.1} parent=1 // pred_region
      %58 = vsyncadd [#allocation9], 0
      %s59 = sshll.u32 %s3, 4
      %s60 = int_to_ptr.hbm [resolvable:$true] %s59
      %s61 = sshll.u32 [#allocation8], 4
      %s62 = int_to_ptr.vmem [resolvable:$true] %s61
      %67 = dma.hbm_to_vmem [thread:$0]  %s60, 24576, %s62, [#allocation9], 256, 256, 16
    $region17: #{tpu_custom_call.1} parent=1 // pred_fallthru
      _
    // Predicated region
    $region18: #{tpu_custom_call.1} parent=1 // pred_check
      _
    $region19: #{tpu_custom_call.1} parent=1 // pred_check_branch
      %69 = sbr.rel (0) target = $region21
    $region20: #{tpu_custom_call.1} parent=1 // pred_region
      %71 = vsyncadd [#allocation9], 0
      %s73 = sshll.u32 %s4, 4
      %s74 = int_to_ptr.hbm [resolvable:$true] %s73
      %s75 = sshll.u32 [#allocation10], 4
      %s76 = int_to_ptr.vmem [resolvable:$true] %s75
      %78 = dma.hbm_to_vmem [thread:$0]  %s74, 64, %s76, [#allocation9]
    $region21: #{tpu_custom_call.1} parent=1 // pred_fallthru
      _
    // Predicated region
    $region22: #{tpu_custom_call.1} parent=1 // pred_check
      _
    $region23: #{tpu_custom_call.1} parent=1 // pred_check_branch
      %80 = sbr.rel (0) target = $region25
    $region24: #{tpu_custom_call.1} parent=1 // pred_region
      %82 = vsyncadd [#allocation12], 0
      %s83 = sshll.u32 %s5, 4
      %s84 = int_to_ptr.hbm [resolvable:$true] %s83
      %s85 = sshll.u32 [#allocation11], 4
      %s86 = int_to_ptr.vmem [resolvable:$true] %s85
      %91 = dma.hbm_to_vmem [thread:$0]  %s84, 8192, %s86, [#allocation12], 128, 128, 8
    $region25: #{tpu_custom_call.1} parent=1 // pred_fallthru
      _
    // Predicated region
    $region26: #{tpu_custom_call.1} parent=1 // pred_check
      _
    $region27: #{tpu_custom_call.1} parent=1 // pred_check_branch
      %93 = sbr.rel (0) target = $region29
    $region28: #{tpu_custom_call.1} parent=1 // pred_region
      %95 = vsyncadd [#allocation12], 0
      %s97 = sshll.u32 %s6, 4
      %s98 = int_to_ptr.hbm [resolvable:$true] %s97
      %s99 = sshll.u32 [#allocation13], 4
      %s100 = int_to_ptr.vmem [resolvable:$true] %s99
      %102 = dma.hbm_to_vmem [thread:$0]  %s98, 16, %s100, [#allocation12]
    $region29: #{tpu_custom_call.1} parent=1 // pred_fallthru
      _
    // Predicated region
    $region30: #{tpu_custom_call.1} parent=1 // pred_check
      _
    $region31: #{tpu_custom_call.1} parent=1 // pred_check_branch
      %104 = sbr.rel (0) target = $region33
    $region32: #{tpu_custom_call.1} parent=1 // pred_region
      %106 = dma.done [#allocation4], 9216
    $region33: #{tpu_custom_call.1} parent=1 // pred_fallthru
      _
    // Predicated region
    $region34: #{tpu_custom_call.1} parent=1 // pred_check
      _
    $region35: #{tpu_custom_call.1} parent=1 // pred_check_branch
      %108 = sbr.rel (0) target = $region37
    $region36: #{tpu_custom_call.1} parent=1 // pred_region
      %110 = dma.done [#allocation6], 36864
    $region37: #{tpu_custom_call.1} parent=1 // pred_fallthru
      _
    // Predicated region
    $region38: #{tpu_custom_call.1} parent=1 // pred_check
      _
    $region39: #{tpu_custom_call.1} parent=1 // pred_check_branch
      %112 = sbr.rel (0) target = $region41
    $region40: #{tpu_custom_call.1} parent=1 // pred_region
      %114 = dma.done [#allocation6], 96
    $region41: #{tpu_custom_call.1} parent=1 // pred_fallthru
      _
    // Predicated region
    $region42: #{tpu_custom_call.1} parent=1 // pred_check
      _
    $region43: #{tpu_custom_call.1} parent=1 // pred_check_branch
      %116 = sbr.rel (0) target = $region45
    $region44: #{tpu_custom_call.1} parent=1 // pred_region
      %118 = dma.done [#allocation9], 24576
    $region45: #{tpu_custom_call.1} parent=1 // pred_fallthru
      _
    // Predicated region
    $region46: #{tpu_custom_call.1} parent=1 // pred_check
      _
    $region47: #{tpu_custom_call.1} parent=1 // pred_check_branch
      %120 = sbr.rel (0) target = $region49
    $region48: #{tpu_custom_call.1} parent=1 // pred_region
      %122 = dma.done [#allocation9], 64
    $region49: #{tpu_custom_call.1} parent=1 // pred_fallthru
      _
    // Predicated region
    $region50: #{tpu_custom_call.1} parent=1 // pred_check
      _
    $region51: #{tpu_custom_call.1} parent=1 // pred_check_branch
      %124 = sbr.rel (0) target = $region53
    $region52: #{tpu_custom_call.1} parent=1 // pred_region
      %126 = dma.done [#allocation12], 8192
    $region53: #{tpu_custom_call.1} parent=1 // pred_fallthru
      _
    // Predicated region
    $region54: #{tpu_custom_call.1} parent=1 // pred_check
      _
    $region55: #{tpu_custom_call.1} parent=1 // pred_check_branch
      %128 = sbr.rel (0) target = $region57
    $region56: #{tpu_custom_call.1} parent=1 // pred_region
      %130 = dma.done [#allocation12], 16
    $region57: #{tpu_custom_call.1} parent=1 // pred_fallthru
      _
    %p131 = scmp.eq.s32.totalorder 0, 0
    // Predicated region
    $region58: #{tpu_custom_call.1} parent=1 // pred_check
      %p132 = pneg %p131
    $region59: #{tpu_custom_call.1} parent=1 // pred_check_branch
      %134 = sbr.rel (%p132) target = $region61
    $region60: #{tpu_custom_call.1} parent=1 // pred_region
      %135 = vst [vmem:[#allocation2] sm:$0x77] 0.0
      %136 = vst [vmem:[#allocation2 + $0x8] sm:$0x77] 0.0
      %137 = vst [vmem:[#allocation2 + $0x10] sm:$0x77] 0.0
    $region61: #{tpu_custom_call.1} parent=1 // pred_fallthru
      _
    %v138 = vld [vmem:[#allocation3] sm:$0xff]
    %v139 = vld [vmem:[#allocation3 + $0x8] sm:$0xff]
    %v140 = vld [vmem:[#allocation3 + $0x10] sm:$0xff]
    %v141 = vld [vmem:[#allocation3 + $0x18] sm:$0xff]
    %v142 = vld [vmem:[#allocation3 + $0x20] sm:$0xff]
    %v143 = vld [vmem:[#allocation3 + $0x28] sm:$0xff]
    %v144 = vld [vmem:[#allocation3 + $0x30] sm:$0xff]
    %v145 = vld [vmem:[#allocation3 + $0x38] sm:$0xff]
    %v146 = vld [vmem:[#allocation3 + $0x40] sm:$0xff]
    %v147 = vld [vmem:[#allocation3 + $0x48] sm:$0xff]
    %v148 = vld [vmem:[#allocation3 + $0x50] sm:$0xff]
    %v149 = vld [vmem:[#allocation3 + $0x58] sm:$0xff]
    %v150 = vld [vmem:[#allocation3 + $0x60] sm:$0xff]
    %v151 = vld [vmem:[#allocation3 + $0x68] sm:$0xff]
    %v152 = vld [vmem:[#allocation3 + $0x70] sm:$0xff]
    %v153 = vld [vmem:[#allocation3 + $0x78] sm:$0xff]
    %v154 = vld [vmem:[#allocation3 + $0x80] sm:$0xff]
    %v155 = vld [vmem:[#allocation3 + $0x88] sm:$0xff]
    %v156 = vld [vmem:[#allocation3 + $0x90] sm:$0xff]
    %v157 = vld [vmem:[#allocation3 + $0x98] sm:$0xff]
    %v158 = vld [vmem:[#allocation3 + $0xa0] sm:$0xff]
    %v159 = vld [vmem:[#allocation3 + $0xa8] sm:$0xff]
    %v160 = vld [vmem:[#allocation3 + $0xb0] sm:$0xff]
    %v161 = vld [vmem:[#allocation3 + $0xb8] sm:$0xff]
    %v162 = vld [vmem:[#allocation3 + $0xc0] sm:$0xff]
    %v163 = vld [vmem:[#allocation3 + $0xc8] sm:$0xff]
    %v164 = vld [vmem:[#allocation3 + $0xd0] sm:$0xff]
    %v165 = vld [vmem:[#allocation3 + $0xd8] sm:$0xff]
    %v166 = vld [vmem:[#allocation3 + $0xe0] sm:$0xff]
    %v167 = vld [vmem:[#allocation3 + $0xe8] sm:$0xff]
    %v168 = vld [vmem:[#allocation3 + $0xf0] sm:$0xff]
    %v169 = vld [vmem:[#allocation3 + $0xf8] sm:$0xff]
    %v170 = vld [vmem:[#allocation3 + $0x100] sm:$0xff]
    %v171 = vld [vmem:[#allocation3 + $0x108] sm:$0xff]
    %v172 = vld [vmem:[#allocation3 + $0x110] sm:$0xff]
    %v173 = vld [vmem:[#allocation3 + $0x118] sm:$0xff]
    %v174 = vld [vmem:[#allocation3 + $0x120] sm:$0xff]
    %v175 = vld [vmem:[#allocation3 + $0x128] sm:$0xff]
    %v176 = vld [vmem:[#allocation3 + $0x130] sm:$0xff]
    %v177 = vld [vmem:[#allocation3 + $0x138] sm:$0xff]
    %v178 = vld [vmem:[#allocation3 + $0x140] sm:$0xff]
    %v179 = vld [vmem:[#allocation3 + $0x148] sm:$0xff]
    %v180 = vld [vmem:[#allocation3 + $0x150] sm:$0xff]
    %v181 = vld [vmem:[#allocation3 + $0x158] sm:$0xff]
    %v182 = vld [vmem:[#allocation3 + $0x160] sm:$0xff]
    %v183 = vld [vmem:[#allocation3 + $0x168] sm:$0xff]
    %v184 = vld [vmem:[#allocation3 + $0x170] sm:$0xff]
    %v185 = vld [vmem:[#allocation3 + $0x178] sm:$0xff]
    %v186 = vld [vmem:[#allocation3 + $0x180] sm:$0xff]
    %v187 = vld [vmem:[#allocation3 + $0x188] sm:$0xff]
    %v188 = vld [vmem:[#allocation3 + $0x190] sm:$0xff]
    %v189 = vld [vmem:[#allocation3 + $0x198] sm:$0xff]
    %v190 = vld [vmem:[#allocation3 + $0x1a0] sm:$0xff]
    %v191 = vld [vmem:[#allocation3 + $0x1a8] sm:$0xff]
    %v192 = vld [vmem:[#allocation3 + $0x1b0] sm:$0xff]
    %v193 = vld [vmem:[#allocation3 + $0x1b8] sm:$0xff]
    %v194 = vld [vmem:[#allocation3 + $0x1c0] sm:$0xff]
    %v195 = vld [vmem:[#allocation3 + $0x1c8] sm:$0xff]
    %v196 = vld [vmem:[#allocation3 + $0x1d0] sm:$0xff]
    %v197 = vld [vmem:[#allocation3 + $0x1d8] sm:$0xff]
    %v198 = vld [vmem:[#allocation3 + $0x1e0] sm:$0xff]
    %v199 = vld [vmem:[#allocation3 + $0x1e8] sm:$0xff]
    %v200 = vld [vmem:[#allocation3 + $0x1f0] sm:$0xff]
    %v201 = vld [vmem:[#allocation3 + $0x1f8] sm:$0xff]
    %v202 = vld [vmem:[#allocation3 + $0x200] sm:$0xff]
    %v203 = vld [vmem:[#allocation3 + $0x208] sm:$0xff]
    %v204 = vld [vmem:[#allocation3 + $0x210] sm:$0xff]
    %v205 = vld [vmem:[#allocation3 + $0x218] sm:$0xff]
    %v206 = vld [vmem:[#allocation3 + $0x220] sm:$0xff]
    %v207 = vld [vmem:[#allocation3 + $0x228] sm:$0xff]
    %v208 = vld [vmem:[#allocation3 + $0x230] sm:$0xff]
    %v209 = vld [vmem:[#allocation3 + $0x238] sm:$0xff]
    %v210 = vld [vmem:[#allocation5] sm:$0xff]
    %v211 = vld [vmem:[#allocation5 + $0x8] sm:$0xff]
    %v212 = vld [vmem:[#allocation5 + $0x10] sm:$0xff]
    %v213 = vld [vmem:[#allocation5 + $0x18] sm:$0xff]
    %v214 = vld [vmem:[#allocation5 + $0x20] sm:$0xff]
    %v215 = vld [vmem:[#allocation5 + $0x28] sm:$0xff]
    %v216 = vld [vmem:[#allocation5 + $0x30] sm:$0xff]
    %v217 = vld [vmem:[#allocation5 + $0x38] sm:$0xff]
    %v218 = vld [vmem:[#allocation5 + $0x40] sm:$0xff]
    %v219 = vld [vmem:[#allocation5 + $0x48] sm:$0xff]
    %v220 = vld [vmem:[#allocation5 + $0x50] sm:$0xff]
    %v221 = vld [vmem:[#allocation5 + $0x58] sm:$0xff]
    %v222 = vld [vmem:[#allocation5 + $0x60] sm:$0xff]
    %v223 = vld [vmem:[#allocation5 + $0x68] sm:$0xff]
    %v224 = vld [vmem:[#allocation5 + $0x70] sm:$0xff]
    %v225 = vld [vmem:[#allocation5 + $0x78] sm:$0xff]
    %v226 = vld [vmem:[#allocation5 + $0x80] sm:$0xff]
    %v227 = vld [vmem:[#allocation5 + $0x88] sm:$0xff]
    %v228 = vld [vmem:[#allocation5 + $0x90] sm:$0xff]
    %v229 = vld [vmem:[#allocation5 + $0x98] sm:$0xff]
    %v230 = vld [vmem:[#allocation5 + $0xa0] sm:$0xff]
    %v231 = vld [vmem:[#allocation5 + $0xa8] sm:$0xff]
    %v232 = vld [vmem:[#allocation5 + $0xb0] sm:$0xff]
    %v233 = vld [vmem:[#allocation5 + $0xb8] sm:$0xff]
    %v234 = vld [vmem:[#allocation5 + $0xc0] sm:$0xff]
    %v235 = vld [vmem:[#allocation5 + $0xc8] sm:$0xff]
    %v236 = vld [vmem:[#allocation5 + $0xd0] sm:$0xff]
    %v237 = vld [vmem:[#allocation5 + $0xd8] sm:$0xff]
    %v238 = vld [vmem:[#allocation5 + $0xe0] sm:$0xff]
    %v239 = vld [vmem:[#allocation5 + $0xe8] sm:$0xff]
    %v240 = vld [vmem:[#allocation5 + $0xf0] sm:$0xff]
    %v241 = vld [vmem:[#allocation5 + $0xf8] sm:$0xff]
    %v242 = vld [vmem:[#allocation5 + $0x100] sm:$0xff]
    %v243 = vld [vmem:[#allocation5 + $0x108] sm:$0xff]
    %v244 = vld [vmem:[#allocation5 + $0x110] sm:$0xff]
    %v245 = vld [vmem:[#allocation5 + $0x118] sm:$0xff]
    %v246 = vld [vmem:[#allocation5 + $0x120] sm:$0xff]
    %v247 = vld [vmem:[#allocation5 + $0x128] sm:$0xff]
    %v248 = vld [vmem:[#allocation5 + $0x130] sm:$0xff]
    %v249 = vld [vmem:[#allocation5 + $0x138] sm:$0xff]
    %v250 = vld [vmem:[#allocation5 + $0x140] sm:$0xff]
    %v251 = vld [vmem:[#allocation5 + $0x148] sm:$0xff]
    %v252 = vld [vmem:[#allocation5 + $0x150] sm:$0xff]
    %v253 = vld [vmem:[#allocation5 + $0x158] sm:$0xff]
    %v254 = vld [vmem:[#allocation5 + $0x160] sm:$0xff]
    %v255 = vld [vmem:[#allocation5 + $0x168] sm:$0xff]
    %v256 = vld [vmem:[#allocation5 + $0x170] sm:$0xff]
    %v257 = vld [vmem:[#allocation5 + $0x178] sm:$0xff]
    %v258 = vld [vmem:[#allocation5 + $0x180] sm:$0xff]
    %v259 = vld [vmem:[#allocation5 + $0x188] sm:$0xff]
    %v260 = vld [vmem:[#allocation5 + $0x190] sm:$0xff]
    %v261 = vld [vmem:[#allocation5 + $0x198] sm:$0xff]
    %v262 = vld [vmem:[#allocation5 + $0x1a0] sm:$0xff]
    %v263 = vld [vmem:[#allocation5 + $0x1a8] sm:$0xff]
    %v264 = vld [vmem:[#allocation5 + $0x1b0] sm:$0xff]
    %v265 = vld [vmem:[#allocation5 + $0x1b8] sm:$0xff]
    %v266 = vld [vmem:[#allocation5 + $0x1c0] sm:$0xff]
    %v267 = vld [vmem:[#allocation5 + $0x1c8] sm:$0xff]
    %v268 = vld [vmem:[#allocation5 + $0x1d0] sm:$0xff]
    %v269 = vld [vmem:[#allocation5 + $0x1d8] sm:$0xff]
    %v270 = vld [vmem:[#allocation5 + $0x1e0] sm:$0xff]
    %v271 = vld [vmem:[#allocation5 + $0x1e8] sm:$0xff]
    %v272 = vld [vmem:[#allocation5 + $0x1f0] sm:$0xff]
    %v273 = vld [vmem:[#allocation5 + $0x1f8] sm:$0xff]
    %v274 = vld [vmem:[#allocation5 + $0x200] sm:$0xff]
    %v275 = vld [vmem:[#allocation5 + $0x208] sm:$0xff]
    %v276 = vld [vmem:[#allocation5 + $0x210] sm:$0xff]
    %v277 = vld [vmem:[#allocation5 + $0x218] sm:$0xff]
    %v278 = vld [vmem:[#allocation5 + $0x220] sm:$0xff]
    %v279 = vld [vmem:[#allocation5 + $0x228] sm:$0xff]
    %v280 = vld [vmem:[#allocation5 + $0x230] sm:$0xff]
    %v281 = vld [vmem:[#allocation5 + $0x238] sm:$0xff]
    %v282 = vld [vmem:[#allocation5 + $0x240] sm:$0xff]
    %v283 = vld [vmem:[#allocation5 + $0x248] sm:$0xff]
    %v284 = vld [vmem:[#allocation5 + $0x250] sm:$0xff]
    %v285 = vld [vmem:[#allocation5 + $0x258] sm:$0xff]
    %v286 = vld [vmem:[#allocation5 + $0x260] sm:$0xff]
    %v287 = vld [vmem:[#allocation5 + $0x268] sm:$0xff]
    %v288 = vld [vmem:[#allocation5 + $0x270] sm:$0xff]
    %v289 = vld [vmem:[#allocation5 + $0x278] sm:$0xff]
    %v290 = vld [vmem:[#allocation5 + $0x280] sm:$0xff]
    %v291 = vld [vmem:[#allocation5 + $0x288] sm:$0xff]
    %v292 = vld [vmem:[#allocation5 + $0x290] sm:$0xff]
    %v293 = vld [vmem:[#allocation5 + $0x298] sm:$0xff]
    %v294 = vld [vmem:[#allocation5 + $0x2a0] sm:$0xff]
    %v295 = vld [vmem:[#allocation5 + $0x2a8] sm:$0xff]
    %v296 = vld [vmem:[#allocation5 + $0x2b0] sm:$0xff]
    %v297 = vld [vmem:[#allocation5 + $0x2b8] sm:$0xff]
    %v298 = vld [vmem:[#allocation5 + $0x2c0] sm:$0xff]
    %v299 = vld [vmem:[#allocation5 + $0x2c8] sm:$0xff]
    %v300 = vld [vmem:[#allocation5 + $0x2d0] sm:$0xff]
    %v301 = vld [vmem:[#allocation5 + $0x2d8] sm:$0xff]
    %v302 = vld [vmem:[#allocation5 + $0x2e0] sm:$0xff]
    %v303 = vld [vmem:[#allocation5 + $0x2e8] sm:$0xff]
    %v304 = vld [vmem:[#allocation5 + $0x2f0] sm:$0xff]
    %v305 = vld [vmem:[#allocation5 + $0x2f8] sm:$0xff]
    %v306 = vld [vmem:[#allocation5 + $0x300] sm:$0xff]
    %v307 = vld [vmem:[#allocation5 + $0x308] sm:$0xff]
    %v308 = vld [vmem:[#allocation5 + $0x310] sm:$0xff]
    %v309 = vld [vmem:[#allocation5 + $0x318] sm:$0xff]
    %v310 = vld [vmem:[#allocation5 + $0x320] sm:$0xff]
    %v311 = vld [vmem:[#allocation5 + $0x328] sm:$0xff]
    %v312 = vld [vmem:[#allocation5 + $0x330] sm:$0xff]
    %v313 = vld [vmem:[#allocation5 + $0x338] sm:$0xff]
    %v314 = vld [vmem:[#allocation5 + $0x340] sm:$0xff]
    %v315 = vld [vmem:[#allocation5 + $0x348] sm:$0xff]
    %v316 = vld [vmem:[#allocation5 + $0x350] sm:$0xff]
    %v317 = vld [vmem:[#allocation5 + $0x358] sm:$0xff]
    %v318 = vld [vmem:[#allocation5 + $0x360] sm:$0xff]
    %v319 = vld [vmem:[#allocation5 + $0x368] sm:$0xff]
    %v320 = vld [vmem:[#allocation5 + $0x370] sm:$0xff]
    %v321 = vld [vmem:[#allocation5 + $0x378] sm:$0xff]
    %v322 = vld [vmem:[#allocation5 + $0x380] sm:$0xff]
    %v323 = vld [vmem:[#allocation5 + $0x388] sm:$0xff]
    %v324 = vld [vmem:[#allocation5 + $0x390] sm:$0xff]
    %v325 = vld [vmem:[#allocation5 + $0x398] sm:$0xff]
    %v326 = vld [vmem:[#allocation5 + $0x3a0] sm:$0xff]
    %v327 = vld [vmem:[#allocation5 + $0x3a8] sm:$0xff]
    %v328 = vld [vmem:[#allocation5 + $0x3b0] sm:$0xff]
    %v329 = vld [vmem:[#allocation5 + $0x3b8] sm:$0xff]
    %v330 = vld [vmem:[#allocation5 + $0x3c0] sm:$0xff]
    %v331 = vld [vmem:[#allocation5 + $0x3c8] sm:$0xff]
    %v332 = vld [vmem:[#allocation5 + $0x3d0] sm:$0xff]
    %v333 = vld [vmem:[#allocation5 + $0x3d8] sm:$0xff]
    %v334 = vld [vmem:[#allocation5 + $0x3e0] sm:$0xff]
    %v335 = vld [vmem:[#allocation5 + $0x3e8] sm:$0xff]
    %v336 = vld [vmem:[#allocation5 + $0x3f0] sm:$0xff]
    %v337 = vld [vmem:[#allocation5 + $0x3f8] sm:$0xff]
    %v338 = vld [vmem:[#allocation5 + $0x400] sm:$0xff]
    %v339 = vld [vmem:[#allocation5 + $0x408] sm:$0xff]
    %v340 = vld [vmem:[#allocation5 + $0x410] sm:$0xff]
    %v341 = vld [vmem:[#allocation5 + $0x418] sm:$0xff]
    %v342 = vld [vmem:[#allocation5 + $0x420] sm:$0xff]
    %v343 = vld [vmem:[#allocation5 + $0x428] sm:$0xff]
    %v344 = vld [vmem:[#allocation5 + $0x430] sm:$0xff]
    %v345 = vld [vmem:[#allocation5 + $0x438] sm:$0xff]
    %v346 = vld [vmem:[#allocation5 + $0x440] sm:$0xff]
    %v347 = vld [vmem:[#allocation5 + $0x448] sm:$0xff]
    %v348 = vld [vmem:[#allocation5 + $0x450] sm:$0xff]
    %v349 = vld [vmem:[#allocation5 + $0x458] sm:$0xff]
    %v350 = vld [vmem:[#allocation5 + $0x460] sm:$0xff]
    %v351 = vld [vmem:[#allocation5 + $0x468] sm:$0xff]
    %v352 = vld [vmem:[#allocation5 + $0x470] sm:$0xff]
    %v353 = vld [vmem:[#allocation5 + $0x478] sm:$0xff]
    %v354 = vld [vmem:[#allocation5 + $0x480] sm:$0xff]
    %v355 = vld [vmem:[#allocation5 + $0x488] sm:$0xff]
    %v356 = vld [vmem:[#allocation5 + $0x490] sm:$0xff]
    %v357 = vld [vmem:[#allocation5 + $0x498] sm:$0xff]
    %v358 = vld [vmem:[#allocation5 + $0x4a0] sm:$0xff]
    %v359 = vld [vmem:[#allocation5 + $0x4a8] sm:$0xff]
    %v360 = vld [vmem:[#allocation5 + $0x4b0] sm:$0xff]
    %v361 = vld [vmem:[#allocation5 + $0x4b8] sm:$0xff]
    %v362 = vld [vmem:[#allocation5 + $0x4c0] sm:$0xff]
    %v363 = vld [vmem:[#allocation5 + $0x4c8] sm:$0xff]
    %v364 = vld [vmem:[#allocation5 + $0x4d0] sm:$0xff]
    %v365 = vld [vmem:[#allocation5 + $0x4d8] sm:$0xff]
    %v366 = vld [vmem:[#allocation5 + $0x4e0] sm:$0xff]
    %v367 = vld [vmem:[#allocation5 + $0x4e8] sm:$0xff]
    %v368 = vld [vmem:[#allocation5 + $0x4f0] sm:$0xff]
    %v369 = vld [vmem:[#allocation5 + $0x4f8] sm:$0xff]
    %v370 = vld [vmem:[#allocation5 + $0x500] sm:$0xff]
    %v371 = vld [vmem:[#allocation5 + $0x508] sm:$0xff]
    %v372 = vld [vmem:[#allocation5 + $0x510] sm:$0xff]
    %v373 = vld [vmem:[#allocation5 + $0x518] sm:$0xff]
    %v374 = vld [vmem:[#allocation5 + $0x520] sm:$0xff]
    %v375 = vld [vmem:[#allocation5 + $0x528] sm:$0xff]
    %v376 = vld [vmem:[#allocation5 + $0x530] sm:$0xff]
    %v377 = vld [vmem:[#allocation5 + $0x538] sm:$0xff]
    %v378 = vld [vmem:[#allocation5 + $0x540] sm:$0xff]
    %v379 = vld [vmem:[#allocation5 + $0x548] sm:$0xff]
    %v380 = vld [vmem:[#allocation5 + $0x550] sm:$0xff]
    %v381 = vld [vmem:[#allocation5 + $0x558] sm:$0xff]
    %v382 = vld [vmem:[#allocation5 + $0x560] sm:$0xff]
    %v383 = vld [vmem:[#allocation5 + $0x568] sm:$0xff]
    %v384 = vld [vmem:[#allocation5 + $0x570] sm:$0xff]
    %v385 = vld [vmem:[#allocation5 + $0x578] sm:$0xff]
    %v386 = vld [vmem:[#allocation5 + $0x580] sm:$0xff]
    %v387 = vld [vmem:[#allocation5 + $0x588] sm:$0xff]
    %v388 = vld [vmem:[#allocation5 + $0x590] sm:$0xff]
    %v389 = vld [vmem:[#allocation5 + $0x598] sm:$0xff]
    %v390 = vld [vmem:[#allocation5 + $0x5a0] sm:$0xff]
    %v391 = vld [vmem:[#allocation5 + $0x5a8] sm:$0xff]
    %v392 = vld [vmem:[#allocation5 + $0x5b0] sm:$0xff]
    %v393 = vld [vmem:[#allocation5 + $0x5b8] sm:$0xff]
    %v394 = vld [vmem:[#allocation5 + $0x5c0] sm:$0xff]
    %v395 = vld [vmem:[#allocation5 + $0x5c8] sm:$0xff]
    %v396 = vld [vmem:[#allocation5 + $0x5d0] sm:$0xff]
    %v397 = vld [vmem:[#allocation5 + $0x5d8] sm:$0xff]
    %v398 = vld [vmem:[#allocation5 + $0x5e0] sm:$0xff]
    %v399 = vld [vmem:[#allocation5 + $0x5e8] sm:$0xff]
    %v400 = vld [vmem:[#allocation5 + $0x5f0] sm:$0xff]
    %v401 = vld [vmem:[#allocation5 + $0x5f8] sm:$0xff]
    %v402 = vld [vmem:[#allocation5 + $0x600] sm:$0xff]
    %v403 = vld [vmem:[#allocation5 + $0x608] sm:$0xff]
    %v404 = vld [vmem:[#allocation5 + $0x610] sm:$0xff]
    %v405 = vld [vmem:[#allocation5 + $0x618] sm:$0xff]
    %v406 = vld [vmem:[#allocation5 + $0x620] sm:$0xff]
    %v407 = vld [vmem:[#allocation5 + $0x628] sm:$0xff]
    %v408 = vld [vmem:[#allocation5 + $0x630] sm:$0xff]
    %v409 = vld [vmem:[#allocation5 + $0x638] sm:$0xff]
    %v410 = vld [vmem:[#allocation5 + $0x640] sm:$0xff]
    %v411 = vld [vmem:[#allocation5 + $0x648] sm:$0xff]
    %v412 = vld [vmem:[#allocation5 + $0x650] sm:$0xff]
    %v413 = vld [vmem:[#allocation5 + $0x658] sm:$0xff]
    %v414 = vld [vmem:[#allocation5 + $0x660] sm:$0xff]
    %v415 = vld [vmem:[#allocation5 + $0x668] sm:$0xff]
    %v416 = vld [vmem:[#allocation5 + $0x670] sm:$0xff]
    %v417 = vld [vmem:[#allocation5 + $0x678] sm:$0xff]
    %v418 = vld [vmem:[#allocation5 + $0x680] sm:$0xff]
    %v419 = vld [vmem:[#allocation5 + $0x688] sm:$0xff]
    %v420 = vld [vmem:[#allocation5 + $0x690] sm:$0xff]
    %v421 = vld [vmem:[#allocation5 + $0x698] sm:$0xff]
    %v422 = vld [vmem:[#allocation5 + $0x6a0] sm:$0xff]
    %v423 = vld [vmem:[#allocation5 + $0x6a8] sm:$0xff]
    %v424 = vld [vmem:[#allocation5 + $0x6b0] sm:$0xff]
    %v425 = vld [vmem:[#allocation5 + $0x6b8] sm:$0xff]
    %v426 = vld [vmem:[#allocation5 + $0x6c0] sm:$0xff]
    %v427 = vld [vmem:[#allocation5 + $0x6c8] sm:$0xff]
    %v428 = vld [vmem:[#allocation5 + $0x6d0] sm:$0xff]
    %v429 = vld [vmem:[#allocation5 + $0x6d8] sm:$0xff]
    %v430 = vld [vmem:[#allocation5 + $0x6e0] sm:$0xff]
    %v431 = vld [vmem:[#allocation5 + $0x6e8] sm:$0xff]
    %v432 = vld [vmem:[#allocation5 + $0x6f0] sm:$0xff]
    %v433 = vld [vmem:[#allocation5 + $0x6f8] sm:$0xff]
    %v434 = vld [vmem:[#allocation5 + $0x700] sm:$0xff]
    %v435 = vld [vmem:[#allocation5 + $0x708] sm:$0xff]
    %v436 = vld [vmem:[#allocation5 + $0x710] sm:$0xff]
    %v437 = vld [vmem:[#allocation5 + $0x718] sm:$0xff]
    %v438 = vld [vmem:[#allocation5 + $0x720] sm:$0xff]
    %v439 = vld [vmem:[#allocation5 + $0x728] sm:$0xff]
    %v440 = vld [vmem:[#allocation5 + $0x730] sm:$0xff]
    %v441 = vld [vmem:[#allocation5 + $0x738] sm:$0xff]
    %v442 = vld [vmem:[#allocation5 + $0x740] sm:$0xff]
    %v443 = vld [vmem:[#allocation5 + $0x748] sm:$0xff]
    %v444 = vld [vmem:[#allocation5 + $0x750] sm:$0xff]
    %v445 = vld [vmem:[#allocation5 + $0x758] sm:$0xff]
    %v446 = vld [vmem:[#allocation5 + $0x760] sm:$0xff]
    %v447 = vld [vmem:[#allocation5 + $0x768] sm:$0xff]
    %v448 = vld [vmem:[#allocation5 + $0x770] sm:$0xff]
    %v449 = vld [vmem:[#allocation5 + $0x778] sm:$0xff]
    %v450 = vld [vmem:[#allocation5 + $0x780] sm:$0xff]
    %v451 = vld [vmem:[#allocation5 + $0x788] sm:$0xff]
    %v452 = vld [vmem:[#allocation5 + $0x790] sm:$0xff]
    %v453 = vld [vmem:[#allocation5 + $0x798] sm:$0xff]
    %v454 = vld [vmem:[#allocation5 + $0x7a0] sm:$0xff]
    %v455 = vld [vmem:[#allocation5 + $0x7a8] sm:$0xff]
    %v456 = vld [vmem:[#allocation5 + $0x7b0] sm:$0xff]
    %v457 = vld [vmem:[#allocation5 + $0x7b8] sm:$0xff]
    %v458 = vld [vmem:[#allocation5 + $0x7c0] sm:$0xff]
    %v459 = vld [vmem:[#allocation5 + $0x7c8] sm:$0xff]
    %v460 = vld [vmem:[#allocation5 + $0x7d0] sm:$0xff]
    %v461 = vld [vmem:[#allocation5 + $0x7d8] sm:$0xff]
    %v462 = vld [vmem:[#allocation5 + $0x7e0] sm:$0xff]
    %v463 = vld [vmem:[#allocation5 + $0x7e8] sm:$0xff]
    %v464 = vld [vmem:[#allocation5 + $0x7f0] sm:$0xff]
    %v465 = vld [vmem:[#allocation5 + $0x7f8] sm:$0xff]
    %v466 = vld [vmem:[#allocation5 + $0x800] sm:$0xff]
    %v467 = vld [vmem:[#allocation5 + $0x808] sm:$0xff]
    %v468 = vld [vmem:[#allocation5 + $0x810] sm:$0xff]
    %v469 = vld [vmem:[#allocation5 + $0x818] sm:$0xff]
    %v470 = vld [vmem:[#allocation5 + $0x820] sm:$0xff]
    %v471 = vld [vmem:[#allocation5 + $0x828] sm:$0xff]
    %v472 = vld [vmem:[#allocation5 + $0x830] sm:$0xff]
    %v473 = vld [vmem:[#allocation5 + $0x838] sm:$0xff]
    %v474 = vld [vmem:[#allocation5 + $0x840] sm:$0xff]
    %v475 = vld [vmem:[#allocation5 + $0x848] sm:$0xff]
    %v476 = vld [vmem:[#allocation5 + $0x850] sm:$0xff]
    %v477 = vld [vmem:[#allocation5 + $0x858] sm:$0xff]
    %v478 = vld [vmem:[#allocation5 + $0x860] sm:$0xff]
    %v479 = vld [vmem:[#allocation5 + $0x868] sm:$0xff]
    %v480 = vld [vmem:[#allocation5 + $0x870] sm:$0xff]
    %v481 = vld [vmem:[#allocation5 + $0x878] sm:$0xff]
    %v482 = vld [vmem:[#allocation5 + $0x880] sm:$0xff]
    %v483 = vld [vmem:[#allocation5 + $0x888] sm:$0xff]
    %v484 = vld [vmem:[#allocation5 + $0x890] sm:$0xff]
    %v485 = vld [vmem:[#allocation5 + $0x898] sm:$0xff]
    %v486 = vld [vmem:[#allocation5 + $0x8a0] sm:$0xff]
    %v487 = vld [vmem:[#allocation5 + $0x8a8] sm:$0xff]
    %v488 = vld [vmem:[#allocation5 + $0x8b0] sm:$0xff]
    %v489 = vld [vmem:[#allocation5 + $0x8b8] sm:$0xff]
    %v490 = vld [vmem:[#allocation5 + $0x8c0] sm:$0xff]
    %v491 = vld [vmem:[#allocation5 + $0x8c8] sm:$0xff]
    %v492 = vld [vmem:[#allocation5 + $0x8d0] sm:$0xff]
    %v493 = vld [vmem:[#allocation5 + $0x8d8] sm:$0xff]
    %v494 = vld [vmem:[#allocation5 + $0x8e0] sm:$0xff]
    %v495 = vld [vmem:[#allocation5 + $0x8e8] sm:$0xff]
    %v496 = vld [vmem:[#allocation5 + $0x8f0] sm:$0xff]
    %v497 = vld [vmem:[#allocation5 + $0x8f8] sm:$0xff]
    %v498 = vld [vmem:[#allocation7] sm:$0x3f]
    %v500 = vperm.slane %v498, 0
    %v501 = vperm.slane %v498, 1
    %v502 = vperm.slane %v498, 2
    %v503 = vperm.slane %v498, 3
    %v504 = vperm.slane %v498, 4
    %v505 = vperm.slane %v498, 5
    %v584 = vunpack.c.l.b16 %v138
    %v585 = vunpack.c.h.b16 %v138
    %v586 = vunpack.c.l.b16 %v139
    %v587 = vunpack.c.h.b16 %v139
    %v588 = vunpack.c.l.b16 %v140
    %v589 = vunpack.c.h.b16 %v140
    %v590 = vunpack.c.l.b16 %v141
    %v591 = vunpack.c.h.b16 %v141
    %v592 = vunpack.c.l.b16 %v142
    %v593 = vunpack.c.h.b16 %v142
    %v594 = vunpack.c.l.b16 %v143
    %v595 = vunpack.c.h.b16 %v143
    %v596 = vunpack.c.l.b16 %v144
    %v597 = vunpack.c.h.b16 %v144
    %v598 = vunpack.c.l.b16 %v145
    %v599 = vunpack.c.h.b16 %v145
    %v600 = vunpack.c.l.b16 %v146
    %v601 = vunpack.c.h.b16 %v146
    %v602 = vunpack.c.l.b16 %v147
    %v603 = vunpack.c.h.b16 %v147
    %v604 = vunpack.c.l.b16 %v148
    %v605 = vunpack.c.h.b16 %v148
    %v606 = vunpack.c.l.b16 %v149
    %v607 = vunpack.c.h.b16 %v149
    %v608 = vunpack.c.l.b16 %v150
    %v609 = vunpack.c.h.b16 %v150
    %v610 = vunpack.c.l.b16 %v151
    %v611 = vunpack.c.h.b16 %v151
    %v612 = vunpack.c.l.b16 %v152
    %v613 = vunpack.c.h.b16 %v152
    %v614 = vunpack.c.l.b16 %v153
    %v615 = vunpack.c.h.b16 %v153
    %v616 = vunpack.c.l.b16 %v154
    %v617 = vunpack.c.h.b16 %v154
    %v618 = vunpack.c.l.b16 %v155
    %v619 = vunpack.c.h.b16 %v155
    %v620 = vunpack.c.l.b16 %v156
    %v621 = vunpack.c.h.b16 %v156
    %v622 = vunpack.c.l.b16 %v157
    %v623 = vunpack.c.h.b16 %v157
    %v624 = vunpack.c.l.b16 %v158
    %v625 = vunpack.c.h.b16 %v158
    %v626 = vunpack.c.l.b16 %v159
    %v627 = vunpack.c.h.b16 %v159
    %v628 = vunpack.c.l.b16 %v160
    %v629 = vunpack.c.h.b16 %v160
    %v630 = vunpack.c.l.b16 %v161
    %v631 = vunpack.c.h.b16 %v161
    %v632 = vunpack.c.l.b16 %v162
    %v633 = vunpack.c.h.b16 %v162
    %v634 = vunpack.c.l.b16 %v163
    %v635 = vunpack.c.h.b16 %v163
    %v636 = vunpack.c.l.b16 %v164
    %v637 = vunpack.c.h.b16 %v164
    %v638 = vunpack.c.l.b16 %v165
    %v639 = vunpack.c.h.b16 %v165
    %v640 = vunpack.c.l.b16 %v166
    %v641 = vunpack.c.h.b16 %v166
    %v642 = vunpack.c.l.b16 %v167
    %v643 = vunpack.c.h.b16 %v167
    %v644 = vunpack.c.l.b16 %v168
    %v645 = vunpack.c.h.b16 %v168
    %v646 = vunpack.c.l.b16 %v169
    %v647 = vunpack.c.h.b16 %v169
    %v648 = vunpack.c.l.b16 %v170
    %v649 = vunpack.c.h.b16 %v170
    %v650 = vunpack.c.l.b16 %v171
    %v651 = vunpack.c.h.b16 %v171
    %v652 = vunpack.c.l.b16 %v172
    %v653 = vunpack.c.h.b16 %v172
    %v654 = vunpack.c.l.b16 %v173
    %v655 = vunpack.c.h.b16 %v173
    %v656 = vunpack.c.l.b16 %v174
    %v657 = vunpack.c.h.b16 %v174
    %v658 = vunpack.c.l.b16 %v175
    %v659 = vunpack.c.h.b16 %v175
    %v660 = vunpack.c.l.b16 %v176
    %v661 = vunpack.c.h.b16 %v176
    %v662 = vunpack.c.l.b16 %v177
    %v663 = vunpack.c.h.b16 %v177
    %v664 = vunpack.c.l.b16 %v178
    %v665 = vunpack.c.h.b16 %v178
    %v666 = vunpack.c.l.b16 %v179
    %v667 = vunpack.c.h.b16 %v179
    %v668 = vunpack.c.l.b16 %v180
    %v669 = vunpack.c.h.b16 %v180
    %v670 = vunpack.c.l.b16 %v181
    %v671 = vunpack.c.h.b16 %v181
    %v672 = vunpack.c.l.b16 %v182
    %v673 = vunpack.c.h.b16 %v182
    %v674 = vunpack.c.l.b16 %v183
    %v675 = vunpack.c.h.b16 %v183
    %v676 = vunpack.c.l.b16 %v184
    %v677 = vunpack.c.h.b16 %v184
    %v678 = vunpack.c.l.b16 %v185
    %v679 = vunpack.c.h.b16 %v185
    %v680 = vunpack.c.l.b16 %v186
    %v681 = vunpack.c.h.b16 %v186
    %v682 = vunpack.c.l.b16 %v187
    %v683 = vunpack.c.h.b16 %v187
    %v684 = vunpack.c.l.b16 %v188
    %v685 = vunpack.c.h.b16 %v188
    %v686 = vunpack.c.l.b16 %v189
    %v687 = vunpack.c.h.b16 %v189
    %v688 = vunpack.c.l.b16 %v190
    %v689 = vunpack.c.h.b16 %v190
    %v690 = vunpack.c.l.b16 %v191
    %v691 = vunpack.c.h.b16 %v191
    %v692 = vunpack.c.l.b16 %v192
    %v693 = vunpack.c.h.b16 %v192
    %v694 = vunpack.c.l.b16 %v193
    %v695 = vunpack.c.h.b16 %v193
    %v696 = vunpack.c.l.b16 %v194
    %v697 = vunpack.c.h.b16 %v194
    %v698 = vunpack.c.l.b16 %v195
    %v699 = vunpack.c.h.b16 %v195
    %v700 = vunpack.c.l.b16 %v196
    %v701 = vunpack.c.h.b16 %v196
    %v702 = vunpack.c.l.b16 %v197
    %v703 = vunpack.c.h.b16 %v197
    %v704 = vunpack.c.l.b16 %v198
    %v705 = vunpack.c.h.b16 %v198
    %v706 = vunpack.c.l.b16 %v199
    %v707 = vunpack.c.h.b16 %v199
    %v708 = vunpack.c.l.b16 %v200
    %v709 = vunpack.c.h.b16 %v200
    %v710 = vunpack.c.l.b16 %v201
    %v711 = vunpack.c.h.b16 %v201
    %v712 = vunpack.c.l.b16 %v202
    %v713 = vunpack.c.h.b16 %v202
    %v714 = vunpack.c.l.b16 %v203
    %v715 = vunpack.c.h.b16 %v203
    %v716 = vunpack.c.l.b16 %v204
    %v717 = vunpack.c.h.b16 %v204
    %v718 = vunpack.c.l.b16 %v205
    %v719 = vunpack.c.h.b16 %v205
    %v720 = vunpack.c.l.b16 %v206
    %v721 = vunpack.c.h.b16 %v206
    %v722 = vunpack.c.l.b16 %v207
    %v723 = vunpack.c.h.b16 %v207
    %v724 = vunpack.c.l.b16 %v208
    %v725 = vunpack.c.h.b16 %v208
    %v726 = vunpack.c.l.b16 %v209
    %v727 = vunpack.c.h.b16 %v209
    %v728 = vpack.c.b16 %v590, %v584
    %v729 = vpack.c.b16 %v591, %v585
    %v730 = vpack.c.b16 %v592, %v586
    %v731 = vpack.c.b16 %v593, %v587
    %v732 = vpack.c.b16 %v594, %v588
    %v733 = vpack.c.b16 %v595, %v589
    %v734 = vpack.c.b16 %v602, %v596
    %v735 = vpack.c.b16 %v603, %v597
    %v736 = vpack.c.b16 %v604, %v598
    %v737 = vpack.c.b16 %v605, %v599
    %v738 = vpack.c.b16 %v606, %v600
    %v739 = vpack.c.b16 %v607, %v601
    %v740 = vpack.c.b16 %v614, %v608
    %v741 = vpack.c.b16 %v615, %v609
    %v742 = vpack.c.b16 %v616, %v610
    %v743 = vpack.c.b16 %v617, %v611
    %v744 = vpack.c.b16 %v618, %v612
    %v745 = vpack.c.b16 %v619, %v613
    %v746 = vpack.c.b16 %v626, %v620
    %v747 = vpack.c.b16 %v627, %v621
    %v748 = vpack.c.b16 %v628, %v622
    %v749 = vpack.c.b16 %v629, %v623
    %v750 = vpack.c.b16 %v630, %v624
    %v751 = vpack.c.b16 %v631, %v625
    %v752 = vpack.c.b16 %v638, %v632
    %v753 = vpack.c.b16 %v639, %v633
    %v754 = vpack.c.b16 %v640, %v634
    %v755 = vpack.c.b16 %v641, %v635
    %v756 = vpack.c.b16 %v642, %v636
    %v757 = vpack.c.b16 %v643, %v637
    %v758 = vpack.c.b16 %v650, %v644
    %v759 = vpack.c.b16 %v651, %v645
    %v760 = vpack.c.b16 %v652, %v646
    %v761 = vpack.c.b16 %v653, %v647
    %v762 = vpack.c.b16 %v654, %v648
    %v763 = vpack.c.b16 %v655, %v649
    %v764 = vpack.c.b16 %v662, %v656
    %v765 = vpack.c.b16 %v663, %v657
    %v766 = vpack.c.b16 %v664, %v658
    %v767 = vpack.c.b16 %v665, %v659
    %v768 = vpack.c.b16 %v666, %v660
    %v769 = vpack.c.b16 %v667, %v661
    %v770 = vpack.c.b16 %v674, %v668
    %v771 = vpack.c.b16 %v675, %v669
    %v772 = vpack.c.b16 %v676, %v670
    %v773 = vpack.c.b16 %v677, %v671
    %v774 = vpack.c.b16 %v678, %v672
    %v775 = vpack.c.b16 %v679, %v673
    %v776 = vpack.c.b16 %v686, %v680
    %v777 = vpack.c.b16 %v687, %v681
    %v778 = vpack.c.b16 %v688, %v682
    %v779 = vpack.c.b16 %v689, %v683
    %v780 = vpack.c.b16 %v690, %v684
    %v781 = vpack.c.b16 %v691, %v685
    %v782 = vpack.c.b16 %v698, %v692
    %v783 = vpack.c.b16 %v699, %v693
    %v784 = vpack.c.b16 %v700, %v694
    %v785 = vpack.c.b16 %v701, %v695
    %v786 = vpack.c.b16 %v702, %v696
    %v787 = vpack.c.b16 %v703, %v697
    %v788 = vpack.c.b16 %v710, %v704
    %v789 = vpack.c.b16 %v711, %v705
    %v790 = vpack.c.b16 %v712, %v706
    %v791 = vpack.c.b16 %v713, %v707
    %v792 = vpack.c.b16 %v714, %v708
    %v793 = vpack.c.b16 %v715, %v709
    %v794 = vpack.c.b16 %v722, %v716
    %v795 = vpack.c.b16 %v723, %v717
    %v796 = vpack.c.b16 %v724, %v718
    %v797 = vpack.c.b16 %v725, %v719
    %v798 = vpack.c.b16 %v726, %v720
    %v799 = vpack.c.b16 %v727, %v721
    %v1160 = vunpack.c.l.b16 %v210
    %v1161 = vunpack.c.h.b16 %v210
    %v1162 = vunpack.c.l.b16 %v211
    %v1163 = vunpack.c.h.b16 %v211
    %v1164 = vunpack.c.l.b16 %v212
    %v1165 = vunpack.c.h.b16 %v212
    %v1166 = vunpack.c.l.b16 %v213
    %v1167 = vunpack.c.h.b16 %v213
    %v1168 = vunpack.c.l.b16 %v214
    %v1169 = vunpack.c.h.b16 %v214
    %v1170 = vunpack.c.l.b16 %v215
    %v1171 = vunpack.c.h.b16 %v215
    %v1172 = vunpack.c.l.b16 %v216
    %v1173 = vunpack.c.h.b16 %v216
    %v1174 = vunpack.c.l.b16 %v217
    %v1175 = vunpack.c.h.b16 %v217
    %v1176 = vunpack.c.l.b16 %v218
    %v1177 = vunpack.c.h.b16 %v218
    %v1178 = vunpack.c.l.b16 %v219
    %v1179 = vunpack.c.h.b16 %v219
    %v1180 = vunpack.c.l.b16 %v220
    %v1181 = vunpack.c.h.b16 %v220
    %v1182 = vunpack.c.l.b16 %v221
    %v1183 = vunpack.c.h.b16 %v221
    %v1184 = vunpack.c.l.b16 %v222
    %v1185 = vunpack.c.h.b16 %v222
    %v1186 = vunpack.c.l.b16 %v223
    %v1187 = vunpack.c.h.b16 %v223
    %v1188 = vunpack.c.l.b16 %v224
    %v1189 = vunpack.c.h.b16 %v224
    %v1190 = vunpack.c.l.b16 %v225
    %v1191 = vunpack.c.h.b16 %v225
    %v1192 = vunpack.c.l.b16 %v226
    %v1193 = vunpack.c.h.b16 %v226
    %v1194 = vunpack.c.l.b16 %v227
    %v1195 = vunpack.c.h.b16 %v227
    %v1196 = vunpack.c.l.b16 %v228
    %v1197 = vunpack.c.h.b16 %v228
    %v1198 = vunpack.c.l.b16 %v229
    %v1199 = vunpack.c.h.b16 %v229
    %v1200 = vunpack.c.l.b16 %v230
    %v1201 = vunpack.c.h.b16 %v230
    %v1202 = vunpack.c.l.b16 %v231
    %v1203 = vunpack.c.h.b16 %v231
    %v1204 = vunpack.c.l.b16 %v232
    %v1205 = vunpack.c.h.b16 %v232
    %v1206 = vunpack.c.l.b16 %v233
    %v1207 = vunpack.c.h.b16 %v233
    %v1208 = vunpack.c.l.b16 %v234
    %v1209 = vunpack.c.h.b16 %v234
    %v1210 = vunpack.c.l.b16 %v235
    %v1211 = vunpack.c.h.b16 %v235
    %v1212 = vunpack.c.l.b16 %v236
    %v1213 = vunpack.c.h.b16 %v236
    %v1214 = vunpack.c.l.b16 %v237
    %v1215 = vunpack.c.h.b16 %v237
    %v1216 = vunpack.c.l.b16 %v238
    %v1217 = vunpack.c.h.b16 %v238
    %v1218 = vunpack.c.l.b16 %v239
    %v1219 = vunpack.c.h.b16 %v239
    %v1220 = vunpack.c.l.b16 %v240
    %v1221 = vunpack.c.h.b16 %v240
    %v1222 = vunpack.c.l.b16 %v241
    %v1223 = vunpack.c.h.b16 %v241
    %v1224 = vunpack.c.l.b16 %v242
    %v1225 = vunpack.c.h.b16 %v242
    %v1226 = vunpack.c.l.b16 %v243
    %v1227 = vunpack.c.h.b16 %v243
    %v1228 = vunpack.c.l.b16 %v244
    %v1229 = vunpack.c.h.b16 %v244
    %v1230 = vunpack.c.l.b16 %v245
    %v1231 = vunpack.c.h.b16 %v245
    %v1232 = vunpack.c.l.b16 %v246
    %v1233 = vunpack.c.h.b16 %v246
    %v1234 = vunpack.c.l.b16 %v247
    %v1235 = vunpack.c.h.b16 %v247
    %v1236 = vunpack.c.l.b16 %v248
    %v1237 = vunpack.c.h.b16 %v248
    %v1238 = vunpack.c.l.b16 %v249
    %v1239 = vunpack.c.h.b16 %v249
    %v1240 = vunpack.c.l.b16 %v250
    %v1241 = vunpack.c.h.b16 %v250
    %v1242 = vunpack.c.l.b16 %v251
    %v1243 = vunpack.c.h.b16 %v251
    %v1244 = vunpack.c.l.b16 %v252
    %v1245 = vunpack.c.h.b16 %v252
    %v1246 = vunpack.c.l.b16 %v253
    %v1247 = vunpack.c.h.b16 %v253
    %v1248 = vunpack.c.l.b16 %v254
    %v1249 = vunpack.c.h.b16 %v254
    %v1250 = vunpack.c.l.b16 %v255
    %v1251 = vunpack.c.h.b16 %v255
    %v1252 = vunpack.c.l.b16 %v256
    %v1253 = vunpack.c.h.b16 %v256
    %v1254 = vunpack.c.l.b16 %v257
    %v1255 = vunpack.c.h.b16 %v257
    %v1256 = vunpack.c.l.b16 %v258
    %v1257 = vunpack.c.h.b16 %v258
    %v1258 = vunpack.c.l.b16 %v259
    %v1259 = vunpack.c.h.b16 %v259
    %v1260 = vunpack.c.l.b16 %v260
    %v1261 = vunpack.c.h.b16 %v260
    %v1262 = vunpack.c.l.b16 %v261
    %v1263 = vunpack.c.h.b16 %v261
    %v1264 = vunpack.c.l.b16 %v262
    %v1265 = vunpack.c.h.b16 %v262
    %v1266 = vunpack.c.l.b16 %v263
    %v1267 = vunpack.c.h.b16 %v263
    %v1268 = vunpack.c.l.b16 %v264
    %v1269 = vunpack.c.h.b16 %v264
    %v1270 = vunpack.c.l.b16 %v265
    %v1271 = vunpack.c.h.b16 %v265
    %v1272 = vunpack.c.l.b16 %v266
    %v1273 = vunpack.c.h.b16 %v266
    %v1274 = vunpack.c.l.b16 %v267
    %v1275 = vunpack.c.h.b16 %v267
    %v1276 = vunpack.c.l.b16 %v268
    %v1277 = vunpack.c.h.b16 %v268
    %v1278 = vunpack.c.l.b16 %v269
    %v1279 = vunpack.c.h.b16 %v269
    %v1280 = vunpack.c.l.b16 %v270
    %v1281 = vunpack.c.h.b16 %v270
    %v1282 = vunpack.c.l.b16 %v271
    %v1283 = vunpack.c.h.b16 %v271
    %v1284 = vunpack.c.l.b16 %v272
    %v1285 = vunpack.c.h.b16 %v272
    %v1286 = vunpack.c.l.b16 %v273
    %v1287 = vunpack.c.h.b16 %v273
    %v1288 = vunpack.c.l.b16 %v274
    %v1289 = vunpack.c.h.b16 %v274
    %v1290 = vunpack.c.l.b16 %v275
    %v1291 = vunpack.c.h.b16 %v275
    %v1292 = vunpack.c.l.b16 %v276
    %v1293 = vunpack.c.h.b16 %v276
    %v1294 = vunpack.c.l.b16 %v277
    %v1295 = vunpack.c.h.b16 %v277
    %v1296 = vunpack.c.l.b16 %v278
    %v1297 = vunpack.c.h.b16 %v278
    %v1298 = vunpack.c.l.b16 %v279
    %v1299 = vunpack.c.h.b16 %v279
    %v1300 = vunpack.c.l.b16 %v280
    %v1301 = vunpack.c.h.b16 %v280
    %v1302 = vunpack.c.l.b16 %v281
    %v1303 = vunpack.c.h.b16 %v281
    %v1304 = vunpack.c.l.b16 %v282
    %v1305 = vunpack.c.h.b16 %v282
    %v1306 = vunpack.c.l.b16 %v283
    %v1307 = vunpack.c.h.b16 %v283
    %v1308 = vunpack.c.l.b16 %v284
    %v1309 = vunpack.c.h.b16 %v284
    %v1310 = vunpack.c.l.b16 %v285
    %v1311 = vunpack.c.h.b16 %v285
    %v1312 = vunpack.c.l.b16 %v286
    %v1313 = vunpack.c.h.b16 %v286
    %v1314 = vunpack.c.l.b16 %v287
    %v1315 = vunpack.c.h.b16 %v287
    %v1316 = vunpack.c.l.b16 %v288
    %v1317 = vunpack.c.h.b16 %v288
    %v1318 = vunpack.c.l.b16 %v289
    %v1319 = vunpack.c.h.b16 %v289
    %v1320 = vunpack.c.l.b16 %v290
    %v1321 = vunpack.c.h.b16 %v290
    %v1322 = vunpack.c.l.b16 %v291
    %v1323 = vunpack.c.h.b16 %v291
    %v1324 = vunpack.c.l.b16 %v292
    %v1325 = vunpack.c.h.b16 %v292
    %v1326 = vunpack.c.l.b16 %v293
    %v1327 = vunpack.c.h.b16 %v293
    %v1328 = vunpack.c.l.b16 %v294
    %v1329 = vunpack.c.h.b16 %v294
    %v1330 = vunpack.c.l.b16 %v295
    %v1331 = vunpack.c.h.b16 %v295
    %v1332 = vunpack.c.l.b16 %v296
    %v1333 = vunpack.c.h.b16 %v296
    %v1334 = vunpack.c.l.b16 %v297
    %v1335 = vunpack.c.h.b16 %v297
    %v1336 = vunpack.c.l.b16 %v298
    %v1337 = vunpack.c.h.b16 %v298
    %v1338 = vunpack.c.l.b16 %v299
    %v1339 = vunpack.c.h.b16 %v299
    %v1340 = vunpack.c.l.b16 %v300
    %v1341 = vunpack.c.h.b16 %v300
    %v1342 = vunpack.c.l.b16 %v301
    %v1343 = vunpack.c.h.b16 %v301
    %v1344 = vunpack.c.l.b16 %v302
    %v1345 = vunpack.c.h.b16 %v302
    %v1346 = vunpack.c.l.b16 %v303
    %v1347 = vunpack.c.h.b16 %v303
    %v1348 = vunpack.c.l.b16 %v304
    %v1349 = vunpack.c.h.b16 %v304
    %v1350 = vunpack.c.l.b16 %v305
    %v1351 = vunpack.c.h.b16 %v305
    %v1352 = vunpack.c.l.b16 %v306
    %v1353 = vunpack.c.h.b16 %v306
    %v1354 = vunpack.c.l.b16 %v307
    %v1355 = vunpack.c.h.b16 %v307
    %v1356 = vunpack.c.l.b16 %v308
    %v1357 = vunpack.c.h.b16 %v308
    %v1358 = vunpack.c.l.b16 %v309
    %v1359 = vunpack.c.h.b16 %v309
    %v1360 = vunpack.c.l.b16 %v310
    %v1361 = vunpack.c.h.b16 %v310
    %v1362 = vunpack.c.l.b16 %v311
    %v1363 = vunpack.c.h.b16 %v311
    %v1364 = vunpack.c.l.b16 %v312
    %v1365 = vunpack.c.h.b16 %v312
    %v1366 = vunpack.c.l.b16 %v313
    %v1367 = vunpack.c.h.b16 %v313
    %v1368 = vunpack.c.l.b16 %v314
    %v1369 = vunpack.c.h.b16 %v314
    %v1370 = vunpack.c.l.b16 %v315
    %v1371 = vunpack.c.h.b16 %v315
    %v1372 = vunpack.c.l.b16 %v316
    %v1373 = vunpack.c.h.b16 %v316
    %v1374 = vunpack.c.l.b16 %v317
    %v1375 = vunpack.c.h.b16 %v317
    %v1376 = vunpack.c.l.b16 %v318
    %v1377 = vunpack.c.h.b16 %v318
    %v1378 = vunpack.c.l.b16 %v319
    %v1379 = vunpack.c.h.b16 %v319
    %v1380 = vunpack.c.l.b16 %v320
    %v1381 = vunpack.c.h.b16 %v320
    %v1382 = vunpack.c.l.b16 %v321
    %v1383 = vunpack.c.h.b16 %v321
    %v1384 = vunpack.c.l.b16 %v322
    %v1385 = vunpack.c.h.b16 %v322
    %v1386 = vunpack.c.l.b16 %v323
    %v1387 = vunpack.c.h.b16 %v323
    %v1388 = vunpack.c.l.b16 %v324
    %v1389 = vunpack.c.h.b16 %v324
    %v1390 = vunpack.c.l.b16 %v325
    %v1391 = vunpack.c.h.b16 %v325
    %v1392 = vunpack.c.l.b16 %v326
    %v1393 = vunpack.c.h.b16 %v326
    %v1394 = vunpack.c.l.b16 %v327
    %v1395 = vunpack.c.h.b16 %v327
    %v1396 = vunpack.c.l.b16 %v328
    %v1397 = vunpack.c.h.b16 %v328
    %v1398 = vunpack.c.l.b16 %v329
    %v1399 = vunpack.c.h.b16 %v329
    %v1400 = vunpack.c.l.b16 %v330
    %v1401 = vunpack.c.h.b16 %v330
    %v1402 = vunpack.c.l.b16 %v331
    %v1403 = vunpack.c.h.b16 %v331
    %v1404 = vunpack.c.l.b16 %v332
    %v1405 = vunpack.c.h.b16 %v332
    %v1406 = vunpack.c.l.b16 %v333
    %v1407 = vunpack.c.h.b16 %v333
    %v1408 = vunpack.c.l.b16 %v334
    %v1409 = vunpack.c.h.b16 %v334
    %v1410 = vunpack.c.l.b16 %v335
    %v1411 = vunpack.c.h.b16 %v335
    %v1412 = vunpack.c.l.b16 %v336
    %v1413 = vunpack.c.h.b16 %v336
    %v1414 = vunpack.c.l.b16 %v337
    %v1415 = vunpack.c.h.b16 %v337
    %v1416 = vunpack.c.l.b16 %v338
    %v1417 = vunpack.c.h.b16 %v338
    %v1418 = vunpack.c.l.b16 %v339
    %v1419 = vunpack.c.h.b16 %v339
    %v1420 = vunpack.c.l.b16 %v340
    %v1421 = vunpack.c.h.b16 %v340
    %v1422 = vunpack.c.l.b16 %v341
    %v1423 = vunpack.c.h.b16 %v341
    %v1424 = vunpack.c.l.b16 %v342
    %v1425 = vunpack.c.h.b16 %v342
    %v1426 = vunpack.c.l.b16 %v343
    %v1427 = vunpack.c.h.b16 %v343
    %v1428 = vunpack.c.l.b16 %v344
    %v1429 = vunpack.c.h.b16 %v344
    %v1430 = vunpack.c.l.b16 %v345
    %v1431 = vunpack.c.h.b16 %v345
    %v1432 = vunpack.c.l.b16 %v346
    %v1433 = vunpack.c.h.b16 %v346
    %v1434 = vunpack.c.l.b16 %v347
    %v1435 = vunpack.c.h.b16 %v347
    %v1436 = vunpack.c.l.b16 %v348
    %v1437 = vunpack.c.h.b16 %v348
    %v1438 = vunpack.c.l.b16 %v349
    %v1439 = vunpack.c.h.b16 %v349
    %v1440 = vunpack.c.l.b16 %v350
    %v1441 = vunpack.c.h.b16 %v350
    %v1442 = vunpack.c.l.b16 %v351
    %v1443 = vunpack.c.h.b16 %v351
    %v1444 = vunpack.c.l.b16 %v352
    %v1445 = vunpack.c.h.b16 %v352
    %v1446 = vunpack.c.l.b16 %v353
    %v1447 = vunpack.c.h.b16 %v353
    %v1448 = vunpack.c.l.b16 %v354
    %v1449 = vunpack.c.h.b16 %v354
    %v1450 = vunpack.c.l.b16 %v355
    %v1451 = vunpack.c.h.b16 %v355
    %v1452 = vunpack.c.l.b16 %v356
    %v1453 = vunpack.c.h.b16 %v356
    %v1454 = vunpack.c.l.b16 %v357
    %v1455 = vunpack.c.h.b16 %v357
    %v1456 = vunpack.c.l.b16 %v358
    %v1457 = vunpack.c.h.b16 %v358
    %v1458 = vunpack.c.l.b16 %v359
    %v1459 = vunpack.c.h.b16 %v359
    %v1460 = vunpack.c.l.b16 %v360
    %v1461 = vunpack.c.h.b16 %v360
    %v1462 = vunpack.c.l.b16 %v361
    %v1463 = vunpack.c.h.b16 %v361
    %v1464 = vunpack.c.l.b16 %v362
    %v1465 = vunpack.c.h.b16 %v362
    %v1466 = vunpack.c.l.b16 %v363
    %v1467 = vunpack.c.h.b16 %v363
    %v1468 = vunpack.c.l.b16 %v364
    %v1469 = vunpack.c.h.b16 %v364
    %v1470 = vunpack.c.l.b16 %v365
    %v1471 = vunpack.c.h.b16 %v365
    %v1472 = vunpack.c.l.b16 %v366
    %v1473 = vunpack.c.h.b16 %v366
    %v1474 = vunpack.c.l.b16 %v367
    %v1475 = vunpack.c.h.b16 %v367
    %v1476 = vunpack.c.l.b16 %v368
    %v1477 = vunpack.c.h.b16 %v368
    %v1478 = vunpack.c.l.b16 %v369
    %v1479 = vunpack.c.h.b16 %v369
    %v1480 = vunpack.c.l.b16 %v370
    %v1481 = vunpack.c.h.b16 %v370
    %v1482 = vunpack.c.l.b16 %v371
    %v1483 = vunpack.c.h.b16 %v371
    %v1484 = vunpack.c.l.b16 %v372
    %v1485 = vunpack.c.h.b16 %v372
    %v1486 = vunpack.c.l.b16 %v373
    %v1487 = vunpack.c.h.b16 %v373
    %v1488 = vunpack.c.l.b16 %v374
    %v1489 = vunpack.c.h.b16 %v374
    %v1490 = vunpack.c.l.b16 %v375
    %v1491 = vunpack.c.h.b16 %v375
    %v1492 = vunpack.c.l.b16 %v376
    %v1493 = vunpack.c.h.b16 %v376
    %v1494 = vunpack.c.l.b16 %v377
    %v1495 = vunpack.c.h.b16 %v377
    %v1496 = vunpack.c.l.b16 %v378
    %v1497 = vunpack.c.h.b16 %v378
    %v1498 = vunpack.c.l.b16 %v379
    %v1499 = vunpack.c.h.b16 %v379
    %v1500 = vunpack.c.l.b16 %v380
    %v1501 = vunpack.c.h.b16 %v380
    %v1502 = vunpack.c.l.b16 %v381
    %v1503 = vunpack.c.h.b16 %v381
    %v1504 = vunpack.c.l.b16 %v382
    %v1505 = vunpack.c.h.b16 %v382
    %v1506 = vunpack.c.l.b16 %v383
    %v1507 = vunpack.c.h.b16 %v383
    %v1508 = vunpack.c.l.b16 %v384
    %v1509 = vunpack.c.h.b16 %v384
    %v1510 = vunpack.c.l.b16 %v385
    %v1511 = vunpack.c.h.b16 %v385
    %v1512 = vunpack.c.l.b16 %v386
    %v1513 = vunpack.c.h.b16 %v386
    %v1514 = vunpack.c.l.b16 %v387
    %v1515 = vunpack.c.h.b16 %v387
    %v1516 = vunpack.c.l.b16 %v388
    %v1517 = vunpack.c.h.b16 %v388
    %v1518 = vunpack.c.l.b16 %v389
    %v1519 = vunpack.c.h.b16 %v389
    %v1520 = vunpack.c.l.b16 %v390
    %v1521 = vunpack.c.h.b16 %v390
    %v1522 = vunpack.c.l.b16 %v391
    %v1523 = vunpack.c.h.b16 %v391
    %v1524 = vunpack.c.l.b16 %v392
    %v1525 = vunpack.c.h.b16 %v392
    %v1526 = vunpack.c.l.b16 %v393
    %v1527 = vunpack.c.h.b16 %v393
    %v1528 = vunpack.c.l.b16 %v394
    %v1529 = vunpack.c.h.b16 %v394
    %v1530 = vunpack.c.l.b16 %v395
    %v1531 = vunpack.c.h.b16 %v395
    %v1532 = vunpack.c.l.b16 %v396
    %v1533 = vunpack.c.h.b16 %v396
    %v1534 = vunpack.c.l.b16 %v397
    %v1535 = vunpack.c.h.b16 %v397
    %v1536 = vunpack.c.l.b16 %v398
    %v1537 = vunpack.c.h.b16 %v398
    %v1538 = vunpack.c.l.b16 %v399
    %v1539 = vunpack.c.h.b16 %v399
    %v1540 = vunpack.c.l.b16 %v400
    %v1541 = vunpack.c.h.b16 %v400
    %v1542 = vunpack.c.l.b16 %v401
    %v1543 = vunpack.c.h.b16 %v401
    %v1544 = vunpack.c.l.b16 %v402
    %v1545 = vunpack.c.h.b16 %v402
    %v1546 = vunpack.c.l.b16 %v403
    %v1547 = vunpack.c.h.b16 %v403
    %v1548 = vunpack.c.l.b16 %v404
    %v1549 = vunpack.c.h.b16 %v404
    %v1550 = vunpack.c.l.b16 %v405
    %v1551 = vunpack.c.h.b16 %v405
    %v1552 = vunpack.c.l.b16 %v406
    %v1553 = vunpack.c.h.b16 %v406
    %v1554 = vunpack.c.l.b16 %v407
    %v1555 = vunpack.c.h.b16 %v407
    %v1556 = vunpack.c.l.b16 %v408
    %v1557 = vunpack.c.h.b16 %v408
    %v1558 = vunpack.c.l.b16 %v409
    %v1559 = vunpack.c.h.b16 %v409
    %v1560 = vunpack.c.l.b16 %v410
    %v1561 = vunpack.c.h.b16 %v410
    %v1562 = vunpack.c.l.b16 %v411
    %v1563 = vunpack.c.h.b16 %v411
    %v1564 = vunpack.c.l.b16 %v412
    %v1565 = vunpack.c.h.b16 %v412
    %v1566 = vunpack.c.l.b16 %v413
    %v1567 = vunpack.c.h.b16 %v413
    %v1568 = vunpack.c.l.b16 %v414
    %v1569 = vunpack.c.h.b16 %v414
    %v1570 = vunpack.c.l.b16 %v415
    %v1571 = vunpack.c.h.b16 %v415
    %v1572 = vunpack.c.l.b16 %v416
    %v1573 = vunpack.c.h.b16 %v416
    %v1574 = vunpack.c.l.b16 %v417
    %v1575 = vunpack.c.h.b16 %v417
    %v1576 = vunpack.c.l.b16 %v418
    %v1577 = vunpack.c.h.b16 %v418
    %v1578 = vunpack.c.l.b16 %v419
    %v1579 = vunpack.c.h.b16 %v419
    %v1580 = vunpack.c.l.b16 %v420
    %v1581 = vunpack.c.h.b16 %v420
    %v1582 = vunpack.c.l.b16 %v421
    %v1583 = vunpack.c.h.b16 %v421
    %v1584 = vunpack.c.l.b16 %v422
    %v1585 = vunpack.c.h.b16 %v422
    %v1586 = vunpack.c.l.b16 %v423
    %v1587 = vunpack.c.h.b16 %v423
    %v1588 = vunpack.c.l.b16 %v424
    %v1589 = vunpack.c.h.b16 %v424
    %v1590 = vunpack.c.l.b16 %v425
    %v1591 = vunpack.c.h.b16 %v425
    %v1592 = vunpack.c.l.b16 %v426
    %v1593 = vunpack.c.h.b16 %v426
    %v1594 = vunpack.c.l.b16 %v427
    %v1595 = vunpack.c.h.b16 %v427
    %v1596 = vunpack.c.l.b16 %v428
    %v1597 = vunpack.c.h.b16 %v428
    %v1598 = vunpack.c.l.b16 %v429
    %v1599 = vunpack.c.h.b16 %v429
    %v1600 = vunpack.c.l.b16 %v430
    %v1601 = vunpack.c.h.b16 %v430
    %v1602 = vunpack.c.l.b16 %v431
    %v1603 = vunpack.c.h.b16 %v431
    %v1604 = vunpack.c.l.b16 %v432
    %v1605 = vunpack.c.h.b16 %v432
    %v1606 = vunpack.c.l.b16 %v433
    %v1607 = vunpack.c.h.b16 %v433
    %v1608 = vunpack.c.l.b16 %v434
    %v1609 = vunpack.c.h.b16 %v434
    %v1610 = vunpack.c.l.b16 %v435
    %v1611 = vunpack.c.h.b16 %v435
    %v1612 = vunpack.c.l.b16 %v436
    %v1613 = vunpack.c.h.b16 %v436
    %v1614 = vunpack.c.l.b16 %v437
    %v1615 = vunpack.c.h.b16 %v437
    %v1616 = vunpack.c.l.b16 %v438
    %v1617 = vunpack.c.h.b16 %v438
    %v1618 = vunpack.c.l.b16 %v439
    %v1619 = vunpack.c.h.b16 %v439
    %v1620 = vunpack.c.l.b16 %v440
    %v1621 = vunpack.c.h.b16 %v440
    %v1622 = vunpack.c.l.b16 %v441
    %v1623 = vunpack.c.h.b16 %v441
    %v1624 = vunpack.c.l.b16 %v442
    %v1625 = vunpack.c.h.b16 %v442
    %v1626 = vunpack.c.l.b16 %v443
    %v1627 = vunpack.c.h.b16 %v443
    %v1628 = vunpack.c.l.b16 %v444
    %v1629 = vunpack.c.h.b16 %v444
    %v1630 = vunpack.c.l.b16 %v445
    %v1631 = vunpack.c.h.b16 %v445
    %v1632 = vunpack.c.l.b16 %v446
    %v1633 = vunpack.c.h.b16 %v446
    %v1634 = vunpack.c.l.b16 %v447
    %v1635 = vunpack.c.h.b16 %v447
    %v1636 = vunpack.c.l.b16 %v448
    %v1637 = vunpack.c.h.b16 %v448
    %v1638 = vunpack.c.l.b16 %v449
    %v1639 = vunpack.c.h.b16 %v449
    %v1640 = vunpack.c.l.b16 %v450
    %v1641 = vunpack.c.h.b16 %v450
    %v1642 = vunpack.c.l.b16 %v451
    %v1643 = vunpack.c.h.b16 %v451
    %v1644 = vunpack.c.l.b16 %v452
    %v1645 = vunpack.c.h.b16 %v452
    %v1646 = vunpack.c.l.b16 %v453
    %v1647 = vunpack.c.h.b16 %v453
    %v1648 = vunpack.c.l.b16 %v454
    %v1649 = vunpack.c.h.b16 %v454
    %v1650 = vunpack.c.l.b16 %v455
    %v1651 = vunpack.c.h.b16 %v455
    %v1652 = vunpack.c.l.b16 %v456
    %v1653 = vunpack.c.h.b16 %v456
    %v1654 = vunpack.c.l.b16 %v457
    %v1655 = vunpack.c.h.b16 %v457
    %v1656 = vunpack.c.l.b16 %v458
    %v1657 = vunpack.c.h.b16 %v458
    %v1658 = vunpack.c.l.b16 %v459
    %v1659 = vunpack.c.h.b16 %v459
    %v1660 = vunpack.c.l.b16 %v460
    %v1661 = vunpack.c.h.b16 %v460
    %v1662 = vunpack.c.l.b16 %v461
    %v1663 = vunpack.c.h.b16 %v461
    %v1664 = vunpack.c.l.b16 %v462
    %v1665 = vunpack.c.h.b16 %v462
    %v1666 = vunpack.c.l.b16 %v463
    %v1667 = vunpack.c.h.b16 %v463
    %v1668 = vunpack.c.l.b16 %v464
    %v1669 = vunpack.c.h.b16 %v464
    %v1670 = vunpack.c.l.b16 %v465
    %v1671 = vunpack.c.h.b16 %v465
    %v1672 = vunpack.c.l.b16 %v466
    %v1673 = vunpack.c.h.b16 %v466
    %v1674 = vunpack.c.l.b16 %v467
    %v1675 = vunpack.c.h.b16 %v467
    %v1676 = vunpack.c.l.b16 %v468
    %v1677 = vunpack.c.h.b16 %v468
    %v1678 = vunpack.c.l.b16 %v469
    %v1679 = vunpack.c.h.b16 %v469
    %v1680 = vunpack.c.l.b16 %v470
    %v1681 = vunpack.c.h.b16 %v470
    %v1682 = vunpack.c.l.b16 %v471
    %v1683 = vunpack.c.h.b16 %v471
    %v1684 = vunpack.c.l.b16 %v472
    %v1685 = vunpack.c.h.b16 %v472
    %v1686 = vunpack.c.l.b16 %v473
    %v1687 = vunpack.c.h.b16 %v473
    %v1688 = vunpack.c.l.b16 %v474
    %v1689 = vunpack.c.h.b16 %v474
    %v1690 = vunpack.c.l.b16 %v475
    %v1691 = vunpack.c.h.b16 %v475
    %v1692 = vunpack.c.l.b16 %v476
    %v1693 = vunpack.c.h.b16 %v476
    %v1694 = vunpack.c.l.b16 %v477
    %v1695 = vunpack.c.h.b16 %v477
    %v1696 = vunpack.c.l.b16 %v478
    %v1697 = vunpack.c.h.b16 %v478
    %v1698 = vunpack.c.l.b16 %v479
    %v1699 = vunpack.c.h.b16 %v479
    %v1700 = vunpack.c.l.b16 %v480
    %v1701 = vunpack.c.h.b16 %v480
    %v1702 = vunpack.c.l.b16 %v481
    %v1703 = vunpack.c.h.b16 %v481
    %v1704 = vunpack.c.l.b16 %v482
    %v1705 = vunpack.c.h.b16 %v482
    %v1706 = vunpack.c.l.b16 %v483
    %v1707 = vunpack.c.h.b16 %v483
    %v1708 = vunpack.c.l.b16 %v484
    %v1709 = vunpack.c.h.b16 %v484
    %v1710 = vunpack.c.l.b16 %v485
    %v1711 = vunpack.c.h.b16 %v485
    %v1712 = vunpack.c.l.b16 %v486
    %v1713 = vunpack.c.h.b16 %v486
    %v1714 = vunpack.c.l.b16 %v487
    %v1715 = vunpack.c.h.b16 %v487
    %v1716 = vunpack.c.l.b16 %v488
    %v1717 = vunpack.c.h.b16 %v488
    %v1718 = vunpack.c.l.b16 %v489
    %v1719 = vunpack.c.h.b16 %v489
    %v1720 = vunpack.c.l.b16 %v490
    %v1721 = vunpack.c.h.b16 %v490
    %v1722 = vunpack.c.l.b16 %v491
    %v1723 = vunpack.c.h.b16 %v491
    %v1724 = vunpack.c.l.b16 %v492
    %v1725 = vunpack.c.h.b16 %v492
    %v1726 = vunpack.c.l.b16 %v493
    %v1727 = vunpack.c.h.b16 %v493
    %v1728 = vunpack.c.l.b16 %v494
    %v1729 = vunpack.c.h.b16 %v494
    %v1730 = vunpack.c.l.b16 %v495
    %v1731 = vunpack.c.h.b16 %v495
    %v1732 = vunpack.c.l.b16 %v496
    %v1733 = vunpack.c.h.b16 %v496
    %v1734 = vunpack.c.l.b16 %v497
    %v1735 = vunpack.c.h.b16 %v497
    %v1736 = vpack.c.b16 %v1166, %v1160
    %v1737 = vpack.c.b16 %v1167, %v1161
    %v1738 = vpack.c.b16 %v1168, %v1162
    %v1739 = vpack.c.b16 %v1169, %v1163
    %v1740 = vpack.c.b16 %v1170, %v1164
    %v1741 = vpack.c.b16 %v1171, %v1165
    %v1742 = vpack.c.b16 %v1178, %v1172
    %v1743 = vpack.c.b16 %v1179, %v1173
    %v1744 = vpack.c.b16 %v1180, %v1174
    %v1745 = vpack.c.b16 %v1181, %v1175
    %v1746 = vpack.c.b16 %v1182, %v1176
    %v1747 = vpack.c.b16 %v1183, %v1177
    %v1748 = vpack.c.b16 %v1190, %v1184
    %v1749 = vpack.c.b16 %v1191, %v1185
    %v1750 = vpack.c.b16 %v1192, %v1186
    %v1751 = vpack.c.b16 %v1193, %v1187
    %v1752 = vpack.c.b16 %v1194, %v1188
    %v1753 = vpack.c.b16 %v1195, %v1189
    %v1754 = vpack.c.b16 %v1202, %v1196
    %v1755 = vpack.c.b16 %v1203, %v1197
    %v1756 = vpack.c.b16 %v1204, %v1198
    %v1757 = vpack.c.b16 %v1205, %v1199
    %v1758 = vpack.c.b16 %v1206, %v1200
    %v1759 = vpack.c.b16 %v1207, %v1201
    %v1760 = vpack.c.b16 %v1214, %v1208
    %v1761 = vpack.c.b16 %v1215, %v1209
    %v1762 = vpack.c.b16 %v1216, %v1210
    %v1763 = vpack.c.b16 %v1217, %v1211
    %v1764 = vpack.c.b16 %v1218, %v1212
    %v1765 = vpack.c.b16 %v1219, %v1213
    %v1766 = vpack.c.b16 %v1226, %v1220
    %v1767 = vpack.c.b16 %v1227, %v1221
    %v1768 = vpack.c.b16 %v1228, %v1222
    %v1769 = vpack.c.b16 %v1229, %v1223
    %v1770 = vpack.c.b16 %v1230, %v1224
    %v1771 = vpack.c.b16 %v1231, %v1225
    %v1772 = vpack.c.b16 %v1238, %v1232
    %v1773 = vpack.c.b16 %v1239, %v1233
    %v1774 = vpack.c.b16 %v1240, %v1234
    %v1775 = vpack.c.b16 %v1241, %v1235
    %v1776 = vpack.c.b16 %v1242, %v1236
    %v1777 = vpack.c.b16 %v1243, %v1237
    %v1778 = vpack.c.b16 %v1250, %v1244
    %v1779 = vpack.c.b16 %v1251, %v1245
    %v1780 = vpack.c.b16 %v1252, %v1246
    %v1781 = vpack.c.b16 %v1253, %v1247
    %v1782 = vpack.c.b16 %v1254, %v1248
    %v1783 = vpack.c.b16 %v1255, %v1249
    %v1784 = vpack.c.b16 %v1262, %v1256
    %v1785 = vpack.c.b16 %v1263, %v1257
    %v1786 = vpack.c.b16 %v1264, %v1258
    %v1787 = vpack.c.b16 %v1265, %v1259
    %v1788 = vpack.c.b16 %v1266, %v1260
    %v1789 = vpack.c.b16 %v1267, %v1261
    %v1790 = vpack.c.b16 %v1274, %v1268
    %v1791 = vpack.c.b16 %v1275, %v1269
    %v1792 = vpack.c.b16 %v1276, %v1270
    %v1793 = vpack.c.b16 %v1277, %v1271
    %v1794 = vpack.c.b16 %v1278, %v1272
    %v1795 = vpack.c.b16 %v1279, %v1273
    %v1796 = vpack.c.b16 %v1286, %v1280
    %v1797 = vpack.c.b16 %v1287, %v1281
    %v1798 = vpack.c.b16 %v1288, %v1282
    %v1799 = vpack.c.b16 %v1289, %v1283
    %v1800 = vpack.c.b16 %v1290, %v1284
    %v1801 = vpack.c.b16 %v1291, %v1285
    %v1802 = vpack.c.b16 %v1298, %v1292
    %v1803 = vpack.c.b16 %v1299, %v1293
    %v1804 = vpack.c.b16 %v1300, %v1294
    %v1805 = vpack.c.b16 %v1301, %v1295
    %v1806 = vpack.c.b16 %v1302, %v1296
    %v1807 = vpack.c.b16 %v1303, %v1297
    %v1808 = vpack.c.b16 %v1310, %v1304
    %v1809 = vpack.c.b16 %v1311, %v1305
    %v1810 = vpack.c.b16 %v1312, %v1306
    %v1811 = vpack.c.b16 %v1313, %v1307
    %v1812 = vpack.c.b16 %v1314, %v1308
    %v1813 = vpack.c.b16 %v1315, %v1309
    %v1814 = vpack.c.b16 %v1322, %v1316
    %v1815 = vpack.c.b16 %v1323, %v1317
    %v1816 = vpack.c.b16 %v1324, %v1318
    %v1817 = vpack.c.b16 %v1325, %v1319
    %v1818 = vpack.c.b16 %v1326, %v1320
    %v1819 = vpack.c.b16 %v1327, %v1321
    %v1820 = vpack.c.b16 %v1334, %v1328
    %v1821 = vpack.c.b16 %v1335, %v1329
    %v1822 = vpack.c.b16 %v1336, %v1330
    %v1823 = vpack.c.b16 %v1337, %v1331
    %v1824 = vpack.c.b16 %v1338, %v1332
    %v1825 = vpack.c.b16 %v1339, %v1333
    %v1826 = vpack.c.b16 %v1346, %v1340
    %v1827 = vpack.c.b16 %v1347, %v1341
    %v1828 = vpack.c.b16 %v1348, %v1342
    %v1829 = vpack.c.b16 %v1349, %v1343
    %v1830 = vpack.c.b16 %v1350, %v1344
    %v1831 = vpack.c.b16 %v1351, %v1345
    %v1832 = vpack.c.b16 %v1358, %v1352
    %v1833 = vpack.c.b16 %v1359, %v1353
    %v1834 = vpack.c.b16 %v1360, %v1354
    %v1835 = vpack.c.b16 %v1361, %v1355
    %v1836 = vpack.c.b16 %v1362, %v1356
    %v1837 = vpack.c.b16 %v1363, %v1357
    %v1838 = vpack.c.b16 %v1370, %v1364
    %v1839 = vpack.c.b16 %v1371, %v1365
    %v1840 = vpack.c.b16 %v1372, %v1366
    %v1841 = vpack.c.b16 %v1373, %v1367
    %v1842 = vpack.c.b16 %v1374, %v1368
    %v1843 = vpack.c.b16 %v1375, %v1369
    %v1844 = vpack.c.b16 %v1382, %v1376
    %v1845 = vpack.c.b16 %v1383, %v1377
    %v1846 = vpack.c.b16 %v1384, %v1378
    %v1847 = vpack.c.b16 %v1385, %v1379
    %v1848 = vpack.c.b16 %v1386, %v1380
    %v1849 = vpack.c.b16 %v1387, %v1381
    %v1850 = vpack.c.b16 %v1394, %v1388
    %v1851 = vpack.c.b16 %v1395, %v1389
    %v1852 = vpack.c.b16 %v1396, %v1390
    %v1853 = vpack.c.b16 %v1397, %v1391
    %v1854 = vpack.c.b16 %v1398, %v1392
    %v1855 = vpack.c.b16 %v1399, %v1393
    %v1856 = vpack.c.b16 %v1406, %v1400
    %v1857 = vpack.c.b16 %v1407, %v1401
    %v1858 = vpack.c.b16 %v1408, %v1402
    %v1859 = vpack.c.b16 %v1409, %v1403
    %v1860 = vpack.c.b16 %v1410, %v1404
    %v1861 = vpack.c.b16 %v1411, %v1405
    %v1862 = vpack.c.b16 %v1418, %v1412
    %v1863 = vpack.c.b16 %v1419, %v1413
    %v1864 = vpack.c.b16 %v1420, %v1414
    %v1865 = vpack.c.b16 %v1421, %v1415
    %v1866 = vpack.c.b16 %v1422, %v1416
    %v1867 = vpack.c.b16 %v1423, %v1417
    %v1868 = vpack.c.b16 %v1430, %v1424
    %v1869 = vpack.c.b16 %v1431, %v1425
    %v1870 = vpack.c.b16 %v1432, %v1426
    %v1871 = vpack.c.b16 %v1433, %v1427
    %v1872 = vpack.c.b16 %v1434, %v1428
    %v1873 = vpack.c.b16 %v1435, %v1429
    %v1874 = vpack.c.b16 %v1442, %v1436
    %v1875 = vpack.c.b16 %v1443, %v1437
    %v1876 = vpack.c.b16 %v1444, %v1438
    %v1877 = vpack.c.b16 %v1445, %v1439
    %v1878 = vpack.c.b16 %v1446, %v1440
    %v1879 = vpack.c.b16 %v1447, %v1441
    %v1880 = vpack.c.b16 %v1454, %v1448
    %v1881 = vpack.c.b16 %v1455, %v1449
    %v1882 = vpack.c.b16 %v1456, %v1450
    %v1883 = vpack.c.b16 %v1457, %v1451
    %v1884 = vpack.c.b16 %v1458, %v1452
    %v1885 = vpack.c.b16 %v1459, %v1453
    %v1886 = vpack.c.b16 %v1466, %v1460
    %v1887 = vpack.c.b16 %v1467, %v1461
    %v1888 = vpack.c.b16 %v1468, %v1462
    %v1889 = vpack.c.b16 %v1469, %v1463
    %v1890 = vpack.c.b16 %v1470, %v1464
    %v1891 = vpack.c.b16 %v1471, %v1465
    %v1892 = vpack.c.b16 %v1478, %v1472
    %v1893 = vpack.c.b16 %v1479, %v1473
    %v1894 = vpack.c.b16 %v1480, %v1474
    %v1895 = vpack.c.b16 %v1481, %v1475
    %v1896 = vpack.c.b16 %v1482, %v1476
    %v1897 = vpack.c.b16 %v1483, %v1477
    %v1898 = vpack.c.b16 %v1490, %v1484
    %v1899 = vpack.c.b16 %v1491, %v1485
    %v1900 = vpack.c.b16 %v1492, %v1486
    %v1901 = vpack.c.b16 %v1493, %v1487
    %v1902 = vpack.c.b16 %v1494, %v1488
    %v1903 = vpack.c.b16 %v1495, %v1489
    %v1904 = vpack.c.b16 %v1502, %v1496
    %v1905 = vpack.c.b16 %v1503, %v1497
    %v1906 = vpack.c.b16 %v1504, %v1498
    %v1907 = vpack.c.b16 %v1505, %v1499
    %v1908 = vpack.c.b16 %v1506, %v1500
    %v1909 = vpack.c.b16 %v1507, %v1501
    %v1910 = vpack.c.b16 %v1514, %v1508
    %v1911 = vpack.c.b16 %v1515, %v1509
    %v1912 = vpack.c.b16 %v1516, %v1510
    %v1913 = vpack.c.b16 %v1517, %v1511
    %v1914 = vpack.c.b16 %v1518, %v1512
    %v1915 = vpack.c.b16 %v1519, %v1513
    %v1916 = vpack.c.b16 %v1526, %v1520
    %v1917 = vpack.c.b16 %v1527, %v1521
    %v1918 = vpack.c.b16 %v1528, %v1522
    %v1919 = vpack.c.b16 %v1529, %v1523
    %v1920 = vpack.c.b16 %v1530, %v1524
    %v1921 = vpack.c.b16 %v1531, %v1525
    %v1922 = vpack.c.b16 %v1538, %v1532
    %v1923 = vpack.c.b16 %v1539, %v1533
    %v1924 = vpack.c.b16 %v1540, %v1534
    %v1925 = vpack.c.b16 %v1541, %v1535
    %v1926 = vpack.c.b16 %v1542, %v1536
    %v1927 = vpack.c.b16 %v1543, %v1537
    %v1928 = vpack.c.b16 %v1550, %v1544
    %v1929 = vpack.c.b16 %v1551, %v1545
    %v1930 = vpack.c.b16 %v1552, %v1546
    %v1931 = vpack.c.b16 %v1553, %v1547
    %v1932 = vpack.c.b16 %v1554, %v1548
    %v1933 = vpack.c.b16 %v1555, %v1549
    %v1934 = vpack.c.b16 %v1562, %v1556
    %v1935 = vpack.c.b16 %v1563, %v1557
    %v1936 = vpack.c.b16 %v1564, %v1558
    %v1937 = vpack.c.b16 %v1565, %v1559
    %v1938 = vpack.c.b16 %v1566, %v1560
    %v1939 = vpack.c.b16 %v1567, %v1561
    %v1940 = vpack.c.b16 %v1574, %v1568
    %v1941 = vpack.c.b16 %v1575, %v1569
    %v1942 = vpack.c.b16 %v1576, %v1570
    %v1943 = vpack.c.b16 %v1577, %v1571
    %v1944 = vpack.c.b16 %v1578, %v1572
    %v1945 = vpack.c.b16 %v1579, %v1573
    %v1946 = vpack.c.b16 %v1586, %v1580
    %v1947 = vpack.c.b16 %v1587, %v1581
    %v1948 = vpack.c.b16 %v1588, %v1582
    %v1949 = vpack.c.b16 %v1589, %v1583
    %v1950 = vpack.c.b16 %v1590, %v1584
    %v1951 = vpack.c.b16 %v1591, %v1585
    %v1952 = vpack.c.b16 %v1598, %v1592
    %v1953 = vpack.c.b16 %v1599, %v1593
    %v1954 = vpack.c.b16 %v1600, %v1594
    %v1955 = vpack.c.b16 %v1601, %v1595
    %v1956 = vpack.c.b16 %v1602, %v1596
    %v1957 = vpack.c.b16 %v1603, %v1597
    %v1958 = vpack.c.b16 %v1610, %v1604
    %v1959 = vpack.c.b16 %v1611, %v1605
    %v1960 = vpack.c.b16 %v1612, %v1606
    %v1961 = vpack.c.b16 %v1613, %v1607
    %v1962 = vpack.c.b16 %v1614, %v1608
    %v1963 = vpack.c.b16 %v1615, %v1609
    %v1964 = vpack.c.b16 %v1622, %v1616
    %v1965 = vpack.c.b16 %v1623, %v1617
    %v1966 = vpack.c.b16 %v1624, %v1618
    %v1967 = vpack.c.b16 %v1625, %v1619
    %v1968 = vpack.c.b16 %v1626, %v1620
    %v1969 = vpack.c.b16 %v1627, %v1621
    %v1970 = vpack.c.b16 %v1634, %v1628
    %v1971 = vpack.c.b16 %v1635, %v1629
    %v1972 = vpack.c.b16 %v1636, %v1630
    %v1973 = vpack.c.b16 %v1637, %v1631
    %v1974 = vpack.c.b16 %v1638, %v1632
    %v1975 = vpack.c.b16 %v1639, %v1633
    %v1976 = vpack.c.b16 %v1646, %v1640
    %v1977 = vpack.c.b16 %v1647, %v1641
    %v1978 = vpack.c.b16 %v1648, %v1642
    %v1979 = vpack.c.b16 %v1649, %v1643
    %v1980 = vpack.c.b16 %v1650, %v1644
    %v1981 = vpack.c.b16 %v1651, %v1645
    %v1982 = vpack.c.b16 %v1658, %v1652
    %v1983 = vpack.c.b16 %v1659, %v1653
    %v1984 = vpack.c.b16 %v1660, %v1654
    %v1985 = vpack.c.b16 %v1661, %v1655
    %v1986 = vpack.c.b16 %v1662, %v1656
    %v1987 = vpack.c.b16 %v1663, %v1657
    %v1988 = vpack.c.b16 %v1670, %v1664
    %v1989 = vpack.c.b16 %v1671, %v1665
    %v1990 = vpack.c.b16 %v1672, %v1666
    %v1991 = vpack.c.b16 %v1673, %v1667
    %v1992 = vpack.c.b16 %v1674, %v1668
    %v1993 = vpack.c.b16 %v1675, %v1669
    %v1994 = vpack.c.b16 %v1682, %v1676
    %v1995 = vpack.c.b16 %v1683, %v1677
    %v1996 = vpack.c.b16 %v1684, %v1678
    %v1997 = vpack.c.b16 %v1685, %v1679
    %v1998 = vpack.c.b16 %v1686, %v1680
    %v1999 = vpack.c.b16 %v1687, %v1681
    %v2000 = vpack.c.b16 %v1694, %v1688
    %v2001 = vpack.c.b16 %v1695, %v1689
    %v2002 = vpack.c.b16 %v1696, %v1690
    %v2003 = vpack.c.b16 %v1697, %v1691
    %v2004 = vpack.c.b16 %v1698, %v1692
    %v2005 = vpack.c.b16 %v1699, %v1693
    %v2006 = vpack.c.b16 %v1706, %v1700
    %v2007 = vpack.c.b16 %v1707, %v1701
    %v2008 = vpack.c.b16 %v1708, %v1702
    %v2009 = vpack.c.b16 %v1709, %v1703
    %v2010 = vpack.c.b16 %v1710, %v1704
    %v2011 = vpack.c.b16 %v1711, %v1705
    %v2012 = vpack.c.b16 %v1718, %v1712
    %v2013 = vpack.c.b16 %v1719, %v1713
    %v2014 = vpack.c.b16 %v1720, %v1714
    %v2015 = vpack.c.b16 %v1721, %v1715
    %v2016 = vpack.c.b16 %v1722, %v1716
    %v2017 = vpack.c.b16 %v1723, %v1717
    %v2018 = vpack.c.b16 %v1730, %v1724
    %v2019 = vpack.c.b16 %v1731, %v1725
    %v2020 = vpack.c.b16 %v1732, %v1726
    %v2021 = vpack.c.b16 %v1733, %v1727
    %v2022 = vpack.c.b16 %v1734, %v1728
    %v2023 = vpack.c.b16 %v1735, %v1729
    %2312 = vmatpush.bf16.msra.mxu0 %v1778
    %2313 = vmatpush.bf16.msra.mxu0 %v1772
    %2314 = vmatpush.bf16.msra.mxu0 %v1766
    %2315 = vmatpush.bf16.msra.mxu0 %v1760
    %2316 = vmatpush.bf16.msra.mxu0 %v1754
    %2317 = vmatpush.bf16.msra.mxu0 %v1748
    %2318 = vmatpush.bf16.msra.mxu0 %v1742
    %2319 = vmatpush.bf16.msra.mxu0 %v1736
    %2320 = vmatmul.bf16.gmra.mxu0 %v728
    %v2321 = vpop.f32.mrf.mxu0
    %v2322 = vadd.f32 %v500, %v2321
    %v2323 = vpop.f32.mrf.mxu0
    %v2324 = vadd.f32 %v500, %v2323
    %2325 = vmatmul.bf16.gmra.mxu0 %v734
    %v2326 = vpop.f32.mrf.mxu0
    %v2327 = vadd.f32 %v500, %v2326
    %v2328 = vpop.f32.mrf.mxu0
    %v2329 = vadd.f32 %v500, %v2328
    %2330 = vmatmul.bf16.gmra.mxu0 %v740
    %v2331 = vpop.f32.mrf.mxu0
    %v2332 = vadd.f32 %v500, %v2331
    %v2333 = vpop.f32.mrf.mxu0
    %v2334 = vadd.f32 %v500, %v2333
    %2335 = vmatmul.bf16.gmra.mxu0 %v746
    %v2336 = vpop.f32.mrf.mxu0
    %v2337 = vadd.f32 %v500, %v2336
    %v2338 = vpop.f32.mrf.mxu0
    %v2339 = vadd.f32 %v500, %v2338
    %2340 = vmatmul.bf16.gmra.mxu0 %v752
    %v2341 = vpop.f32.mrf.mxu0
    %v2342 = vadd.f32 %v500, %v2341
    %v2343 = vpop.f32.mrf.mxu0
    %v2344 = vadd.f32 %v500, %v2343
    %2345 = vmatmul.bf16.gmra.mxu0 %v758
    %v2346 = vpop.f32.mrf.mxu0
    %v2347 = vadd.f32 %v500, %v2346
    %v2348 = vpop.f32.mrf.mxu0
    %v2349 = vadd.f32 %v500, %v2348
    %2350 = vmatmul.bf16.gmra.mxu0 %v764
    %v2351 = vpop.f32.mrf.mxu0
    %v2352 = vadd.f32 %v500, %v2351
    %v2353 = vpop.f32.mrf.mxu0
    %v2354 = vadd.f32 %v500, %v2353
    %2355 = vmatmul.bf16.gmra.mxu0 %v770
    %v2356 = vpop.f32.mrf.mxu0
    %v2357 = vadd.f32 %v500, %v2356
    %v2358 = vpop.f32.mrf.mxu0
    %v2359 = vadd.f32 %v500, %v2358
    %2360 = vmatmul.bf16.gmra.mxu0 %v776
    %v2361 = vpop.f32.mrf.mxu0
    %v2362 = vadd.f32 %v500, %v2361
    %v2363 = vpop.f32.mrf.mxu0
    %v2364 = vadd.f32 %v500, %v2363
    %2365 = vmatmul.bf16.gmra.mxu0 %v782
    %v2366 = vpop.f32.mrf.mxu0
    %v2367 = vadd.f32 %v500, %v2366
    %v2368 = vpop.f32.mrf.mxu0
    %v2369 = vadd.f32 %v500, %v2368
    %2370 = vmatmul.bf16.gmra.mxu0 %v788
    %v2371 = vpop.f32.mrf.mxu0
    %v2372 = vadd.f32 %v500, %v2371
    %v2373 = vpop.f32.mrf.mxu0
    %v2374 = vadd.f32 %v500, %v2373
    %2375 = vmatmul.bf16.gmra.mxu0 %v794
    %v2376 = vpop.f32.mrf.mxu0
    %v2377 = vadd.f32 %v500, %v2376
    %v2378 = vpop.f32.mrf.mxu0
    %v2379 = vadd.f32 %v500, %v2378
    %2380 = vdwg.mxu0
    %2381 = vmatpush.bf16.msra.mxu0 %v1826
    %2382 = vmatpush.bf16.msra.mxu0 %v1820
    %2383 = vmatpush.bf16.msra.mxu0 %v1814
    %2384 = vmatpush.bf16.msra.mxu0 %v1808
    %2385 = vmatpush.bf16.msra.mxu0 %v1802
    %2386 = vmatpush.bf16.msra.mxu0 %v1796
    %2387 = vmatpush.bf16.msra.mxu0 %v1790
    %2388 = vmatpush.bf16.msra.mxu0 %v1784
    %2389 = vmatmul.bf16.gmra.mxu0 %v729
    %v2390 = vpop.f32.mrf.mxu0
    %v2391 = vadd.f32 %v2322, %v2390
    %v2392 = vpop.f32.mrf.mxu0
    %v2393 = vadd.f32 %v2324, %v2392
    %2394 = vmatmul.bf16.gmra.mxu0 %v735
    %v2395 = vpop.f32.mrf.mxu0
    %v2396 = vadd.f32 %v2327, %v2395
    %v2397 = vpop.f32.mrf.mxu0
    %v2398 = vadd.f32 %v2329, %v2397
    %2399 = vmatmul.bf16.gmra.mxu0 %v741
    %v2400 = vpop.f32.mrf.mxu0
    %v2401 = vadd.f32 %v2332, %v2400
    %v2402 = vpop.f32.mrf.mxu0
    %v2403 = vadd.f32 %v2334, %v2402
    %2404 = vmatmul.bf16.gmra.mxu0 %v747
    %v2405 = vpop.f32.mrf.mxu0
    %v2406 = vadd.f32 %v2337, %v2405
    %v2407 = vpop.f32.mrf.mxu0
    %v2408 = vadd.f32 %v2339, %v2407
    %2409 = vmatmul.bf16.gmra.mxu0 %v753
    %v2410 = vpop.f32.mrf.mxu0
    %v2411 = vadd.f32 %v2342, %v2410
    %v2412 = vpop.f32.mrf.mxu0
    %v2413 = vadd.f32 %v2344, %v2412
    %2414 = vmatmul.bf16.gmra.mxu0 %v759
    %v2415 = vpop.f32.mrf.mxu0
    %v2416 = vadd.f32 %v2347, %v2415
    %v2417 = vpop.f32.mrf.mxu0
    %v2418 = vadd.f32 %v2349, %v2417
    %2419 = vmatmul.bf16.gmra.mxu0 %v765
    %v2420 = vpop.f32.mrf.mxu0
    %v2421 = vadd.f32 %v2352, %v2420
    %v2422 = vpop.f32.mrf.mxu0
    %v2423 = vadd.f32 %v2354, %v2422
    %2424 = vmatmul.bf16.gmra.mxu0 %v771
    %v2425 = vpop.f32.mrf.mxu0
    %v2426 = vadd.f32 %v2357, %v2425
    %v2427 = vpop.f32.mrf.mxu0
    %v2428 = vadd.f32 %v2359, %v2427
    %2429 = vmatmul.bf16.gmra.mxu0 %v777
    %v2430 = vpop.f32.mrf.mxu0
    %v2431 = vadd.f32 %v2362, %v2430
    %v2432 = vpop.f32.mrf.mxu0
    %v2433 = vadd.f32 %v2364, %v2432
    %2434 = vmatmul.bf16.gmra.mxu0 %v783
    %v2435 = vpop.f32.mrf.mxu0
    %v2436 = vadd.f32 %v2367, %v2435
    %v2437 = vpop.f32.mrf.mxu0
    %v2438 = vadd.f32 %v2369, %v2437
    %2439 = vmatmul.bf16.gmra.mxu0 %v789
    %v2440 = vpop.f32.mrf.mxu0
    %v2441 = vadd.f32 %v2372, %v2440
    %v2442 = vpop.f32.mrf.mxu0
    %v2443 = vadd.f32 %v2374, %v2442
    %2444 = vmatmul.bf16.gmra.mxu0 %v795
    %v2445 = vpop.f32.mrf.mxu0
    %v2446 = vadd.f32 %v2377, %v2445
    %v2447 = vpop.f32.mrf.mxu0
    %v2448 = vadd.f32 %v2379, %v2447
    %2449 = vdwg.mxu0
    %2450 = vmatpush.bf16.msra.mxu0 %v1874
    %2451 = vmatpush.bf16.msra.mxu0 %v1868
    %2452 = vmatpush.bf16.msra.mxu0 %v1862
    %2453 = vmatpush.bf16.msra.mxu0 %v1856
    %2454 = vmatpush.bf16.msra.mxu0 %v1850
    %2455 = vmatpush.bf16.msra.mxu0 %v1844
    %2456 = vmatpush.bf16.msra.mxu0 %v1838
    %2457 = vmatpush.bf16.msra.mxu0 %v1832
    %2458 = vmatmul.bf16.gmra.mxu0 %v730
    %v2459 = vpop.f32.mrf.mxu0
    %v2460 = vadd.f32 %v2391, %v2459
    %v2461 = vpop.f32.mrf.mxu0
    %v2462 = vadd.f32 %v2393, %v2461
    %2463 = vmatmul.bf16.gmra.mxu0 %v736
    %v2464 = vpop.f32.mrf.mxu0
    %v2465 = vadd.f32 %v2396, %v2464
    %v2466 = vpop.f32.mrf.mxu0
    %v2467 = vadd.f32 %v2398, %v2466
    %2468 = vmatmul.bf16.gmra.mxu0 %v742
    %v2469 = vpop.f32.mrf.mxu0
    %v2470 = vadd.f32 %v2401, %v2469
    %v2471 = vpop.f32.mrf.mxu0
    %v2472 = vadd.f32 %v2403, %v2471
    %2473 = vmatmul.bf16.gmra.mxu0 %v748
    %v2474 = vpop.f32.mrf.mxu0
    %v2475 = vadd.f32 %v2406, %v2474
    %v2476 = vpop.f32.mrf.mxu0
    %v2477 = vadd.f32 %v2408, %v2476
    %2478 = vmatmul.bf16.gmra.mxu0 %v754
    %v2479 = vpop.f32.mrf.mxu0
    %v2480 = vadd.f32 %v2411, %v2479
    %v2481 = vpop.f32.mrf.mxu0
    %v2482 = vadd.f32 %v2413, %v2481
    %2483 = vmatmul.bf16.gmra.mxu0 %v760
    %v2484 = vpop.f32.mrf.mxu0
    %v2485 = vadd.f32 %v2416, %v2484
    %v2486 = vpop.f32.mrf.mxu0
    %v2487 = vadd.f32 %v2418, %v2486
    %2488 = vmatmul.bf16.gmra.mxu0 %v766
    %v2489 = vpop.f32.mrf.mxu0
    %v2490 = vadd.f32 %v2421, %v2489
    %v2491 = vpop.f32.mrf.mxu0
    %v2492 = vadd.f32 %v2423, %v2491
    %2493 = vmatmul.bf16.gmra.mxu0 %v772
    %v2494 = vpop.f32.mrf.mxu0
    %v2495 = vadd.f32 %v2426, %v2494
    %v2496 = vpop.f32.mrf.mxu0
    %v2497 = vadd.f32 %v2428, %v2496
    %2498 = vmatmul.bf16.gmra.mxu0 %v778
    %v2499 = vpop.f32.mrf.mxu0
    %v2500 = vadd.f32 %v2431, %v2499
    %v2501 = vpop.f32.mrf.mxu0
    %v2502 = vadd.f32 %v2433, %v2501
    %2503 = vmatmul.bf16.gmra.mxu0 %v784
    %v2504 = vpop.f32.mrf.mxu0
    %v2505 = vadd.f32 %v2436, %v2504
    %v2506 = vpop.f32.mrf.mxu0
    %v2507 = vadd.f32 %v2438, %v2506
    %2508 = vmatmul.bf16.gmra.mxu0 %v790
    %v2509 = vpop.f32.mrf.mxu0
    %v2510 = vadd.f32 %v2441, %v2509
    %v2511 = vpop.f32.mrf.mxu0
    %v2512 = vadd.f32 %v2443, %v2511
    %2513 = vmatmul.bf16.gmra.mxu0 %v796
    %v2514 = vpop.f32.mrf.mxu0
    %v2515 = vadd.f32 %v2446, %v2514
    %v2516 = vpop.f32.mrf.mxu0
    %v2517 = vadd.f32 %v2448, %v2516
    %2518 = vdwg.mxu0
    %2519 = vmatpush.bf16.msra.mxu0 %v1922
    %2520 = vmatpush.bf16.msra.mxu0 %v1916
    %2521 = vmatpush.bf16.msra.mxu0 %v1910
    %2522 = vmatpush.bf16.msra.mxu0 %v1904
    %2523 = vmatpush.bf16.msra.mxu0 %v1898
    %2524 = vmatpush.bf16.msra.mxu0 %v1892
    %2525 = vmatpush.bf16.msra.mxu0 %v1886
    %2526 = vmatpush.bf16.msra.mxu0 %v1880
    %2527 = vmatmul.bf16.gmra.mxu0 %v731
    %v2528 = vpop.f32.mrf.mxu0
    %v2529 = vadd.f32 %v2460, %v2528
    %v2530 = vpop.f32.mrf.mxu0
    %v2531 = vadd.f32 %v2462, %v2530
    %2532 = vmatmul.bf16.gmra.mxu0 %v737
    %v2533 = vpop.f32.mrf.mxu0
    %v2534 = vadd.f32 %v2465, %v2533
    %v2535 = vpop.f32.mrf.mxu0
    %v2536 = vadd.f32 %v2467, %v2535
    %2537 = vmatmul.bf16.gmra.mxu0 %v743
    %v2538 = vpop.f32.mrf.mxu0
    %v2539 = vadd.f32 %v2470, %v2538
    %v2540 = vpop.f32.mrf.mxu0
    %v2541 = vadd.f32 %v2472, %v2540
    %2542 = vmatmul.bf16.gmra.mxu0 %v749
    %v2543 = vpop.f32.mrf.mxu0
    %v2544 = vadd.f32 %v2475, %v2543
    %v2545 = vpop.f32.mrf.mxu0
    %v2546 = vadd.f32 %v2477, %v2545
    %2547 = vmatmul.bf16.gmra.mxu0 %v755
    %v2548 = vpop.f32.mrf.mxu0
    %v2549 = vadd.f32 %v2480, %v2548
    %v2550 = vpop.f32.mrf.mxu0
    %v2551 = vadd.f32 %v2482, %v2550
    %2552 = vmatmul.bf16.gmra.mxu0 %v761
    %v2553 = vpop.f32.mrf.mxu0
    %v2554 = vadd.f32 %v2485, %v2553
    %v2555 = vpop.f32.mrf.mxu0
    %v2556 = vadd.f32 %v2487, %v2555
    %2557 = vmatmul.bf16.gmra.mxu0 %v767
    %v2558 = vpop.f32.mrf.mxu0
    %v2559 = vadd.f32 %v2490, %v2558
    %v2560 = vpop.f32.mrf.mxu0
    %v2561 = vadd.f32 %v2492, %v2560
    %2562 = vmatmul.bf16.gmra.mxu0 %v773
    %v2563 = vpop.f32.mrf.mxu0
    %v2564 = vadd.f32 %v2495, %v2563
    %v2565 = vpop.f32.mrf.mxu0
    %v2566 = vadd.f32 %v2497, %v2565
    %2567 = vmatmul.bf16.gmra.mxu0 %v779
    %v2568 = vpop.f32.mrf.mxu0
    %v2569 = vadd.f32 %v2500, %v2568
    %v2570 = vpop.f32.mrf.mxu0
    %v2571 = vadd.f32 %v2502, %v2570
    %2572 = vmatmul.bf16.gmra.mxu0 %v785
    %v2573 = vpop.f32.mrf.mxu0
    %v2574 = vadd.f32 %v2505, %v2573
    %v2575 = vpop.f32.mrf.mxu0
    %v2576 = vadd.f32 %v2507, %v2575
    %2577 = vmatmul.bf16.gmra.mxu0 %v791
    %v2578 = vpop.f32.mrf.mxu0
    %v2579 = vadd.f32 %v2510, %v2578
    %v2580 = vpop.f32.mrf.mxu0
    %v2581 = vadd.f32 %v2512, %v2580
    %2582 = vmatmul.bf16.gmra.mxu0 %v797
    %v2583 = vpop.f32.mrf.mxu0
    %v2584 = vadd.f32 %v2515, %v2583
    %v2585 = vpop.f32.mrf.mxu0
    %v2586 = vadd.f32 %v2517, %v2585
    %2587 = vdwg.mxu0
    %2588 = vmatpush.bf16.msra.mxu0 %v1970
    %2589 = vmatpush.bf16.msra.mxu0 %v1964
    %2590 = vmatpush.bf16.msra.mxu0 %v1958
    %2591 = vmatpush.bf16.msra.mxu0 %v1952
    %2592 = vmatpush.bf16.msra.mxu0 %v1946
    %2593 = vmatpush.bf16.msra.mxu0 %v1940
    %2594 = vmatpush.bf16.msra.mxu0 %v1934
    %2595 = vmatpush.bf16.msra.mxu0 %v1928
    %2596 = vmatmul.bf16.gmra.mxu0 %v732
    %v2597 = vpop.f32.mrf.mxu0
    %v2598 = vadd.f32 %v2529, %v2597
    %v2599 = vpop.f32.mrf.mxu0
    %v2600 = vadd.f32 %v2531, %v2599
    %2601 = vmatmul.bf16.gmra.mxu0 %v738
    %v2602 = vpop.f32.mrf.mxu0
    %v2603 = vadd.f32 %v2534, %v2602
    %v2604 = vpop.f32.mrf.mxu0
    %v2605 = vadd.f32 %v2536, %v2604
    %2606 = vmatmul.bf16.gmra.mxu0 %v744
    %v2607 = vpop.f32.mrf.mxu0
    %v2608 = vadd.f32 %v2539, %v2607
    %v2609 = vpop.f32.mrf.mxu0
    %v2610 = vadd.f32 %v2541, %v2609
    %2611 = vmatmul.bf16.gmra.mxu0 %v750
    %v2612 = vpop.f32.mrf.mxu0
    %v2613 = vadd.f32 %v2544, %v2612
    %v2614 = vpop.f32.mrf.mxu0
    %v2615 = vadd.f32 %v2546, %v2614
    %2616 = vmatmul.bf16.gmra.mxu0 %v756
    %v2617 = vpop.f32.mrf.mxu0
    %v2618 = vadd.f32 %v2549, %v2617
    %v2619 = vpop.f32.mrf.mxu0
    %v2620 = vadd.f32 %v2551, %v2619
    %2621 = vmatmul.bf16.gmra.mxu0 %v762
    %v2622 = vpop.f32.mrf.mxu0
    %v2623 = vadd.f32 %v2554, %v2622
    %v2624 = vpop.f32.mrf.mxu0
    %v2625 = vadd.f32 %v2556, %v2624
    %2626 = vmatmul.bf16.gmra.mxu0 %v768
    %v2627 = vpop.f32.mrf.mxu0
    %v2628 = vadd.f32 %v2559, %v2627
    %v2629 = vpop.f32.mrf.mxu0
    %v2630 = vadd.f32 %v2561, %v2629
    %2631 = vmatmul.bf16.gmra.mxu0 %v774
    %v2632 = vpop.f32.mrf.mxu0
    %v2633 = vadd.f32 %v2564, %v2632
    %v2634 = vpop.f32.mrf.mxu0
    %v2635 = vadd.f32 %v2566, %v2634
    %2636 = vmatmul.bf16.gmra.mxu0 %v780
    %v2637 = vpop.f32.mrf.mxu0
    %v2638 = vadd.f32 %v2569, %v2637
    %v2639 = vpop.f32.mrf.mxu0
    %v2640 = vadd.f32 %v2571, %v2639
    %2641 = vmatmul.bf16.gmra.mxu0 %v786
    %v2642 = vpop.f32.mrf.mxu0
    %v2643 = vadd.f32 %v2574, %v2642
    %v2644 = vpop.f32.mrf.mxu0
    %v2645 = vadd.f32 %v2576, %v2644
    %2646 = vmatmul.bf16.gmra.mxu0 %v792
    %v2647 = vpop.f32.mrf.mxu0
    %v2648 = vadd.f32 %v2579, %v2647
    %v2649 = vpop.f32.mrf.mxu0
    %v2650 = vadd.f32 %v2581, %v2649
    %2651 = vmatmul.bf16.gmra.mxu0 %v798
    %v2652 = vpop.f32.mrf.mxu0
    %v2653 = vadd.f32 %v2584, %v2652
    %v2654 = vpop.f32.mrf.mxu0
    %v2655 = vadd.f32 %v2586, %v2654
    %2656 = vdwg.mxu0
    %2657 = vmatpush.bf16.msra.mxu0 %v2018
    %2658 = vmatpush.bf16.msra.mxu0 %v2012
    %2659 = vmatpush.bf16.msra.mxu0 %v2006
    %2660 = vmatpush.bf16.msra.mxu0 %v2000
    %2661 = vmatpush.bf16.msra.mxu0 %v1994
    %2662 = vmatpush.bf16.msra.mxu0 %v1988
    %2663 = vmatpush.bf16.msra.mxu0 %v1982
    %2664 = vmatpush.bf16.msra.mxu0 %v1976
    %2665 = vmatmul.bf16.gmra.mxu0 %v733
    %v2666 = vpop.f32.mrf.mxu0
    %v2667 = vadd.f32 %v2598, %v2666
    %v2668 = vpop.f32.mrf.mxu0
    %v2669 = vadd.f32 %v2600, %v2668
    %2670 = vmatmul.bf16.gmra.mxu0 %v739
    %v2671 = vpop.f32.mrf.mxu0
    %v2672 = vadd.f32 %v2603, %v2671
    %v2673 = vpop.f32.mrf.mxu0
    %v2674 = vadd.f32 %v2605, %v2673
    %2675 = vmatmul.bf16.gmra.mxu0 %v745
    %v2676 = vpop.f32.mrf.mxu0
    %v2677 = vadd.f32 %v2608, %v2676
    %v2678 = vpop.f32.mrf.mxu0
    %v2679 = vadd.f32 %v2610, %v2678
    %2680 = vmatmul.bf16.gmra.mxu0 %v751
    %v2681 = vpop.f32.mrf.mxu0
    %v2682 = vadd.f32 %v2613, %v2681
    %v2683 = vpop.f32.mrf.mxu0
    %v2684 = vadd.f32 %v2615, %v2683
    %2685 = vmatmul.bf16.gmra.mxu0 %v757
    %v2686 = vpop.f32.mrf.mxu0
    %v2687 = vadd.f32 %v2618, %v2686
    %v2688 = vpop.f32.mrf.mxu0
    %v2689 = vadd.f32 %v2620, %v2688
    %2690 = vmatmul.bf16.gmra.mxu0 %v763
    %v2691 = vpop.f32.mrf.mxu0
    %v2692 = vadd.f32 %v2623, %v2691
    %v2693 = vpop.f32.mrf.mxu0
    %v2694 = vadd.f32 %v2625, %v2693
    %2695 = vmatmul.bf16.gmra.mxu0 %v769
    %v2696 = vpop.f32.mrf.mxu0
    %v2697 = vadd.f32 %v2628, %v2696
    %v2698 = vpop.f32.mrf.mxu0
    %v2699 = vadd.f32 %v2630, %v2698
    %2700 = vmatmul.bf16.gmra.mxu0 %v775
    %v2701 = vpop.f32.mrf.mxu0
    %v2702 = vadd.f32 %v2633, %v2701
    %v2703 = vpop.f32.mrf.mxu0
    %v2704 = vadd.f32 %v2635, %v2703
    %2705 = vmatmul.bf16.gmra.mxu0 %v781
    %v2706 = vpop.f32.mrf.mxu0
    %v2707 = vadd.f32 %v2638, %v2706
    %v2708 = vpop.f32.mrf.mxu0
    %v2709 = vadd.f32 %v2640, %v2708
    %2710 = vmatmul.bf16.gmra.mxu0 %v787
    %v2711 = vpop.f32.mrf.mxu0
    %v2712 = vadd.f32 %v2643, %v2711
    %v2713 = vpop.f32.mrf.mxu0
    %v2714 = vadd.f32 %v2645, %v2713
    %2715 = vmatmul.bf16.gmra.mxu0 %v793
    %v2716 = vpop.f32.mrf.mxu0
    %v2717 = vadd.f32 %v2648, %v2716
    %v2718 = vpop.f32.mrf.mxu0
    %v2719 = vadd.f32 %v2650, %v2718
    %2720 = vmatmul.bf16.gmra.mxu0 %v799
    %v2721 = vpop.f32.mrf.mxu0
    %v2722 = vadd.f32 %v2653, %v2721
    %v2723 = vpop.f32.mrf.mxu0
    %v2724 = vadd.f32 %v2655, %v2723
    %2725 = vdwg.mxu0
    %2726 = vmatpush.bf16.msra.mxu0 %v1779
    %2727 = vmatpush.bf16.msra.mxu0 %v1773
    %2728 = vmatpush.bf16.msra.mxu0 %v1767
    %2729 = vmatpush.bf16.msra.mxu0 %v1761
    %2730 = vmatpush.bf16.msra.mxu0 %v1755
    %2731 = vmatpush.bf16.msra.mxu0 %v1749
    %2732 = vmatpush.bf16.msra.mxu0 %v1743
    %2733 = vmatpush.bf16.msra.mxu0 %v1737
    %2734 = vmatmul.bf16.gmra.mxu0 %v728
    %v2735 = vpop.f32.mrf.mxu0
    %v2736 = vadd.f32 %v501, %v2735
    %v2737 = vpop.f32.mrf.mxu0
    %v2738 = vadd.f32 %v501, %v2737
    %2739 = vmatmul.bf16.gmra.mxu0 %v734
    %v2740 = vpop.f32.mrf.mxu0
    %v2741 = vadd.f32 %v501, %v2740
    %v2742 = vpop.f32.mrf.mxu0
    %v2743 = vadd.f32 %v501, %v2742
    %2744 = vmatmul.bf16.gmra.mxu0 %v740
    %v2745 = vpop.f32.mrf.mxu0
    %v2746 = vadd.f32 %v501, %v2745
    %v2747 = vpop.f32.mrf.mxu0
    %v2748 = vadd.f32 %v501, %v2747
    %2749 = vmatmul.bf16.gmra.mxu0 %v746
    %v2750 = vpop.f32.mrf.mxu0
    %v2751 = vadd.f32 %v501, %v2750
    %v2752 = vpop.f32.mrf.mxu0
    %v2753 = vadd.f32 %v501, %v2752
    %2754 = vmatmul.bf16.gmra.mxu0 %v752
    %v2755 = vpop.f32.mrf.mxu0
    %v2756 = vadd.f32 %v501, %v2755
    %v2757 = vpop.f32.mrf.mxu0
    %v2758 = vadd.f32 %v501, %v2757
    %2759 = vmatmul.bf16.gmra.mxu0 %v758
    %v2760 = vpop.f32.mrf.mxu0
    %v2761 = vadd.f32 %v501, %v2760
    %v2762 = vpop.f32.mrf.mxu0
    %v2763 = vadd.f32 %v501, %v2762
    %2764 = vmatmul.bf16.gmra.mxu0 %v764
    %v2765 = vpop.f32.mrf.mxu0
    %v2766 = vadd.f32 %v501, %v2765
    %v2767 = vpop.f32.mrf.mxu0
    %v2768 = vadd.f32 %v501, %v2767
    %2769 = vmatmul.bf16.gmra.mxu0 %v770
    %v2770 = vpop.f32.mrf.mxu0
    %v2771 = vadd.f32 %v501, %v2770
    %v2772 = vpop.f32.mrf.mxu0
    %v2773 = vadd.f32 %v501, %v2772
    %2774 = vmatmul.bf16.gmra.mxu0 %v776
    %v2775 = vpop.f32.mrf.mxu0
    %v2776 = vadd.f32 %v501, %v2775
    %v2777 = vpop.f32.mrf.mxu0
    %v2778 = vadd.f32 %v501, %v2777
    %2779 = vmatmul.bf16.gmra.mxu0 %v782
    %v2780 = vpop.f32.mrf.mxu0
    %v2781 = vadd.f32 %v501, %v2780
    %v2782 = vpop.f32.mrf.mxu0
    %v2783 = vadd.f32 %v501, %v2782
    %2784 = vmatmul.bf16.gmra.mxu0 %v788
    %v2785 = vpop.f32.mrf.mxu0
    %v2786 = vadd.f32 %v501, %v2785
    %v2787 = vpop.f32.mrf.mxu0
    %v2788 = vadd.f32 %v501, %v2787
    %2789 = vmatmul.bf16.gmra.mxu0 %v794
    %v2790 = vpop.f32.mrf.mxu0
    %v2791 = vadd.f32 %v501, %v2790
    %v2792 = vpop.f32.mrf.mxu0
    %v2793 = vadd.f32 %v501, %v2792
    %2794 = vdwg.mxu0
    %2795 = vmatpush.bf16.msra.mxu0 %v1827
    %2796 = vmatpush.bf16.msra.mxu0 %v1821
    %2797 = vmatpush.bf16.msra.mxu0 %v1815
    %2798 = vmatpush.bf16.msra.mxu0 %v1809
    %2799 = vmatpush.bf16.msra.mxu0 %v1803
    %2800 = vmatpush.bf16.msra.mxu0 %v1797
    %2801 = vmatpush.bf16.msra.mxu0 %v1791
    %2802 = vmatpush.bf16.msra.mxu0 %v1785
    %2803 = vmatmul.bf16.gmra.mxu0 %v729
    %v2804 = vpop.f32.mrf.mxu0
    %v2805 = vadd.f32 %v2736, %v2804
    %v2806 = vpop.f32.mrf.mxu0
    %v2807 = vadd.f32 %v2738, %v2806
    %2808 = vmatmul.bf16.gmra.mxu0 %v735
    %v2809 = vpop.f32.mrf.mxu0
    %v2810 = vadd.f32 %v2741, %v2809
    %v2811 = vpop.f32.mrf.mxu0
    %v2812 = vadd.f32 %v2743, %v2811
    %2813 = vmatmul.bf16.gmra.mxu0 %v741
    %v2814 = vpop.f32.mrf.mxu0
    %v2815 = vadd.f32 %v2746, %v2814
    %v2816 = vpop.f32.mrf.mxu0
    %v2817 = vadd.f32 %v2748, %v2816
    %2818 = vmatmul.bf16.gmra.mxu0 %v747
    %v2819 = vpop.f32.mrf.mxu0
    %v2820 = vadd.f32 %v2751, %v2819
    %v2821 = vpop.f32.mrf.mxu0
    %v2822 = vadd.f32 %v2753, %v2821
    %2823 = vmatmul.bf16.gmra.mxu0 %v753
    %v2824 = vpop.f32.mrf.mxu0
    %v2825 = vadd.f32 %v2756, %v2824
    %v2826 = vpop.f32.mrf.mxu0
    %v2827 = vadd.f32 %v2758, %v2826
    %2828 = vmatmul.bf16.gmra.mxu0 %v759
    %v2829 = vpop.f32.mrf.mxu0
    %v2830 = vadd.f32 %v2761, %v2829
    %v2831 = vpop.f32.mrf.mxu0
    %v2832 = vadd.f32 %v2763, %v2831
    %2833 = vmatmul.bf16.gmra.mxu0 %v765
    %v2834 = vpop.f32.mrf.mxu0
    %v2835 = vadd.f32 %v2766, %v2834
    %v2836 = vpop.f32.mrf.mxu0
    %v2837 = vadd.f32 %v2768, %v2836
    %2838 = vmatmul.bf16.gmra.mxu0 %v771
    %v2839 = vpop.f32.mrf.mxu0
    %v2840 = vadd.f32 %v2771, %v2839
    %v2841 = vpop.f32.mrf.mxu0
    %v2842 = vadd.f32 %v2773, %v2841
    %2843 = vmatmul.bf16.gmra.mxu0 %v777
    %v2844 = vpop.f32.mrf.mxu0
    %v2845 = vadd.f32 %v2776, %v2844
    %v2846 = vpop.f32.mrf.mxu0
    %v2847 = vadd.f32 %v2778, %v2846
    %2848 = vmatmul.bf16.gmra.mxu0 %v783
    %v2849 = vpop.f32.mrf.mxu0
    %v2850 = vadd.f32 %v2781, %v2849
    %v2851 = vpop.f32.mrf.mxu0
    %v2852 = vadd.f32 %v2783, %v2851
    %2853 = vmatmul.bf16.gmra.mxu0 %v789
    %v2854 = vpop.f32.mrf.mxu0
    %v2855 = vadd.f32 %v2786, %v2854
    %v2856 = vpop.f32.mrf.mxu0
    %v2857 = vadd.f32 %v2788, %v2856
    %2858 = vmatmul.bf16.gmra.mxu0 %v795
    %v2859 = vpop.f32.mrf.mxu0
    %v2860 = vadd.f32 %v2791, %v2859
    %v2861 = vpop.f32.mrf.mxu0
    %v2862 = vadd.f32 %v2793, %v2861
    %2863 = vdwg.mxu0
    %2864 = vmatpush.bf16.msra.mxu0 %v1875
    %2865 = vmatpush.bf16.msra.mxu0 %v1869
    %2866 = vmatpush.bf16.msra.mxu0 %v1863
    %2867 = vmatpush.bf16.msra.mxu0 %v1857
    %2868 = vmatpush.bf16.msra.mxu0 %v1851
    %2869 = vmatpush.bf16.msra.mxu0 %v1845
    %2870 = vmatpush.bf16.msra.mxu0 %v1839
    %2871 = vmatpush.bf16.msra.mxu0 %v1833
    %2872 = vmatmul.bf16.gmra.mxu0 %v730
    %v2873 = vpop.f32.mrf.mxu0
    %v2874 = vadd.f32 %v2805, %v2873
    %v2875 = vpop.f32.mrf.mxu0
    %v2876 = vadd.f32 %v2807, %v2875
    %2877 = vmatmul.bf16.gmra.mxu0 %v736
    %v2878 = vpop.f32.mrf.mxu0
    %v2879 = vadd.f32 %v2810, %v2878
    %v2880 = vpop.f32.mrf.mxu0
    %v2881 = vadd.f32 %v2812, %v2880
    %2882 = vmatmul.bf16.gmra.mxu0 %v742
    %v2883 = vpop.f32.mrf.mxu0
    %v2884 = vadd.f32 %v2815, %v2883
    %v2885 = vpop.f32.mrf.mxu0
    %v2886 = vadd.f32 %v2817, %v2885
    %2887 = vmatmul.bf16.gmra.mxu0 %v748
    %v2888 = vpop.f32.mrf.mxu0
    %v2889 = vadd.f32 %v2820, %v2888
    %v2890 = vpop.f32.mrf.mxu0
    %v2891 = vadd.f32 %v2822, %v2890
    %2892 = vmatmul.bf16.gmra.mxu0 %v754
    %v2893 = vpop.f32.mrf.mxu0
    %v2894 = vadd.f32 %v2825, %v2893
    %v2895 = vpop.f32.mrf.mxu0
    %v2896 = vadd.f32 %v2827, %v2895
    %2897 = vmatmul.bf16.gmra.mxu0 %v760
    %v2898 = vpop.f32.mrf.mxu0
    %v2899 = vadd.f32 %v2830, %v2898
    %v2900 = vpop.f32.mrf.mxu0
    %v2901 = vadd.f32 %v2832, %v2900
    %2902 = vmatmul.bf16.gmra.mxu0 %v766
    %v2903 = vpop.f32.mrf.mxu0
    %v2904 = vadd.f32 %v2835, %v2903
    %v2905 = vpop.f32.mrf.mxu0
    %v2906 = vadd.f32 %v2837, %v2905
    %2907 = vmatmul.bf16.gmra.mxu0 %v772
    %v2908 = vpop.f32.mrf.mxu0
    %v2909 = vadd.f32 %v2840, %v2908
    %v2910 = vpop.f32.mrf.mxu0
    %v2911 = vadd.f32 %v2842, %v2910
    %2912 = vmatmul.bf16.gmra.mxu0 %v778
    %v2913 = vpop.f32.mrf.mxu0
    %v2914 = vadd.f32 %v2845, %v2913
    %v2915 = vpop.f32.mrf.mxu0
    %v2916 = vadd.f32 %v2847, %v2915
    %2917 = vmatmul.bf16.gmra.mxu0 %v784
    %v2918 = vpop.f32.mrf.mxu0
    %v2919 = vadd.f32 %v2850, %v2918
    %v2920 = vpop.f32.mrf.mxu0
    %v2921 = vadd.f32 %v2852, %v2920
    %2922 = vmatmul.bf16.gmra.mxu0 %v790
    %v2923 = vpop.f32.mrf.mxu0
    %v2924 = vadd.f32 %v2855, %v2923
    %v2925 = vpop.f32.mrf.mxu0
    %v2926 = vadd.f32 %v2857, %v2925
    %2927 = vmatmul.bf16.gmra.mxu0 %v796
    %v2928 = vpop.f32.mrf.mxu0
    %v2929 = vadd.f32 %v2860, %v2928
    %v2930 = vpop.f32.mrf.mxu0
    %v2931 = vadd.f32 %v2862, %v2930
    %2932 = vdwg.mxu0
    %2933 = vmatpush.bf16.msra.mxu0 %v1923
    %2934 = vmatpush.bf16.msra.mxu0 %v1917
    %2935 = vmatpush.bf16.msra.mxu0 %v1911
    %2936 = vmatpush.bf16.msra.mxu0 %v1905
    %2937 = vmatpush.bf16.msra.mxu0 %v1899
    %2938 = vmatpush.bf16.msra.mxu0 %v1893
    %2939 = vmatpush.bf16.msra.mxu0 %v1887
    %2940 = vmatpush.bf16.msra.mxu0 %v1881
    %2941 = vmatmul.bf16.gmra.mxu0 %v731
    %v2942 = vpop.f32.mrf.mxu0
    %v2943 = vadd.f32 %v2874, %v2942
    %v2944 = vpop.f32.mrf.mxu0
    %v2945 = vadd.f32 %v2876, %v2944
    %2946 = vmatmul.bf16.gmra.mxu0 %v737
    %v2947 = vpop.f32.mrf.mxu0
    %v2948 = vadd.f32 %v2879, %v2947
    %v2949 = vpop.f32.mrf.mxu0
    %v2950 = vadd.f32 %v2881, %v2949
    %2951 = vmatmul.bf16.gmra.mxu0 %v743
    %v2952 = vpop.f32.mrf.mxu0
    %v2953 = vadd.f32 %v2884, %v2952
    %v2954 = vpop.f32.mrf.mxu0
    %v2955 = vadd.f32 %v2886, %v2954
    %2956 = vmatmul.bf16.gmra.mxu0 %v749
    %v2957 = vpop.f32.mrf.mxu0
    %v2958 = vadd.f32 %v2889, %v2957
    %v2959 = vpop.f32.mrf.mxu0
    %v2960 = vadd.f32 %v2891, %v2959
    %2961 = vmatmul.bf16.gmra.mxu0 %v755
    %v2962 = vpop.f32.mrf.mxu0
    %v2963 = vadd.f32 %v2894, %v2962
    %v2964 = vpop.f32.mrf.mxu0
    %v2965 = vadd.f32 %v2896, %v2964
    %2966 = vmatmul.bf16.gmra.mxu0 %v761
    %v2967 = vpop.f32.mrf.mxu0
    %v2968 = vadd.f32 %v2899, %v2967
    %v2969 = vpop.f32.mrf.mxu0
    %v2970 = vadd.f32 %v2901, %v2969
    %2971 = vmatmul.bf16.gmra.mxu0 %v767
    %v2972 = vpop.f32.mrf.mxu0
    %v2973 = vadd.f32 %v2904, %v2972
    %v2974 = vpop.f32.mrf.mxu0
    %v2975 = vadd.f32 %v2906, %v2974
    %2976 = vmatmul.bf16.gmra.mxu0 %v773
    %v2977 = vpop.f32.mrf.mxu0
    %v2978 = vadd.f32 %v2909, %v2977
    %v2979 = vpop.f32.mrf.mxu0
    %v2980 = vadd.f32 %v2911, %v2979
    %2981 = vmatmul.bf16.gmra.mxu0 %v779
    %v2982 = vpop.f32.mrf.mxu0
    %v2983 = vadd.f32 %v2914, %v2982
    %v2984 = vpop.f32.mrf.mxu0
    %v2985 = vadd.f32 %v2916, %v2984
    %2986 = vmatmul.bf16.gmra.mxu0 %v785
    %v2987 = vpop.f32.mrf.mxu0
    %v2988 = vadd.f32 %v2919, %v2987
    %v2989 = vpop.f32.mrf.mxu0
    %v2990 = vadd.f32 %v2921, %v2989
    %2991 = vmatmul.bf16.gmra.mxu0 %v791
    %v2992 = vpop.f32.mrf.mxu0
    %v2993 = vadd.f32 %v2924, %v2992
    %v2994 = vpop.f32.mrf.mxu0
    %v2995 = vadd.f32 %v2926, %v2994
    %2996 = vmatmul.bf16.gmra.mxu0 %v797
    %v2997 = vpop.f32.mrf.mxu0
    %v2998 = vadd.f32 %v2929, %v2997
    %v2999 = vpop.f32.mrf.mxu0
    %v3000 = vadd.f32 %v2931, %v2999
    %3001 = vdwg.mxu0
    %3002 = vmatpush.bf16.msra.mxu0 %v1971
    %3003 = vmatpush.bf16.msra.mxu0 %v1965
    %3004 = vmatpush.bf16.msra.mxu0 %v1959
    %3005 = vmatpush.bf16.msra.mxu0 %v1953
    %3006 = vmatpush.bf16.msra.mxu0 %v1947
    %3007 = vmatpush.bf16.msra.mxu0 %v1941
    %3008 = vmatpush.bf16.msra.mxu0 %v1935
    %3009 = vmatpush.bf16.msra.mxu0 %v1929
    %3010 = vmatmul.bf16.gmra.mxu0 %v732
    %v3011 = vpop.f32.mrf.mxu0
    %v3012 = vadd.f32 %v2943, %v3011
    %v3013 = vpop.f32.mrf.mxu0
    %v3014 = vadd.f32 %v2945, %v3013
    %3015 = vmatmul.bf16.gmra.mxu0 %v738
    %v3016 = vpop.f32.mrf.mxu0
    %v3017 = vadd.f32 %v2948, %v3016
    %v3018 = vpop.f32.mrf.mxu0
    %v3019 = vadd.f32 %v2950, %v3018
    %3020 = vmatmul.bf16.gmra.mxu0 %v744
    %v3021 = vpop.f32.mrf.mxu0
    %v3022 = vadd.f32 %v2953, %v3021
    %v3023 = vpop.f32.mrf.mxu0
    %v3024 = vadd.f32 %v2955, %v3023
    %3025 = vmatmul.bf16.gmra.mxu0 %v750
    %v3026 = vpop.f32.mrf.mxu0
    %v3027 = vadd.f32 %v2958, %v3026
    %v3028 = vpop.f32.mrf.mxu0
    %v3029 = vadd.f32 %v2960, %v3028
    %3030 = vmatmul.bf16.gmra.mxu0 %v756
    %v3031 = vpop.f32.mrf.mxu0
    %v3032 = vadd.f32 %v2963, %v3031
    %v3033 = vpop.f32.mrf.mxu0
    %v3034 = vadd.f32 %v2965, %v3033
    %3035 = vmatmul.bf16.gmra.mxu0 %v762
    %v3036 = vpop.f32.mrf.mxu0
    %v3037 = vadd.f32 %v2968, %v3036
    %v3038 = vpop.f32.mrf.mxu0
    %v3039 = vadd.f32 %v2970, %v3038
    %3040 = vmatmul.bf16.gmra.mxu0 %v768
    %v3041 = vpop.f32.mrf.mxu0
    %v3042 = vadd.f32 %v2973, %v3041
    %v3043 = vpop.f32.mrf.mxu0
    %v3044 = vadd.f32 %v2975, %v3043
    %3045 = vmatmul.bf16.gmra.mxu0 %v774
    %v3046 = vpop.f32.mrf.mxu0
    %v3047 = vadd.f32 %v2978, %v3046
    %v3048 = vpop.f32.mrf.mxu0
    %v3049 = vadd.f32 %v2980, %v3048
    %3050 = vmatmul.bf16.gmra.mxu0 %v780
    %v3051 = vpop.f32.mrf.mxu0
    %v3052 = vadd.f32 %v2983, %v3051
    %v3053 = vpop.f32.mrf.mxu0
    %v3054 = vadd.f32 %v2985, %v3053
    %3055 = vmatmul.bf16.gmra.mxu0 %v786
    %v3056 = vpop.f32.mrf.mxu0
    %v3057 = vadd.f32 %v2988, %v3056
    %v3058 = vpop.f32.mrf.mxu0
    %v3059 = vadd.f32 %v2990, %v3058
    %3060 = vmatmul.bf16.gmra.mxu0 %v792
    %v3061 = vpop.f32.mrf.mxu0
    %v3062 = vadd.f32 %v2993, %v3061
    %v3063 = vpop.f32.mrf.mxu0
    %v3064 = vadd.f32 %v2995, %v3063
    %3065 = vmatmul.bf16.gmra.mxu0 %v798
    %v3066 = vpop.f32.mrf.mxu0
    %v3067 = vadd.f32 %v2998, %v3066
    %v3068 = vpop.f32.mrf.mxu0
    %v3069 = vadd.f32 %v3000, %v3068
    %3070 = vdwg.mxu0
    %3071 = vmatpush.bf16.msra.mxu0 %v2019
    %3072 = vmatpush.bf16.msra.mxu0 %v2013
    %3073 = vmatpush.bf16.msra.mxu0 %v2007
    %3074 = vmatpush.bf16.msra.mxu0 %v2001
    %3075 = vmatpush.bf16.msra.mxu0 %v1995
    %3076 = vmatpush.bf16.msra.mxu0 %v1989
    %3077 = vmatpush.bf16.msra.mxu0 %v1983
    %3078 = vmatpush.bf16.msra.mxu0 %v1977
    %3079 = vmatmul.bf16.gmra.mxu0 %v733
    %v3080 = vpop.f32.mrf.mxu0
    %v3081 = vadd.f32 %v3012, %v3080
    %v3082 = vpop.f32.mrf.mxu0
    %v3083 = vadd.f32 %v3014, %v3082
    %3084 = vmatmul.bf16.gmra.mxu0 %v739
    %v3085 = vpop.f32.mrf.mxu0
    %v3086 = vadd.f32 %v3017, %v3085
    %v3087 = vpop.f32.mrf.mxu0
    %v3088 = vadd.f32 %v3019, %v3087
    %3089 = vmatmul.bf16.gmra.mxu0 %v745
    %v3090 = vpop.f32.mrf.mxu0
    %v3091 = vadd.f32 %v3022, %v3090
    %v3092 = vpop.f32.mrf.mxu0
    %v3093 = vadd.f32 %v3024, %v3092
    %3094 = vmatmul.bf16.gmra.mxu0 %v751
    %v3095 = vpop.f32.mrf.mxu0
    %v3096 = vadd.f32 %v3027, %v3095
    %v3097 = vpop.f32.mrf.mxu0
    %v3098 = vadd.f32 %v3029, %v3097
    %3099 = vmatmul.bf16.gmra.mxu0 %v757
    %v3100 = vpop.f32.mrf.mxu0
    %v3101 = vadd.f32 %v3032, %v3100
    %v3102 = vpop.f32.mrf.mxu0
    %v3103 = vadd.f32 %v3034, %v3102
    %3104 = vmatmul.bf16.gmra.mxu0 %v763
    %v3105 = vpop.f32.mrf.mxu0
    %v3106 = vadd.f32 %v3037, %v3105
    %v3107 = vpop.f32.mrf.mxu0
    %v3108 = vadd.f32 %v3039, %v3107
    %3109 = vmatmul.bf16.gmra.mxu0 %v769
    %v3110 = vpop.f32.mrf.mxu0
    %v3111 = vadd.f32 %v3042, %v3110
    %v3112 = vpop.f32.mrf.mxu0
    %v3113 = vadd.f32 %v3044, %v3112
    %3114 = vmatmul.bf16.gmra.mxu0 %v775
    %v3115 = vpop.f32.mrf.mxu0
    %v3116 = vadd.f32 %v3047, %v3115
    %v3117 = vpop.f32.mrf.mxu0
    %v3118 = vadd.f32 %v3049, %v3117
    %3119 = vmatmul.bf16.gmra.mxu0 %v781
    %v3120 = vpop.f32.mrf.mxu0
    %v3121 = vadd.f32 %v3052, %v3120
    %v3122 = vpop.f32.mrf.mxu0
    %v3123 = vadd.f32 %v3054, %v3122
    %3124 = vmatmul.bf16.gmra.mxu0 %v787
    %v3125 = vpop.f32.mrf.mxu0
    %v3126 = vadd.f32 %v3057, %v3125
    %v3127 = vpop.f32.mrf.mxu0
    %v3128 = vadd.f32 %v3059, %v3127
    %3129 = vmatmul.bf16.gmra.mxu0 %v793
    %v3130 = vpop.f32.mrf.mxu0
    %v3131 = vadd.f32 %v3062, %v3130
    %v3132 = vpop.f32.mrf.mxu0
    %v3133 = vadd.f32 %v3064, %v3132
    %3134 = vmatmul.bf16.gmra.mxu0 %v799
    %v3135 = vpop.f32.mrf.mxu0
    %v3136 = vadd.f32 %v3067, %v3135
    %v3137 = vpop.f32.mrf.mxu0
    %v3138 = vadd.f32 %v3069, %v3137
    %3139 = vdwg.mxu0
    %3140 = vmatpush.bf16.msra.mxu0 %v1780
    %3141 = vmatpush.bf16.msra.mxu0 %v1774
    %3142 = vmatpush.bf16.msra.mxu0 %v1768
    %3143 = vmatpush.bf16.msra.mxu0 %v1762
    %3144 = vmatpush.bf16.msra.mxu0 %v1756
    %3145 = vmatpush.bf16.msra.mxu0 %v1750
    %3146 = vmatpush.bf16.msra.mxu0 %v1744
    %3147 = vmatpush.bf16.msra.mxu0 %v1738
    %3148 = vmatmul.bf16.gmra.mxu0 %v728
    %v3149 = vpop.f32.mrf.mxu0
    %v3150 = vadd.f32 %v502, %v3149
    %v3151 = vpop.f32.mrf.mxu0
    %v3152 = vadd.f32 %v502, %v3151
    %3153 = vmatmul.bf16.gmra.mxu0 %v734
    %v3154 = vpop.f32.mrf.mxu0
    %v3155 = vadd.f32 %v502, %v3154
    %v3156 = vpop.f32.mrf.mxu0
    %v3157 = vadd.f32 %v502, %v3156
    %3158 = vmatmul.bf16.gmra.mxu0 %v740
    %v3159 = vpop.f32.mrf.mxu0
    %v3160 = vadd.f32 %v502, %v3159
    %v3161 = vpop.f32.mrf.mxu0
    %v3162 = vadd.f32 %v502, %v3161
    %3163 = vmatmul.bf16.gmra.mxu0 %v746
    %v3164 = vpop.f32.mrf.mxu0
    %v3165 = vadd.f32 %v502, %v3164
    %v3166 = vpop.f32.mrf.mxu0
    %v3167 = vadd.f32 %v502, %v3166
    %3168 = vmatmul.bf16.gmra.mxu0 %v752
    %v3169 = vpop.f32.mrf.mxu0
    %v3170 = vadd.f32 %v502, %v3169
    %v3171 = vpop.f32.mrf.mxu0
    %v3172 = vadd.f32 %v502, %v3171
    %3173 = vmatmul.bf16.gmra.mxu0 %v758
    %v3174 = vpop.f32.mrf.mxu0
    %v3175 = vadd.f32 %v502, %v3174
    %v3176 = vpop.f32.mrf.mxu0
    %v3177 = vadd.f32 %v502, %v3176
    %3178 = vmatmul.bf16.gmra.mxu0 %v764
    %v3179 = vpop.f32.mrf.mxu0
    %v3180 = vadd.f32 %v502, %v3179
    %v3181 = vpop.f32.mrf.mxu0
    %v3182 = vadd.f32 %v502, %v3181
    %3183 = vmatmul.bf16.gmra.mxu0 %v770
    %v3184 = vpop.f32.mrf.mxu0
    %v3185 = vadd.f32 %v502, %v3184
    %v3186 = vpop.f32.mrf.mxu0
    %v3187 = vadd.f32 %v502, %v3186
    %3188 = vmatmul.bf16.gmra.mxu0 %v776
    %v3189 = vpop.f32.mrf.mxu0
    %v3190 = vadd.f32 %v502, %v3189
    %v3191 = vpop.f32.mrf.mxu0
    %v3192 = vadd.f32 %v502, %v3191
    %3193 = vmatmul.bf16.gmra.mxu0 %v782
    %v3194 = vpop.f32.mrf.mxu0
    %v3195 = vadd.f32 %v502, %v3194
    %v3196 = vpop.f32.mrf.mxu0
    %v3197 = vadd.f32 %v502, %v3196
    %3198 = vmatmul.bf16.gmra.mxu0 %v788
    %v3199 = vpop.f32.mrf.mxu0
    %v3200 = vadd.f32 %v502, %v3199
    %v3201 = vpop.f32.mrf.mxu0
    %v3202 = vadd.f32 %v502, %v3201
    %3203 = vmatmul.bf16.gmra.mxu0 %v794
    %v3204 = vpop.f32.mrf.mxu0
    %v3205 = vadd.f32 %v502, %v3204
    %v3206 = vpop.f32.mrf.mxu0
    %v3207 = vadd.f32 %v502, %v3206
    %3208 = vdwg.mxu0
    %3209 = vmatpush.bf16.msra.mxu0 %v1828
    %3210 = vmatpush.bf16.msra.mxu0 %v1822
    %3211 = vmatpush.bf16.msra.mxu0 %v1816
    %3212 = vmatpush.bf16.msra.mxu0 %v1810
    %3213 = vmatpush.bf16.msra.mxu0 %v1804
    %3214 = vmatpush.bf16.msra.mxu0 %v1798
    %3215 = vmatpush.bf16.msra.mxu0 %v1792
    %3216 = vmatpush.bf16.msra.mxu0 %v1786
    %3217 = vmatmul.bf16.gmra.mxu0 %v729
    %v3218 = vpop.f32.mrf.mxu0
    %v3219 = vadd.f32 %v3150, %v3218
    %v3220 = vpop.f32.mrf.mxu0
    %v3221 = vadd.f32 %v3152, %v3220
    %3222 = vmatmul.bf16.gmra.mxu0 %v735
    %v3223 = vpop.f32.mrf.mxu0
    %v3224 = vadd.f32 %v3155, %v3223
    %v3225 = vpop.f32.mrf.mxu0
    %v3226 = vadd.f32 %v3157, %v3225
    %3227 = vmatmul.bf16.gmra.mxu0 %v741
    %v3228 = vpop.f32.mrf.mxu0
    %v3229 = vadd.f32 %v3160, %v3228
    %v3230 = vpop.f32.mrf.mxu0
    %v3231 = vadd.f32 %v3162, %v3230
    %3232 = vmatmul.bf16.gmra.mxu0 %v747
    %v3233 = vpop.f32.mrf.mxu0
    %v3234 = vadd.f32 %v3165, %v3233
    %v3235 = vpop.f32.mrf.mxu0
    %v3236 = vadd.f32 %v3167, %v3235
    %3237 = vmatmul.bf16.gmra.mxu0 %v753
    %v3238 = vpop.f32.mrf.mxu0
    %v3239 = vadd.f32 %v3170, %v3238
    %v3240 = vpop.f32.mrf.mxu0
    %v3241 = vadd.f32 %v3172, %v3240
    %3242 = vmatmul.bf16.gmra.mxu0 %v759
    %v3243 = vpop.f32.mrf.mxu0
    %v3244 = vadd.f32 %v3175, %v3243
    %v3245 = vpop.f32.mrf.mxu0
    %v3246 = vadd.f32 %v3177, %v3245
    %3247 = vmatmul.bf16.gmra.mxu0 %v765
    %v3248 = vpop.f32.mrf.mxu0
    %v3249 = vadd.f32 %v3180, %v3248
    %v3250 = vpop.f32.mrf.mxu0
    %v3251 = vadd.f32 %v3182, %v3250
    %3252 = vmatmul.bf16.gmra.mxu0 %v771
    %v3253 = vpop.f32.mrf.mxu0
    %v3254 = vadd.f32 %v3185, %v3253
    %v3255 = vpop.f32.mrf.mxu0
    %v3256 = vadd.f32 %v3187, %v3255
    %3257 = vmatmul.bf16.gmra.mxu0 %v777
    %v3258 = vpop.f32.mrf.mxu0
    %v3259 = vadd.f32 %v3190, %v3258
    %v3260 = vpop.f32.mrf.mxu0
    %v3261 = vadd.f32 %v3192, %v3260
    %3262 = vmatmul.bf16.gmra.mxu0 %v783
    %v3263 = vpop.f32.mrf.mxu0
    %v3264 = vadd.f32 %v3195, %v3263
    %v3265 = vpop.f32.mrf.mxu0
    %v3266 = vadd.f32 %v3197, %v3265
    %3267 = vmatmul.bf16.gmra.mxu0 %v789
    %v3268 = vpop.f32.mrf.mxu0
    %v3269 = vadd.f32 %v3200, %v3268
    %v3270 = vpop.f32.mrf.mxu0
    %v3271 = vadd.f32 %v3202, %v3270
    %3272 = vmatmul.bf16.gmra.mxu0 %v795
    %v3273 = vpop.f32.mrf.mxu0
    %v3274 = vadd.f32 %v3205, %v3273
    %v3275 = vpop.f32.mrf.mxu0
    %v3276 = vadd.f32 %v3207, %v3275
    %3277 = vdwg.mxu0
    %3278 = vmatpush.bf16.msra.mxu0 %v1876
    %3279 = vmatpush.bf16.msra.mxu0 %v1870
    %3280 = vmatpush.bf16.msra.mxu0 %v1864
    %3281 = vmatpush.bf16.msra.mxu0 %v1858
    %3282 = vmatpush.bf16.msra.mxu0 %v1852
    %3283 = vmatpush.bf16.msra.mxu0 %v1846
    %3284 = vmatpush.bf16.msra.mxu0 %v1840
    %3285 = vmatpush.bf16.msra.mxu0 %v1834
    %3286 = vmatmul.bf16.gmra.mxu0 %v730
    %v3287 = vpop.f32.mrf.mxu0
    %v3288 = vadd.f32 %v3219, %v3287
    %v3289 = vpop.f32.mrf.mxu0
    %v3290 = vadd.f32 %v3221, %v3289
    %3291 = vmatmul.bf16.gmra.mxu0 %v736
    %v3292 = vpop.f32.mrf.mxu0
    %v3293 = vadd.f32 %v3224, %v3292
    %v3294 = vpop.f32.mrf.mxu0
    %v3295 = vadd.f32 %v3226, %v3294
    %3296 = vmatmul.bf16.gmra.mxu0 %v742
    %v3297 = vpop.f32.mrf.mxu0
    %v3298 = vadd.f32 %v3229, %v3297
    %v3299 = vpop.f32.mrf.mxu0
    %v3300 = vadd.f32 %v3231, %v3299
    %3301 = vmatmul.bf16.gmra.mxu0 %v748
    %v3302 = vpop.f32.mrf.mxu0
    %v3303 = vadd.f32 %v3234, %v3302
    %v3304 = vpop.f32.mrf.mxu0
    %v3305 = vadd.f32 %v3236, %v3304
    %3306 = vmatmul.bf16.gmra.mxu0 %v754
    %v3307 = vpop.f32.mrf.mxu0
    %v3308 = vadd.f32 %v3239, %v3307
    %v3309 = vpop.f32.mrf.mxu0
    %v3310 = vadd.f32 %v3241, %v3309
    %3311 = vmatmul.bf16.gmra.mxu0 %v760
    %v3312 = vpop.f32.mrf.mxu0
    %v3313 = vadd.f32 %v3244, %v3312
    %v3314 = vpop.f32.mrf.mxu0
    %v3315 = vadd.f32 %v3246, %v3314
    %3316 = vmatmul.bf16.gmra.mxu0 %v766
    %v3317 = vpop.f32.mrf.mxu0
    %v3318 = vadd.f32 %v3249, %v3317
    %v3319 = vpop.f32.mrf.mxu0
    %v3320 = vadd.f32 %v3251, %v3319
    %3321 = vmatmul.bf16.gmra.mxu0 %v772
    %v3322 = vpop.f32.mrf.mxu0
    %v3323 = vadd.f32 %v3254, %v3322
    %v3324 = vpop.f32.mrf.mxu0
    %v3325 = vadd.f32 %v3256, %v3324
    %3326 = vmatmul.bf16.gmra.mxu0 %v778
    %v3327 = vpop.f32.mrf.mxu0
    %v3328 = vadd.f32 %v3259, %v3327
    %v3329 = vpop.f32.mrf.mxu0
    %v3330 = vadd.f32 %v3261, %v3329
    %3331 = vmatmul.bf16.gmra.mxu0 %v784
    %v3332 = vpop.f32.mrf.mxu0
    %v3333 = vadd.f32 %v3264, %v3332
    %v3334 = vpop.f32.mrf.mxu0
    %v3335 = vadd.f32 %v3266, %v3334
    %3336 = vmatmul.bf16.gmra.mxu0 %v790
    %v3337 = vpop.f32.mrf.mxu0
    %v3338 = vadd.f32 %v3269, %v3337
    %v3339 = vpop.f32.mrf.mxu0
    %v3340 = vadd.f32 %v3271, %v3339
    %3341 = vmatmul.bf16.gmra.mxu0 %v796
    %v3342 = vpop.f32.mrf.mxu0
    %v3343 = vadd.f32 %v3274, %v3342
    %v3344 = vpop.f32.mrf.mxu0
    %v3345 = vadd.f32 %v3276, %v3344
    %3346 = vdwg.mxu0
    %3347 = vmatpush.bf16.msra.mxu0 %v1924
    %3348 = vmatpush.bf16.msra.mxu0 %v1918
    %3349 = vmatpush.bf16.msra.mxu0 %v1912
    %3350 = vmatpush.bf16.msra.mxu0 %v1906
    %3351 = vmatpush.bf16.msra.mxu0 %v1900
    %3352 = vmatpush.bf16.msra.mxu0 %v1894
    %3353 = vmatpush.bf16.msra.mxu0 %v1888
    %3354 = vmatpush.bf16.msra.mxu0 %v1882
    %3355 = vmatmul.bf16.gmra.mxu0 %v731
    %v3356 = vpop.f32.mrf.mxu0
    %v3357 = vadd.f32 %v3288, %v3356
    %v3358 = vpop.f32.mrf.mxu0
    %v3359 = vadd.f32 %v3290, %v3358
    %3360 = vmatmul.bf16.gmra.mxu0 %v737
    %v3361 = vpop.f32.mrf.mxu0
    %v3362 = vadd.f32 %v3293, %v3361
    %v3363 = vpop.f32.mrf.mxu0
    %v3364 = vadd.f32 %v3295, %v3363
    %3365 = vmatmul.bf16.gmra.mxu0 %v743
    %v3366 = vpop.f32.mrf.mxu0
    %v3367 = vadd.f32 %v3298, %v3366
    %v3368 = vpop.f32.mrf.mxu0
    %v3369 = vadd.f32 %v3300, %v3368
    %3370 = vmatmul.bf16.gmra.mxu0 %v749
    %v3371 = vpop.f32.mrf.mxu0
    %v3372 = vadd.f32 %v3303, %v3371
    %v3373 = vpop.f32.mrf.mxu0
    %v3374 = vadd.f32 %v3305, %v3373
    %3375 = vmatmul.bf16.gmra.mxu0 %v755
    %v3376 = vpop.f32.mrf.mxu0
    %v3377 = vadd.f32 %v3308, %v3376
    %v3378 = vpop.f32.mrf.mxu0
    %v3379 = vadd.f32 %v3310, %v3378
    %3380 = vmatmul.bf16.gmra.mxu0 %v761
    %v3381 = vpop.f32.mrf.mxu0
    %v3382 = vadd.f32 %v3313, %v3381
    %v3383 = vpop.f32.mrf.mxu0
    %v3384 = vadd.f32 %v3315, %v3383
    %3385 = vmatmul.bf16.gmra.mxu0 %v767
    %v3386 = vpop.f32.mrf.mxu0
    %v3387 = vadd.f32 %v3318, %v3386
    %v3388 = vpop.f32.mrf.mxu0
    %v3389 = vadd.f32 %v3320, %v3388
    %3390 = vmatmul.bf16.gmra.mxu0 %v773
    %v3391 = vpop.f32.mrf.mxu0
    %v3392 = vadd.f32 %v3323, %v3391
    %v3393 = vpop.f32.mrf.mxu0
    %v3394 = vadd.f32 %v3325, %v3393
    %3395 = vmatmul.bf16.gmra.mxu0 %v779
    %v3396 = vpop.f32.mrf.mxu0
    %v3397 = vadd.f32 %v3328, %v3396
    %v3398 = vpop.f32.mrf.mxu0
    %v3399 = vadd.f32 %v3330, %v3398
    %3400 = vmatmul.bf16.gmra.mxu0 %v785
    %v3401 = vpop.f32.mrf.mxu0
    %v3402 = vadd.f32 %v3333, %v3401
    %v3403 = vpop.f32.mrf.mxu0
    %v3404 = vadd.f32 %v3335, %v3403
    %3405 = vmatmul.bf16.gmra.mxu0 %v791
    %v3406 = vpop.f32.mrf.mxu0
    %v3407 = vadd.f32 %v3338, %v3406
    %v3408 = vpop.f32.mrf.mxu0
    %v3409 = vadd.f32 %v3340, %v3408
    %3410 = vmatmul.bf16.gmra.mxu0 %v797
    %v3411 = vpop.f32.mrf.mxu0
    %v3412 = vadd.f32 %v3343, %v3411
    %v3413 = vpop.f32.mrf.mxu0
    %v3414 = vadd.f32 %v3345, %v3413
    %3415 = vdwg.mxu0
    %3416 = vmatpush.bf16.msra.mxu0 %v1972
    %3417 = vmatpush.bf16.msra.mxu0 %v1966
    %3418 = vmatpush.bf16.msra.mxu0 %v1960
    %3419 = vmatpush.bf16.msra.mxu0 %v1954
    %3420 = vmatpush.bf16.msra.mxu0 %v1948
    %3421 = vmatpush.bf16.msra.mxu0 %v1942
    %3422 = vmatpush.bf16.msra.mxu0 %v1936
    %3423 = vmatpush.bf16.msra.mxu0 %v1930
    %3424 = vmatmul.bf16.gmra.mxu0 %v732
    %v3425 = vpop.f32.mrf.mxu0
    %v3426 = vadd.f32 %v3357, %v3425
    %v3427 = vpop.f32.mrf.mxu0
    %v3428 = vadd.f32 %v3359, %v3427
    %3429 = vmatmul.bf16.gmra.mxu0 %v738
    %v3430 = vpop.f32.mrf.mxu0
    %v3431 = vadd.f32 %v3362, %v3430
    %v3432 = vpop.f32.mrf.mxu0
    %v3433 = vadd.f32 %v3364, %v3432
    %3434 = vmatmul.bf16.gmra.mxu0 %v744
    %v3435 = vpop.f32.mrf.mxu0
    %v3436 = vadd.f32 %v3367, %v3435
    %v3437 = vpop.f32.mrf.mxu0
    %v3438 = vadd.f32 %v3369, %v3437
    %3439 = vmatmul.bf16.gmra.mxu0 %v750
    %v3440 = vpop.f32.mrf.mxu0
    %v3441 = vadd.f32 %v3372, %v3440
    %v3442 = vpop.f32.mrf.mxu0
    %v3443 = vadd.f32 %v3374, %v3442
    %3444 = vmatmul.bf16.gmra.mxu0 %v756
    %v3445 = vpop.f32.mrf.mxu0
    %v3446 = vadd.f32 %v3377, %v3445
    %v3447 = vpop.f32.mrf.mxu0
    %v3448 = vadd.f32 %v3379, %v3447
    %3449 = vmatmul.bf16.gmra.mxu0 %v762
    %v3450 = vpop.f32.mrf.mxu0
    %v3451 = vadd.f32 %v3382, %v3450
    %v3452 = vpop.f32.mrf.mxu0
    %v3453 = vadd.f32 %v3384, %v3452
    %3454 = vmatmul.bf16.gmra.mxu0 %v768
    %v3455 = vpop.f32.mrf.mxu0
    %v3456 = vadd.f32 %v3387, %v3455
    %v3457 = vpop.f32.mrf.mxu0
    %v3458 = vadd.f32 %v3389, %v3457
    %3459 = vmatmul.bf16.gmra.mxu0 %v774
    %v3460 = vpop.f32.mrf.mxu0
    %v3461 = vadd.f32 %v3392, %v3460
    %v3462 = vpop.f32.mrf.mxu0
    %v3463 = vadd.f32 %v3394, %v3462
    %3464 = vmatmul.bf16.gmra.mxu0 %v780
    %v3465 = vpop.f32.mrf.mxu0
    %v3466 = vadd.f32 %v3397, %v3465
    %v3467 = vpop.f32.mrf.mxu0
    %v3468 = vadd.f32 %v3399, %v3467
    %3469 = vmatmul.bf16.gmra.mxu0 %v786
    %v3470 = vpop.f32.mrf.mxu0
    %v3471 = vadd.f32 %v3402, %v3470
    %v3472 = vpop.f32.mrf.mxu0
    %v3473 = vadd.f32 %v3404, %v3472
    %3474 = vmatmul.bf16.gmra.mxu0 %v792
    %v3475 = vpop.f32.mrf.mxu0
    %v3476 = vadd.f32 %v3407, %v3475
    %v3477 = vpop.f32.mrf.mxu0
    %v3478 = vadd.f32 %v3409, %v3477
    %3479 = vmatmul.bf16.gmra.mxu0 %v798
    %v3480 = vpop.f32.mrf.mxu0
    %v3481 = vadd.f32 %v3412, %v3480
    %v3482 = vpop.f32.mrf.mxu0
    %v3483 = vadd.f32 %v3414, %v3482
    %3484 = vdwg.mxu0
    %3485 = vmatpush.bf16.msra.mxu0 %v2020
    %3486 = vmatpush.bf16.msra.mxu0 %v2014
    %3487 = vmatpush.bf16.msra.mxu0 %v2008
    %3488 = vmatpush.bf16.msra.mxu0 %v2002
    %3489 = vmatpush.bf16.msra.mxu0 %v1996
    %3490 = vmatpush.bf16.msra.mxu0 %v1990
    %3491 = vmatpush.bf16.msra.mxu0 %v1984
    %3492 = vmatpush.bf16.msra.mxu0 %v1978
    %3493 = vmatmul.bf16.gmra.mxu0 %v733
    %v3494 = vpop.f32.mrf.mxu0
    %v3495 = vadd.f32 %v3426, %v3494
    %v3496 = vpop.f32.mrf.mxu0
    %v3497 = vadd.f32 %v3428, %v3496
    %3498 = vmatmul.bf16.gmra.mxu0 %v739
    %v3499 = vpop.f32.mrf.mxu0
    %v3500 = vadd.f32 %v3431, %v3499
    %v3501 = vpop.f32.mrf.mxu0
    %v3502 = vadd.f32 %v3433, %v3501
    %3503 = vmatmul.bf16.gmra.mxu0 %v745
    %v3504 = vpop.f32.mrf.mxu0
    %v3505 = vadd.f32 %v3436, %v3504
    %v3506 = vpop.f32.mrf.mxu0
    %v3507 = vadd.f32 %v3438, %v3506
    %3508 = vmatmul.bf16.gmra.mxu0 %v751
    %v3509 = vpop.f32.mrf.mxu0
    %v3510 = vadd.f32 %v3441, %v3509
    %v3511 = vpop.f32.mrf.mxu0
    %v3512 = vadd.f32 %v3443, %v3511
    %3513 = vmatmul.bf16.gmra.mxu0 %v757
    %v3514 = vpop.f32.mrf.mxu0
    %v3515 = vadd.f32 %v3446, %v3514
    %v3516 = vpop.f32.mrf.mxu0
    %v3517 = vadd.f32 %v3448, %v3516
    %3518 = vmatmul.bf16.gmra.mxu0 %v763
    %v3519 = vpop.f32.mrf.mxu0
    %v3520 = vadd.f32 %v3451, %v3519
    %v3521 = vpop.f32.mrf.mxu0
    %v3522 = vadd.f32 %v3453, %v3521
    %3523 = vmatmul.bf16.gmra.mxu0 %v769
    %v3524 = vpop.f32.mrf.mxu0
    %v3525 = vadd.f32 %v3456, %v3524
    %v3526 = vpop.f32.mrf.mxu0
    %v3527 = vadd.f32 %v3458, %v3526
    %3528 = vmatmul.bf16.gmra.mxu0 %v775
    %v3529 = vpop.f32.mrf.mxu0
    %v3530 = vadd.f32 %v3461, %v3529
    %v3531 = vpop.f32.mrf.mxu0
    %v3532 = vadd.f32 %v3463, %v3531
    %3533 = vmatmul.bf16.gmra.mxu0 %v781
    %v3534 = vpop.f32.mrf.mxu0
    %v3535 = vadd.f32 %v3466, %v3534
    %v3536 = vpop.f32.mrf.mxu0
    %v3537 = vadd.f32 %v3468, %v3536
    %3538 = vmatmul.bf16.gmra.mxu0 %v787
    %v3539 = vpop.f32.mrf.mxu0
    %v3540 = vadd.f32 %v3471, %v3539
    %v3541 = vpop.f32.mrf.mxu0
    %v3542 = vadd.f32 %v3473, %v3541
    %3543 = vmatmul.bf16.gmra.mxu0 %v793
    %v3544 = vpop.f32.mrf.mxu0
    %v3545 = vadd.f32 %v3476, %v3544
    %v3546 = vpop.f32.mrf.mxu0
    %v3547 = vadd.f32 %v3478, %v3546
    %3548 = vmatmul.bf16.gmra.mxu0 %v799
    %v3549 = vpop.f32.mrf.mxu0
    %v3550 = vadd.f32 %v3481, %v3549
    %v3551 = vpop.f32.mrf.mxu0
    %v3552 = vadd.f32 %v3483, %v3551
    %3553 = vdwg.mxu0
    %3554 = vmatpush.bf16.msra.mxu0 %v1781
    %3555 = vmatpush.bf16.msra.mxu0 %v1775
    %3556 = vmatpush.bf16.msra.mxu0 %v1769
    %3557 = vmatpush.bf16.msra.mxu0 %v1763
    %3558 = vmatpush.bf16.msra.mxu0 %v1757
    %3559 = vmatpush.bf16.msra.mxu0 %v1751
    %3560 = vmatpush.bf16.msra.mxu0 %v1745
    %3561 = vmatpush.bf16.msra.mxu0 %v1739
    %3562 = vmatmul.bf16.gmra.mxu0 %v728
    %v3563 = vpop.f32.mrf.mxu0
    %v3564 = vadd.f32 %v503, %v3563
    %v3565 = vpop.f32.mrf.mxu0
    %v3566 = vadd.f32 %v503, %v3565
    %3567 = vmatmul.bf16.gmra.mxu0 %v734
    %v3568 = vpop.f32.mrf.mxu0
    %v3569 = vadd.f32 %v503, %v3568
    %v3570 = vpop.f32.mrf.mxu0
    %v3571 = vadd.f32 %v503, %v3570
    %3572 = vmatmul.bf16.gmra.mxu0 %v740
    %v3573 = vpop.f32.mrf.mxu0
    %v3574 = vadd.f32 %v503, %v3573
    %v3575 = vpop.f32.mrf.mxu0
    %v3576 = vadd.f32 %v503, %v3575
    %3577 = vmatmul.bf16.gmra.mxu0 %v746
    %v3578 = vpop.f32.mrf.mxu0
    %v3579 = vadd.f32 %v503, %v3578
    %v3580 = vpop.f32.mrf.mxu0
    %v3581 = vadd.f32 %v503, %v3580
    %3582 = vmatmul.bf16.gmra.mxu0 %v752
    %v3583 = vpop.f32.mrf.mxu0
    %v3584 = vadd.f32 %v503, %v3583
    %v3585 = vpop.f32.mrf.mxu0
    %v3586 = vadd.f32 %v503, %v3585
    %3587 = vmatmul.bf16.gmra.mxu0 %v758
    %v3588 = vpop.f32.mrf.mxu0
    %v3589 = vadd.f32 %v503, %v3588
    %v3590 = vpop.f32.mrf.mxu0
    %v3591 = vadd.f32 %v503, %v3590
    %3592 = vmatmul.bf16.gmra.mxu0 %v764
    %v3593 = vpop.f32.mrf.mxu0
    %v3594 = vadd.f32 %v503, %v3593
    %v3595 = vpop.f32.mrf.mxu0
    %v3596 = vadd.f32 %v503, %v3595
    %3597 = vmatmul.bf16.gmra.mxu0 %v770
    %v3598 = vpop.f32.mrf.mxu0
    %v3599 = vadd.f32 %v503, %v3598
    %v3600 = vpop.f32.mrf.mxu0
    %v3601 = vadd.f32 %v503, %v3600
    %3602 = vmatmul.bf16.gmra.mxu0 %v776
    %v3603 = vpop.f32.mrf.mxu0
    %v3604 = vadd.f32 %v503, %v3603
    %v3605 = vpop.f32.mrf.mxu0
    %v3606 = vadd.f32 %v503, %v3605
    %3607 = vmatmul.bf16.gmra.mxu0 %v782
    %v3608 = vpop.f32.mrf.mxu0
    %v3609 = vadd.f32 %v503, %v3608
    %v3610 = vpop.f32.mrf.mxu0
    %v3611 = vadd.f32 %v503, %v3610
    %3612 = vmatmul.bf16.gmra.mxu0 %v788
    %v3613 = vpop.f32.mrf.mxu0
    %v3614 = vadd.f32 %v503, %v3613
    %v3615 = vpop.f32.mrf.mxu0
    %v3616 = vadd.f32 %v503, %v3615
    %3617 = vmatmul.bf16.gmra.mxu0 %v794
    %v3618 = vpop.f32.mrf.mxu0
    %v3619 = vadd.f32 %v503, %v3618
    %v3620 = vpop.f32.mrf.mxu0
    %v3621 = vadd.f32 %v503, %v3620
    %3622 = vdwg.mxu0
    %3623 = vmatpush.bf16.msra.mxu0 %v1829
    %3624 = vmatpush.bf16.msra.mxu0 %v1823
    %3625 = vmatpush.bf16.msra.mxu0 %v1817
    %3626 = vmatpush.bf16.msra.mxu0 %v1811
    %3627 = vmatpush.bf16.msra.mxu0 %v1805
    %3628 = vmatpush.bf16.msra.mxu0 %v1799
    %3629 = vmatpush.bf16.msra.mxu0 %v1793
    %3630 = vmatpush.bf16.msra.mxu0 %v1787
    %3631 = vmatmul.bf16.gmra.mxu0 %v729
    %v3632 = vpop.f32.mrf.mxu0
    %v3633 = vadd.f32 %v3564, %v3632
    %v3634 = vpop.f32.mrf.mxu0
    %v3635 = vadd.f32 %v3566, %v3634
    %3636 = vmatmul.bf16.gmra.mxu0 %v735
    %v3637 = vpop.f32.mrf.mxu0
    %v3638 = vadd.f32 %v3569, %v3637
    %v3639 = vpop.f32.mrf.mxu0
    %v3640 = vadd.f32 %v3571, %v3639
    %3641 = vmatmul.bf16.gmra.mxu0 %v741
    %v3642 = vpop.f32.mrf.mxu0
    %v3643 = vadd.f32 %v3574, %v3642
    %v3644 = vpop.f32.mrf.mxu0
    %v3645 = vadd.f32 %v3576, %v3644
    %3646 = vmatmul.bf16.gmra.mxu0 %v747
    %v3647 = vpop.f32.mrf.mxu0
    %v3648 = vadd.f32 %v3579, %v3647
    %v3649 = vpop.f32.mrf.mxu0
    %v3650 = vadd.f32 %v3581, %v3649
    %3651 = vmatmul.bf16.gmra.mxu0 %v753
    %v3652 = vpop.f32.mrf.mxu0
    %v3653 = vadd.f32 %v3584, %v3652
    %v3654 = vpop.f32.mrf.mxu0
    %v3655 = vadd.f32 %v3586, %v3654
    %3656 = vmatmul.bf16.gmra.mxu0 %v759
    %v3657 = vpop.f32.mrf.mxu0
    %v3658 = vadd.f32 %v3589, %v3657
    %v3659 = vpop.f32.mrf.mxu0
    %v3660 = vadd.f32 %v3591, %v3659
    %3661 = vmatmul.bf16.gmra.mxu0 %v765
    %v3662 = vpop.f32.mrf.mxu0
    %v3663 = vadd.f32 %v3594, %v3662
    %v3664 = vpop.f32.mrf.mxu0
    %v3665 = vadd.f32 %v3596, %v3664
    %3666 = vmatmul.bf16.gmra.mxu0 %v771
    %v3667 = vpop.f32.mrf.mxu0
    %v3668 = vadd.f32 %v3599, %v3667
    %v3669 = vpop.f32.mrf.mxu0
    %v3670 = vadd.f32 %v3601, %v3669
    %3671 = vmatmul.bf16.gmra.mxu0 %v777
    %v3672 = vpop.f32.mrf.mxu0
    %v3673 = vadd.f32 %v3604, %v3672
    %v3674 = vpop.f32.mrf.mxu0
    %v3675 = vadd.f32 %v3606, %v3674
    %3676 = vmatmul.bf16.gmra.mxu0 %v783
    %v3677 = vpop.f32.mrf.mxu0
    %v3678 = vadd.f32 %v3609, %v3677
    %v3679 = vpop.f32.mrf.mxu0
    %v3680 = vadd.f32 %v3611, %v3679
    %3681 = vmatmul.bf16.gmra.mxu0 %v789
    %v3682 = vpop.f32.mrf.mxu0
    %v3683 = vadd.f32 %v3614, %v3682
    %v3684 = vpop.f32.mrf.mxu0
    %v3685 = vadd.f32 %v3616, %v3684
    %3686 = vmatmul.bf16.gmra.mxu0 %v795
    %v3687 = vpop.f32.mrf.mxu0
    %v3688 = vadd.f32 %v3619, %v3687
    %v3689 = vpop.f32.mrf.mxu0
    %v3690 = vadd.f32 %v3621, %v3689
    %3691 = vdwg.mxu0
    %3692 = vmatpush.bf16.msra.mxu0 %v1877
    %3693 = vmatpush.bf16.msra.mxu0 %v1871
    %3694 = vmatpush.bf16.msra.mxu0 %v1865
    %3695 = vmatpush.bf16.msra.mxu0 %v1859
    %3696 = vmatpush.bf16.msra.mxu0 %v1853
    %3697 = vmatpush.bf16.msra.mxu0 %v1847
    %3698 = vmatpush.bf16.msra.mxu0 %v1841
    %3699 = vmatpush.bf16.msra.mxu0 %v1835
    %3700 = vmatmul.bf16.gmra.mxu0 %v730
    %v3701 = vpop.f32.mrf.mxu0
    %v3702 = vadd.f32 %v3633, %v3701
    %v3703 = vpop.f32.mrf.mxu0
    %v3704 = vadd.f32 %v3635, %v3703
    %3705 = vmatmul.bf16.gmra.mxu0 %v736
    %v3706 = vpop.f32.mrf.mxu0
    %v3707 = vadd.f32 %v3638, %v3706
    %v3708 = vpop.f32.mrf.mxu0
    %v3709 = vadd.f32 %v3640, %v3708
    %3710 = vmatmul.bf16.gmra.mxu0 %v742
    %v3711 = vpop.f32.mrf.mxu0
    %v3712 = vadd.f32 %v3643, %v3711
    %v3713 = vpop.f32.mrf.mxu0
    %v3714 = vadd.f32 %v3645, %v3713
    %3715 = vmatmul.bf16.gmra.mxu0 %v748
    %v3716 = vpop.f32.mrf.mxu0
    %v3717 = vadd.f32 %v3648, %v3716
    %v3718 = vpop.f32.mrf.mxu0
    %v3719 = vadd.f32 %v3650, %v3718
    %3720 = vmatmul.bf16.gmra.mxu0 %v754
    %v3721 = vpop.f32.mrf.mxu0
    %v3722 = vadd.f32 %v3653, %v3721
    %v3723 = vpop.f32.mrf.mxu0
    %v3724 = vadd.f32 %v3655, %v3723
    %3725 = vmatmul.bf16.gmra.mxu0 %v760
    %v3726 = vpop.f32.mrf.mxu0
    %v3727 = vadd.f32 %v3658, %v3726
    %v3728 = vpop.f32.mrf.mxu0
    %v3729 = vadd.f32 %v3660, %v3728
    %3730 = vmatmul.bf16.gmra.mxu0 %v766
    %v3731 = vpop.f32.mrf.mxu0
    %v3732 = vadd.f32 %v3663, %v3731
    %v3733 = vpop.f32.mrf.mxu0
    %v3734 = vadd.f32 %v3665, %v3733
    %3735 = vmatmul.bf16.gmra.mxu0 %v772
    %v3736 = vpop.f32.mrf.mxu0
    %v3737 = vadd.f32 %v3668, %v3736
    %v3738 = vpop.f32.mrf.mxu0
    %v3739 = vadd.f32 %v3670, %v3738
    %3740 = vmatmul.bf16.gmra.mxu0 %v778
    %v3741 = vpop.f32.mrf.mxu0
    %v3742 = vadd.f32 %v3673, %v3741
    %v3743 = vpop.f32.mrf.mxu0
    %v3744 = vadd.f32 %v3675, %v3743
    %3745 = vmatmul.bf16.gmra.mxu0 %v784
    %v3746 = vpop.f32.mrf.mxu0
    %v3747 = vadd.f32 %v3678, %v3746
    %v3748 = vpop.f32.mrf.mxu0
    %v3749 = vadd.f32 %v3680, %v3748
    %3750 = vmatmul.bf16.gmra.mxu0 %v790
    %v3751 = vpop.f32.mrf.mxu0
    %v3752 = vadd.f32 %v3683, %v3751
    %v3753 = vpop.f32.mrf.mxu0
    %v3754 = vadd.f32 %v3685, %v3753
    %3755 = vmatmul.bf16.gmra.mxu0 %v796
    %v3756 = vpop.f32.mrf.mxu0
    %v3757 = vadd.f32 %v3688, %v3756
    %v3758 = vpop.f32.mrf.mxu0
    %v3759 = vadd.f32 %v3690, %v3758
    %3760 = vdwg.mxu0
    %3761 = vmatpush.bf16.msra.mxu0 %v1925
    %3762 = vmatpush.bf16.msra.mxu0 %v1919
    %3763 = vmatpush.bf16.msra.mxu0 %v1913
    %3764 = vmatpush.bf16.msra.mxu0 %v1907
    %3765 = vmatpush.bf16.msra.mxu0 %v1901
    %3766 = vmatpush.bf16.msra.mxu0 %v1895
    %3767 = vmatpush.bf16.msra.mxu0 %v1889
    %3768 = vmatpush.bf16.msra.mxu0 %v1883
    %3769 = vmatmul.bf16.gmra.mxu0 %v731
    %v3770 = vpop.f32.mrf.mxu0
    %v3771 = vadd.f32 %v3702, %v3770
    %v3772 = vpop.f32.mrf.mxu0
    %v3773 = vadd.f32 %v3704, %v3772
    %3774 = vmatmul.bf16.gmra.mxu0 %v737
    %v3775 = vpop.f32.mrf.mxu0
    %v3776 = vadd.f32 %v3707, %v3775
    %v3777 = vpop.f32.mrf.mxu0
    %v3778 = vadd.f32 %v3709, %v3777
    %3779 = vmatmul.bf16.gmra.mxu0 %v743
    %v3780 = vpop.f32.mrf.mxu0
    %v3781 = vadd.f32 %v3712, %v3780
    %v3782 = vpop.f32.mrf.mxu0
    %v3783 = vadd.f32 %v3714, %v3782
    %3784 = vmatmul.bf16.gmra.mxu0 %v749
    %v3785 = vpop.f32.mrf.mxu0
    %v3786 = vadd.f32 %v3717, %v3785
    %v3787 = vpop.f32.mrf.mxu0
    %v3788 = vadd.f32 %v3719, %v3787
    %3789 = vmatmul.bf16.gmra.mxu0 %v755
    %v3790 = vpop.f32.mrf.mxu0
    %v3791 = vadd.f32 %v3722, %v3790
    %v3792 = vpop.f32.mrf.mxu0
    %v3793 = vadd.f32 %v3724, %v3792
    %3794 = vmatmul.bf16.gmra.mxu0 %v761
    %v3795 = vpop.f32.mrf.mxu0
    %v3796 = vadd.f32 %v3727, %v3795
    %v3797 = vpop.f32.mrf.mxu0
    %v3798 = vadd.f32 %v3729, %v3797
    %3799 = vmatmul.bf16.gmra.mxu0 %v767
    %v3800 = vpop.f32.mrf.mxu0
    %v3801 = vadd.f32 %v3732, %v3800
    %v3802 = vpop.f32.mrf.mxu0
    %v3803 = vadd.f32 %v3734, %v3802
    %3804 = vmatmul.bf16.gmra.mxu0 %v773
    %v3805 = vpop.f32.mrf.mxu0
    %v3806 = vadd.f32 %v3737, %v3805
    %v3807 = vpop.f32.mrf.mxu0
    %v3808 = vadd.f32 %v3739, %v3807
    %3809 = vmatmul.bf16.gmra.mxu0 %v779
    %v3810 = vpop.f32.mrf.mxu0
    %v3811 = vadd.f32 %v3742, %v3810
    %v3812 = vpop.f32.mrf.mxu0
    %v3813 = vadd.f32 %v3744, %v3812
    %3814 = vmatmul.bf16.gmra.mxu0 %v785
    %v3815 = vpop.f32.mrf.mxu0
    %v3816 = vadd.f32 %v3747, %v3815
    %v3817 = vpop.f32.mrf.mxu0
    %v3818 = vadd.f32 %v3749, %v3817
    %3819 = vmatmul.bf16.gmra.mxu0 %v791
    %v3820 = vpop.f32.mrf.mxu0
    %v3821 = vadd.f32 %v3752, %v3820
    %v3822 = vpop.f32.mrf.mxu0
    %v3823 = vadd.f32 %v3754, %v3822
    %3824 = vmatmul.bf16.gmra.mxu0 %v797
    %v3825 = vpop.f32.mrf.mxu0
    %v3826 = vadd.f32 %v3757, %v3825
    %v3827 = vpop.f32.mrf.mxu0
    %v3828 = vadd.f32 %v3759, %v3827
    %3829 = vdwg.mxu0
    %3830 = vmatpush.bf16.msra.mxu0 %v1973
    %3831 = vmatpush.bf16.msra.mxu0 %v1967
    %3832 = vmatpush.bf16.msra.mxu0 %v1961
    %3833 = vmatpush.bf16.msra.mxu0 %v1955
    %3834 = vmatpush.bf16.msra.mxu0 %v1949
    %3835 = vmatpush.bf16.msra.mxu0 %v1943
    %3836 = vmatpush.bf16.msra.mxu0 %v1937
    %3837 = vmatpush.bf16.msra.mxu0 %v1931
    %3838 = vmatmul.bf16.gmra.mxu0 %v732
    %v3839 = vpop.f32.mrf.mxu0
    %v3840 = vadd.f32 %v3771, %v3839
    %v3841 = vpop.f32.mrf.mxu0
    %v3842 = vadd.f32 %v3773, %v3841
    %3843 = vmatmul.bf16.gmra.mxu0 %v738
    %v3844 = vpop.f32.mrf.mxu0
    %v3845 = vadd.f32 %v3776, %v3844
    %v3846 = vpop.f32.mrf.mxu0
    %v3847 = vadd.f32 %v3778, %v3846
    %3848 = vmatmul.bf16.gmra.mxu0 %v744
    %v3849 = vpop.f32.mrf.mxu0
    %v3850 = vadd.f32 %v3781, %v3849
    %v3851 = vpop.f32.mrf.mxu0
    %v3852 = vadd.f32 %v3783, %v3851
    %3853 = vmatmul.bf16.gmra.mxu0 %v750
    %v3854 = vpop.f32.mrf.mxu0
    %v3855 = vadd.f32 %v3786, %v3854
    %v3856 = vpop.f32.mrf.mxu0
    %v3857 = vadd.f32 %v3788, %v3856
    %3858 = vmatmul.bf16.gmra.mxu0 %v756
    %v3859 = vpop.f32.mrf.mxu0
    %v3860 = vadd.f32 %v3791, %v3859
    %v3861 = vpop.f32.mrf.mxu0
    %v3862 = vadd.f32 %v3793, %v3861
    %3863 = vmatmul.bf16.gmra.mxu0 %v762
    %v3864 = vpop.f32.mrf.mxu0
    %v3865 = vadd.f32 %v3796, %v3864
    %v3866 = vpop.f32.mrf.mxu0
    %v3867 = vadd.f32 %v3798, %v3866
    %3868 = vmatmul.bf16.gmra.mxu0 %v768
    %v3869 = vpop.f32.mrf.mxu0
    %v3870 = vadd.f32 %v3801, %v3869
    %v3871 = vpop.f32.mrf.mxu0
    %v3872 = vadd.f32 %v3803, %v3871
    %3873 = vmatmul.bf16.gmra.mxu0 %v774
    %v3874 = vpop.f32.mrf.mxu0
    %v3875 = vadd.f32 %v3806, %v3874
    %v3876 = vpop.f32.mrf.mxu0
    %v3877 = vadd.f32 %v3808, %v3876
    %3878 = vmatmul.bf16.gmra.mxu0 %v780
    %v3879 = vpop.f32.mrf.mxu0
    %v3880 = vadd.f32 %v3811, %v3879
    %v3881 = vpop.f32.mrf.mxu0
    %v3882 = vadd.f32 %v3813, %v3881
    %3883 = vmatmul.bf16.gmra.mxu0 %v786
    %v3884 = vpop.f32.mrf.mxu0
    %v3885 = vadd.f32 %v3816, %v3884
    %v3886 = vpop.f32.mrf.mxu0
    %v3887 = vadd.f32 %v3818, %v3886
    %3888 = vmatmul.bf16.gmra.mxu0 %v792
    %v3889 = vpop.f32.mrf.mxu0
    %v3890 = vadd.f32 %v3821, %v3889
    %v3891 = vpop.f32.mrf.mxu0
    %v3892 = vadd.f32 %v3823, %v3891
    %3893 = vmatmul.bf16.gmra.mxu0 %v798
    %v3894 = vpop.f32.mrf.mxu0
    %v3895 = vadd.f32 %v3826, %v3894
    %v3896 = vpop.f32.mrf.mxu0
    %v3897 = vadd.f32 %v3828, %v3896
    %3898 = vdwg.mxu0
    %3899 = vmatpush.bf16.msra.mxu0 %v2021
    %3900 = vmatpush.bf16.msra.mxu0 %v2015
    %3901 = vmatpush.bf16.msra.mxu0 %v2009
    %3902 = vmatpush.bf16.msra.mxu0 %v2003
    %3903 = vmatpush.bf16.msra.mxu0 %v1997
    %3904 = vmatpush.bf16.msra.mxu0 %v1991
    %3905 = vmatpush.bf16.msra.mxu0 %v1985
    %3906 = vmatpush.bf16.msra.mxu0 %v1979
    %3907 = vmatmul.bf16.gmra.mxu0 %v733
    %v3908 = vpop.f32.mrf.mxu0
    %v3909 = vadd.f32 %v3840, %v3908
    %v3910 = vpop.f32.mrf.mxu0
    %v3911 = vadd.f32 %v3842, %v3910
    %3912 = vmatmul.bf16.gmra.mxu0 %v739
    %v3913 = vpop.f32.mrf.mxu0
    %v3914 = vadd.f32 %v3845, %v3913
    %v3915 = vpop.f32.mrf.mxu0
    %v3916 = vadd.f32 %v3847, %v3915
    %3917 = vmatmul.bf16.gmra.mxu0 %v745
    %v3918 = vpop.f32.mrf.mxu0
    %v3919 = vadd.f32 %v3850, %v3918
    %v3920 = vpop.f32.mrf.mxu0
    %v3921 = vadd.f32 %v3852, %v3920
    %3922 = vmatmul.bf16.gmra.mxu0 %v751
    %v3923 = vpop.f32.mrf.mxu0
    %v3924 = vadd.f32 %v3855, %v3923
    %v3925 = vpop.f32.mrf.mxu0
    %v3926 = vadd.f32 %v3857, %v3925
    %3927 = vmatmul.bf16.gmra.mxu0 %v757
    %v3928 = vpop.f32.mrf.mxu0
    %v3929 = vadd.f32 %v3860, %v3928
    %v3930 = vpop.f32.mrf.mxu0
    %v3931 = vadd.f32 %v3862, %v3930
    %3932 = vmatmul.bf16.gmra.mxu0 %v763
    %v3933 = vpop.f32.mrf.mxu0
    %v3934 = vadd.f32 %v3865, %v3933
    %v3935 = vpop.f32.mrf.mxu0
    %v3936 = vadd.f32 %v3867, %v3935
    %3937 = vmatmul.bf16.gmra.mxu0 %v769
    %v3938 = vpop.f32.mrf.mxu0
    %v3939 = vadd.f32 %v3870, %v3938
    %v3940 = vpop.f32.mrf.mxu0
    %v3941 = vadd.f32 %v3872, %v3940
    %3942 = vmatmul.bf16.gmra.mxu0 %v775
    %v3943 = vpop.f32.mrf.mxu0
    %v3944 = vadd.f32 %v3875, %v3943
    %v3945 = vpop.f32.mrf.mxu0
    %v3946 = vadd.f32 %v3877, %v3945
    %3947 = vmatmul.bf16.gmra.mxu0 %v781
    %v3948 = vpop.f32.mrf.mxu0
    %v3949 = vadd.f32 %v3880, %v3948
    %v3950 = vpop.f32.mrf.mxu0
    %v3951 = vadd.f32 %v3882, %v3950
    %3952 = vmatmul.bf16.gmra.mxu0 %v787
    %v3953 = vpop.f32.mrf.mxu0
    %v3954 = vadd.f32 %v3885, %v3953
    %v3955 = vpop.f32.mrf.mxu0
    %v3956 = vadd.f32 %v3887, %v3955
    %3957 = vmatmul.bf16.gmra.mxu0 %v793
    %v3958 = vpop.f32.mrf.mxu0
    %v3959 = vadd.f32 %v3890, %v3958
    %v3960 = vpop.f32.mrf.mxu0
    %v3961 = vadd.f32 %v3892, %v3960
    %3962 = vmatmul.bf16.gmra.mxu0 %v799
    %v3963 = vpop.f32.mrf.mxu0
    %v3964 = vadd.f32 %v3895, %v3963
    %v3965 = vpop.f32.mrf.mxu0
    %v3966 = vadd.f32 %v3897, %v3965
    %3967 = vdwg.mxu0
    %3968 = vmatpush.bf16.msra.mxu0 %v1782
    %3969 = vmatpush.bf16.msra.mxu0 %v1776
    %3970 = vmatpush.bf16.msra.mxu0 %v1770
    %3971 = vmatpush.bf16.msra.mxu0 %v1764
    %3972 = vmatpush.bf16.msra.mxu0 %v1758
    %3973 = vmatpush.bf16.msra.mxu0 %v1752
    %3974 = vmatpush.bf16.msra.mxu0 %v1746
    %3975 = vmatpush.bf16.msra.mxu0 %v1740
    %3976 = vmatmul.bf16.gmra.mxu0 %v728
    %v3977 = vpop.f32.mrf.mxu0
    %v3978 = vadd.f32 %v504, %v3977
    %v3979 = vpop.f32.mrf.mxu0
    %v3980 = vadd.f32 %v504, %v3979
    %3981 = vmatmul.bf16.gmra.mxu0 %v734
    %v3982 = vpop.f32.mrf.mxu0
    %v3983 = vadd.f32 %v504, %v3982
    %v3984 = vpop.f32.mrf.mxu0
    %v3985 = vadd.f32 %v504, %v3984
    %3986 = vmatmul.bf16.gmra.mxu0 %v740
    %v3987 = vpop.f32.mrf.mxu0
    %v3988 = vadd.f32 %v504, %v3987
    %v3989 = vpop.f32.mrf.mxu0
    %v3990 = vadd.f32 %v504, %v3989
    %3991 = vmatmul.bf16.gmra.mxu0 %v746
    %v3992 = vpop.f32.mrf.mxu0
    %v3993 = vadd.f32 %v504, %v3992
    %v3994 = vpop.f32.mrf.mxu0
    %v3995 = vadd.f32 %v504, %v3994
    %3996 = vmatmul.bf16.gmra.mxu0 %v752
    %v3997 = vpop.f32.mrf.mxu0
    %v3998 = vadd.f32 %v504, %v3997
    %v3999 = vpop.f32.mrf.mxu0
    %v4000 = vadd.f32 %v504, %v3999
    %4001 = vmatmul.bf16.gmra.mxu0 %v758
    %v4002 = vpop.f32.mrf.mxu0
    %v4003 = vadd.f32 %v504, %v4002
    %v4004 = vpop.f32.mrf.mxu0
    %v4005 = vadd.f32 %v504, %v4004
    %4006 = vmatmul.bf16.gmra.mxu0 %v764
    %v4007 = vpop.f32.mrf.mxu0
    %v4008 = vadd.f32 %v504, %v4007
    %v4009 = vpop.f32.mrf.mxu0
    %v4010 = vadd.f32 %v504, %v4009
    %4011 = vmatmul.bf16.gmra.mxu0 %v770
    %v4012 = vpop.f32.mrf.mxu0
    %v4013 = vadd.f32 %v504, %v4012
    %v4014 = vpop.f32.mrf.mxu0
    %v4015 = vadd.f32 %v504, %v4014
    %4016 = vmatmul.bf16.gmra.mxu0 %v776
    %v4017 = vpop.f32.mrf.mxu0
    %v4018 = vadd.f32 %v504, %v4017
    %v4019 = vpop.f32.mrf.mxu0
    %v4020 = vadd.f32 %v504, %v4019
    %4021 = vmatmul.bf16.gmra.mxu0 %v782
    %v4022 = vpop.f32.mrf.mxu0
    %v4023 = vadd.f32 %v504, %v4022
    %v4024 = vpop.f32.mrf.mxu0
    %v4025 = vadd.f32 %v504, %v4024
    %4026 = vmatmul.bf16.gmra.mxu0 %v788
    %v4027 = vpop.f32.mrf.mxu0
    %v4028 = vadd.f32 %v504, %v4027
    %v4029 = vpop.f32.mrf.mxu0
    %v4030 = vadd.f32 %v504, %v4029
    %4031 = vmatmul.bf16.gmra.mxu0 %v794
    %v4032 = vpop.f32.mrf.mxu0
    %v4033 = vadd.f32 %v504, %v4032
    %v4034 = vpop.f32.mrf.mxu0
    %v4035 = vadd.f32 %v504, %v4034
    %4036 = vdwg.mxu0
    %4037 = vmatpush.bf16.msra.mxu0 %v1830
    %4038 = vmatpush.bf16.msra.mxu0 %v1824
    %4039 = vmatpush.bf16.msra.mxu0 %v1818
    %4040 = vmatpush.bf16.msra.mxu0 %v1812
    %4041 = vmatpush.bf16.msra.mxu0 %v1806
    %4042 = vmatpush.bf16.msra.mxu0 %v1800
    %4043 = vmatpush.bf16.msra.mxu0 %v1794
    %4044 = vmatpush.bf16.msra.mxu0 %v1788
    %4045 = vmatmul.bf16.gmra.mxu0 %v729
    %v4046 = vpop.f32.mrf.mxu0
    %v4047 = vadd.f32 %v3978, %v4046
    %v4048 = vpop.f32.mrf.mxu0
    %v4049 = vadd.f32 %v3980, %v4048
    %4050 = vmatmul.bf16.gmra.mxu0 %v735
    %v4051 = vpop.f32.mrf.mxu0
    %v4052 = vadd.f32 %v3983, %v4051
    %v4053 = vpop.f32.mrf.mxu0
    %v4054 = vadd.f32 %v3985, %v4053
    %4055 = vmatmul.bf16.gmra.mxu0 %v741
    %v4056 = vpop.f32.mrf.mxu0
    %v4057 = vadd.f32 %v3988, %v4056
    %v4058 = vpop.f32.mrf.mxu0
    %v4059 = vadd.f32 %v3990, %v4058
    %4060 = vmatmul.bf16.gmra.mxu0 %v747
    %v4061 = vpop.f32.mrf.mxu0
    %v4062 = vadd.f32 %v3993, %v4061
    %v4063 = vpop.f32.mrf.mxu0
    %v4064 = vadd.f32 %v3995, %v4063
    %4065 = vmatmul.bf16.gmra.mxu0 %v753
    %v4066 = vpop.f32.mrf.mxu0
    %v4067 = vadd.f32 %v3998, %v4066
    %v4068 = vpop.f32.mrf.mxu0
    %v4069 = vadd.f32 %v4000, %v4068
    %4070 = vmatmul.bf16.gmra.mxu0 %v759
    %v4071 = vpop.f32.mrf.mxu0
    %v4072 = vadd.f32 %v4003, %v4071
    %v4073 = vpop.f32.mrf.mxu0
    %v4074 = vadd.f32 %v4005, %v4073
    %4075 = vmatmul.bf16.gmra.mxu0 %v765
    %v4076 = vpop.f32.mrf.mxu0
    %v4077 = vadd.f32 %v4008, %v4076
    %v4078 = vpop.f32.mrf.mxu0
    %v4079 = vadd.f32 %v4010, %v4078
    %4080 = vmatmul.bf16.gmra.mxu0 %v771
    %v4081 = vpop.f32.mrf.mxu0
    %v4082 = vadd.f32 %v4013, %v4081
    %v4083 = vpop.f32.mrf.mxu0
    %v4084 = vadd.f32 %v4015, %v4083
    %4085 = vmatmul.bf16.gmra.mxu0 %v777
    %v4086 = vpop.f32.mrf.mxu0
    %v4087 = vadd.f32 %v4018, %v4086
    %v4088 = vpop.f32.mrf.mxu0
    %v4089 = vadd.f32 %v4020, %v4088
    %4090 = vmatmul.bf16.gmra.mxu0 %v783
    %v4091 = vpop.f32.mrf.mxu0
    %v4092 = vadd.f32 %v4023, %v4091
    %v4093 = vpop.f32.mrf.mxu0
    %v4094 = vadd.f32 %v4025, %v4093
    %4095 = vmatmul.bf16.gmra.mxu0 %v789
    %v4096 = vpop.f32.mrf.mxu0
    %v4097 = vadd.f32 %v4028, %v4096
    %v4098 = vpop.f32.mrf.mxu0
    %v4099 = vadd.f32 %v4030, %v4098
    %4100 = vmatmul.bf16.gmra.mxu0 %v795
    %v4101 = vpop.f32.mrf.mxu0
    %v4102 = vadd.f32 %v4033, %v4101
    %v4103 = vpop.f32.mrf.mxu0
    %v4104 = vadd.f32 %v4035, %v4103
    %4105 = vdwg.mxu0
    %4106 = vmatpush.bf16.msra.mxu0 %v1878
    %4107 = vmatpush.bf16.msra.mxu0 %v1872
    %4108 = vmatpush.bf16.msra.mxu0 %v1866
    %4109 = vmatpush.bf16.msra.mxu0 %v1860
    %4110 = vmatpush.bf16.msra.mxu0 %v1854
    %4111 = vmatpush.bf16.msra.mxu0 %v1848
    %4112 = vmatpush.bf16.msra.mxu0 %v1842
    %4113 = vmatpush.bf16.msra.mxu0 %v1836
    %4114 = vmatmul.bf16.gmra.mxu0 %v730
    %v4115 = vpop.f32.mrf.mxu0
    %v4116 = vadd.f32 %v4047, %v4115
    %v4117 = vpop.f32.mrf.mxu0
    %v4118 = vadd.f32 %v4049, %v4117
    %4119 = vmatmul.bf16.gmra.mxu0 %v736
    %v4120 = vpop.f32.mrf.mxu0
    %v4121 = vadd.f32 %v4052, %v4120
    %v4122 = vpop.f32.mrf.mxu0
    %v4123 = vadd.f32 %v4054, %v4122
    %4124 = vmatmul.bf16.gmra.mxu0 %v742
    %v4125 = vpop.f32.mrf.mxu0
    %v4126 = vadd.f32 %v4057, %v4125
    %v4127 = vpop.f32.mrf.mxu0
    %v4128 = vadd.f32 %v4059, %v4127
    %4129 = vmatmul.bf16.gmra.mxu0 %v748
    %v4130 = vpop.f32.mrf.mxu0
    %v4131 = vadd.f32 %v4062, %v4130
    %v4132 = vpop.f32.mrf.mxu0
    %v4133 = vadd.f32 %v4064, %v4132
    %4134 = vmatmul.bf16.gmra.mxu0 %v754
    %v4135 = vpop.f32.mrf.mxu0
    %v4136 = vadd.f32 %v4067, %v4135
    %v4137 = vpop.f32.mrf.mxu0
    %v4138 = vadd.f32 %v4069, %v4137
    %4139 = vmatmul.bf16.gmra.mxu0 %v760
    %v4140 = vpop.f32.mrf.mxu0
    %v4141 = vadd.f32 %v4072, %v4140
    %v4142 = vpop.f32.mrf.mxu0
    %v4143 = vadd.f32 %v4074, %v4142
    %4144 = vmatmul.bf16.gmra.mxu0 %v766
    %v4145 = vpop.f32.mrf.mxu0
    %v4146 = vadd.f32 %v4077, %v4145
    %v4147 = vpop.f32.mrf.mxu0
    %v4148 = vadd.f32 %v4079, %v4147
    %4149 = vmatmul.bf16.gmra.mxu0 %v772
    %v4150 = vpop.f32.mrf.mxu0
    %v4151 = vadd.f32 %v4082, %v4150
    %v4152 = vpop.f32.mrf.mxu0
    %v4153 = vadd.f32 %v4084, %v4152
    %4154 = vmatmul.bf16.gmra.mxu0 %v778
    %v4155 = vpop.f32.mrf.mxu0
    %v4156 = vadd.f32 %v4087, %v4155
    %v4157 = vpop.f32.mrf.mxu0
    %v4158 = vadd.f32 %v4089, %v4157
    %4159 = vmatmul.bf16.gmra.mxu0 %v784
    %v4160 = vpop.f32.mrf.mxu0
    %v4161 = vadd.f32 %v4092, %v4160
    %v4162 = vpop.f32.mrf.mxu0
    %v4163 = vadd.f32 %v4094, %v4162
    %4164 = vmatmul.bf16.gmra.mxu0 %v790
    %v4165 = vpop.f32.mrf.mxu0
    %v4166 = vadd.f32 %v4097, %v4165
    %v4167 = vpop.f32.mrf.mxu0
    %v4168 = vadd.f32 %v4099, %v4167
    %4169 = vmatmul.bf16.gmra.mxu0 %v796
    %v4170 = vpop.f32.mrf.mxu0
    %v4171 = vadd.f32 %v4102, %v4170
    %v4172 = vpop.f32.mrf.mxu0
    %v4173 = vadd.f32 %v4104, %v4172
    %4174 = vdwg.mxu0
    %4175 = vmatpush.bf16.msra.mxu0 %v1926
    %4176 = vmatpush.bf16.msra.mxu0 %v1920
    %4177 = vmatpush.bf16.msra.mxu0 %v1914
    %4178 = vmatpush.bf16.msra.mxu0 %v1908
    %4179 = vmatpush.bf16.msra.mxu0 %v1902
    %4180 = vmatpush.bf16.msra.mxu0 %v1896
    %4181 = vmatpush.bf16.msra.mxu0 %v1890
    %4182 = vmatpush.bf16.msra.mxu0 %v1884
    %4183 = vmatmul.bf16.gmra.mxu0 %v731
    %v4184 = vpop.f32.mrf.mxu0
    %v4185 = vadd.f32 %v4116, %v4184
    %v4186 = vpop.f32.mrf.mxu0
    %v4187 = vadd.f32 %v4118, %v4186
    %4188 = vmatmul.bf16.gmra.mxu0 %v737
    %v4189 = vpop.f32.mrf.mxu0
    %v4190 = vadd.f32 %v4121, %v4189
    %v4191 = vpop.f32.mrf.mxu0
    %v4192 = vadd.f32 %v4123, %v4191
    %4193 = vmatmul.bf16.gmra.mxu0 %v743
    %v4194 = vpop.f32.mrf.mxu0
    %v4195 = vadd.f32 %v4126, %v4194
    %v4196 = vpop.f32.mrf.mxu0
    %v4197 = vadd.f32 %v4128, %v4196
    %4198 = vmatmul.bf16.gmra.mxu0 %v749
    %v4199 = vpop.f32.mrf.mxu0
    %v4200 = vadd.f32 %v4131, %v4199
    %v4201 = vpop.f32.mrf.mxu0
    %v4202 = vadd.f32 %v4133, %v4201
    %4203 = vmatmul.bf16.gmra.mxu0 %v755
    %v4204 = vpop.f32.mrf.mxu0
    %v4205 = vadd.f32 %v4136, %v4204
    %v4206 = vpop.f32.mrf.mxu0
    %v4207 = vadd.f32 %v4138, %v4206
    %4208 = vmatmul.bf16.gmra.mxu0 %v761
    %v4209 = vpop.f32.mrf.mxu0
    %v4210 = vadd.f32 %v4141, %v4209
    %v4211 = vpop.f32.mrf.mxu0
    %v4212 = vadd.f32 %v4143, %v4211
    %4213 = vmatmul.bf16.gmra.mxu0 %v767
    %v4214 = vpop.f32.mrf.mxu0
    %v4215 = vadd.f32 %v4146, %v4214
    %v4216 = vpop.f32.mrf.mxu0
    %v4217 = vadd.f32 %v4148, %v4216
    %4218 = vmatmul.bf16.gmra.mxu0 %v773
    %v4219 = vpop.f32.mrf.mxu0
    %v4220 = vadd.f32 %v4151, %v4219
    %v4221 = vpop.f32.mrf.mxu0
    %v4222 = vadd.f32 %v4153, %v4221
    %4223 = vmatmul.bf16.gmra.mxu0 %v779
    %v4224 = vpop.f32.mrf.mxu0
    %v4225 = vadd.f32 %v4156, %v4224
    %v4226 = vpop.f32.mrf.mxu0
    %v4227 = vadd.f32 %v4158, %v4226
    %4228 = vmatmul.bf16.gmra.mxu0 %v785
    %v4229 = vpop.f32.mrf.mxu0
    %v4230 = vadd.f32 %v4161, %v4229
    %v4231 = vpop.f32.mrf.mxu0
    %v4232 = vadd.f32 %v4163, %v4231
    %4233 = vmatmul.bf16.gmra.mxu0 %v791
    %v4234 = vpop.f32.mrf.mxu0
    %v4235 = vadd.f32 %v4166, %v4234
    %v4236 = vpop.f32.mrf.mxu0
    %v4237 = vadd.f32 %v4168, %v4236
    %4238 = vmatmul.bf16.gmra.mxu0 %v797
    %v4239 = vpop.f32.mrf.mxu0
    %v4240 = vadd.f32 %v4171, %v4239
    %v4241 = vpop.f32.mrf.mxu0
    %v4242 = vadd.f32 %v4173, %v4241
    %4243 = vdwg.mxu0
    %4244 = vmatpush.bf16.msra.mxu0 %v1974
    %4245 = vmatpush.bf16.msra.mxu0 %v1968
    %4246 = vmatpush.bf16.msra.mxu0 %v1962
    %4247 = vmatpush.bf16.msra.mxu0 %v1956
    %4248 = vmatpush.bf16.msra.mxu0 %v1950
    %4249 = vmatpush.bf16.msra.mxu0 %v1944
    %4250 = vmatpush.bf16.msra.mxu0 %v1938
    %4251 = vmatpush.bf16.msra.mxu0 %v1932
    %4252 = vmatmul.bf16.gmra.mxu0 %v732
    %v4253 = vpop.f32.mrf.mxu0
    %v4254 = vadd.f32 %v4185, %v4253
    %v4255 = vpop.f32.mrf.mxu0
    %v4256 = vadd.f32 %v4187, %v4255
    %4257 = vmatmul.bf16.gmra.mxu0 %v738
    %v4258 = vpop.f32.mrf.mxu0
    %v4259 = vadd.f32 %v4190, %v4258
    %v4260 = vpop.f32.mrf.mxu0
    %v4261 = vadd.f32 %v4192, %v4260
    %4262 = vmatmul.bf16.gmra.mxu0 %v744
    %v4263 = vpop.f32.mrf.mxu0
    %v4264 = vadd.f32 %v4195, %v4263
    %v4265 = vpop.f32.mrf.mxu0
    %v4266 = vadd.f32 %v4197, %v4265
    %4267 = vmatmul.bf16.gmra.mxu0 %v750
    %v4268 = vpop.f32.mrf.mxu0
    %v4269 = vadd.f32 %v4200, %v4268
    %v4270 = vpop.f32.mrf.mxu0
    %v4271 = vadd.f32 %v4202, %v4270
    %4272 = vmatmul.bf16.gmra.mxu0 %v756
    %v4273 = vpop.f32.mrf.mxu0
    %v4274 = vadd.f32 %v4205, %v4273
    %v4275 = vpop.f32.mrf.mxu0
    %v4276 = vadd.f32 %v4207, %v4275
    %4277 = vmatmul.bf16.gmra.mxu0 %v762
    %v4278 = vpop.f32.mrf.mxu0
    %v4279 = vadd.f32 %v4210, %v4278
    %v4280 = vpop.f32.mrf.mxu0
    %v4281 = vadd.f32 %v4212, %v4280
    %4282 = vmatmul.bf16.gmra.mxu0 %v768
    %v4283 = vpop.f32.mrf.mxu0
    %v4284 = vadd.f32 %v4215, %v4283
    %v4285 = vpop.f32.mrf.mxu0
    %v4286 = vadd.f32 %v4217, %v4285
    %4287 = vmatmul.bf16.gmra.mxu0 %v774
    %v4288 = vpop.f32.mrf.mxu0
    %v4289 = vadd.f32 %v4220, %v4288
    %v4290 = vpop.f32.mrf.mxu0
    %v4291 = vadd.f32 %v4222, %v4290
    %4292 = vmatmul.bf16.gmra.mxu0 %v780
    %v4293 = vpop.f32.mrf.mxu0
    %v4294 = vadd.f32 %v4225, %v4293
    %v4295 = vpop.f32.mrf.mxu0
    %v4296 = vadd.f32 %v4227, %v4295
    %4297 = vmatmul.bf16.gmra.mxu0 %v786
    %v4298 = vpop.f32.mrf.mxu0
    %v4299 = vadd.f32 %v4230, %v4298
    %v4300 = vpop.f32.mrf.mxu0
    %v4301 = vadd.f32 %v4232, %v4300
    %4302 = vmatmul.bf16.gmra.mxu0 %v792
    %v4303 = vpop.f32.mrf.mxu0
    %v4304 = vadd.f32 %v4235, %v4303
    %v4305 = vpop.f32.mrf.mxu0
    %v4306 = vadd.f32 %v4237, %v4305
    %4307 = vmatmul.bf16.gmra.mxu0 %v798
    %v4308 = vpop.f32.mrf.mxu0
    %v4309 = vadd.f32 %v4240, %v4308
    %v4310 = vpop.f32.mrf.mxu0
    %v4311 = vadd.f32 %v4242, %v4310
    %4312 = vdwg.mxu0
    %4313 = vmatpush.bf16.msra.mxu0 %v2022
    %4314 = vmatpush.bf16.msra.mxu0 %v2016
    %4315 = vmatpush.bf16.msra.mxu0 %v2010
    %4316 = vmatpush.bf16.msra.mxu0 %v2004
    %4317 = vmatpush.bf16.msra.mxu0 %v1998
    %4318 = vmatpush.bf16.msra.mxu0 %v1992
    %4319 = vmatpush.bf16.msra.mxu0 %v1986
    %4320 = vmatpush.bf16.msra.mxu0 %v1980
    %4321 = vmatmul.bf16.gmra.mxu0 %v733
    %v4322 = vpop.f32.mrf.mxu0
    %v4323 = vadd.f32 %v4254, %v4322
    %v4324 = vpop.f32.mrf.mxu0
    %v4325 = vadd.f32 %v4256, %v4324
    %4326 = vmatmul.bf16.gmra.mxu0 %v739
    %v4327 = vpop.f32.mrf.mxu0
    %v4328 = vadd.f32 %v4259, %v4327
    %v4329 = vpop.f32.mrf.mxu0
    %v4330 = vadd.f32 %v4261, %v4329
    %4331 = vmatmul.bf16.gmra.mxu0 %v745
    %v4332 = vpop.f32.mrf.mxu0
    %v4333 = vadd.f32 %v4264, %v4332
    %v4334 = vpop.f32.mrf.mxu0
    %v4335 = vadd.f32 %v4266, %v4334
    %4336 = vmatmul.bf16.gmra.mxu0 %v751
    %v4337 = vpop.f32.mrf.mxu0
    %v4338 = vadd.f32 %v4269, %v4337
    %v4339 = vpop.f32.mrf.mxu0
    %v4340 = vadd.f32 %v4271, %v4339
    %4341 = vmatmul.bf16.gmra.mxu0 %v757
    %v4342 = vpop.f32.mrf.mxu0
    %v4343 = vadd.f32 %v4274, %v4342
    %v4344 = vpop.f32.mrf.mxu0
    %v4345 = vadd.f32 %v4276, %v4344
    %4346 = vmatmul.bf16.gmra.mxu0 %v763
    %v4347 = vpop.f32.mrf.mxu0
    %v4348 = vadd.f32 %v4279, %v4347
    %v4349 = vpop.f32.mrf.mxu0
    %v4350 = vadd.f32 %v4281, %v4349
    %4351 = vmatmul.bf16.gmra.mxu0 %v769
    %v4352 = vpop.f32.mrf.mxu0
    %v4353 = vadd.f32 %v4284, %v4352
    %v4354 = vpop.f32.mrf.mxu0
    %v4355 = vadd.f32 %v4286, %v4354
    %4356 = vmatmul.bf16.gmra.mxu0 %v775
    %v4357 = vpop.f32.mrf.mxu0
    %v4358 = vadd.f32 %v4289, %v4357
    %v4359 = vpop.f32.mrf.mxu0
    %v4360 = vadd.f32 %v4291, %v4359
    %4361 = vmatmul.bf16.gmra.mxu0 %v781
    %v4362 = vpop.f32.mrf.mxu0
    %v4363 = vadd.f32 %v4294, %v4362
    %v4364 = vpop.f32.mrf.mxu0
    %v4365 = vadd.f32 %v4296, %v4364
    %4366 = vmatmul.bf16.gmra.mxu0 %v787
    %v4367 = vpop.f32.mrf.mxu0
    %v4368 = vadd.f32 %v4299, %v4367
    %v4369 = vpop.f32.mrf.mxu0
    %v4370 = vadd.f32 %v4301, %v4369
    %4371 = vmatmul.bf16.gmra.mxu0 %v793
    %v4372 = vpop.f32.mrf.mxu0
    %v4373 = vadd.f32 %v4304, %v4372
    %v4374 = vpop.f32.mrf.mxu0
    %v4375 = vadd.f32 %v4306, %v4374
    %4376 = vmatmul.bf16.gmra.mxu0 %v799
    %v4377 = vpop.f32.mrf.mxu0
    %v4378 = vadd.f32 %v4309, %v4377
    %v4379 = vpop.f32.mrf.mxu0
    %v4380 = vadd.f32 %v4311, %v4379
    %4381 = vdwg.mxu0
    %4382 = vmatpush.bf16.msra.mxu0 %v1783
    %4383 = vmatpush.bf16.msra.mxu0 %v1777
    %4384 = vmatpush.bf16.msra.mxu0 %v1771
    %4385 = vmatpush.bf16.msra.mxu0 %v1765
    %4386 = vmatpush.bf16.msra.mxu0 %v1759
    %4387 = vmatpush.bf16.msra.mxu0 %v1753
    %4388 = vmatpush.bf16.msra.mxu0 %v1747
    %4389 = vmatpush.bf16.msra.mxu0 %v1741
    %4390 = vmatmul.bf16.gmra.mxu0 %v728
    %v4391 = vpop.f32.mrf.mxu0
    %v4392 = vadd.f32 %v505, %v4391
    %v4393 = vpop.f32.mrf.mxu0
    %v4394 = vadd.f32 %v505, %v4393
    %4395 = vmatmul.bf16.gmra.mxu0 %v734
    %v4396 = vpop.f32.mrf.mxu0
    %v4397 = vadd.f32 %v505, %v4396
    %v4398 = vpop.f32.mrf.mxu0
    %v4399 = vadd.f32 %v505, %v4398
    %4400 = vmatmul.bf16.gmra.mxu0 %v740
    %v4401 = vpop.f32.mrf.mxu0
    %v4402 = vadd.f32 %v505, %v4401
    %v4403 = vpop.f32.mrf.mxu0
    %v4404 = vadd.f32 %v505, %v4403
    %4405 = vmatmul.bf16.gmra.mxu0 %v746
    %v4406 = vpop.f32.mrf.mxu0
    %v4407 = vadd.f32 %v505, %v4406
    %v4408 = vpop.f32.mrf.mxu0
    %v4409 = vadd.f32 %v505, %v4408
    %4410 = vmatmul.bf16.gmra.mxu0 %v752
    %v4411 = vpop.f32.mrf.mxu0
    %v4412 = vadd.f32 %v505, %v4411
    %v4413 = vpop.f32.mrf.mxu0
    %v4414 = vadd.f32 %v505, %v4413
    %4415 = vmatmul.bf16.gmra.mxu0 %v758
    %v4416 = vpop.f32.mrf.mxu0
    %v4417 = vadd.f32 %v505, %v4416
    %v4418 = vpop.f32.mrf.mxu0
    %v4419 = vadd.f32 %v505, %v4418
    %4420 = vmatmul.bf16.gmra.mxu0 %v764
    %v4421 = vpop.f32.mrf.mxu0
    %v4422 = vadd.f32 %v505, %v4421
    %v4423 = vpop.f32.mrf.mxu0
    %v4424 = vadd.f32 %v505, %v4423
    %4425 = vmatmul.bf16.gmra.mxu0 %v770
    %v4426 = vpop.f32.mrf.mxu0
    %v4427 = vadd.f32 %v505, %v4426
    %v4428 = vpop.f32.mrf.mxu0
    %v4429 = vadd.f32 %v505, %v4428
    %4430 = vmatmul.bf16.gmra.mxu0 %v776
    %v4431 = vpop.f32.mrf.mxu0
    %v4432 = vadd.f32 %v505, %v4431
    %v4433 = vpop.f32.mrf.mxu0
    %v4434 = vadd.f32 %v505, %v4433
    %4435 = vmatmul.bf16.gmra.mxu0 %v782
    %v4436 = vpop.f32.mrf.mxu0
    %v4437 = vadd.f32 %v505, %v4436
    %v4438 = vpop.f32.mrf.mxu0
    %v4439 = vadd.f32 %v505, %v4438
    %4440 = vmatmul.bf16.gmra.mxu0 %v788
    %v4441 = vpop.f32.mrf.mxu0
    %v4442 = vadd.f32 %v505, %v4441
    %v4443 = vpop.f32.mrf.mxu0
    %v4444 = vadd.f32 %v505, %v4443
    %4445 = vmatmul.bf16.gmra.mxu0 %v794
    %v4446 = vpop.f32.mrf.mxu0
    %v4447 = vadd.f32 %v505, %v4446
    %v4448 = vpop.f32.mrf.mxu0
    %v4449 = vadd.f32 %v505, %v4448
    %4450 = vdwg.mxu0
    %4451 = vmatpush.bf16.msra.mxu0 %v1831
    %4452 = vmatpush.bf16.msra.mxu0 %v1825
    %4453 = vmatpush.bf16.msra.mxu0 %v1819
    %4454 = vmatpush.bf16.msra.mxu0 %v1813
    %4455 = vmatpush.bf16.msra.mxu0 %v1807
    %4456 = vmatpush.bf16.msra.mxu0 %v1801
    %4457 = vmatpush.bf16.msra.mxu0 %v1795
    %4458 = vmatpush.bf16.msra.mxu0 %v1789
    %4459 = vmatmul.bf16.gmra.mxu0 %v729
    %v4460 = vpop.f32.mrf.mxu0
    %v4461 = vadd.f32 %v4392, %v4460
    %v4462 = vpop.f32.mrf.mxu0
    %v4463 = vadd.f32 %v4394, %v4462
    %4464 = vmatmul.bf16.gmra.mxu0 %v735
    %v4465 = vpop.f32.mrf.mxu0
    %v4466 = vadd.f32 %v4397, %v4465
    %v4467 = vpop.f32.mrf.mxu0
    %v4468 = vadd.f32 %v4399, %v4467
    %4469 = vmatmul.bf16.gmra.mxu0 %v741
    %v4470 = vpop.f32.mrf.mxu0
    %v4471 = vadd.f32 %v4402, %v4470
    %v4472 = vpop.f32.mrf.mxu0
    %v4473 = vadd.f32 %v4404, %v4472
    %4474 = vmatmul.bf16.gmra.mxu0 %v747
    %v4475 = vpop.f32.mrf.mxu0
    %v4476 = vadd.f32 %v4407, %v4475
    %v4477 = vpop.f32.mrf.mxu0
    %v4478 = vadd.f32 %v4409, %v4477
    %4479 = vmatmul.bf16.gmra.mxu0 %v753
    %v4480 = vpop.f32.mrf.mxu0
    %v4481 = vadd.f32 %v4412, %v4480
    %v4482 = vpop.f32.mrf.mxu0
    %v4483 = vadd.f32 %v4414, %v4482
    %4484 = vmatmul.bf16.gmra.mxu0 %v759
    %v4485 = vpop.f32.mrf.mxu0
    %v4486 = vadd.f32 %v4417, %v4485
    %v4487 = vpop.f32.mrf.mxu0
    %v4488 = vadd.f32 %v4419, %v4487
    %4489 = vmatmul.bf16.gmra.mxu0 %v765
    %v4490 = vpop.f32.mrf.mxu0
    %v4491 = vadd.f32 %v4422, %v4490
    %v4492 = vpop.f32.mrf.mxu0
    %v4493 = vadd.f32 %v4424, %v4492
    %4494 = vmatmul.bf16.gmra.mxu0 %v771
    %v4495 = vpop.f32.mrf.mxu0
    %v4496 = vadd.f32 %v4427, %v4495
    %v4497 = vpop.f32.mrf.mxu0
    %v4498 = vadd.f32 %v4429, %v4497
    %4499 = vmatmul.bf16.gmra.mxu0 %v777
    %v4500 = vpop.f32.mrf.mxu0
    %v4501 = vadd.f32 %v4432, %v4500
    %v4502 = vpop.f32.mrf.mxu0
    %v4503 = vadd.f32 %v4434, %v4502
    %4504 = vmatmul.bf16.gmra.mxu0 %v783
    %v4505 = vpop.f32.mrf.mxu0
    %v4506 = vadd.f32 %v4437, %v4505
    %v4507 = vpop.f32.mrf.mxu0
    %v4508 = vadd.f32 %v4439, %v4507
    %4509 = vmatmul.bf16.gmra.mxu0 %v789
    %v4510 = vpop.f32.mrf.mxu0
    %v4511 = vadd.f32 %v4442, %v4510
    %v4512 = vpop.f32.mrf.mxu0
    %v4513 = vadd.f32 %v4444, %v4512
    %4514 = vmatmul.bf16.gmra.mxu0 %v795
    %v4515 = vpop.f32.mrf.mxu0
    %v4516 = vadd.f32 %v4447, %v4515
    %v4517 = vpop.f32.mrf.mxu0
    %v4518 = vadd.f32 %v4449, %v4517
    %4519 = vdwg.mxu0
    %4520 = vmatpush.bf16.msra.mxu0 %v1879
    %4521 = vmatpush.bf16.msra.mxu0 %v1873
    %4522 = vmatpush.bf16.msra.mxu0 %v1867
    %4523 = vmatpush.bf16.msra.mxu0 %v1861
    %4524 = vmatpush.bf16.msra.mxu0 %v1855
    %4525 = vmatpush.bf16.msra.mxu0 %v1849
    %4526 = vmatpush.bf16.msra.mxu0 %v1843
    %4527 = vmatpush.bf16.msra.mxu0 %v1837
    %4528 = vmatmul.bf16.gmra.mxu0 %v730
    %v4529 = vpop.f32.mrf.mxu0
    %v4530 = vadd.f32 %v4461, %v4529
    %v4531 = vpop.f32.mrf.mxu0
    %v4532 = vadd.f32 %v4463, %v4531
    %4533 = vmatmul.bf16.gmra.mxu0 %v736
    %v4534 = vpop.f32.mrf.mxu0
    %v4535 = vadd.f32 %v4466, %v4534
    %v4536 = vpop.f32.mrf.mxu0
    %v4537 = vadd.f32 %v4468, %v4536
    %4538 = vmatmul.bf16.gmra.mxu0 %v742
    %v4539 = vpop.f32.mrf.mxu0
    %v4540 = vadd.f32 %v4471, %v4539
    %v4541 = vpop.f32.mrf.mxu0
    %v4542 = vadd.f32 %v4473, %v4541
    %4543 = vmatmul.bf16.gmra.mxu0 %v748
    %v4544 = vpop.f32.mrf.mxu0
    %v4545 = vadd.f32 %v4476, %v4544
    %v4546 = vpop.f32.mrf.mxu0
    %v4547 = vadd.f32 %v4478, %v4546
    %4548 = vmatmul.bf16.gmra.mxu0 %v754
    %v4549 = vpop.f32.mrf.mxu0
    %v4550 = vadd.f32 %v4481, %v4549
    %v4551 = vpop.f32.mrf.mxu0
    %v4552 = vadd.f32 %v4483, %v4551
    %4553 = vmatmul.bf16.gmra.mxu0 %v760
    %v4554 = vpop.f32.mrf.mxu0
    %v4555 = vadd.f32 %v4486, %v4554
    %v4556 = vpop.f32.mrf.mxu0
    %v4557 = vadd.f32 %v4488, %v4556
    %4558 = vmatmul.bf16.gmra.mxu0 %v766
    %v4559 = vpop.f32.mrf.mxu0
    %v4560 = vadd.f32 %v4491, %v4559
    %v4561 = vpop.f32.mrf.mxu0
    %v4562 = vadd.f32 %v4493, %v4561
    %4563 = vmatmul.bf16.gmra.mxu0 %v772
    %v4564 = vpop.f32.mrf.mxu0
    %v4565 = vadd.f32 %v4496, %v4564
    %v4566 = vpop.f32.mrf.mxu0
    %v4567 = vadd.f32 %v4498, %v4566
    %4568 = vmatmul.bf16.gmra.mxu0 %v778
    %v4569 = vpop.f32.mrf.mxu0
    %v4570 = vadd.f32 %v4501, %v4569
    %v4571 = vpop.f32.mrf.mxu0
    %v4572 = vadd.f32 %v4503, %v4571
    %4573 = vmatmul.bf16.gmra.mxu0 %v784
    %v4574 = vpop.f32.mrf.mxu0
    %v4575 = vadd.f32 %v4506, %v4574
    %v4576 = vpop.f32.mrf.mxu0
    %v4577 = vadd.f32 %v4508, %v4576
    %4578 = vmatmul.bf16.gmra.mxu0 %v790
    %v4579 = vpop.f32.mrf.mxu0
    %v4580 = vadd.f32 %v4511, %v4579
    %v4581 = vpop.f32.mrf.mxu0
    %v4582 = vadd.f32 %v4513, %v4581
    %4583 = vmatmul.bf16.gmra.mxu0 %v796
    %v4584 = vpop.f32.mrf.mxu0
    %v4585 = vadd.f32 %v4516, %v4584
    %v4586 = vpop.f32.mrf.mxu0
    %v4587 = vadd.f32 %v4518, %v4586
    %4588 = vdwg.mxu0
    %4589 = vmatpush.bf16.msra.mxu0 %v1927
    %4590 = vmatpush.bf16.msra.mxu0 %v1921
    %4591 = vmatpush.bf16.msra.mxu0 %v1915
    %4592 = vmatpush.bf16.msra.mxu0 %v1909
    %4593 = vmatpush.bf16.msra.mxu0 %v1903
    %4594 = vmatpush.bf16.msra.mxu0 %v1897
    %4595 = vmatpush.bf16.msra.mxu0 %v1891
    %4596 = vmatpush.bf16.msra.mxu0 %v1885
    %4597 = vmatmul.bf16.gmra.mxu0 %v731
    %v4598 = vpop.f32.mrf.mxu0
    %v4599 = vadd.f32 %v4530, %v4598
    %v4600 = vpop.f32.mrf.mxu0
    %v4601 = vadd.f32 %v4532, %v4600
    %4602 = vmatmul.bf16.gmra.mxu0 %v737
    %v4603 = vpop.f32.mrf.mxu0
    %v4604 = vadd.f32 %v4535, %v4603
    %v4605 = vpop.f32.mrf.mxu0
    %v4606 = vadd.f32 %v4537, %v4605
    %4607 = vmatmul.bf16.gmra.mxu0 %v743
    %v4608 = vpop.f32.mrf.mxu0
    %v4609 = vadd.f32 %v4540, %v4608
    %v4610 = vpop.f32.mrf.mxu0
    %v4611 = vadd.f32 %v4542, %v4610
    %4612 = vmatmul.bf16.gmra.mxu0 %v749
    %v4613 = vpop.f32.mrf.mxu0
    %v4614 = vadd.f32 %v4545, %v4613
    %v4615 = vpop.f32.mrf.mxu0
    %v4616 = vadd.f32 %v4547, %v4615
    %4617 = vmatmul.bf16.gmra.mxu0 %v755
    %v4618 = vpop.f32.mrf.mxu0
    %v4619 = vadd.f32 %v4550, %v4618
    %v4620 = vpop.f32.mrf.mxu0
    %v4621 = vadd.f32 %v4552, %v4620
    %4622 = vmatmul.bf16.gmra.mxu0 %v761
    %v4623 = vpop.f32.mrf.mxu0
    %v4624 = vadd.f32 %v4555, %v4623
    %v4625 = vpop.f32.mrf.mxu0
    %v4626 = vadd.f32 %v4557, %v4625
    %4627 = vmatmul.bf16.gmra.mxu0 %v767
    %v4628 = vpop.f32.mrf.mxu0
    %v4629 = vadd.f32 %v4560, %v4628
    %v4630 = vpop.f32.mrf.mxu0
    %v4631 = vadd.f32 %v4562, %v4630
    %4632 = vmatmul.bf16.gmra.mxu0 %v773
    %v4633 = vpop.f32.mrf.mxu0
    %v4634 = vadd.f32 %v4565, %v4633
    %v4635 = vpop.f32.mrf.mxu0
    %v4636 = vadd.f32 %v4567, %v4635
    %4637 = vmatmul.bf16.gmra.mxu0 %v779
    %v4638 = vpop.f32.mrf.mxu0
    %v4639 = vadd.f32 %v4570, %v4638
    %v4640 = vpop.f32.mrf.mxu0
    %v4641 = vadd.f32 %v4572, %v4640
    %4642 = vmatmul.bf16.gmra.mxu0 %v785
    %v4643 = vpop.f32.mrf.mxu0
    %v4644 = vadd.f32 %v4575, %v4643
    %v4645 = vpop.f32.mrf.mxu0
    %v4646 = vadd.f32 %v4577, %v4645
    %4647 = vmatmul.bf16.gmra.mxu0 %v791
    %v4648 = vpop.f32.mrf.mxu0
    %v4649 = vadd.f32 %v4580, %v4648
    %v4650 = vpop.f32.mrf.mxu0
    %v4651 = vadd.f32 %v4582, %v4650
    %4652 = vmatmul.bf16.gmra.mxu0 %v797
    %v4653 = vpop.f32.mrf.mxu0
    %v4654 = vadd.f32 %v4585, %v4653
    %v4655 = vpop.f32.mrf.mxu0
    %v4656 = vadd.f32 %v4587, %v4655
    %4657 = vdwg.mxu0
    %4658 = vmatpush.bf16.msra.mxu0 %v1975
    %4659 = vmatpush.bf16.msra.mxu0 %v1969
    %4660 = vmatpush.bf16.msra.mxu0 %v1963
    %4661 = vmatpush.bf16.msra.mxu0 %v1957
    %4662 = vmatpush.bf16.msra.mxu0 %v1951
    %4663 = vmatpush.bf16.msra.mxu0 %v1945
    %4664 = vmatpush.bf16.msra.mxu0 %v1939
    %4665 = vmatpush.bf16.msra.mxu0 %v1933
    %4666 = vmatmul.bf16.gmra.mxu0 %v732
    %v4667 = vpop.f32.mrf.mxu0
    %v4668 = vadd.f32 %v4599, %v4667
    %v4669 = vpop.f32.mrf.mxu0
    %v4670 = vadd.f32 %v4601, %v4669
    %4671 = vmatmul.bf16.gmra.mxu0 %v738
    %v4672 = vpop.f32.mrf.mxu0
    %v4673 = vadd.f32 %v4604, %v4672
    %v4674 = vpop.f32.mrf.mxu0
    %v4675 = vadd.f32 %v4606, %v4674
    %4676 = vmatmul.bf16.gmra.mxu0 %v744
    %v4677 = vpop.f32.mrf.mxu0
    %v4678 = vadd.f32 %v4609, %v4677
    %v4679 = vpop.f32.mrf.mxu0
    %v4680 = vadd.f32 %v4611, %v4679
    %4681 = vmatmul.bf16.gmra.mxu0 %v750
    %v4682 = vpop.f32.mrf.mxu0
    %v4683 = vadd.f32 %v4614, %v4682
    %v4684 = vpop.f32.mrf.mxu0
    %v4685 = vadd.f32 %v4616, %v4684
    %4686 = vmatmul.bf16.gmra.mxu0 %v756
    %v4687 = vpop.f32.mrf.mxu0
    %v4688 = vadd.f32 %v4619, %v4687
    %v4689 = vpop.f32.mrf.mxu0
    %v4690 = vadd.f32 %v4621, %v4689
    %4691 = vmatmul.bf16.gmra.mxu0 %v762
    %v4692 = vpop.f32.mrf.mxu0
    %v4693 = vadd.f32 %v4624, %v4692
    %v4694 = vpop.f32.mrf.mxu0
    %v4695 = vadd.f32 %v4626, %v4694
    %4696 = vmatmul.bf16.gmra.mxu0 %v768
    %v4697 = vpop.f32.mrf.mxu0
    %v4698 = vadd.f32 %v4629, %v4697
    %v4699 = vpop.f32.mrf.mxu0
    %v4700 = vadd.f32 %v4631, %v4699
    %4701 = vmatmul.bf16.gmra.mxu0 %v774
    %v4702 = vpop.f32.mrf.mxu0
    %v4703 = vadd.f32 %v4634, %v4702
    %v4704 = vpop.f32.mrf.mxu0
    %v4705 = vadd.f32 %v4636, %v4704
    %4706 = vmatmul.bf16.gmra.mxu0 %v780
    %v4707 = vpop.f32.mrf.mxu0
    %v4708 = vadd.f32 %v4639, %v4707
    %v4709 = vpop.f32.mrf.mxu0
    %v4710 = vadd.f32 %v4641, %v4709
    %4711 = vmatmul.bf16.gmra.mxu0 %v786
    %v4712 = vpop.f32.mrf.mxu0
    %v4713 = vadd.f32 %v4644, %v4712
    %v4714 = vpop.f32.mrf.mxu0
    %v4715 = vadd.f32 %v4646, %v4714
    %4716 = vmatmul.bf16.gmra.mxu0 %v792
    %v4717 = vpop.f32.mrf.mxu0
    %v4718 = vadd.f32 %v4649, %v4717
    %v4719 = vpop.f32.mrf.mxu0
    %v4720 = vadd.f32 %v4651, %v4719
    %4721 = vmatmul.bf16.gmra.mxu0 %v798
    %v4722 = vpop.f32.mrf.mxu0
    %v4723 = vadd.f32 %v4654, %v4722
    %v4724 = vpop.f32.mrf.mxu0
    %v4725 = vadd.f32 %v4656, %v4724
    %4726 = vdwg.mxu0
    %4727 = vmatpush.bf16.msra.mxu0 %v2023
    %4728 = vmatpush.bf16.msra.mxu0 %v2017
    %4729 = vmatpush.bf16.msra.mxu0 %v2011
    %4730 = vmatpush.bf16.msra.mxu0 %v2005
    %4731 = vmatpush.bf16.msra.mxu0 %v1999
    %4732 = vmatpush.bf16.msra.mxu0 %v1993
    %4733 = vmatpush.bf16.msra.mxu0 %v1987
    %4734 = vmatpush.bf16.msra.mxu0 %v1981
    %4735 = vmatmul.bf16.gmra.mxu0 %v733
    %v4736 = vpop.f32.mrf.mxu0
    %v4737 = vadd.f32 %v4668, %v4736
    %v4738 = vpop.f32.mrf.mxu0
    %v4739 = vadd.f32 %v4670, %v4738
    %4740 = vmatmul.bf16.gmra.mxu0 %v739
    %v4741 = vpop.f32.mrf.mxu0
    %v4742 = vadd.f32 %v4673, %v4741
    %v4743 = vpop.f32.mrf.mxu0
    %v4744 = vadd.f32 %v4675, %v4743
    %4745 = vmatmul.bf16.gmra.mxu0 %v745
    %v4746 = vpop.f32.mrf.mxu0
    %v4747 = vadd.f32 %v4678, %v4746
    %v4748 = vpop.f32.mrf.mxu0
    %v4749 = vadd.f32 %v4680, %v4748
    %4750 = vmatmul.bf16.gmra.mxu0 %v751
    %v4751 = vpop.f32.mrf.mxu0
    %v4752 = vadd.f32 %v4683, %v4751
    %v4753 = vpop.f32.mrf.mxu0
    %v4754 = vadd.f32 %v4685, %v4753
    %4755 = vmatmul.bf16.gmra.mxu0 %v757
    %v4756 = vpop.f32.mrf.mxu0
    %v4757 = vadd.f32 %v4688, %v4756
    %v4758 = vpop.f32.mrf.mxu0
    %v4759 = vadd.f32 %v4690, %v4758
    %4760 = vmatmul.bf16.gmra.mxu0 %v763
    %v4761 = vpop.f32.mrf.mxu0
    %v4762 = vadd.f32 %v4693, %v4761
    %v4763 = vpop.f32.mrf.mxu0
    %v4764 = vadd.f32 %v4695, %v4763
    %4765 = vmatmul.bf16.gmra.mxu0 %v769
    %v4766 = vpop.f32.mrf.mxu0
    %v4767 = vadd.f32 %v4698, %v4766
    %v4768 = vpop.f32.mrf.mxu0
    %v4769 = vadd.f32 %v4700, %v4768
    %4770 = vmatmul.bf16.gmra.mxu0 %v775
    %v4771 = vpop.f32.mrf.mxu0
    %v4772 = vadd.f32 %v4703, %v4771
    %v4773 = vpop.f32.mrf.mxu0
    %v4774 = vadd.f32 %v4705, %v4773
    %4775 = vmatmul.bf16.gmra.mxu0 %v781
    %v4776 = vpop.f32.mrf.mxu0
    %v4777 = vadd.f32 %v4708, %v4776
    %v4778 = vpop.f32.mrf.mxu0
    %v4779 = vadd.f32 %v4710, %v4778
    %4780 = vmatmul.bf16.gmra.mxu0 %v787
    %v4781 = vpop.f32.mrf.mxu0
    %v4782 = vadd.f32 %v4713, %v4781
    %v4783 = vpop.f32.mrf.mxu0
    %v4784 = vadd.f32 %v4715, %v4783
    %4785 = vmatmul.bf16.gmra.mxu0 %v793
    %v4786 = vpop.f32.mrf.mxu0
    %v4787 = vadd.f32 %v4718, %v4786
    %v4788 = vpop.f32.mrf.mxu0
    %v4789 = vadd.f32 %v4720, %v4788
    %4790 = vmatmul.bf16.gmra.mxu0 %v799
    %v4791 = vpop.f32.mrf.mxu0
    %v4792 = vadd.f32 %v4723, %v4791
    %v4793 = vpop.f32.mrf.mxu0
    %v4794 = vadd.f32 %v4725, %v4793
    %4795 = vdwg.mxu0
    %v4796 = vmul.f32 %v2667, 0.5
    %v4797 = vmul.f32 %v3081, 0.5
    %v4798 = vmul.f32 %v3495, 0.5
    %v4799 = vmul.f32 %v3909, 0.5
    %v4800 = vmul.f32 %v4323, 0.5
    %v4801 = vmul.f32 %v4737, 0.5
    %v4802 = vmul.f32 %v2669, 0.5
    %v4803 = vmul.f32 %v3083, 0.5
    %v4804 = vmul.f32 %v3497, 0.5
    %v4805 = vmul.f32 %v3911, 0.5
    %v4806 = vmul.f32 %v4325, 0.5
    %v4807 = vmul.f32 %v4739, 0.5
    %v4808 = vmul.f32 %v2672, 0.5
    %v4809 = vmul.f32 %v3086, 0.5
    %v4810 = vmul.f32 %v3500, 0.5
    %v4811 = vmul.f32 %v3914, 0.5
    %v4812 = vmul.f32 %v4328, 0.5
    %v4813 = vmul.f32 %v4742, 0.5
    %v4814 = vmul.f32 %v2674, 0.5
    %v4815 = vmul.f32 %v3088, 0.5
    %v4816 = vmul.f32 %v3502, 0.5
    %v4817 = vmul.f32 %v3916, 0.5
    %v4818 = vmul.f32 %v4330, 0.5
    %v4819 = vmul.f32 %v4744, 0.5
    %v4820 = vmul.f32 %v2677, 0.5
    %v4821 = vmul.f32 %v3091, 0.5
    %v4822 = vmul.f32 %v3505, 0.5
    %v4823 = vmul.f32 %v3919, 0.5
    %v4824 = vmul.f32 %v4333, 0.5
    %v4825 = vmul.f32 %v4747, 0.5
    %v4826 = vmul.f32 %v2679, 0.5
    %v4827 = vmul.f32 %v3093, 0.5
    %v4828 = vmul.f32 %v3507, 0.5
    %v4829 = vmul.f32 %v3921, 0.5
    %v4830 = vmul.f32 %v4335, 0.5
    %v4831 = vmul.f32 %v4749, 0.5
    %v4832 = vmul.f32 %v2682, 0.5
    %v4833 = vmul.f32 %v3096, 0.5
    %v4834 = vmul.f32 %v3510, 0.5
    %v4835 = vmul.f32 %v3924, 0.5
    %v4836 = vmul.f32 %v4338, 0.5
    %v4837 = vmul.f32 %v4752, 0.5
    %v4838 = vmul.f32 %v2684, 0.5
    %v4839 = vmul.f32 %v3098, 0.5
    %v4840 = vmul.f32 %v3512, 0.5
    %v4841 = vmul.f32 %v3926, 0.5
    %v4842 = vmul.f32 %v4340, 0.5
    %v4843 = vmul.f32 %v4754, 0.5
    %v4844 = vmul.f32 %v2687, 0.5
    %v4845 = vmul.f32 %v3101, 0.5
    %v4846 = vmul.f32 %v3515, 0.5
    %v4847 = vmul.f32 %v3929, 0.5
    %v4848 = vmul.f32 %v4343, 0.5
    %v4849 = vmul.f32 %v4757, 0.5
    %v4850 = vmul.f32 %v2689, 0.5
    %v4851 = vmul.f32 %v3103, 0.5
    %v4852 = vmul.f32 %v3517, 0.5
    %v4853 = vmul.f32 %v3931, 0.5
    %v4854 = vmul.f32 %v4345, 0.5
    %v4855 = vmul.f32 %v4759, 0.5
    %v4856 = vmul.f32 %v2692, 0.5
    %v4857 = vmul.f32 %v3106, 0.5
    %v4858 = vmul.f32 %v3520, 0.5
    %v4859 = vmul.f32 %v3934, 0.5
    %v4860 = vmul.f32 %v4348, 0.5
    %v4861 = vmul.f32 %v4762, 0.5
    %v4862 = vmul.f32 %v2694, 0.5
    %v4863 = vmul.f32 %v3108, 0.5
    %v4864 = vmul.f32 %v3522, 0.5
    %v4865 = vmul.f32 %v3936, 0.5
    %v4866 = vmul.f32 %v4350, 0.5
    %v4867 = vmul.f32 %v4764, 0.5
    %v4868 = vmul.f32 %v2697, 0.5
    %v4869 = vmul.f32 %v3111, 0.5
    %v4870 = vmul.f32 %v3525, 0.5
    %v4871 = vmul.f32 %v3939, 0.5
    %v4872 = vmul.f32 %v4353, 0.5
    %v4873 = vmul.f32 %v4767, 0.5
    %v4874 = vmul.f32 %v2699, 0.5
    %v4875 = vmul.f32 %v3113, 0.5
    %v4876 = vmul.f32 %v3527, 0.5
    %v4877 = vmul.f32 %v3941, 0.5
    %v4878 = vmul.f32 %v4355, 0.5
    %v4879 = vmul.f32 %v4769, 0.5
    %v4880 = vmul.f32 %v2702, 0.5
    %v4881 = vmul.f32 %v3116, 0.5
    %v4882 = vmul.f32 %v3530, 0.5
    %v4883 = vmul.f32 %v3944, 0.5
    %v4884 = vmul.f32 %v4358, 0.5
    %v4885 = vmul.f32 %v4772, 0.5
    %v4886 = vmul.f32 %v2704, 0.5
    %v4887 = vmul.f32 %v3118, 0.5
    %v4888 = vmul.f32 %v3532, 0.5
    %v4889 = vmul.f32 %v3946, 0.5
    %v4890 = vmul.f32 %v4360, 0.5
    %v4891 = vmul.f32 %v4774, 0.5
    %v4892 = vmul.f32 %v2707, 0.5
    %v4893 = vmul.f32 %v3121, 0.5
    %v4894 = vmul.f32 %v3535, 0.5
    %v4895 = vmul.f32 %v3949, 0.5
    %v4896 = vmul.f32 %v4363, 0.5
    %v4897 = vmul.f32 %v4777, 0.5
    %v4898 = vmul.f32 %v2709, 0.5
    %v4899 = vmul.f32 %v3123, 0.5
    %v4900 = vmul.f32 %v3537, 0.5
    %v4901 = vmul.f32 %v3951, 0.5
    %v4902 = vmul.f32 %v4365, 0.5
    %v4903 = vmul.f32 %v4779, 0.5
    %v4904 = vmul.f32 %v2712, 0.5
    %v4905 = vmul.f32 %v3126, 0.5
    %v4906 = vmul.f32 %v3540, 0.5
    %v4907 = vmul.f32 %v3954, 0.5
    %v4908 = vmul.f32 %v4368, 0.5
    %v4909 = vmul.f32 %v4782, 0.5
    %v4910 = vmul.f32 %v2714, 0.5
    %v4911 = vmul.f32 %v3128, 0.5
    %v4912 = vmul.f32 %v3542, 0.5
    %v4913 = vmul.f32 %v3956, 0.5
    %v4914 = vmul.f32 %v4370, 0.5
    %v4915 = vmul.f32 %v4784, 0.5
    %v4916 = vmul.f32 %v2717, 0.5
    %v4917 = vmul.f32 %v3131, 0.5
    %v4918 = vmul.f32 %v3545, 0.5
    %v4919 = vmul.f32 %v3959, 0.5
    %v4920 = vmul.f32 %v4373, 0.5
    %v4921 = vmul.f32 %v4787, 0.5
    %v4922 = vmul.f32 %v2719, 0.5
    %v4923 = vmul.f32 %v3133, 0.5
    %v4924 = vmul.f32 %v3547, 0.5
    %v4925 = vmul.f32 %v3961, 0.5
    %v4926 = vmul.f32 %v4375, 0.5
    %v4927 = vmul.f32 %v4789, 0.5
    %v4928 = vmul.f32 %v2722, 0.5
    %v4929 = vmul.f32 %v3136, 0.5
    %v4930 = vmul.f32 %v3550, 0.5
    %v4931 = vmul.f32 %v3964, 0.5
    %v4932 = vmul.f32 %v4378, 0.5
    %v4933 = vmul.f32 %v4792, 0.5
    %v4934 = vmul.f32 %v2724, 0.5
    %v4935 = vmul.f32 %v3138, 0.5
    %v4936 = vmul.f32 %v3552, 0.5
    %v4937 = vmul.f32 %v3966, 0.5
    %v4938 = vmul.f32 %v4380, 0.5
    %v4939 = vmul.f32 %v4794, 0.5
    %v4940 = vmul.f32 %v2667, 0.044715
    %v4941 = vmul.f32 %v3081, 0.044715
    %v4942 = vmul.f32 %v3495, 0.044715
    %v4943 = vmul.f32 %v3909, 0.044715
    %v4944 = vmul.f32 %v4323, 0.044715
    %v4945 = vmul.f32 %v4737, 0.044715
    %v4946 = vmul.f32 %v2669, 0.044715
    %v4947 = vmul.f32 %v3083, 0.044715
    %v4948 = vmul.f32 %v3497, 0.044715
    %v4949 = vmul.f32 %v3911, 0.044715
    %v4950 = vmul.f32 %v4325, 0.044715
    %v4951 = vmul.f32 %v4739, 0.044715
    %v4952 = vmul.f32 %v2672, 0.044715
    %v4953 = vmul.f32 %v3086, 0.044715
    %v4954 = vmul.f32 %v3500, 0.044715
    %v4955 = vmul.f32 %v3914, 0.044715
    %v4956 = vmul.f32 %v4328, 0.044715
    %v4957 = vmul.f32 %v4742, 0.044715
    %v4958 = vmul.f32 %v2674, 0.044715
    %v4959 = vmul.f32 %v3088, 0.044715
    %v4960 = vmul.f32 %v3502, 0.044715
    %v4961 = vmul.f32 %v3916, 0.044715
    %v4962 = vmul.f32 %v4330, 0.044715
    %v4963 = vmul.f32 %v4744, 0.044715
    %v4964 = vmul.f32 %v2677, 0.044715
    %v4965 = vmul.f32 %v3091, 0.044715
    %v4966 = vmul.f32 %v3505, 0.044715
    %v4967 = vmul.f32 %v3919, 0.044715
    %v4968 = vmul.f32 %v4333, 0.044715
    %v4969 = vmul.f32 %v4747, 0.044715
    %v4970 = vmul.f32 %v2679, 0.044715
    %v4971 = vmul.f32 %v3093, 0.044715
    %v4972 = vmul.f32 %v3507, 0.044715
    %v4973 = vmul.f32 %v3921, 0.044715
    %v4974 = vmul.f32 %v4335, 0.044715
    %v4975 = vmul.f32 %v4749, 0.044715
    %v4976 = vmul.f32 %v2682, 0.044715
    %v4977 = vmul.f32 %v3096, 0.044715
    %v4978 = vmul.f32 %v3510, 0.044715
    %v4979 = vmul.f32 %v3924, 0.044715
    %v4980 = vmul.f32 %v4338, 0.044715
    %v4981 = vmul.f32 %v4752, 0.044715
    %v4982 = vmul.f32 %v2684, 0.044715
    %v4983 = vmul.f32 %v3098, 0.044715
    %v4984 = vmul.f32 %v3512, 0.044715
    %v4985 = vmul.f32 %v3926, 0.044715
    %v4986 = vmul.f32 %v4340, 0.044715
    %v4987 = vmul.f32 %v4754, 0.044715
    %v4988 = vmul.f32 %v2687, 0.044715
    %v4989 = vmul.f32 %v3101, 0.044715
    %v4990 = vmul.f32 %v3515, 0.044715
    %v4991 = vmul.f32 %v3929, 0.044715
    %v4992 = vmul.f32 %v4343, 0.044715
    %v4993 = vmul.f32 %v4757, 0.044715
    %v4994 = vmul.f32 %v2689, 0.044715
    %v4995 = vmul.f32 %v3103, 0.044715
    %v4996 = vmul.f32 %v3517, 0.044715
    %v4997 = vmul.f32 %v3931, 0.044715
    %v4998 = vmul.f32 %v4345, 0.044715
    %v4999 = vmul.f32 %v4759, 0.044715
    %v5000 = vmul.f32 %v2692, 0.044715
    %v5001 = vmul.f32 %v3106, 0.044715
    %v5002 = vmul.f32 %v3520, 0.044715
    %v5003 = vmul.f32 %v3934, 0.044715
    %v5004 = vmul.f32 %v4348, 0.044715
    %v5005 = vmul.f32 %v4762, 0.044715
    %v5006 = vmul.f32 %v2694, 0.044715
    %v5007 = vmul.f32 %v3108, 0.044715
    %v5008 = vmul.f32 %v3522, 0.044715
    %v5009 = vmul.f32 %v3936, 0.044715
    %v5010 = vmul.f32 %v4350, 0.044715
    %v5011 = vmul.f32 %v4764, 0.044715
    %v5012 = vmul.f32 %v2697, 0.044715
    %v5013 = vmul.f32 %v3111, 0.044715
    %v5014 = vmul.f32 %v3525, 0.044715
    %v5015 = vmul.f32 %v3939, 0.044715
    %v5016 = vmul.f32 %v4353, 0.044715
    %v5017 = vmul.f32 %v4767, 0.044715
    %v5018 = vmul.f32 %v2699, 0.044715
    %v5019 = vmul.f32 %v3113, 0.044715
    %v5020 = vmul.f32 %v3527, 0.044715
    %v5021 = vmul.f32 %v3941, 0.044715
    %v5022 = vmul.f32 %v4355, 0.044715
    %v5023 = vmul.f32 %v4769, 0.044715
    %v5024 = vmul.f32 %v2702, 0.044715
    %v5025 = vmul.f32 %v3116, 0.044715
    %v5026 = vmul.f32 %v3530, 0.044715
    %v5027 = vmul.f32 %v3944, 0.044715
    %v5028 = vmul.f32 %v4358, 0.044715
    %v5029 = vmul.f32 %v4772, 0.044715
    %v5030 = vmul.f32 %v2704, 0.044715
    %v5031 = vmul.f32 %v3118, 0.044715
    %v5032 = vmul.f32 %v3532, 0.044715
    %v5033 = vmul.f32 %v3946, 0.044715
    %v5034 = vmul.f32 %v4360, 0.044715
    %v5035 = vmul.f32 %v4774, 0.044715
    %v5036 = vmul.f32 %v2707, 0.044715
    %v5037 = vmul.f32 %v3121, 0.044715
    %v5038 = vmul.f32 %v3535, 0.044715
    %v5039 = vmul.f32 %v3949, 0.044715
    %v5040 = vmul.f32 %v4363, 0.044715
    %v5041 = vmul.f32 %v4777, 0.044715
    %v5042 = vmul.f32 %v2709, 0.044715
    %v5043 = vmul.f32 %v3123, 0.044715
    %v5044 = vmul.f32 %v3537, 0.044715
    %v5045 = vmul.f32 %v3951, 0.044715
    %v5046 = vmul.f32 %v4365, 0.044715
    %v5047 = vmul.f32 %v4779, 0.044715
    %v5048 = vmul.f32 %v2712, 0.044715
    %v5049 = vmul.f32 %v3126, 0.044715
    %v5050 = vmul.f32 %v3540, 0.044715
    %v5051 = vmul.f32 %v3954, 0.044715
    %v5052 = vmul.f32 %v4368, 0.044715
    %v5053 = vmul.f32 %v4782, 0.044715
    %v5054 = vmul.f32 %v2714, 0.044715
    %v5055 = vmul.f32 %v3128, 0.044715
    %v5056 = vmul.f32 %v3542, 0.044715
    %v5057 = vmul.f32 %v3956, 0.044715
    %v5058 = vmul.f32 %v4370, 0.044715
    %v5059 = vmul.f32 %v4784, 0.044715
    %v5060 = vmul.f32 %v2717, 0.044715
    %v5061 = vmul.f32 %v3131, 0.044715
    %v5062 = vmul.f32 %v3545, 0.044715
    %v5063 = vmul.f32 %v3959, 0.044715
    %v5064 = vmul.f32 %v4373, 0.044715
    %v5065 = vmul.f32 %v4787, 0.044715
    %v5066 = vmul.f32 %v2719, 0.044715
    %v5067 = vmul.f32 %v3133, 0.044715
    %v5068 = vmul.f32 %v3547, 0.044715
    %v5069 = vmul.f32 %v3961, 0.044715
    %v5070 = vmul.f32 %v4375, 0.044715
    %v5071 = vmul.f32 %v4789, 0.044715
    %v5072 = vmul.f32 %v2722, 0.044715
    %v5073 = vmul.f32 %v3136, 0.044715
    %v5074 = vmul.f32 %v3550, 0.044715
    %v5075 = vmul.f32 %v3964, 0.044715
    %v5076 = vmul.f32 %v4378, 0.044715
    %v5077 = vmul.f32 %v4792, 0.044715
    %v5078 = vmul.f32 %v2724, 0.044715
    %v5079 = vmul.f32 %v3138, 0.044715
    %v5080 = vmul.f32 %v3552, 0.044715
    %v5081 = vmul.f32 %v3966, 0.044715
    %v5082 = vmul.f32 %v4380, 0.044715
    %v5083 = vmul.f32 %v4794, 0.044715
    %v5084 = vmul.f32 %v4940, %v2667
    %v5085 = vmul.f32 %v4941, %v3081
    %v5086 = vmul.f32 %v4942, %v3495
    %v5087 = vmul.f32 %v4943, %v3909
    %v5088 = vmul.f32 %v4944, %v4323
    %v5089 = vmul.f32 %v4945, %v4737
    %v5090 = vmul.f32 %v4946, %v2669
    %v5091 = vmul.f32 %v4947, %v3083
    %v5092 = vmul.f32 %v4948, %v3497
    %v5093 = vmul.f32 %v4949, %v3911
    %v5094 = vmul.f32 %v4950, %v4325
    %v5095 = vmul.f32 %v4951, %v4739
    %v5096 = vmul.f32 %v4952, %v2672
    %v5097 = vmul.f32 %v4953, %v3086
    %v5098 = vmul.f32 %v4954, %v3500
    %v5099 = vmul.f32 %v4955, %v3914
    %v5100 = vmul.f32 %v4956, %v4328
    %v5101 = vmul.f32 %v4957, %v4742
    %v5102 = vmul.f32 %v4958, %v2674
    %v5103 = vmul.f32 %v4959, %v3088
    %v5104 = vmul.f32 %v4960, %v3502
    %v5105 = vmul.f32 %v4961, %v3916
    %v5106 = vmul.f32 %v4962, %v4330
    %v5107 = vmul.f32 %v4963, %v4744
    %v5108 = vmul.f32 %v4964, %v2677
    %v5109 = vmul.f32 %v4965, %v3091
    %v5110 = vmul.f32 %v4966, %v3505
    %v5111 = vmul.f32 %v4967, %v3919
    %v5112 = vmul.f32 %v4968, %v4333
    %v5113 = vmul.f32 %v4969, %v4747
    %v5114 = vmul.f32 %v4970, %v2679
    %v5115 = vmul.f32 %v4971, %v3093
    %v5116 = vmul.f32 %v4972, %v3507
    %v5117 = vmul.f32 %v4973, %v3921
    %v5118 = vmul.f32 %v4974, %v4335
    %v5119 = vmul.f32 %v4975, %v4749
    %v5120 = vmul.f32 %v4976, %v2682
    %v5121 = vmul.f32 %v4977, %v3096
    %v5122 = vmul.f32 %v4978, %v3510
    %v5123 = vmul.f32 %v4979, %v3924
    %v5124 = vmul.f32 %v4980, %v4338
    %v5125 = vmul.f32 %v4981, %v4752
    %v5126 = vmul.f32 %v4982, %v2684
    %v5127 = vmul.f32 %v4983, %v3098
    %v5128 = vmul.f32 %v4984, %v3512
    %v5129 = vmul.f32 %v4985, %v3926
    %v5130 = vmul.f32 %v4986, %v4340
    %v5131 = vmul.f32 %v4987, %v4754
    %v5132 = vmul.f32 %v4988, %v2687
    %v5133 = vmul.f32 %v4989, %v3101
    %v5134 = vmul.f32 %v4990, %v3515
    %v5135 = vmul.f32 %v4991, %v3929
    %v5136 = vmul.f32 %v4992, %v4343
    %v5137 = vmul.f32 %v4993, %v4757
    %v5138 = vmul.f32 %v4994, %v2689
    %v5139 = vmul.f32 %v4995, %v3103
    %v5140 = vmul.f32 %v4996, %v3517
    %v5141 = vmul.f32 %v4997, %v3931
    %v5142 = vmul.f32 %v4998, %v4345
    %v5143 = vmul.f32 %v4999, %v4759
    %v5144 = vmul.f32 %v5000, %v2692
    %v5145 = vmul.f32 %v5001, %v3106
    %v5146 = vmul.f32 %v5002, %v3520
    %v5147 = vmul.f32 %v5003, %v3934
    %v5148 = vmul.f32 %v5004, %v4348
    %v5149 = vmul.f32 %v5005, %v4762
    %v5150 = vmul.f32 %v5006, %v2694
    %v5151 = vmul.f32 %v5007, %v3108
    %v5152 = vmul.f32 %v5008, %v3522
    %v5153 = vmul.f32 %v5009, %v3936
    %v5154 = vmul.f32 %v5010, %v4350
    %v5155 = vmul.f32 %v5011, %v4764
    %v5156 = vmul.f32 %v5012, %v2697
    %v5157 = vmul.f32 %v5013, %v3111
    %v5158 = vmul.f32 %v5014, %v3525
    %v5159 = vmul.f32 %v5015, %v3939
    %v5160 = vmul.f32 %v5016, %v4353
    %v5161 = vmul.f32 %v5017, %v4767
    %v5162 = vmul.f32 %v5018, %v2699
    %v5163 = vmul.f32 %v5019, %v3113
    %v5164 = vmul.f32 %v5020, %v3527
    %v5165 = vmul.f32 %v5021, %v3941
    %v5166 = vmul.f32 %v5022, %v4355
    %v5167 = vmul.f32 %v5023, %v4769
    %v5168 = vmul.f32 %v5024, %v2702
    %v5169 = vmul.f32 %v5025, %v3116
    %v5170 = vmul.f32 %v5026, %v3530
    %v5171 = vmul.f32 %v5027, %v3944
    %v5172 = vmul.f32 %v5028, %v4358
    %v5173 = vmul.f32 %v5029, %v4772
    %v5174 = vmul.f32 %v5030, %v2704
    %v5175 = vmul.f32 %v5031, %v3118
    %v5176 = vmul.f32 %v5032, %v3532
    %v5177 = vmul.f32 %v5033, %v3946
    %v5178 = vmul.f32 %v5034, %v4360
    %v5179 = vmul.f32 %v5035, %v4774
    %v5180 = vmul.f32 %v5036, %v2707
    %v5181 = vmul.f32 %v5037, %v3121
    %v5182 = vmul.f32 %v5038, %v3535
    %v5183 = vmul.f32 %v5039, %v3949
    %v5184 = vmul.f32 %v5040, %v4363
    %v5185 = vmul.f32 %v5041, %v4777
    %v5186 = vmul.f32 %v5042, %v2709
    %v5187 = vmul.f32 %v5043, %v3123
    %v5188 = vmul.f32 %v5044, %v3537
    %v5189 = vmul.f32 %v5045, %v3951
    %v5190 = vmul.f32 %v5046, %v4365
    %v5191 = vmul.f32 %v5047, %v4779
    %v5192 = vmul.f32 %v5048, %v2712
    %v5193 = vmul.f32 %v5049, %v3126
    %v5194 = vmul.f32 %v5050, %v3540
    %v5195 = vmul.f32 %v5051, %v3954
    %v5196 = vmul.f32 %v5052, %v4368
    %v5197 = vmul.f32 %v5053, %v4782
    %v5198 = vmul.f32 %v5054, %v2714
    %v5199 = vmul.f32 %v5055, %v3128
    %v5200 = vmul.f32 %v5056, %v3542
    %v5201 = vmul.f32 %v5057, %v3956
    %v5202 = vmul.f32 %v5058, %v4370
    %v5203 = vmul.f32 %v5059, %v4784
    %v5204 = vmul.f32 %v5060, %v2717
    %v5205 = vmul.f32 %v5061, %v3131
    %v5206 = vmul.f32 %v5062, %v3545
    %v5207 = vmul.f32 %v5063, %v3959
    %v5208 = vmul.f32 %v5064, %v4373
    %v5209 = vmul.f32 %v5065, %v4787
    %v5210 = vmul.f32 %v5066, %v2719
    %v5211 = vmul.f32 %v5067, %v3133
    %v5212 = vmul.f32 %v5068, %v3547
    %v5213 = vmul.f32 %v5069, %v3961
    %v5214 = vmul.f32 %v5070, %v4375
    %v5215 = vmul.f32 %v5071, %v4789
    %v5216 = vmul.f32 %v5072, %v2722
    %v5217 = vmul.f32 %v5073, %v3136
    %v5218 = vmul.f32 %v5074, %v3550
    %v5219 = vmul.f32 %v5075, %v3964
    %v5220 = vmul.f32 %v5076, %v4378
    %v5221 = vmul.f32 %v5077, %v4792
    %v5222 = vmul.f32 %v5078, %v2724
    %v5223 = vmul.f32 %v5079, %v3138
    %v5224 = vmul.f32 %v5080, %v3552
    %v5225 = vmul.f32 %v5081, %v3966
    %v5226 = vmul.f32 %v5082, %v4380
    %v5227 = vmul.f32 %v5083, %v4794
    %v5228 = vmul.f32 %v5084, %v2667
    %v5229 = vmul.f32 %v5085, %v3081
    %v5230 = vmul.f32 %v5086, %v3495
    %v5231 = vmul.f32 %v5087, %v3909
    %v5232 = vmul.f32 %v5088, %v4323
    %v5233 = vmul.f32 %v5089, %v4737
    %v5234 = vmul.f32 %v5090, %v2669
    %v5235 = vmul.f32 %v5091, %v3083
    %v5236 = vmul.f32 %v5092, %v3497
    %v5237 = vmul.f32 %v5093, %v3911
    %v5238 = vmul.f32 %v5094, %v4325
    %v5239 = vmul.f32 %v5095, %v4739
    %v5240 = vmul.f32 %v5096, %v2672
    %v5241 = vmul.f32 %v5097, %v3086
    %v5242 = vmul.f32 %v5098, %v3500
    %v5243 = vmul.f32 %v5099, %v3914
    %v5244 = vmul.f32 %v5100, %v4328
    %v5245 = vmul.f32 %v5101, %v4742
    %v5246 = vmul.f32 %v5102, %v2674
    %v5247 = vmul.f32 %v5103, %v3088
    %v5248 = vmul.f32 %v5104, %v3502
    %v5249 = vmul.f32 %v5105, %v3916
    %v5250 = vmul.f32 %v5106, %v4330
    %v5251 = vmul.f32 %v5107, %v4744
    %v5252 = vmul.f32 %v5108, %v2677
    %v5253 = vmul.f32 %v5109, %v3091
    %v5254 = vmul.f32 %v5110, %v3505
    %v5255 = vmul.f32 %v5111, %v3919
    %v5256 = vmul.f32 %v5112, %v4333
    %v5257 = vmul.f32 %v5113, %v4747
    %v5258 = vmul.f32 %v5114, %v2679
    %v5259 = vmul.f32 %v5115, %v3093
    %v5260 = vmul.f32 %v5116, %v3507
    %v5261 = vmul.f32 %v5117, %v3921
    %v5262 = vmul.f32 %v5118, %v4335
    %v5263 = vmul.f32 %v5119, %v4749
    %v5264 = vmul.f32 %v5120, %v2682
    %v5265 = vmul.f32 %v5121, %v3096
    %v5266 = vmul.f32 %v5122, %v3510
    %v5267 = vmul.f32 %v5123, %v3924
    %v5268 = vmul.f32 %v5124, %v4338
    %v5269 = vmul.f32 %v5125, %v4752
    %v5270 = vmul.f32 %v5126, %v2684
    %v5271 = vmul.f32 %v5127, %v3098
    %v5272 = vmul.f32 %v5128, %v3512
    %v5273 = vmul.f32 %v5129, %v3926
    %v5274 = vmul.f32 %v5130, %v4340
    %v5275 = vmul.f32 %v5131, %v4754
    %v5276 = vmul.f32 %v5132, %v2687
    %v5277 = vmul.f32 %v5133, %v3101
    %v5278 = vmul.f32 %v5134, %v3515
    %v5279 = vmul.f32 %v5135, %v3929
    %v5280 = vmul.f32 %v5136, %v4343
    %v5281 = vmul.f32 %v5137, %v4757
    %v5282 = vmul.f32 %v5138, %v2689
    %v5283 = vmul.f32 %v5139, %v3103
    %v5284 = vmul.f32 %v5140, %v3517
    %v5285 = vmul.f32 %v5141, %v3931
    %v5286 = vmul.f32 %v5142, %v4345
    %v5287 = vmul.f32 %v5143, %v4759
    %v5288 = vmul.f32 %v5144, %v2692
    %v5289 = vmul.f32 %v5145, %v3106
    %v5290 = vmul.f32 %v5146, %v3520
    %v5291 = vmul.f32 %v5147, %v3934
    %v5292 = vmul.f32 %v5148, %v4348
    %v5293 = vmul.f32 %v5149, %v4762
    %v5294 = vmul.f32 %v5150, %v2694
    %v5295 = vmul.f32 %v5151, %v3108
    %v5296 = vmul.f32 %v5152, %v3522
    %v5297 = vmul.f32 %v5153, %v3936
    %v5298 = vmul.f32 %v5154, %v4350
    %v5299 = vmul.f32 %v5155, %v4764
    %v5300 = vmul.f32 %v5156, %v2697
    %v5301 = vmul.f32 %v5157, %v3111
    %v5302 = vmul.f32 %v5158, %v3525
    %v5303 = vmul.f32 %v5159, %v3939
    %v5304 = vmul.f32 %v5160, %v4353
    %v5305 = vmul.f32 %v5161, %v4767
    %v5306 = vmul.f32 %v5162, %v2699
    %v5307 = vmul.f32 %v5163, %v3113
    %v5308 = vmul.f32 %v5164, %v3527
    %v5309 = vmul.f32 %v5165, %v3941
    %v5310 = vmul.f32 %v5166, %v4355
    %v5311 = vmul.f32 %v5167, %v4769
    %v5312 = vmul.f32 %v5168, %v2702
    %v5313 = vmul.f32 %v5169, %v3116
    %v5314 = vmul.f32 %v5170, %v3530
    %v5315 = vmul.f32 %v5171, %v3944
    %v5316 = vmul.f32 %v5172, %v4358
    %v5317 = vmul.f32 %v5173, %v4772
    %v5318 = vmul.f32 %v5174, %v2704
    %v5319 = vmul.f32 %v5175, %v3118
    %v5320 = vmul.f32 %v5176, %v3532
    %v5321 = vmul.f32 %v5177, %v3946
    %v5322 = vmul.f32 %v5178, %v4360
    %v5323 = vmul.f32 %v5179, %v4774
    %v5324 = vmul.f32 %v5180, %v2707
    %v5325 = vmul.f32 %v5181, %v3121
    %v5326 = vmul.f32 %v5182, %v3535
    %v5327 = vmul.f32 %v5183, %v3949
    %v5328 = vmul.f32 %v5184, %v4363
    %v5329 = vmul.f32 %v5185, %v4777
    %v5330 = vmul.f32 %v5186, %v2709
    %v5331 = vmul.f32 %v5187, %v3123
    %v5332 = vmul.f32 %v5188, %v3537
    %v5333 = vmul.f32 %v5189, %v3951
    %v5334 = vmul.f32 %v5190, %v4365
    %v5335 = vmul.f32 %v5191, %v4779
    %v5336 = vmul.f32 %v5192, %v2712
    %v5337 = vmul.f32 %v5193, %v3126
    %v5338 = vmul.f32 %v5194, %v3540
    %v5339 = vmul.f32 %v5195, %v3954
    %v5340 = vmul.f32 %v5196, %v4368
    %v5341 = vmul.f32 %v5197, %v4782
    %v5342 = vmul.f32 %v5198, %v2714
    %v5343 = vmul.f32 %v5199, %v3128
    %v5344 = vmul.f32 %v5200, %v3542
    %v5345 = vmul.f32 %v5201, %v3956
    %v5346 = vmul.f32 %v5202, %v4370
    %v5347 = vmul.f32 %v5203, %v4784
    %v5348 = vmul.f32 %v5204, %v2717
    %v5349 = vmul.f32 %v5205, %v3131
    %v5350 = vmul.f32 %v5206, %v3545
    %v5351 = vmul.f32 %v5207, %v3959
    %v5352 = vmul.f32 %v5208, %v4373
    %v5353 = vmul.f32 %v5209, %v4787
    %v5354 = vmul.f32 %v5210, %v2719
    %v5355 = vmul.f32 %v5211, %v3133
    %v5356 = vmul.f32 %v5212, %v3547
    %v5357 = vmul.f32 %v5213, %v3961
    %v5358 = vmul.f32 %v5214, %v4375
    %v5359 = vmul.f32 %v5215, %v4789
    %v5360 = vmul.f32 %v5216, %v2722
    %v5361 = vmul.f32 %v5217, %v3136
    %v5362 = vmul.f32 %v5218, %v3550
    %v5363 = vmul.f32 %v5219, %v3964
    %v5364 = vmul.f32 %v5220, %v4378
    %v5365 = vmul.f32 %v5221, %v4792
    %v5366 = vmul.f32 %v5222, %v2724
    %v5367 = vmul.f32 %v5223, %v3138
    %v5368 = vmul.f32 %v5224, %v3552
    %v5369 = vmul.f32 %v5225, %v3966
    %v5370 = vmul.f32 %v5226, %v4380
    %v5371 = vmul.f32 %v5227, %v4794
    %v5372 = vadd.f32 %v2667, %v5228
    %v5373 = vadd.f32 %v3081, %v5229
    %v5374 = vadd.f32 %v3495, %v5230
    %v5375 = vadd.f32 %v3909, %v5231
    %v5376 = vadd.f32 %v4323, %v5232
    %v5377 = vadd.f32 %v4737, %v5233
    %v5378 = vadd.f32 %v2669, %v5234
    %v5379 = vadd.f32 %v3083, %v5235
    %v5380 = vadd.f32 %v3497, %v5236
    %v5381 = vadd.f32 %v3911, %v5237
    %v5382 = vadd.f32 %v4325, %v5238
    %v5383 = vadd.f32 %v4739, %v5239
    %v5384 = vadd.f32 %v2672, %v5240
    %v5385 = vadd.f32 %v3086, %v5241
    %v5386 = vadd.f32 %v3500, %v5242
    %v5387 = vadd.f32 %v3914, %v5243
    %v5388 = vadd.f32 %v4328, %v5244
    %v5389 = vadd.f32 %v4742, %v5245
    %v5390 = vadd.f32 %v2674, %v5246
    %v5391 = vadd.f32 %v3088, %v5247
    %v5392 = vadd.f32 %v3502, %v5248
    %v5393 = vadd.f32 %v3916, %v5249
    %v5394 = vadd.f32 %v4330, %v5250
    %v5395 = vadd.f32 %v4744, %v5251
    %v5396 = vadd.f32 %v2677, %v5252
    %v5397 = vadd.f32 %v3091, %v5253
    %v5398 = vadd.f32 %v3505, %v5254
    %v5399 = vadd.f32 %v3919, %v5255
    %v5400 = vadd.f32 %v4333, %v5256
    %v5401 = vadd.f32 %v4747, %v5257
    %v5402 = vadd.f32 %v2679, %v5258
    %v5403 = vadd.f32 %v3093, %v5259
    %v5404 = vadd.f32 %v3507, %v5260
    %v5405 = vadd.f32 %v3921, %v5261
    %v5406 = vadd.f32 %v4335, %v5262
    %v5407 = vadd.f32 %v4749, %v5263
    %v5408 = vadd.f32 %v2682, %v5264
    %v5409 = vadd.f32 %v3096, %v5265
    %v5410 = vadd.f32 %v3510, %v5266
    %v5411 = vadd.f32 %v3924, %v5267
    %v5412 = vadd.f32 %v4338, %v5268
    %v5413 = vadd.f32 %v4752, %v5269
    %v5414 = vadd.f32 %v2684, %v5270
    %v5415 = vadd.f32 %v3098, %v5271
    %v5416 = vadd.f32 %v3512, %v5272
    %v5417 = vadd.f32 %v3926, %v5273
    %v5418 = vadd.f32 %v4340, %v5274
    %v5419 = vadd.f32 %v4754, %v5275
    %v5420 = vadd.f32 %v2687, %v5276
    %v5421 = vadd.f32 %v3101, %v5277
    %v5422 = vadd.f32 %v3515, %v5278
    %v5423 = vadd.f32 %v3929, %v5279
    %v5424 = vadd.f32 %v4343, %v5280
    %v5425 = vadd.f32 %v4757, %v5281
    %v5426 = vadd.f32 %v2689, %v5282
    %v5427 = vadd.f32 %v3103, %v5283
    %v5428 = vadd.f32 %v3517, %v5284
    %v5429 = vadd.f32 %v3931, %v5285
    %v5430 = vadd.f32 %v4345, %v5286
    %v5431 = vadd.f32 %v4759, %v5287
    %v5432 = vadd.f32 %v2692, %v5288
    %v5433 = vadd.f32 %v3106, %v5289
    %v5434 = vadd.f32 %v3520, %v5290
    %v5435 = vadd.f32 %v3934, %v5291
    %v5436 = vadd.f32 %v4348, %v5292
    %v5437 = vadd.f32 %v4762, %v5293
    %v5438 = vadd.f32 %v2694, %v5294
    %v5439 = vadd.f32 %v3108, %v5295
    %v5440 = vadd.f32 %v3522, %v5296
    %v5441 = vadd.f32 %v3936, %v5297
    %v5442 = vadd.f32 %v4350, %v5298
    %v5443 = vadd.f32 %v4764, %v5299
    %v5444 = vadd.f32 %v2697, %v5300
    %v5445 = vadd.f32 %v3111, %v5301
    %v5446 = vadd.f32 %v3525, %v5302
    %v5447 = vadd.f32 %v3939, %v5303
    %v5448 = vadd.f32 %v4353, %v5304
    %v5449 = vadd.f32 %v4767, %v5305
    %v5450 = vadd.f32 %v2699, %v5306
    %v5451 = vadd.f32 %v3113, %v5307
    %v5452 = vadd.f32 %v3527, %v5308
    %v5453 = vadd.f32 %v3941, %v5309
    %v5454 = vadd.f32 %v4355, %v5310
    %v5455 = vadd.f32 %v4769, %v5311
    %v5456 = vadd.f32 %v2702, %v5312
    %v5457 = vadd.f32 %v3116, %v5313
    %v5458 = vadd.f32 %v3530, %v5314
    %v5459 = vadd.f32 %v3944, %v5315
    %v5460 = vadd.f32 %v4358, %v5316
    %v5461 = vadd.f32 %v4772, %v5317
    %v5462 = vadd.f32 %v2704, %v5318
    %v5463 = vadd.f32 %v3118, %v5319
    %v5464 = vadd.f32 %v3532, %v5320
    %v5465 = vadd.f32 %v3946, %v5321
    %v5466 = vadd.f32 %v4360, %v5322
    %v5467 = vadd.f32 %v4774, %v5323
    %v5468 = vadd.f32 %v2707, %v5324
    %v5469 = vadd.f32 %v3121, %v5325
    %v5470 = vadd.f32 %v3535, %v5326
    %v5471 = vadd.f32 %v3949, %v5327
    %v5472 = vadd.f32 %v4363, %v5328
    %v5473 = vadd.f32 %v4777, %v5329
    %v5474 = vadd.f32 %v2709, %v5330
    %v5475 = vadd.f32 %v3123, %v5331
    %v5476 = vadd.f32 %v3537, %v5332
    %v5477 = vadd.f32 %v3951, %v5333
    %v5478 = vadd.f32 %v4365, %v5334
    %v5479 = vadd.f32 %v4779, %v5335
    %v5480 = vadd.f32 %v2712, %v5336
    %v5481 = vadd.f32 %v3126, %v5337
    %v5482 = vadd.f32 %v3540, %v5338
    %v5483 = vadd.f32 %v3954, %v5339
    %v5484 = vadd.f32 %v4368, %v5340
    %v5485 = vadd.f32 %v4782, %v5341
    %v5486 = vadd.f32 %v2714, %v5342
    %v5487 = vadd.f32 %v3128, %v5343
    %v5488 = vadd.f32 %v3542, %v5344
    %v5489 = vadd.f32 %v3956, %v5345
    %v5490 = vadd.f32 %v4370, %v5346
    %v5491 = vadd.f32 %v4784, %v5347
    %v5492 = vadd.f32 %v2717, %v5348
    %v5493 = vadd.f32 %v3131, %v5349
    %v5494 = vadd.f32 %v3545, %v5350
    %v5495 = vadd.f32 %v3959, %v5351
    %v5496 = vadd.f32 %v4373, %v5352
    %v5497 = vadd.f32 %v4787, %v5353
    %v5498 = vadd.f32 %v2719, %v5354
    %v5499 = vadd.f32 %v3133, %v5355
    %v5500 = vadd.f32 %v3547, %v5356
    %v5501 = vadd.f32 %v3961, %v5357
    %v5502 = vadd.f32 %v4375, %v5358
    %v5503 = vadd.f32 %v4789, %v5359
    %v5504 = vadd.f32 %v2722, %v5360
    %v5505 = vadd.f32 %v3136, %v5361
    %v5506 = vadd.f32 %v3550, %v5362
    %v5507 = vadd.f32 %v3964, %v5363
    %v5508 = vadd.f32 %v4378, %v5364
    %v5509 = vadd.f32 %v4792, %v5365
    %v5510 = vadd.f32 %v2724, %v5366
    %v5511 = vadd.f32 %v3138, %v5367
    %v5512 = vadd.f32 %v3552, %v5368
    %v5513 = vadd.f32 %v3966, %v5369
    %v5514 = vadd.f32 %v4380, %v5370
    %v5515 = vadd.f32 %v4794, %v5371
    %v5516 = vmul.f32 %v5372, 0.7978846
    %v5517 = vmul.f32 %v5373, 0.7978846
    %v5518 = vmul.f32 %v5374, 0.7978846
    %v5519 = vmul.f32 %v5375, 0.7978846
    %v5520 = vmul.f32 %v5376, 0.7978846
    %v5521 = vmul.f32 %v5377, 0.7978846
    %v5522 = vmul.f32 %v5378, 0.7978846
    %v5523 = vmul.f32 %v5379, 0.7978846
    %v5524 = vmul.f32 %v5380, 0.7978846
    %v5525 = vmul.f32 %v5381, 0.7978846
    %v5526 = vmul.f32 %v5382, 0.7978846
    %v5527 = vmul.f32 %v5383, 0.7978846
    %v5528 = vmul.f32 %v5384, 0.7978846
    %v5529 = vmul.f32 %v5385, 0.7978846
    %v5530 = vmul.f32 %v5386, 0.7978846
    %v5531 = vmul.f32 %v5387, 0.7978846
    %v5532 = vmul.f32 %v5388, 0.7978846
    %v5533 = vmul.f32 %v5389, 0.7978846
    %v5534 = vmul.f32 %v5390, 0.7978846
    %v5535 = vmul.f32 %v5391, 0.7978846
    %v5536 = vmul.f32 %v5392, 0.7978846
    %v5537 = vmul.f32 %v5393, 0.7978846
    %v5538 = vmul.f32 %v5394, 0.7978846
    %v5539 = vmul.f32 %v5395, 0.7978846
    %v5540 = vmul.f32 %v5396, 0.7978846
    %v5541 = vmul.f32 %v5397, 0.7978846
    %v5542 = vmul.f32 %v5398, 0.7978846
    %v5543 = vmul.f32 %v5399, 0.7978846
    %v5544 = vmul.f32 %v5400, 0.7978846
    %v5545 = vmul.f32 %v5401, 0.7978846
    %v5546 = vmul.f32 %v5402, 0.7978846
    %v5547 = vmul.f32 %v5403, 0.7978846
    %v5548 = vmul.f32 %v5404, 0.7978846
    %v5549 = vmul.f32 %v5405, 0.7978846
    %v5550 = vmul.f32 %v5406, 0.7978846
    %v5551 = vmul.f32 %v5407, 0.7978846
    %v5552 = vmul.f32 %v5408, 0.7978846
    %v5553 = vmul.f32 %v5409, 0.7978846
    %v5554 = vmul.f32 %v5410, 0.7978846
    %v5555 = vmul.f32 %v5411, 0.7978846
    %v5556 = vmul.f32 %v5412, 0.7978846
    %v5557 = vmul.f32 %v5413, 0.7978846
    %v5558 = vmul.f32 %v5414, 0.7978846
    %v5559 = vmul.f32 %v5415, 0.7978846
    %v5560 = vmul.f32 %v5416, 0.7978846
    %v5561 = vmul.f32 %v5417, 0.7978846
    %v5562 = vmul.f32 %v5418, 0.7978846
    %v5563 = vmul.f32 %v5419, 0.7978846
    %v5564 = vmul.f32 %v5420, 0.7978846
    %v5565 = vmul.f32 %v5421, 0.7978846
    %v5566 = vmul.f32 %v5422, 0.7978846
    %v5567 = vmul.f32 %v5423, 0.7978846
    %v5568 = vmul.f32 %v5424, 0.7978846
    %v5569 = vmul.f32 %v5425, 0.7978846
    %v5570 = vmul.f32 %v5426, 0.7978846
    %v5571 = vmul.f32 %v5427, 0.7978846
    %v5572 = vmul.f32 %v5428, 0.7978846
    %v5573 = vmul.f32 %v5429, 0.7978846
    %v5574 = vmul.f32 %v5430, 0.7978846
    %v5575 = vmul.f32 %v5431, 0.7978846
    %v5576 = vmul.f32 %v5432, 0.7978846
    %v5577 = vmul.f32 %v5433, 0.7978846
    %v5578 = vmul.f32 %v5434, 0.7978846
    %v5579 = vmul.f32 %v5435, 0.7978846
    %v5580 = vmul.f32 %v5436, 0.7978846
    %v5581 = vmul.f32 %v5437, 0.7978846
    %v5582 = vmul.f32 %v5438, 0.7978846
    %v5583 = vmul.f32 %v5439, 0.7978846
    %v5584 = vmul.f32 %v5440, 0.7978846
    %v5585 = vmul.f32 %v5441, 0.7978846
    %v5586 = vmul.f32 %v5442, 0.7978846
    %v5587 = vmul.f32 %v5443, 0.7978846
    %v5588 = vmul.f32 %v5444, 0.7978846
    %v5589 = vmul.f32 %v5445, 0.7978846
    %v5590 = vmul.f32 %v5446, 0.7978846
    %v5591 = vmul.f32 %v5447, 0.7978846
    %v5592 = vmul.f32 %v5448, 0.7978846
    %v5593 = vmul.f32 %v5449, 0.7978846
    %v5594 = vmul.f32 %v5450, 0.7978846
    %v5595 = vmul.f32 %v5451, 0.7978846
    %v5596 = vmul.f32 %v5452, 0.7978846
    %v5597 = vmul.f32 %v5453, 0.7978846
    %v5598 = vmul.f32 %v5454, 0.7978846
    %v5599 = vmul.f32 %v5455, 0.7978846
    %v5600 = vmul.f32 %v5456, 0.7978846
    %v5601 = vmul.f32 %v5457, 0.7978846
    %v5602 = vmul.f32 %v5458, 0.7978846
    %v5603 = vmul.f32 %v5459, 0.7978846
    %v5604 = vmul.f32 %v5460, 0.7978846
    %v5605 = vmul.f32 %v5461, 0.7978846
    %v5606 = vmul.f32 %v5462, 0.7978846
    %v5607 = vmul.f32 %v5463, 0.7978846
    %v5608 = vmul.f32 %v5464, 0.7978846
    %v5609 = vmul.f32 %v5465, 0.7978846
    %v5610 = vmul.f32 %v5466, 0.7978846
    %v5611 = vmul.f32 %v5467, 0.7978846
    %v5612 = vmul.f32 %v5468, 0.7978846
    %v5613 = vmul.f32 %v5469, 0.7978846
    %v5614 = vmul.f32 %v5470, 0.7978846
    %v5615 = vmul.f32 %v5471, 0.7978846
    %v5616 = vmul.f32 %v5472, 0.7978846
    %v5617 = vmul.f32 %v5473, 0.7978846
    %v5618 = vmul.f32 %v5474, 0.7978846
    %v5619 = vmul.f32 %v5475, 0.7978846
    %v5620 = vmul.f32 %v5476, 0.7978846
    %v5621 = vmul.f32 %v5477, 0.7978846
    %v5622 = vmul.f32 %v5478, 0.7978846
    %v5623 = vmul.f32 %v5479, 0.7978846
    %v5624 = vmul.f32 %v5480, 0.7978846
    %v5625 = vmul.f32 %v5481, 0.7978846
    %v5626 = vmul.f32 %v5482, 0.7978846
    %v5627 = vmul.f32 %v5483, 0.7978846
    %v5628 = vmul.f32 %v5484, 0.7978846
    %v5629 = vmul.f32 %v5485, 0.7978846
    %v5630 = vmul.f32 %v5486, 0.7978846
    %v5631 = vmul.f32 %v5487, 0.7978846
    %v5632 = vmul.f32 %v5488, 0.7978846
    %v5633 = vmul.f32 %v5489, 0.7978846
    %v5634 = vmul.f32 %v5490, 0.7978846
    %v5635 = vmul.f32 %v5491, 0.7978846
    %v5636 = vmul.f32 %v5492, 0.7978846
    %v5637 = vmul.f32 %v5493, 0.7978846
    %v5638 = vmul.f32 %v5494, 0.7978846
    %v5639 = vmul.f32 %v5495, 0.7978846
    %v5640 = vmul.f32 %v5496, 0.7978846
    %v5641 = vmul.f32 %v5497, 0.7978846
    %v5642 = vmul.f32 %v5498, 0.7978846
    %v5643 = vmul.f32 %v5499, 0.7978846
    %v5644 = vmul.f32 %v5500, 0.7978846
    %v5645 = vmul.f32 %v5501, 0.7978846
    %v5646 = vmul.f32 %v5502, 0.7978846
    %v5647 = vmul.f32 %v5503, 0.7978846
    %v5648 = vmul.f32 %v5504, 0.7978846
    %v5649 = vmul.f32 %v5505, 0.7978846
    %v5650 = vmul.f32 %v5506, 0.7978846
    %v5651 = vmul.f32 %v5507, 0.7978846
    %v5652 = vmul.f32 %v5508, 0.7978846
    %v5653 = vmul.f32 %v5509, 0.7978846
    %v5654 = vmul.f32 %v5510, 0.7978846
    %v5655 = vmul.f32 %v5511, 0.7978846
    %v5656 = vmul.f32 %v5512, 0.7978846
    %v5657 = vmul.f32 %v5513, 0.7978846
    %v5658 = vmul.f32 %v5514, 0.7978846
    %v5659 = vmul.f32 %v5515, 0.7978846
    %v5660 = vtanh.pop %v5516
    %v5661 = vtanh.pop %v5517
    %v5662 = vtanh.pop %v5518
    %v5663 = vtanh.pop %v5519
    %v5664 = vtanh.pop %v5520
    %v5665 = vtanh.pop %v5521
    %v5666 = vtanh.pop %v5522
    %v5667 = vtanh.pop %v5523
    %v5668 = vtanh.pop %v5524
    %v5669 = vtanh.pop %v5525
    %v5670 = vtanh.pop %v5526
    %v5671 = vtanh.pop %v5527
    %v5672 = vtanh.pop %v5528
    %v5673 = vtanh.pop %v5529
    %v5674 = vtanh.pop %v5530
    %v5675 = vtanh.pop %v5531
    %v5676 = vtanh.pop %v5532
    %v5677 = vtanh.pop %v5533
    %v5678 = vtanh.pop %v5534
    %v5679 = vtanh.pop %v5535
    %v5680 = vtanh.pop %v5536
    %v5681 = vtanh.pop %v5537
    %v5682 = vtanh.pop %v5538
    %v5683 = vtanh.pop %v5539
    %v5684 = vtanh.pop %v5540
    %v5685 = vtanh.pop %v5541
    %v5686 = vtanh.pop %v5542
    %v5687 = vtanh.pop %v5543
    %v5688 = vtanh.pop %v5544
    %v5689 = vtanh.pop %v5545
    %v5690 = vtanh.pop %v5546
    %v5691 = vtanh.pop %v5547
    %v5692 = vtanh.pop %v5548
    %v5693 = vtanh.pop %v5549
    %v5694 = vtanh.pop %v5550
    %v5695 = vtanh.pop %v5551
    %v5696 = vtanh.pop %v5552
    %v5697 = vtanh.pop %v5553
    %v5698 = vtanh.pop %v5554
    %v5699 = vtanh.pop %v5555
    %v5700 = vtanh.pop %v5556
    %v5701 = vtanh.pop %v5557
    %v5702 = vtanh.pop %v5558
    %v5703 = vtanh.pop %v5559
    %v5704 = vtanh.pop %v5560
    %v5705 = vtanh.pop %v5561
    %v5706 = vtanh.pop %v5562
    %v5707 = vtanh.pop %v5563
    %v5708 = vtanh.pop %v5564
    %v5709 = vtanh.pop %v5565
    %v5710 = vtanh.pop %v5566
    %v5711 = vtanh.pop %v5567
    %v5712 = vtanh.pop %v5568
    %v5713 = vtanh.pop %v5569
    %v5714 = vtanh.pop %v5570
    %v5715 = vtanh.pop %v5571
    %v5716 = vtanh.pop %v5572
    %v5717 = vtanh.pop %v5573
    %v5718 = vtanh.pop %v5574
    %v5719 = vtanh.pop %v5575
    %v5720 = vtanh.pop %v5576
    %v5721 = vtanh.pop %v5577
    %v5722 = vtanh.pop %v5578
    %v5723 = vtanh.pop %v5579
    %v5724 = vtanh.pop %v5580
    %v5725 = vtanh.pop %v5581
    %v5726 = vtanh.pop %v5582
    %v5727 = vtanh.pop %v5583
    %v5728 = vtanh.pop %v5584
    %v5729 = vtanh.pop %v5585
    %v5730 = vtanh.pop %v5586
    %v5731 = vtanh.pop %v5587
    %v5732 = vtanh.pop %v5588
    %v5733 = vtanh.pop %v5589
    %v5734 = vtanh.pop %v5590
    %v5735 = vtanh.pop %v5591
    %v5736 = vtanh.pop %v5592
    %v5737 = vtanh.pop %v5593
    %v5738 = vtanh.pop %v5594
    %v5739 = vtanh.pop %v5595
    %v5740 = vtanh.pop %v5596
    %v5741 = vtanh.pop %v5597
    %v5742 = vtanh.pop %v5598
    %v5743 = vtanh.pop %v5599
    %v5744 = vtanh.pop %v5600
    %v5745 = vtanh.pop %v5601
    %v5746 = vtanh.pop %v5602
    %v5747 = vtanh.pop %v5603
    %v5748 = vtanh.pop %v5604
    %v5749 = vtanh.pop %v5605
    %v5750 = vtanh.pop %v5606
    %v5751 = vtanh.pop %v5607
    %v5752 = vtanh.pop %v5608
    %v5753 = vtanh.pop %v5609
    %v5754 = vtanh.pop %v5610
    %v5755 = vtanh.pop %v5611
    %v5756 = vtanh.pop %v5612
    %v5757 = vtanh.pop %v5613
    %v5758 = vtanh.pop %v5614
    %v5759 = vtanh.pop %v5615
    %v5760 = vtanh.pop %v5616
    %v5761 = vtanh.pop %v5617
    %v5762 = vtanh.pop %v5618
    %v5763 = vtanh.pop %v5619
    %v5764 = vtanh.pop %v5620
    %v5765 = vtanh.pop %v5621
    %v5766 = vtanh.pop %v5622
    %v5767 = vtanh.pop %v5623
    %v5768 = vtanh.pop %v5624
    %v5769 = vtanh.pop %v5625
    %v5770 = vtanh.pop %v5626
    %v5771 = vtanh.pop %v5627
    %v5772 = vtanh.pop %v5628
    %v5773 = vtanh.pop %v5629
    %v5774 = vtanh.pop %v5630
    %v5775 = vtanh.pop %v5631
    %v5776 = vtanh.pop %v5632
    %v5777 = vtanh.pop %v5633
    %v5778 = vtanh.pop %v5634
    %v5779 = vtanh.pop %v5635
    %v5780 = vtanh.pop %v5636
    %v5781 = vtanh.pop %v5637
    %v5782 = vtanh.pop %v5638
    %v5783 = vtanh.pop %v5639
    %v5784 = vtanh.pop %v5640
    %v5785 = vtanh.pop %v5641
    %v5786 = vtanh.pop %v5642
    %v5787 = vtanh.pop %v5643
    %v5788 = vtanh.pop %v5644
    %v5789 = vtanh.pop %v5645
    %v5790 = vtanh.pop %v5646
    %v5791 = vtanh.pop %v5647
    %v5792 = vtanh.pop %v5648
    %v5793 = vtanh.pop %v5649
    %v5794 = vtanh.pop %v5650
    %v5795 = vtanh.pop %v5651
    %v5796 = vtanh.pop %v5652
    %v5797 = vtanh.pop %v5653
    %v5798 = vtanh.pop %v5654
    %v5799 = vtanh.pop %v5655
    %v5800 = vtanh.pop %v5656
    %v5801 = vtanh.pop %v5657
    %v5802 = vtanh.pop %v5658
    %v5803 = vtanh.pop %v5659
    %v5804 = vadd.f32 %v5660, 1.0
    %v5805 = vadd.f32 %v5661, 1.0
    %v5806 = vadd.f32 %v5662, 1.0
    %v5807 = vadd.f32 %v5663, 1.0
    %v5808 = vadd.f32 %v5664, 1.0
    %v5809 = vadd.f32 %v5665, 1.0
    %v5810 = vadd.f32 %v5666, 1.0
    %v5811 = vadd.f32 %v5667, 1.0
    %v5812 = vadd.f32 %v5668, 1.0
    %v5813 = vadd.f32 %v5669, 1.0
    %v5814 = vadd.f32 %v5670, 1.0
    %v5815 = vadd.f32 %v5671, 1.0
    %v5816 = vadd.f32 %v5672, 1.0
    %v5817 = vadd.f32 %v5673, 1.0
    %v5818 = vadd.f32 %v5674, 1.0
    %v5819 = vadd.f32 %v5675, 1.0
    %v5820 = vadd.f32 %v5676, 1.0
    %v5821 = vadd.f32 %v5677, 1.0
    %v5822 = vadd.f32 %v5678, 1.0
    %v5823 = vadd.f32 %v5679, 1.0
    %v5824 = vadd.f32 %v5680, 1.0
    %v5825 = vadd.f32 %v5681, 1.0
    %v5826 = vadd.f32 %v5682, 1.0
    %v5827 = vadd.f32 %v5683, 1.0
    %v5828 = vadd.f32 %v5684, 1.0
    %v5829 = vadd.f32 %v5685, 1.0
    %v5830 = vadd.f32 %v5686, 1.0
    %v5831 = vadd.f32 %v5687, 1.0
    %v5832 = vadd.f32 %v5688, 1.0
    %v5833 = vadd.f32 %v5689, 1.0
    %v5834 = vadd.f32 %v5690, 1.0
    %v5835 = vadd.f32 %v5691, 1.0
    %v5836 = vadd.f32 %v5692, 1.0
    %v5837 = vadd.f32 %v5693, 1.0
    %v5838 = vadd.f32 %v5694, 1.0
    %v5839 = vadd.f32 %v5695, 1.0
    %v5840 = vadd.f32 %v5696, 1.0
    %v5841 = vadd.f32 %v5697, 1.0
    %v5842 = vadd.f32 %v5698, 1.0
    %v5843 = vadd.f32 %v5699, 1.0
    %v5844 = vadd.f32 %v5700, 1.0
    %v5845 = vadd.f32 %v5701, 1.0
    %v5846 = vadd.f32 %v5702, 1.0
    %v5847 = vadd.f32 %v5703, 1.0
    %v5848 = vadd.f32 %v5704, 1.0
    %v5849 = vadd.f32 %v5705, 1.0
    %v5850 = vadd.f32 %v5706, 1.0
    %v5851 = vadd.f32 %v5707, 1.0
    %v5852 = vadd.f32 %v5708, 1.0
    %v5853 = vadd.f32 %v5709, 1.0
    %v5854 = vadd.f32 %v5710, 1.0
    %v5855 = vadd.f32 %v5711, 1.0
    %v5856 = vadd.f32 %v5712, 1.0
    %v5857 = vadd.f32 %v5713, 1.0
    %v5858 = vadd.f32 %v5714, 1.0
    %v5859 = vadd.f32 %v5715, 1.0
    %v5860 = vadd.f32 %v5716, 1.0
    %v5861 = vadd.f32 %v5717, 1.0
    %v5862 = vadd.f32 %v5718, 1.0
    %v5863 = vadd.f32 %v5719, 1.0
    %v5864 = vadd.f32 %v5720, 1.0
    %v5865 = vadd.f32 %v5721, 1.0
    %v5866 = vadd.f32 %v5722, 1.0
    %v5867 = vadd.f32 %v5723, 1.0
    %v5868 = vadd.f32 %v5724, 1.0
    %v5869 = vadd.f32 %v5725, 1.0
    %v5870 = vadd.f32 %v5726, 1.0
    %v5871 = vadd.f32 %v5727, 1.0
    %v5872 = vadd.f32 %v5728, 1.0
    %v5873 = vadd.f32 %v5729, 1.0
    %v5874 = vadd.f32 %v5730, 1.0
    %v5875 = vadd.f32 %v5731, 1.0
    %v5876 = vadd.f32 %v5732, 1.0
    %v5877 = vadd.f32 %v5733, 1.0
    %v5878 = vadd.f32 %v5734, 1.0
    %v5879 = vadd.f32 %v5735, 1.0
    %v5880 = vadd.f32 %v5736, 1.0
    %v5881 = vadd.f32 %v5737, 1.0
    %v5882 = vadd.f32 %v5738, 1.0
    %v5883 = vadd.f32 %v5739, 1.0
    %v5884 = vadd.f32 %v5740, 1.0
    %v5885 = vadd.f32 %v5741, 1.0
    %v5886 = vadd.f32 %v5742, 1.0
    %v5887 = vadd.f32 %v5743, 1.0
    %v5888 = vadd.f32 %v5744, 1.0
    %v5889 = vadd.f32 %v5745, 1.0
    %v5890 = vadd.f32 %v5746, 1.0
    %v5891 = vadd.f32 %v5747, 1.0
    %v5892 = vadd.f32 %v5748, 1.0
    %v5893 = vadd.f32 %v5749, 1.0
    %v5894 = vadd.f32 %v5750, 1.0
    %v5895 = vadd.f32 %v5751, 1.0
    %v5896 = vadd.f32 %v5752, 1.0
    %v5897 = vadd.f32 %v5753, 1.0
    %v5898 = vadd.f32 %v5754, 1.0
    %v5899 = vadd.f32 %v5755, 1.0
    %v5900 = vadd.f32 %v5756, 1.0
    %v5901 = vadd.f32 %v5757, 1.0
    %v5902 = vadd.f32 %v5758, 1.0
    %v5903 = vadd.f32 %v5759, 1.0
    %v5904 = vadd.f32 %v5760, 1.0
    %v5905 = vadd.f32 %v5761, 1.0
    %v5906 = vadd.f32 %v5762, 1.0
    %v5907 = vadd.f32 %v5763, 1.0
    %v5908 = vadd.f32 %v5764, 1.0
    %v5909 = vadd.f32 %v5765, 1.0
    %v5910 = vadd.f32 %v5766, 1.0
    %v5911 = vadd.f32 %v5767, 1.0
    %v5912 = vadd.f32 %v5768, 1.0
    %v5913 = vadd.f32 %v5769, 1.0
    %v5914 = vadd.f32 %v5770, 1.0
    %v5915 = vadd.f32 %v5771, 1.0
    %v5916 = vadd.f32 %v5772, 1.0
    %v5917 = vadd.f32 %v5773, 1.0
    %v5918 = vadd.f32 %v5774, 1.0
    %v5919 = vadd.f32 %v5775, 1.0
    %v5920 = vadd.f32 %v5776, 1.0
    %v5921 = vadd.f32 %v5777, 1.0
    %v5922 = vadd.f32 %v5778, 1.0
    %v5923 = vadd.f32 %v5779, 1.0
    %v5924 = vadd.f32 %v5780, 1.0
    %v5925 = vadd.f32 %v5781, 1.0
    %v5926 = vadd.f32 %v5782, 1.0
    %v5927 = vadd.f32 %v5783, 1.0
    %v5928 = vadd.f32 %v5784, 1.0
    %v5929 = vadd.f32 %v5785, 1.0
    %v5930 = vadd.f32 %v5786, 1.0
    %v5931 = vadd.f32 %v5787, 1.0
    %v5932 = vadd.f32 %v5788, 1.0
    %v5933 = vadd.f32 %v5789, 1.0
    %v5934 = vadd.f32 %v5790, 1.0
    %v5935 = vadd.f32 %v5791, 1.0
    %v5936 = vadd.f32 %v5792, 1.0
    %v5937 = vadd.f32 %v5793, 1.0
    %v5938 = vadd.f32 %v5794, 1.0
    %v5939 = vadd.f32 %v5795, 1.0
    %v5940 = vadd.f32 %v5796, 1.0
    %v5941 = vadd.f32 %v5797, 1.0
    %v5942 = vadd.f32 %v5798, 1.0
    %v5943 = vadd.f32 %v5799, 1.0
    %v5944 = vadd.f32 %v5800, 1.0
    %v5945 = vadd.f32 %v5801, 1.0
    %v5946 = vadd.f32 %v5802, 1.0
    %v5947 = vadd.f32 %v5803, 1.0
    %v5948 = vmul.f32 %v4796, %v5804
    %v5949 = vmul.f32 %v4797, %v5805
    %v5950 = vmul.f32 %v4798, %v5806
    %v5951 = vmul.f32 %v4799, %v5807
    %v5952 = vmul.f32 %v4800, %v5808
    %v5953 = vmul.f32 %v4801, %v5809
    %v5954 = vmul.f32 %v4802, %v5810
    %v5955 = vmul.f32 %v4803, %v5811
    %v5956 = vmul.f32 %v4804, %v5812
    %v5957 = vmul.f32 %v4805, %v5813
    %v5958 = vmul.f32 %v4806, %v5814
    %v5959 = vmul.f32 %v4807, %v5815
    %v5960 = vmul.f32 %v4808, %v5816
    %v5961 = vmul.f32 %v4809, %v5817
    %v5962 = vmul.f32 %v4810, %v5818
    %v5963 = vmul.f32 %v4811, %v5819
    %v5964 = vmul.f32 %v4812, %v5820
    %v5965 = vmul.f32 %v4813, %v5821
    %v5966 = vmul.f32 %v4814, %v5822
    %v5967 = vmul.f32 %v4815, %v5823
    %v5968 = vmul.f32 %v4816, %v5824
    %v5969 = vmul.f32 %v4817, %v5825
    %v5970 = vmul.f32 %v4818, %v5826
    %v5971 = vmul.f32 %v4819, %v5827
    %v5972 = vmul.f32 %v4820, %v5828
    %v5973 = vmul.f32 %v4821, %v5829
    %v5974 = vmul.f32 %v4822, %v5830
    %v5975 = vmul.f32 %v4823, %v5831
    %v5976 = vmul.f32 %v4824, %v5832
    %v5977 = vmul.f32 %v4825, %v5833
    %v5978 = vmul.f32 %v4826, %v5834
    %v5979 = vmul.f32 %v4827, %v5835
    %v5980 = vmul.f32 %v4828, %v5836
    %v5981 = vmul.f32 %v4829, %v5837
    %v5982 = vmul.f32 %v4830, %v5838
    %v5983 = vmul.f32 %v4831, %v5839
    %v5984 = vmul.f32 %v4832, %v5840
    %v5985 = vmul.f32 %v4833, %v5841
    %v5986 = vmul.f32 %v4834, %v5842
    %v5987 = vmul.f32 %v4835, %v5843
    %v5988 = vmul.f32 %v4836, %v5844
    %v5989 = vmul.f32 %v4837, %v5845
    %v5990 = vmul.f32 %v4838, %v5846
    %v5991 = vmul.f32 %v4839, %v5847
    %v5992 = vmul.f32 %v4840, %v5848
    %v5993 = vmul.f32 %v4841, %v5849
    %v5994 = vmul.f32 %v4842, %v5850
    %v5995 = vmul.f32 %v4843, %v5851
    %v5996 = vmul.f32 %v4844, %v5852
    %v5997 = vmul.f32 %v4845, %v5853
    %v5998 = vmul.f32 %v4846, %v5854
    %v5999 = vmul.f32 %v4847, %v5855
    %v6000 = vmul.f32 %v4848, %v5856
    %v6001 = vmul.f32 %v4849, %v5857
    %v6002 = vmul.f32 %v4850, %v5858
    %v6003 = vmul.f32 %v4851, %v5859
    %v6004 = vmul.f32 %v4852, %v5860
    %v6005 = vmul.f32 %v4853, %v5861
    %v6006 = vmul.f32 %v4854, %v5862
    %v6007 = vmul.f32 %v4855, %v5863
    %v6008 = vmul.f32 %v4856, %v5864
    %v6009 = vmul.f32 %v4857, %v5865
    %v6010 = vmul.f32 %v4858, %v5866
    %v6011 = vmul.f32 %v4859, %v5867
    %v6012 = vmul.f32 %v4860, %v5868
    %v6013 = vmul.f32 %v4861, %v5869
    %v6014 = vmul.f32 %v4862, %v5870
    %v6015 = vmul.f32 %v4863, %v5871
    %v6016 = vmul.f32 %v4864, %v5872
    %v6017 = vmul.f32 %v4865, %v5873
    %v6018 = vmul.f32 %v4866, %v5874
    %v6019 = vmul.f32 %v4867, %v5875
    %v6020 = vmul.f32 %v4868, %v5876
    %v6021 = vmul.f32 %v4869, %v5877
    %v6022 = vmul.f32 %v4870, %v5878
    %v6023 = vmul.f32 %v4871, %v5879
    %v6024 = vmul.f32 %v4872, %v5880
    %v6025 = vmul.f32 %v4873, %v5881
    %v6026 = vmul.f32 %v4874, %v5882
    %v6027 = vmul.f32 %v4875, %v5883
    %v6028 = vmul.f32 %v4876, %v5884
    %v6029 = vmul.f32 %v4877, %v5885
    %v6030 = vmul.f32 %v4878, %v5886
    %v6031 = vmul.f32 %v4879, %v5887
    %v6032 = vmul.f32 %v4880, %v5888
    %v6033 = vmul.f32 %v4881, %v5889
    %v6034 = vmul.f32 %v4882, %v5890
    %v6035 = vmul.f32 %v4883, %v5891
    %v6036 = vmul.f32 %v4884, %v5892
    %v6037 = vmul.f32 %v4885, %v5893
    %v6038 = vmul.f32 %v4886, %v5894
    %v6039 = vmul.f32 %v4887, %v5895
    %v6040 = vmul.f32 %v4888, %v5896
    %v6041 = vmul.f32 %v4889, %v5897
    %v6042 = vmul.f32 %v4890, %v5898
    %v6043 = vmul.f32 %v4891, %v5899
    %v6044 = vmul.f32 %v4892, %v5900
    %v6045 = vmul.f32 %v4893, %v5901
    %v6046 = vmul.f32 %v4894, %v5902
    %v6047 = vmul.f32 %v4895, %v5903
    %v6048 = vmul.f32 %v4896, %v5904
    %v6049 = vmul.f32 %v4897, %v5905
    %v6050 = vmul.f32 %v4898, %v5906
    %v6051 = vmul.f32 %v4899, %v5907
    %v6052 = vmul.f32 %v4900, %v5908
    %v6053 = vmul.f32 %v4901, %v5909
    %v6054 = vmul.f32 %v4902, %v5910
    %v6055 = vmul.f32 %v4903, %v5911
    %v6056 = vmul.f32 %v4904, %v5912
    %v6057 = vmul.f32 %v4905, %v5913
    %v6058 = vmul.f32 %v4906, %v5914
    %v6059 = vmul.f32 %v4907, %v5915
    %v6060 = vmul.f32 %v4908, %v5916
    %v6061 = vmul.f32 %v4909, %v5917
    %v6062 = vmul.f32 %v4910, %v5918
    %v6063 = vmul.f32 %v4911, %v5919
    %v6064 = vmul.f32 %v4912, %v5920
    %v6065 = vmul.f32 %v4913, %v5921
    %v6066 = vmul.f32 %v4914, %v5922
    %v6067 = vmul.f32 %v4915, %v5923
    %v6068 = vmul.f32 %v4916, %v5924
    %v6069 = vmul.f32 %v4917, %v5925
    %v6070 = vmul.f32 %v4918, %v5926
    %v6071 = vmul.f32 %v4919, %v5927
    %v6072 = vmul.f32 %v4920, %v5928
    %v6073 = vmul.f32 %v4921, %v5929
    %v6074 = vmul.f32 %v4922, %v5930
    %v6075 = vmul.f32 %v4923, %v5931
    %v6076 = vmul.f32 %v4924, %v5932
    %v6077 = vmul.f32 %v4925, %v5933
    %v6078 = vmul.f32 %v4926, %v5934
    %v6079 = vmul.f32 %v4927, %v5935
    %v6080 = vmul.f32 %v4928, %v5936
    %v6081 = vmul.f32 %v4929, %v5937
    %v6082 = vmul.f32 %v4930, %v5938
    %v6083 = vmul.f32 %v4931, %v5939
    %v6084 = vmul.f32 %v4932, %v5940
    %v6085 = vmul.f32 %v4933, %v5941
    %v6086 = vmul.f32 %v4934, %v5942
    %v6087 = vmul.f32 %v4935, %v5943
    %v6088 = vmul.f32 %v4936, %v5944
    %v6089 = vmul.f32 %v4937, %v5945
    %v6090 = vmul.f32 %v4938, %v5946
    %v6091 = vmul.f32 %v4939, %v5947
    %v6092 = vlaneseq
    %v6093 = vshrl.u32 %v6092, 7
    %v6094 = vadd.s32 %v6093, 8
    %v6095 = vadd.s32 %v6093, 16
    %v6096 = vadd.s32 %v6093, 24
    %v6097 = vadd.s32 %v6093, 32
    %v6098 = vadd.s32 %v6093, 40
    %v6099 = vadd.s32 %v6093, 48
    %v6100 = vadd.s32 %v6093, 56
    %s6101 = smul.u32 0, 64
    %v6102 = vstv %s6101
    %v6103 = vadd.s32 %v6093, %v6102
    %v6104 = vadd.s32 %v6094, %v6102
    %v6105 = vadd.s32 %v6095, %v6102
    %v6106 = vadd.s32 %v6096, %v6102
    %v6107 = vadd.s32 %v6097, %v6102
    %v6108 = vadd.s32 %v6098, %v6102
    %v6109 = vadd.s32 %v6099, %v6102
    %v6110 = vadd.s32 %v6100, %v6102
    %vm6111 = vcmp.lt.s32.totalorder %v6103, 49
    %vm6112 = vcmp.lt.s32.totalorder %v6104, 49
    %vm6113 = vcmp.lt.s32.totalorder %v6105, 49
    %vm6114 = vcmp.lt.s32.totalorder %v6106, 49
    %vm6115 = vcmp.lt.s32.totalorder %v6107, 49
    %vm6116 = vcmp.lt.s32.totalorder %v6108, 49
    %vm6117 = vcmp.lt.s32.totalorder %v6109, 49
    %vm6118 = vcmp.lt.s32.totalorder %v6110, 49
    %v6119 = vsel %vm6111, 1, 0
    %v6120 = vsel %vm6112, 1, 0
    %v6121 = vsel %vm6113, 1, 0
    %v6122 = vsel %vm6114, 1, 0
    %v6123 = vsel %vm6115, 1, 0
    %v6124 = vsel %vm6116, 1, 0
    %v6125 = vsel %vm6117, 1, 0
    %v6126 = vsel %vm6118, 1, 0
    %v6127 = vcvt.s32.f32 %v6119
    %v6128 = vcvt.s32.f32 %v6120
    %v6129 = vcvt.s32.f32 %v6121
    %v6130 = vcvt.s32.f32 %v6122
    %v6131 = vcvt.s32.f32 %v6123
    %v6132 = vcvt.s32.f32 %v6124
    %v6133 = vcvt.s32.f32 %v6125
    %v6134 = vcvt.s32.f32 %v6126
    %v6135 = vmul.f32 %v5948, %v6127
    %v6136 = vmul.f32 %v5949, %v6127
    %v6137 = vmul.f32 %v5950, %v6127
    %v6138 = vmul.f32 %v5951, %v6127
    %v6139 = vmul.f32 %v5952, %v6127
    %v6140 = vmul.f32 %v5953, %v6127
    %v6141 = vmul.f32 %v5954, %v6128
    %v6142 = vmul.f32 %v5955, %v6128
    %v6143 = vmul.f32 %v5956, %v6128
    %v6144 = vmul.f32 %v5957, %v6128
    %v6145 = vmul.f32 %v5958, %v6128
    %v6146 = vmul.f32 %v5959, %v6128
    %v6147 = vmul.f32 %v5960, %v6129
    %v6148 = vmul.f32 %v5961, %v6129
    %v6149 = vmul.f32 %v5962, %v6129
    %v6150 = vmul.f32 %v5963, %v6129
    %v6151 = vmul.f32 %v5964, %v6129
    %v6152 = vmul.f32 %v5965, %v6129
    %v6153 = vmul.f32 %v5966, %v6130
    %v6154 = vmul.f32 %v5967, %v6130
    %v6155 = vmul.f32 %v5968, %v6130
    %v6156 = vmul.f32 %v5969, %v6130
    %v6157 = vmul.f32 %v5970, %v6130
    %v6158 = vmul.f32 %v5971, %v6130
    %v6159 = vmul.f32 %v5972, %v6131
    %v6160 = vmul.f32 %v5973, %v6131
    %v6161 = vmul.f32 %v5974, %v6131
    %v6162 = vmul.f32 %v5975, %v6131
    %v6163 = vmul.f32 %v5976, %v6131
    %v6164 = vmul.f32 %v5977, %v6131
    %v6165 = vmul.f32 %v5978, %v6132
    %v6166 = vmul.f32 %v5979, %v6132
    %v6167 = vmul.f32 %v5980, %v6132
    %v6168 = vmul.f32 %v5981, %v6132
    %v6169 = vmul.f32 %v5982, %v6132
    %v6170 = vmul.f32 %v5983, %v6132
    %v6171 = vmul.f32 %v5984, %v6133
    %v6172 = vmul.f32 %v5985, %v6133
    %v6173 = vmul.f32 %v5986, %v6133
    %v6174 = vmul.f32 %v5987, %v6133
    %v6175 = vmul.f32 %v5988, %v6133
    %v6176 = vmul.f32 %v5989, %v6133
    %v6177 = vmul.f32 %v5990, %v6134
    %v6178 = vmul.f32 %v5991, %v6134
    %v6179 = vmul.f32 %v5992, %v6134
    %v6180 = vmul.f32 %v5993, %v6134
    %v6181 = vmul.f32 %v5994, %v6134
    %v6182 = vmul.f32 %v5995, %v6134
    %v6183 = vmul.f32 %v5996, %v6127
    %v6184 = vmul.f32 %v5997, %v6127
    %v6185 = vmul.f32 %v5998, %v6127
    %v6186 = vmul.f32 %v5999, %v6127
    %v6187 = vmul.f32 %v6000, %v6127
    %v6188 = vmul.f32 %v6001, %v6127
    %v6189 = vmul.f32 %v6002, %v6128
    %v6190 = vmul.f32 %v6003, %v6128
    %v6191 = vmul.f32 %v6004, %v6128
    %v6192 = vmul.f32 %v6005, %v6128
    %v6193 = vmul.f32 %v6006, %v6128
    %v6194 = vmul.f32 %v6007, %v6128
    %v6195 = vmul.f32 %v6008, %v6129
    %v6196 = vmul.f32 %v6009, %v6129
    %v6197 = vmul.f32 %v6010, %v6129
    %v6198 = vmul.f32 %v6011, %v6129
    %v6199 = vmul.f32 %v6012, %v6129
    %v6200 = vmul.f32 %v6013, %v6129
    %v6201 = vmul.f32 %v6014, %v6130
    %v6202 = vmul.f32 %v6015, %v6130
    %v6203 = vmul.f32 %v6016, %v6130
    %v6204 = vmul.f32 %v6017, %v6130
    %v6205 = vmul.f32 %v6018, %v6130
    %v6206 = vmul.f32 %v6019, %v6130
    %v6207 = vmul.f32 %v6020, %v6131
    %v6208 = vmul.f32 %v6021, %v6131
    %v6209 = vmul.f32 %v6022, %v6131
    %v6210 = vmul.f32 %v6023, %v6131
    %v6211 = vmul.f32 %v6024, %v6131
    %v6212 = vmul.f32 %v6025, %v6131
    %v6213 = vmul.f32 %v6026, %v6132
    %v6214 = vmul.f32 %v6027, %v6132
    %v6215 = vmul.f32 %v6028, %v6132
    %v6216 = vmul.f32 %v6029, %v6132
    %v6217 = vmul.f32 %v6030, %v6132
    %v6218 = vmul.f32 %v6031, %v6132
    %v6219 = vmul.f32 %v6032, %v6133
    %v6220 = vmul.f32 %v6033, %v6133
    %v6221 = vmul.f32 %v6034, %v6133
    %v6222 = vmul.f32 %v6035, %v6133
    %v6223 = vmul.f32 %v6036, %v6133
    %v6224 = vmul.f32 %v6037, %v6133
    %v6225 = vmul.f32 %v6038, %v6134
    %v6226 = vmul.f32 %v6039, %v6134
    %v6227 = vmul.f32 %v6040, %v6134
    %v6228 = vmul.f32 %v6041, %v6134
    %v6229 = vmul.f32 %v6042, %v6134
    %v6230 = vmul.f32 %v6043, %v6134
    %v6231 = vmul.f32 %v6044, %v6127
    %v6232 = vmul.f32 %v6045, %v6127
    %v6233 = vmul.f32 %v6046, %v6127
    %v6234 = vmul.f32 %v6047, %v6127
    %v6235 = vmul.f32 %v6048, %v6127
    %v6236 = vmul.f32 %v6049, %v6127
    %v6237 = vmul.f32 %v6050, %v6128
    %v6238 = vmul.f32 %v6051, %v6128
    %v6239 = vmul.f32 %v6052, %v6128
    %v6240 = vmul.f32 %v6053, %v6128
    %v6241 = vmul.f32 %v6054, %v6128
    %v6242 = vmul.f32 %v6055, %v6128
    %v6243 = vmul.f32 %v6056, %v6129
    %v6244 = vmul.f32 %v6057, %v6129
    %v6245 = vmul.f32 %v6058, %v6129
    %v6246 = vmul.f32 %v6059, %v6129
    %v6247 = vmul.f32 %v6060, %v6129
    %v6248 = vmul.f32 %v6061, %v6129
    %v6249 = vmul.f32 %v6062, %v6130
    %v6250 = vmul.f32 %v6063, %v6130
    %v6251 = vmul.f32 %v6064, %v6130
    %v6252 = vmul.f32 %v6065, %v6130
    %v6253 = vmul.f32 %v6066, %v6130
    %v6254 = vmul.f32 %v6067, %v6130
    %v6255 = vmul.f32 %v6068, %v6131
    %v6256 = vmul.f32 %v6069, %v6131
    %v6257 = vmul.f32 %v6070, %v6131
    %v6258 = vmul.f32 %v6071, %v6131
    %v6259 = vmul.f32 %v6072, %v6131
    %v6260 = vmul.f32 %v6073, %v6131
    %v6261 = vmul.f32 %v6074, %v6132
    %v6262 = vmul.f32 %v6075, %v6132
    %v6263 = vmul.f32 %v6076, %v6132
    %v6264 = vmul.f32 %v6077, %v6132
    %v6265 = vmul.f32 %v6078, %v6132
    %v6266 = vmul.f32 %v6079, %v6132
    %v6267 = vmul.f32 %v6080, %v6133
    %v6268 = vmul.f32 %v6081, %v6133
    %v6269 = vmul.f32 %v6082, %v6133
    %v6270 = vmul.f32 %v6083, %v6133
    %v6271 = vmul.f32 %v6084, %v6133
    %v6272 = vmul.f32 %v6085, %v6133
    %v6273 = vmul.f32 %v6086, %v6134
    %v6274 = vmul.f32 %v6087, %v6134
    %v6275 = vmul.f32 %v6088, %v6134
    %v6276 = vmul.f32 %v6089, %v6134
    %v6277 = vmul.f32 %v6090, %v6134
    %v6278 = vmul.f32 %v6091, %v6134
    %v6279 = vld [vmem:[#allocation2] sm:$0x77]
    %v6280 = vld [vmem:[#allocation2 + $0x8] sm:$0x77]
    %v6281 = vld [vmem:[#allocation2 + $0x10] sm:$0x77]
    %v6282 = vadd.f32 %v6135, %v6141
    %v6283 = vadd.f32 %v6282, %v6147
    %v6284 = vadd.f32 %v6283, %v6153
    %v6285 = vadd.f32 %v6284, %v6159
    %v6286 = vadd.f32 %v6285, %v6165
    %v6287 = vadd.f32 %v6286, %v6171
    %v6288 = vadd.f32 %v6287, %v6177
    %v6289 = vrot.slane %v6288, 4
    %v6290 = vadd.f32 %v6288, %v6289
    %v6291 = vrot.slane %v6290, 2
    %v6292 = vadd.f32 %v6290, %v6291
    %v6293 = vrot.slane %v6292, 1
    %v6294 = vadd.f32 %v6292, %v6293
    %v6295 = vadd.f32 %v6136, %v6142
    %v6296 = vadd.f32 %v6295, %v6148
    %v6297 = vadd.f32 %v6296, %v6154
    %v6298 = vadd.f32 %v6297, %v6160
    %v6299 = vadd.f32 %v6298, %v6166
    %v6300 = vadd.f32 %v6299, %v6172
    %v6301 = vadd.f32 %v6300, %v6178
    %v6302 = vrot.slane %v6301, 4
    %v6303 = vadd.f32 %v6301, %v6302
    %v6304 = vrot.slane %v6303, 2
    %v6305 = vadd.f32 %v6303, %v6304
    %v6306 = vrot.slane %v6305, 1
    %v6307 = vadd.f32 %v6305, %v6306
    %v6308 = vadd.f32 %v6137, %v6143
    %v6309 = vadd.f32 %v6308, %v6149
    %v6310 = vadd.f32 %v6309, %v6155
    %v6311 = vadd.f32 %v6310, %v6161
    %v6312 = vadd.f32 %v6311, %v6167
    %v6313 = vadd.f32 %v6312, %v6173
    %v6314 = vadd.f32 %v6313, %v6179
    %v6315 = vrot.slane %v6314, 4
    %v6316 = vadd.f32 %v6314, %v6315
    %v6317 = vrot.slane %v6316, 2
    %v6318 = vadd.f32 %v6316, %v6317
    %v6319 = vrot.slane %v6318, 1
    %v6320 = vadd.f32 %v6318, %v6319
    %v6321 = vadd.f32 %v6138, %v6144
    %v6322 = vadd.f32 %v6321, %v6150
    %v6323 = vadd.f32 %v6322, %v6156
    %v6324 = vadd.f32 %v6323, %v6162
    %v6325 = vadd.f32 %v6324, %v6168
    %v6326 = vadd.f32 %v6325, %v6174
    %v6327 = vadd.f32 %v6326, %v6180
    %v6328 = vrot.slane %v6327, 4
    %v6329 = vadd.f32 %v6327, %v6328
    %v6330 = vrot.slane %v6329, 2
    %v6331 = vadd.f32 %v6329, %v6330
    %v6332 = vrot.slane %v6331, 1
    %v6333 = vadd.f32 %v6331, %v6332
    %v6334 = vadd.f32 %v6139, %v6145
    %v6335 = vadd.f32 %v6334, %v6151
    %v6336 = vadd.f32 %v6335, %v6157
    %v6337 = vadd.f32 %v6336, %v6163
    %v6338 = vadd.f32 %v6337, %v6169
    %v6339 = vadd.f32 %v6338, %v6175
    %v6340 = vadd.f32 %v6339, %v6181
    %v6341 = vrot.slane %v6340, 4
    %v6342 = vadd.f32 %v6340, %v6341
    %v6343 = vrot.slane %v6342, 2
    %v6344 = vadd.f32 %v6342, %v6343
    %v6345 = vrot.slane %v6344, 1
    %v6346 = vadd.f32 %v6344, %v6345
    %v6347 = vadd.f32 %v6140, %v6146
    %v6348 = vadd.f32 %v6347, %v6152
    %v6349 = vadd.f32 %v6348, %v6158
    %v6350 = vadd.f32 %v6349, %v6164
    %v6351 = vadd.f32 %v6350, %v6170
    %v6352 = vadd.f32 %v6351, %v6176
    %v6353 = vadd.f32 %v6352, %v6182
    %v6354 = vrot.slane %v6353, 4
    %v6355 = vadd.f32 %v6353, %v6354
    %v6356 = vrot.slane %v6355, 2
    %v6357 = vadd.f32 %v6355, %v6356
    %v6358 = vrot.slane %v6357, 1
    %v6359 = vadd.f32 %v6357, %v6358
    %v6360 = vadd.f32 %v6183, %v6189
    %v6361 = vadd.f32 %v6360, %v6195
    %v6362 = vadd.f32 %v6361, %v6201
    %v6363 = vadd.f32 %v6362, %v6207
    %v6364 = vadd.f32 %v6363, %v6213
    %v6365 = vadd.f32 %v6364, %v6219
    %v6366 = vadd.f32 %v6365, %v6225
    %v6367 = vrot.slane %v6366, 4
    %v6368 = vadd.f32 %v6366, %v6367
    %v6369 = vrot.slane %v6368, 2
    %v6370 = vadd.f32 %v6368, %v6369
    %v6371 = vrot.slane %v6370, 1
    %v6372 = vadd.f32 %v6370, %v6371
    %v6373 = vadd.f32 %v6184, %v6190
    %v6374 = vadd.f32 %v6373, %v6196
    %v6375 = vadd.f32 %v6374, %v6202
    %v6376 = vadd.f32 %v6375, %v6208
    %v6377 = vadd.f32 %v6376, %v6214
    %v6378 = vadd.f32 %v6377, %v6220
    %v6379 = vadd.f32 %v6378, %v6226
    %v6380 = vrot.slane %v6379, 4
    %v6381 = vadd.f32 %v6379, %v6380
    %v6382 = vrot.slane %v6381, 2
    %v6383 = vadd.f32 %v6381, %v6382
    %v6384 = vrot.slane %v6383, 1
    %v6385 = vadd.f32 %v6383, %v6384
    %v6386 = vadd.f32 %v6185, %v6191
    %v6387 = vadd.f32 %v6386, %v6197
    %v6388 = vadd.f32 %v6387, %v6203
    %v6389 = vadd.f32 %v6388, %v6209
    %v6390 = vadd.f32 %v6389, %v6215
    %v6391 = vadd.f32 %v6390, %v6221
    %v6392 = vadd.f32 %v6391, %v6227
    %v6393 = vrot.slane %v6392, 4
    %v6394 = vadd.f32 %v6392, %v6393
    %v6395 = vrot.slane %v6394, 2
    %v6396 = vadd.f32 %v6394, %v6395
    %v6397 = vrot.slane %v6396, 1
    %v6398 = vadd.f32 %v6396, %v6397
    %v6399 = vadd.f32 %v6186, %v6192
    %v6400 = vadd.f32 %v6399, %v6198
    %v6401 = vadd.f32 %v6400, %v6204
    %v6402 = vadd.f32 %v6401, %v6210
    %v6403 = vadd.f32 %v6402, %v6216
    %v6404 = vadd.f32 %v6403, %v6222
    %v6405 = vadd.f32 %v6404, %v6228
    %v6406 = vrot.slane %v6405, 4
    %v6407 = vadd.f32 %v6405, %v6406
    %v6408 = vrot.slane %v6407, 2
    %v6409 = vadd.f32 %v6407, %v6408
    %v6410 = vrot.slane %v6409, 1
    %v6411 = vadd.f32 %v6409, %v6410
    %v6412 = vadd.f32 %v6187, %v6193
    %v6413 = vadd.f32 %v6412, %v6199
    %v6414 = vadd.f32 %v6413, %v6205
    %v6415 = vadd.f32 %v6414, %v6211
    %v6416 = vadd.f32 %v6415, %v6217
    %v6417 = vadd.f32 %v6416, %v6223
    %v6418 = vadd.f32 %v6417, %v6229
    %v6419 = vrot.slane %v6418, 4
    %v6420 = vadd.f32 %v6418, %v6419
    %v6421 = vrot.slane %v6420, 2
    %v6422 = vadd.f32 %v6420, %v6421
    %v6423 = vrot.slane %v6422, 1
    %v6424 = vadd.f32 %v6422, %v6423
    %v6425 = vadd.f32 %v6188, %v6194
    %v6426 = vadd.f32 %v6425, %v6200
    %v6427 = vadd.f32 %v6426, %v6206
    %v6428 = vadd.f32 %v6427, %v6212
    %v6429 = vadd.f32 %v6428, %v6218
    %v6430 = vadd.f32 %v6429, %v6224
    %v6431 = vadd.f32 %v6430, %v6230
    %v6432 = vrot.slane %v6431, 4
    %v6433 = vadd.f32 %v6431, %v6432
    %v6434 = vrot.slane %v6433, 2
    %v6435 = vadd.f32 %v6433, %v6434
    %v6436 = vrot.slane %v6435, 1
    %v6437 = vadd.f32 %v6435, %v6436
    %v6438 = vadd.f32 %v6231, %v6237
    %v6439 = vadd.f32 %v6438, %v6243
    %v6440 = vadd.f32 %v6439, %v6249
    %v6441 = vadd.f32 %v6440, %v6255
    %v6442 = vadd.f32 %v6441, %v6261
    %v6443 = vadd.f32 %v6442, %v6267
    %v6444 = vadd.f32 %v6443, %v6273
    %v6445 = vrot.slane %v6444, 4
    %v6446 = vadd.f32 %v6444, %v6445
    %v6447 = vrot.slane %v6446, 2
    %v6448 = vadd.f32 %v6446, %v6447
    %v6449 = vrot.slane %v6448, 1
    %v6450 = vadd.f32 %v6448, %v6449
    %v6451 = vadd.f32 %v6232, %v6238
    %v6452 = vadd.f32 %v6451, %v6244
    %v6453 = vadd.f32 %v6452, %v6250
    %v6454 = vadd.f32 %v6453, %v6256
    %v6455 = vadd.f32 %v6454, %v6262
    %v6456 = vadd.f32 %v6455, %v6268
    %v6457 = vadd.f32 %v6456, %v6274
    %v6458 = vrot.slane %v6457, 4
    %v6459 = vadd.f32 %v6457, %v6458
    %v6460 = vrot.slane %v6459, 2
    %v6461 = vadd.f32 %v6459, %v6460
    %v6462 = vrot.slane %v6461, 1
    %v6463 = vadd.f32 %v6461, %v6462
    %v6464 = vadd.f32 %v6233, %v6239
    %v6465 = vadd.f32 %v6464, %v6245
    %v6466 = vadd.f32 %v6465, %v6251
    %v6467 = vadd.f32 %v6466, %v6257
    %v6468 = vadd.f32 %v6467, %v6263
    %v6469 = vadd.f32 %v6468, %v6269
    %v6470 = vadd.f32 %v6469, %v6275
    %v6471 = vrot.slane %v6470, 4
    %v6472 = vadd.f32 %v6470, %v6471
    %v6473 = vrot.slane %v6472, 2
    %v6474 = vadd.f32 %v6472, %v6473
    %v6475 = vrot.slane %v6474, 1
    %v6476 = vadd.f32 %v6474, %v6475
    %v6477 = vadd.f32 %v6234, %v6240
    %v6478 = vadd.f32 %v6477, %v6246
    %v6479 = vadd.f32 %v6478, %v6252
    %v6480 = vadd.f32 %v6479, %v6258
    %v6481 = vadd.f32 %v6480, %v6264
    %v6482 = vadd.f32 %v6481, %v6270
    %v6483 = vadd.f32 %v6482, %v6276
    %v6484 = vrot.slane %v6483, 4
    %v6485 = vadd.f32 %v6483, %v6484
    %v6486 = vrot.slane %v6485, 2
    %v6487 = vadd.f32 %v6485, %v6486
    %v6488 = vrot.slane %v6487, 1
    %v6489 = vadd.f32 %v6487, %v6488
    %v6490 = vadd.f32 %v6235, %v6241
    %v6491 = vadd.f32 %v6490, %v6247
    %v6492 = vadd.f32 %v6491, %v6253
    %v6493 = vadd.f32 %v6492, %v6259
    %v6494 = vadd.f32 %v6493, %v6265
    %v6495 = vadd.f32 %v6494, %v6271
    %v6496 = vadd.f32 %v6495, %v6277
    %v6497 = vrot.slane %v6496, 4
    %v6498 = vadd.f32 %v6496, %v6497
    %v6499 = vrot.slane %v6498, 2
    %v6500 = vadd.f32 %v6498, %v6499
    %v6501 = vrot.slane %v6500, 1
    %v6502 = vadd.f32 %v6500, %v6501
    %v6503 = vadd.f32 %v6236, %v6242
    %v6504 = vadd.f32 %v6503, %v6248
    %v6505 = vadd.f32 %v6504, %v6254
    %v6506 = vadd.f32 %v6505, %v6260
    %v6507 = vadd.f32 %v6506, %v6266
    %v6508 = vadd.f32 %v6507, %v6272
    %v6509 = vadd.f32 %v6508, %v6278
    %v6510 = vrot.slane %v6509, 4
    %v6511 = vadd.f32 %v6509, %v6510
    %v6512 = vrot.slane %v6511, 2
    %v6513 = vadd.f32 %v6511, %v6512
    %v6514 = vrot.slane %v6513, 1
    %v6515 = vadd.f32 %v6513, %v6514
    %v6534 = vrot.slane %v6307, 4
    %v6535 = vrot.slane %v6333, 4
    %v6536 = vrot.slane %v6359, 4
    %v6537 = vrot.slane %v6385, 4
    %v6538 = vrot.slane %v6411, 4
    %v6539 = vrot.slane %v6437, 4
    %v6540 = vrot.slane %v6463, 4
    %v6541 = vrot.slane %v6489, 4
    %v6542 = vrot.slane %v6515, 4
    %vm6543 = vcmask 1043456
    %v6544 = vsel %vm6543, %v6294, %v6534
    %v6545 = vsel %vm6543, %v6320, %v6535
    %v6546 = vsel %vm6543, %v6346, %v6536
    %v6547 = vsel %vm6543, %v6372, %v6537
    %v6548 = vsel %vm6543, %v6398, %v6538
    %v6549 = vsel %vm6543, %v6424, %v6539
    %v6550 = vsel %vm6543, %v6450, %v6540
    %v6551 = vsel %vm6543, %v6476, %v6541
    %v6552 = vsel %vm6543, %v6502, %v6542
    %v6553 = vrot.slane %v6547, 7
    %vm6554 = vcmask 1041409
    %v6555 = vsel %vm6554, %v6553, %v6544
    %vm6556 = vcmask 1045509
    %v6557 = vsel %vm6556, %v6553, %v6555
    %v6558 = vrot.slane %v6550, 6
    %vm6559 = vcmask 1042434
    %v6560 = vsel %vm6559, %v6558, %v6557
    %vm6561 = vcmask 1046534
    %v6562 = vsel %vm6561, %v6558, %v6560
    %v6563 = vrot.slane %v6548, 7
    %v6564 = vsel %vm6554, %v6563, %v6545
    %v6565 = vsel %vm6556, %v6563, %v6564
    %v6566 = vrot.slane %v6551, 6
    %v6567 = vsel %vm6559, %v6566, %v6565
    %v6568 = vsel %vm6561, %v6566, %v6567
    %v6569 = vrot.slane %v6549, 7
    %v6570 = vsel %vm6554, %v6569, %v6546
    %v6571 = vsel %vm6556, %v6569, %v6570
    %v6572 = vrot.slane %v6552, 6
    %v6573 = vsel %vm6559, %v6572, %v6571
    %v6574 = vsel %vm6561, %v6572, %v6573
    %v6578 = vadd.f32 %v6279, %v6562
    %v6579 = vadd.f32 %v6280, %v6568
    %v6580 = vadd.f32 %v6281, %v6574
    %6581 = vst [vmem:[#allocation2] sm:$0x77] %v6578
    %6582 = vst [vmem:[#allocation2 + $0x8] sm:$0x77] %v6579
    %6583 = vst [vmem:[#allocation2 + $0x10] sm:$0x77] %v6580
    // Predicated region
    $region62: #{tpu_custom_call.1} parent=1 // pred_check
      %p6584 = pneg %p131
    $region63: #{tpu_custom_call.1} parent=1 // pred_check_branch
      %6586 = sbr.rel (%p6584) target = $region65
    $region64: #{tpu_custom_call.1} parent=1 // pred_region
      %v6587 = vld [vmem:[#allocation2] sm:$0x77]
      %v6588 = vld [vmem:[#allocation2 + $0x8] sm:$0x77]
      %v6589 = vld [vmem:[#allocation2 + $0x10] sm:$0x77]
      %v6590 = vmul.f32 %v6587, 0.020408163
      %v6591 = vmul.f32 %v6588, 0.020408163
      %v6592 = vmul.f32 %v6589, 0.020408163
      %6596 = vst [vmem:[#allocation1] ss:$2 sm:$0xff] %v6590
      %s6597 = scalar_lea.vmem [#allocation1], 16
      %6598 = vst [vmem:[%s6597] ss:$2 sm:$0xff] %v6591
      %s6599 = scalar_lea.vmem [#allocation1], 32
      %6600 = vst [vmem:[%s6599] ss:$2 sm:$0xff] %v6592
      %v6601 = vld.sshfl [vmem:[#allocation1] sm:$0xff pattern:$0x75316420]
      %v6602 = vld.sshfl [vmem:[#allocation1 + $0x8] sm:$0xff pattern:$0x75316420]
      %v6603 = vld.sshfl [vmem:[#allocation1 + $0x10] sm:$0xff pattern:$0x75316420]
      %v6604 = vld.sshfl [vmem:[#allocation1 + $0x18] sm:$0xff pattern:$0x75316420]
      %v6605 = vld.sshfl [vmem:[#allocation1 + $0x20] sm:$0xff pattern:$0x75316420]
      %v6606 = vld.sshfl [vmem:[#allocation1 + $0x28] sm:$0xff pattern:$0x75316420]
      %v6613 = vpack.c.bf16 %v6601, %v6601
      %v6614 = vpack.c.bf16 %v6602, %v6602
      %v6615 = vpack.c.bf16 %v6603, %v6603
      %v6616 = vpack.c.bf16 %v6604, %v6604
      %v6617 = vpack.c.bf16 %v6605, %v6605
      %v6618 = vpack.c.bf16 %v6606, %v6606
      %v6619 = vld [vmem:[#allocation8] sm:$0xff]
      %v6620 = vld [vmem:[#allocation8 + $0x8] sm:$0xff]
      %v6621 = vld [vmem:[#allocation8 + $0x10] sm:$0xff]
      %v6622 = vld [vmem:[#allocation8 + $0x18] sm:$0xff]
      %v6623 = vld [vmem:[#allocation8 + $0x20] sm:$0xff]
      %v6624 = vld [vmem:[#allocation8 + $0x28] sm:$0xff]
      %v6625 = vld [vmem:[#allocation8 + $0x30] sm:$0xff]
      %v6626 = vld [vmem:[#allocation8 + $0x38] sm:$0xff]
      %v6627 = vld [vmem:[#allocation8 + $0x40] sm:$0xff]
      %v6628 = vld [vmem:[#allocation8 + $0x48] sm:$0xff]
      %v6629 = vld [vmem:[#allocation8 + $0x50] sm:$0xff]
      %v6630 = vld [vmem:[#allocation8 + $0x58] sm:$0xff]
      %v6631 = vld [vmem:[#allocation8 + $0x60] sm:$0xff]
      %v6632 = vld [vmem:[#allocation8 + $0x68] sm:$0xff]
      %v6633 = vld [vmem:[#allocation8 + $0x70] sm:$0xff]
      %v6634 = vld [vmem:[#allocation8 + $0x78] sm:$0xff]
      %v6635 = vld [vmem:[#allocation8 + $0x80] sm:$0xff]
      %v6636 = vld [vmem:[#allocation8 + $0x88] sm:$0xff]
      %v6637 = vld [vmem:[#allocation8 + $0x90] sm:$0xff]
      %v6638 = vld [vmem:[#allocation8 + $0x98] sm:$0xff]
      %v6639 = vld [vmem:[#allocation8 + $0xa0] sm:$0xff]
      %v6640 = vld [vmem:[#allocation8 + $0xa8] sm:$0xff]
      %v6641 = vld [vmem:[#allocation8 + $0xb0] sm:$0xff]
      %v6642 = vld [vmem:[#allocation8 + $0xb8] sm:$0xff]
      %v6643 = vld [vmem:[#allocation8 + $0xc0] sm:$0xff]
      %v6644 = vld [vmem:[#allocation8 + $0xc8] sm:$0xff]
      %v6645 = vld [vmem:[#allocation8 + $0xd0] sm:$0xff]
      %v6646 = vld [vmem:[#allocation8 + $0xd8] sm:$0xff]
      %v6647 = vld [vmem:[#allocation8 + $0xe0] sm:$0xff]
      %v6648 = vld [vmem:[#allocation8 + $0xe8] sm:$0xff]
      %v6649 = vld [vmem:[#allocation8 + $0xf0] sm:$0xff]
      %v6650 = vld [vmem:[#allocation8 + $0xf8] sm:$0xff]
      %v6651 = vld [vmem:[#allocation8 + $0x100] sm:$0xff]
      %v6652 = vld [vmem:[#allocation8 + $0x108] sm:$0xff]
      %v6653 = vld [vmem:[#allocation8 + $0x110] sm:$0xff]
      %v6654 = vld [vmem:[#allocation8 + $0x118] sm:$0xff]
      %v6655 = vld [vmem:[#allocation8 + $0x120] sm:$0xff]
      %v6656 = vld [vmem:[#allocation8 + $0x128] sm:$0xff]
      %v6657 = vld [vmem:[#allocation8 + $0x130] sm:$0xff]
      %v6658 = vld [vmem:[#allocation8 + $0x138] sm:$0xff]
      %v6659 = vld [vmem:[#allocation8 + $0x140] sm:$0xff]
      %v6660 = vld [vmem:[#allocation8 + $0x148] sm:$0xff]
      %v6661 = vld [vmem:[#allocation8 + $0x150] sm:$0xff]
      %v6662 = vld [vmem:[#allocation8 + $0x158] sm:$0xff]
      %v6663 = vld [vmem:[#allocation8 + $0x160] sm:$0xff]
      %v6664 = vld [vmem:[#allocation8 + $0x168] sm:$0xff]
      %v6665 = vld [vmem:[#allocation8 + $0x170] sm:$0xff]
      %v6666 = vld [vmem:[#allocation8 + $0x178] sm:$0xff]
      %v6667 = vld [vmem:[#allocation8 + $0x180] sm:$0xff]
      %v6668 = vld [vmem:[#allocation8 + $0x188] sm:$0xff]
      %v6669 = vld [vmem:[#allocation8 + $0x190] sm:$0xff]
      %v6670 = vld [vmem:[#allocation8 + $0x198] sm:$0xff]
      %v6671 = vld [vmem:[#allocation8 + $0x1a0] sm:$0xff]
      %v6672 = vld [vmem:[#allocation8 + $0x1a8] sm:$0xff]
      %v6673 = vld [vmem:[#allocation8 + $0x1b0] sm:$0xff]
      %v6674 = vld [vmem:[#allocation8 + $0x1b8] sm:$0xff]
      %v6675 = vld [vmem:[#allocation8 + $0x1c0] sm:$0xff]
      %v6676 = vld [vmem:[#allocation8 + $0x1c8] sm:$0xff]
      %v6677 = vld [vmem:[#allocation8 + $0x1d0] sm:$0xff]
      %v6678 = vld [vmem:[#allocation8 + $0x1d8] sm:$0xff]
      %v6679 = vld [vmem:[#allocation8 + $0x1e0] sm:$0xff]
      %v6680 = vld [vmem:[#allocation8 + $0x1e8] sm:$0xff]
      %v6681 = vld [vmem:[#allocation8 + $0x1f0] sm:$0xff]
      %v6682 = vld [vmem:[#allocation8 + $0x1f8] sm:$0xff]
      %v6683 = vld [vmem:[#allocation8 + $0x200] sm:$0xff]
      %v6684 = vld [vmem:[#allocation8 + $0x208] sm:$0xff]
      %v6685 = vld [vmem:[#allocation8 + $0x210] sm:$0xff]
      %v6686 = vld [vmem:[#allocation8 + $0x218] sm:$0xff]
      %v6687 = vld [vmem:[#allocation8 + $0x220] sm:$0xff]
      %v6688 = vld [vmem:[#allocation8 + $0x228] sm:$0xff]
      %v6689 = vld [vmem:[#allocation8 + $0x230] sm:$0xff]
      %v6690 = vld [vmem:[#allocation8 + $0x238] sm:$0xff]
      %v6691 = vld [vmem:[#allocation8 + $0x240] sm:$0xff]
      %v6692 = vld [vmem:[#allocation8 + $0x248] sm:$0xff]
      %v6693 = vld [vmem:[#allocation8 + $0x250] sm:$0xff]
      %v6694 = vld [vmem:[#allocation8 + $0x258] sm:$0xff]
      %v6695 = vld [vmem:[#allocation8 + $0x260] sm:$0xff]
      %v6696 = vld [vmem:[#allocation8 + $0x268] sm:$0xff]
      %v6697 = vld [vmem:[#allocation8 + $0x270] sm:$0xff]
      %v6698 = vld [vmem:[#allocation8 + $0x278] sm:$0xff]
      %v6699 = vld [vmem:[#allocation8 + $0x280] sm:$0xff]
      %v6700 = vld [vmem:[#allocation8 + $0x288] sm:$0xff]
      %v6701 = vld [vmem:[#allocation8 + $0x290] sm:$0xff]
      %v6702 = vld [vmem:[#allocation8 + $0x298] sm:$0xff]
      %v6703 = vld [vmem:[#allocation8 + $0x2a0] sm:$0xff]
      %v6704 = vld [vmem:[#allocation8 + $0x2a8] sm:$0xff]
      %v6705 = vld [vmem:[#allocation8 + $0x2b0] sm:$0xff]
      %v6706 = vld [vmem:[#allocation8 + $0x2b8] sm:$0xff]
      %v6707 = vld [vmem:[#allocation8 + $0x2c0] sm:$0xff]
      %v6708 = vld [vmem:[#allocation8 + $0x2c8] sm:$0xff]
      %v6709 = vld [vmem:[#allocation8 + $0x2d0] sm:$0xff]
      %v6710 = vld [vmem:[#allocation8 + $0x2d8] sm:$0xff]
      %v6711 = vld [vmem:[#allocation8 + $0x2e0] sm:$0xff]
      %v6712 = vld [vmem:[#allocation8 + $0x2e8] sm:$0xff]
      %v6713 = vld [vmem:[#allocation8 + $0x2f0] sm:$0xff]
      %v6714 = vld [vmem:[#allocation8 + $0x2f8] sm:$0xff]
      %v6715 = vld [vmem:[#allocation8 + $0x300] sm:$0xff]
      %v6716 = vld [vmem:[#allocation8 + $0x308] sm:$0xff]
      %v6717 = vld [vmem:[#allocation8 + $0x310] sm:$0xff]
      %v6718 = vld [vmem:[#allocation8 + $0x318] sm:$0xff]
      %v6719 = vld [vmem:[#allocation8 + $0x320] sm:$0xff]
      %v6720 = vld [vmem:[#allocation8 + $0x328] sm:$0xff]
      %v6721 = vld [vmem:[#allocation8 + $0x330] sm:$0xff]
      %v6722 = vld [vmem:[#allocation8 + $0x338] sm:$0xff]
      %v6723 = vld [vmem:[#allocation8 + $0x340] sm:$0xff]
      %v6724 = vld [vmem:[#allocation8 + $0x348] sm:$0xff]
      %v6725 = vld [vmem:[#allocation8 + $0x350] sm:$0xff]
      %v6726 = vld [vmem:[#allocation8 + $0x358] sm:$0xff]
      %v6727 = vld [vmem:[#allocation8 + $0x360] sm:$0xff]
      %v6728 = vld [vmem:[#allocation8 + $0x368] sm:$0xff]
      %v6729 = vld [vmem:[#allocation8 + $0x370] sm:$0xff]
      %v6730 = vld [vmem:[#allocation8 + $0x378] sm:$0xff]
      %v6731 = vld [vmem:[#allocation8 + $0x380] sm:$0xff]
      %v6732 = vld [vmem:[#allocation8 + $0x388] sm:$0xff]
      %v6733 = vld [vmem:[#allocation8 + $0x390] sm:$0xff]
      %v6734 = vld [vmem:[#allocation8 + $0x398] sm:$0xff]
      %v6735 = vld [vmem:[#allocation8 + $0x3a0] sm:$0xff]
      %v6736 = vld [vmem:[#allocation8 + $0x3a8] sm:$0xff]
      %v6737 = vld [vmem:[#allocation8 + $0x3b0] sm:$0xff]
      %v6738 = vld [vmem:[#allocation8 + $0x3b8] sm:$0xff]
      %v6739 = vld [vmem:[#allocation8 + $0x3c0] sm:$0xff]
      %v6740 = vld [vmem:[#allocation8 + $0x3c8] sm:$0xff]
      %v6741 = vld [vmem:[#allocation8 + $0x3d0] sm:$0xff]
      %v6742 = vld [vmem:[#allocation8 + $0x3d8] sm:$0xff]
      %v6743 = vld [vmem:[#allocation8 + $0x3e0] sm:$0xff]
      %v6744 = vld [vmem:[#allocation8 + $0x3e8] sm:$0xff]
      %v6745 = vld [vmem:[#allocation8 + $0x3f0] sm:$0xff]
      %v6746 = vld [vmem:[#allocation8 + $0x3f8] sm:$0xff]
      %v6747 = vld [vmem:[#allocation8 + $0x400] sm:$0xff]
      %v6748 = vld [vmem:[#allocation8 + $0x408] sm:$0xff]
      %v6749 = vld [vmem:[#allocation8 + $0x410] sm:$0xff]
      %v6750 = vld [vmem:[#allocation8 + $0x418] sm:$0xff]
      %v6751 = vld [vmem:[#allocation8 + $0x420] sm:$0xff]
      %v6752 = vld [vmem:[#allocation8 + $0x428] sm:$0xff]
      %v6753 = vld [vmem:[#allocation8 + $0x430] sm:$0xff]
      %v6754 = vld [vmem:[#allocation8 + $0x438] sm:$0xff]
      %v6755 = vld [vmem:[#allocation8 + $0x440] sm:$0xff]
      %v6756 = vld [vmem:[#allocation8 + $0x448] sm:$0xff]
      %v6757 = vld [vmem:[#allocation8 + $0x450] sm:$0xff]
      %v6758 = vld [vmem:[#allocation8 + $0x458] sm:$0xff]
      %v6759 = vld [vmem:[#allocation8 + $0x460] sm:$0xff]
      %v6760 = vld [vmem:[#allocation8 + $0x468] sm:$0xff]
      %v6761 = vld [vmem:[#allocation8 + $0x470] sm:$0xff]
      %v6762 = vld [vmem:[#allocation8 + $0x478] sm:$0xff]
      %v6763 = vld [vmem:[#allocation8 + $0x480] sm:$0xff]
      %v6764 = vld [vmem:[#allocation8 + $0x488] sm:$0xff]
      %v6765 = vld [vmem:[#allocation8 + $0x490] sm:$0xff]
      %v6766 = vld [vmem:[#allocation8 + $0x498] sm:$0xff]
      %v6767 = vld [vmem:[#allocation8 + $0x4a0] sm:$0xff]
      %v6768 = vld [vmem:[#allocation8 + $0x4a8] sm:$0xff]
      %v6769 = vld [vmem:[#allocation8 + $0x4b0] sm:$0xff]
      %v6770 = vld [vmem:[#allocation8 + $0x4b8] sm:$0xff]
      %v6771 = vld [vmem:[#allocation8 + $0x4c0] sm:$0xff]
      %v6772 = vld [vmem:[#allocation8 + $0x4c8] sm:$0xff]
      %v6773 = vld [vmem:[#allocation8 + $0x4d0] sm:$0xff]
      %v6774 = vld [vmem:[#allocation8 + $0x4d8] sm:$0xff]
      %v6775 = vld [vmem:[#allocation8 + $0x4e0] sm:$0xff]
      %v6776 = vld [vmem:[#allocation8 + $0x4e8] sm:$0xff]
      %v6777 = vld [vmem:[#allocation8 + $0x4f0] sm:$0xff]
      %v6778 = vld [vmem:[#allocation8 + $0x4f8] sm:$0xff]
      %v6779 = vld [vmem:[#allocation8 + $0x500] sm:$0xff]
      %v6780 = vld [vmem:[#allocation8 + $0x508] sm:$0xff]
      %v6781 = vld [vmem:[#allocation8 + $0x510] sm:$0xff]
      %v6782 = vld [vmem:[#allocation8 + $0x518] sm:$0xff]
      %v6783 = vld [vmem:[#allocation8 + $0x520] sm:$0xff]
      %v6784 = vld [vmem:[#allocation8 + $0x528] sm:$0xff]
      %v6785 = vld [vmem:[#allocation8 + $0x530] sm:$0xff]
      %v6786 = vld [vmem:[#allocation8 + $0x538] sm:$0xff]
      %v6787 = vld [vmem:[#allocation8 + $0x540] sm:$0xff]
      %v6788 = vld [vmem:[#allocation8 + $0x548] sm:$0xff]
      %v6789 = vld [vmem:[#allocation8 + $0x550] sm:$0xff]
      %v6790 = vld [vmem:[#allocation8 + $0x558] sm:$0xff]
      %v6791 = vld [vmem:[#allocation8 + $0x560] sm:$0xff]
      %v6792 = vld [vmem:[#allocation8 + $0x568] sm:$0xff]
      %v6793 = vld [vmem:[#allocation8 + $0x570] sm:$0xff]
      %v6794 = vld [vmem:[#allocation8 + $0x578] sm:$0xff]
      %v6795 = vld [vmem:[#allocation8 + $0x580] sm:$0xff]
      %v6796 = vld [vmem:[#allocation8 + $0x588] sm:$0xff]
      %v6797 = vld [vmem:[#allocation8 + $0x590] sm:$0xff]
      %v6798 = vld [vmem:[#allocation8 + $0x598] sm:$0xff]
      %v6799 = vld [vmem:[#allocation8 + $0x5a0] sm:$0xff]
      %v6800 = vld [vmem:[#allocation8 + $0x5a8] sm:$0xff]
      %v6801 = vld [vmem:[#allocation8 + $0x5b0] sm:$0xff]
      %v6802 = vld [vmem:[#allocation8 + $0x5b8] sm:$0xff]
      %v6803 = vld [vmem:[#allocation8 + $0x5c0] sm:$0xff]
      %v6804 = vld [vmem:[#allocation8 + $0x5c8] sm:$0xff]
      %v6805 = vld [vmem:[#allocation8 + $0x5d0] sm:$0xff]
      %v6806 = vld [vmem:[#allocation8 + $0x5d8] sm:$0xff]
      %v6807 = vld [vmem:[#allocation8 + $0x5e0] sm:$0xff]
      %v6808 = vld [vmem:[#allocation8 + $0x5e8] sm:$0xff]
      %v6809 = vld [vmem:[#allocation8 + $0x5f0] sm:$0xff]
      %v6810 = vld [vmem:[#allocation8 + $0x5f8] sm:$0xff]
      %v6811 = vld [vmem:[#allocation10] sm:$0xf]
      %v6813 = vperm.slane %v6811, 0
      %v6814 = vperm.slane %v6811, 1
      %v6815 = vperm.slane %v6811, 2
      %v6816 = vperm.slane %v6811, 3
      %v7013 = vunpack.c.l.b16 %v6619
      %v7014 = vunpack.c.h.b16 %v6619
      %v7015 = vunpack.c.l.b16 %v6620
      %v7016 = vunpack.c.h.b16 %v6620
      %v7017 = vunpack.c.l.b16 %v6621
      %v7018 = vunpack.c.h.b16 %v6621
      %v7019 = vunpack.c.l.b16 %v6622
      %v7020 = vunpack.c.h.b16 %v6622
      %v7021 = vunpack.c.l.b16 %v6623
      %v7022 = vunpack.c.h.b16 %v6623
      %v7023 = vunpack.c.l.b16 %v6624
      %v7024 = vunpack.c.h.b16 %v6624
      %v7025 = vunpack.c.l.b16 %v6625
      %v7026 = vunpack.c.h.b16 %v6625
      %v7027 = vunpack.c.l.b16 %v6626
      %v7028 = vunpack.c.h.b16 %v6626
      %v7029 = vunpack.c.l.b16 %v6627
      %v7030 = vunpack.c.h.b16 %v6627
      %v7031 = vunpack.c.l.b16 %v6628
      %v7032 = vunpack.c.h.b16 %v6628
      %v7033 = vunpack.c.l.b16 %v6629
      %v7034 = vunpack.c.h.b16 %v6629
      %v7035 = vunpack.c.l.b16 %v6630
      %v7036 = vunpack.c.h.b16 %v6630
      %v7037 = vunpack.c.l.b16 %v6631
      %v7038 = vunpack.c.h.b16 %v6631
      %v7039 = vunpack.c.l.b16 %v6632
      %v7040 = vunpack.c.h.b16 %v6632
      %v7041 = vunpack.c.l.b16 %v6633
      %v7042 = vunpack.c.h.b16 %v6633
      %v7043 = vunpack.c.l.b16 %v6634
      %v7044 = vunpack.c.h.b16 %v6634
      %v7045 = vunpack.c.l.b16 %v6635
      %v7046 = vunpack.c.h.b16 %v6635
      %v7047 = vunpack.c.l.b16 %v6636
      %v7048 = vunpack.c.h.b16 %v6636
      %v7049 = vunpack.c.l.b16 %v6637
      %v7050 = vunpack.c.h.b16 %v6637
      %v7051 = vunpack.c.l.b16 %v6638
      %v7052 = vunpack.c.h.b16 %v6638
      %v7053 = vunpack.c.l.b16 %v6639
      %v7054 = vunpack.c.h.b16 %v6639
      %v7055 = vunpack.c.l.b16 %v6640
      %v7056 = vunpack.c.h.b16 %v6640
      %v7057 = vunpack.c.l.b16 %v6641
      %v7058 = vunpack.c.h.b16 %v6641
      %v7059 = vunpack.c.l.b16 %v6642
      %v7060 = vunpack.c.h.b16 %v6642
      %v7061 = vunpack.c.l.b16 %v6643
      %v7062 = vunpack.c.h.b16 %v6643
      %v7063 = vunpack.c.l.b16 %v6644
      %v7064 = vunpack.c.h.b16 %v6644
      %v7065 = vunpack.c.l.b16 %v6645
      %v7066 = vunpack.c.h.b16 %v6645
      %v7067 = vunpack.c.l.b16 %v6646
      %v7068 = vunpack.c.h.b16 %v6646
      %v7069 = vunpack.c.l.b16 %v6647
      %v7070 = vunpack.c.h.b16 %v6647
      %v7071 = vunpack.c.l.b16 %v6648
      %v7072 = vunpack.c.h.b16 %v6648
      %v7073 = vunpack.c.l.b16 %v6649
      %v7074 = vunpack.c.h.b16 %v6649
      %v7075 = vunpack.c.l.b16 %v6650
      %v7076 = vunpack.c.h.b16 %v6650
      %v7077 = vunpack.c.l.b16 %v6651
      %v7078 = vunpack.c.h.b16 %v6651
      %v7079 = vunpack.c.l.b16 %v6652
      %v7080 = vunpack.c.h.b16 %v6652
      %v7081 = vunpack.c.l.b16 %v6653
      %v7082 = vunpack.c.h.b16 %v6653
      %v7083 = vunpack.c.l.b16 %v6654
      %v7084 = vunpack.c.h.b16 %v6654
      %v7085 = vunpack.c.l.b16 %v6655
      %v7086 = vunpack.c.h.b16 %v6655
      %v7087 = vunpack.c.l.b16 %v6656
      %v7088 = vunpack.c.h.b16 %v6656
      %v7089 = vunpack.c.l.b16 %v6657
      %v7090 = vunpack.c.h.b16 %v6657
      %v7091 = vunpack.c.l.b16 %v6658
      %v7092 = vunpack.c.h.b16 %v6658
      %v7093 = vunpack.c.l.b16 %v6659
      %v7094 = vunpack.c.h.b16 %v6659
      %v7095 = vunpack.c.l.b16 %v6660
      %v7096 = vunpack.c.h.b16 %v6660
      %v7097 = vunpack.c.l.b16 %v6661
      %v7098 = vunpack.c.h.b16 %v6661
      %v7099 = vunpack.c.l.b16 %v6662
      %v7100 = vunpack.c.h.b16 %v6662
      %v7101 = vunpack.c.l.b16 %v6663
      %v7102 = vunpack.c.h.b16 %v6663
      %v7103 = vunpack.c.l.b16 %v6664
      %v7104 = vunpack.c.h.b16 %v6664
      %v7105 = vunpack.c.l.b16 %v6665
      %v7106 = vunpack.c.h.b16 %v6665
      %v7107 = vunpack.c.l.b16 %v6666
      %v7108 = vunpack.c.h.b16 %v6666
      %v7109 = vunpack.c.l.b16 %v6667
      %v7110 = vunpack.c.h.b16 %v6667
      %v7111 = vunpack.c.l.b16 %v6668
      %v7112 = vunpack.c.h.b16 %v6668
      %v7113 = vunpack.c.l.b16 %v6669
      %v7114 = vunpack.c.h.b16 %v6669
      %v7115 = vunpack.c.l.b16 %v6670
      %v7116 = vunpack.c.h.b16 %v6670
      %v7117 = vunpack.c.l.b16 %v6671
      %v7118 = vunpack.c.h.b16 %v6671
      %v7119 = vunpack.c.l.b16 %v6672
      %v7120 = vunpack.c.h.b16 %v6672
      %v7121 = vunpack.c.l.b16 %v6673
      %v7122 = vunpack.c.h.b16 %v6673
      %v7123 = vunpack.c.l.b16 %v6674
      %v7124 = vunpack.c.h.b16 %v6674
      %v7125 = vunpack.c.l.b16 %v6675
      %v7126 = vunpack.c.h.b16 %v6675
      %v7127 = vunpack.c.l.b16 %v6676
      %v7128 = vunpack.c.h.b16 %v6676
      %v7129 = vunpack.c.l.b16 %v6677
      %v7130 = vunpack.c.h.b16 %v6677
      %v7131 = vunpack.c.l.b16 %v6678
      %v7132 = vunpack.c.h.b16 %v6678
      %v7133 = vunpack.c.l.b16 %v6679
      %v7134 = vunpack.c.h.b16 %v6679
      %v7135 = vunpack.c.l.b16 %v6680
      %v7136 = vunpack.c.h.b16 %v6680
      %v7137 = vunpack.c.l.b16 %v6681
      %v7138 = vunpack.c.h.b16 %v6681
      %v7139 = vunpack.c.l.b16 %v6682
      %v7140 = vunpack.c.h.b16 %v6682
      %v7141 = vunpack.c.l.b16 %v6683
      %v7142 = vunpack.c.h.b16 %v6683
      %v7143 = vunpack.c.l.b16 %v6684
      %v7144 = vunpack.c.h.b16 %v6684
      %v7145 = vunpack.c.l.b16 %v6685
      %v7146 = vunpack.c.h.b16 %v6685
      %v7147 = vunpack.c.l.b16 %v6686
      %v7148 = vunpack.c.h.b16 %v6686
      %v7149 = vunpack.c.l.b16 %v6687
      %v7150 = vunpack.c.h.b16 %v6687
      %v7151 = vunpack.c.l.b16 %v6688
      %v7152 = vunpack.c.h.b16 %v6688
      %v7153 = vunpack.c.l.b16 %v6689
      %v7154 = vunpack.c.h.b16 %v6689
      %v7155 = vunpack.c.l.b16 %v6690
      %v7156 = vunpack.c.h.b16 %v6690
      %v7157 = vunpack.c.l.b16 %v6691
      %v7158 = vunpack.c.h.b16 %v6691
      %v7159 = vunpack.c.l.b16 %v6692
      %v7160 = vunpack.c.h.b16 %v6692
      %v7161 = vunpack.c.l.b16 %v6693
      %v7162 = vunpack.c.h.b16 %v6693
      %v7163 = vunpack.c.l.b16 %v6694
      %v7164 = vunpack.c.h.b16 %v6694
      %v7165 = vunpack.c.l.b16 %v6695
      %v7166 = vunpack.c.h.b16 %v6695
      %v7167 = vunpack.c.l.b16 %v6696
      %v7168 = vunpack.c.h.b16 %v6696
      %v7169 = vunpack.c.l.b16 %v6697
      %v7170 = vunpack.c.h.b16 %v6697
      %v7171 = vunpack.c.l.b16 %v6698
      %v7172 = vunpack.c.h.b16 %v6698
      %v7173 = vunpack.c.l.b16 %v6699
      %v7174 = vunpack.c.h.b16 %v6699
      %v7175 = vunpack.c.l.b16 %v6700
      %v7176 = vunpack.c.h.b16 %v6700
      %v7177 = vunpack.c.l.b16 %v6701
      %v7178 = vunpack.c.h.b16 %v6701
      %v7179 = vunpack.c.l.b16 %v6702
      %v7180 = vunpack.c.h.b16 %v6702
      %v7181 = vunpack.c.l.b16 %v6703
      %v7182 = vunpack.c.h.b16 %v6703
      %v7183 = vunpack.c.l.b16 %v6704
      %v7184 = vunpack.c.h.b16 %v6704
      %v7185 = vunpack.c.l.b16 %v6705
      %v7186 = vunpack.c.h.b16 %v6705
      %v7187 = vunpack.c.l.b16 %v6706
      %v7188 = vunpack.c.h.b16 %v6706
      %v7189 = vunpack.c.l.b16 %v6707
      %v7190 = vunpack.c.h.b16 %v6707
      %v7191 = vunpack.c.l.b16 %v6708
      %v7192 = vunpack.c.h.b16 %v6708
      %v7193 = vunpack.c.l.b16 %v6709
      %v7194 = vunpack.c.h.b16 %v6709
      %v7195 = vunpack.c.l.b16 %v6710
      %v7196 = vunpack.c.h.b16 %v6710
      %v7197 = vunpack.c.l.b16 %v6711
      %v7198 = vunpack.c.h.b16 %v6711
      %v7199 = vunpack.c.l.b16 %v6712
      %v7200 = vunpack.c.h.b16 %v6712
      %v7201 = vunpack.c.l.b16 %v6713
      %v7202 = vunpack.c.h.b16 %v6713
      %v7203 = vunpack.c.l.b16 %v6714
      %v7204 = vunpack.c.h.b16 %v6714
      %v7205 = vunpack.c.l.b16 %v6715
      %v7206 = vunpack.c.h.b16 %v6715
      %v7207 = vunpack.c.l.b16 %v6716
      %v7208 = vunpack.c.h.b16 %v6716
      %v7209 = vunpack.c.l.b16 %v6717
      %v7210 = vunpack.c.h.b16 %v6717
      %v7211 = vunpack.c.l.b16 %v6718
      %v7212 = vunpack.c.h.b16 %v6718
      %v7213 = vunpack.c.l.b16 %v6719
      %v7214 = vunpack.c.h.b16 %v6719
      %v7215 = vunpack.c.l.b16 %v6720
      %v7216 = vunpack.c.h.b16 %v6720
      %v7217 = vunpack.c.l.b16 %v6721
      %v7218 = vunpack.c.h.b16 %v6721
      %v7219 = vunpack.c.l.b16 %v6722
      %v7220 = vunpack.c.h.b16 %v6722
      %v7221 = vunpack.c.l.b16 %v6723
      %v7222 = vunpack.c.h.b16 %v6723
      %v7223 = vunpack.c.l.b16 %v6724
      %v7224 = vunpack.c.h.b16 %v6724
      %v7225 = vunpack.c.l.b16 %v6725
      %v7226 = vunpack.c.h.b16 %v6725
      %v7227 = vunpack.c.l.b16 %v6726
      %v7228 = vunpack.c.h.b16 %v6726
      %v7229 = vunpack.c.l.b16 %v6727
      %v7230 = vunpack.c.h.b16 %v6727
      %v7231 = vunpack.c.l.b16 %v6728
      %v7232 = vunpack.c.h.b16 %v6728
      %v7233 = vunpack.c.l.b16 %v6729
      %v7234 = vunpack.c.h.b16 %v6729
      %v7235 = vunpack.c.l.b16 %v6730
      %v7236 = vunpack.c.h.b16 %v6730
      %v7237 = vunpack.c.l.b16 %v6731
      %v7238 = vunpack.c.h.b16 %v6731
      %v7239 = vunpack.c.l.b16 %v6732
      %v7240 = vunpack.c.h.b16 %v6732
      %v7241 = vunpack.c.l.b16 %v6733
      %v7242 = vunpack.c.h.b16 %v6733
      %v7243 = vunpack.c.l.b16 %v6734
      %v7244 = vunpack.c.h.b16 %v6734
      %v7245 = vunpack.c.l.b16 %v6735
      %v7246 = vunpack.c.h.b16 %v6735
      %v7247 = vunpack.c.l.b16 %v6736
      %v7248 = vunpack.c.h.b16 %v6736
      %v7249 = vunpack.c.l.b16 %v6737
      %v7250 = vunpack.c.h.b16 %v6737
      %v7251 = vunpack.c.l.b16 %v6738
      %v7252 = vunpack.c.h.b16 %v6738
      %v7253 = vunpack.c.l.b16 %v6739
      %v7254 = vunpack.c.h.b16 %v6739
      %v7255 = vunpack.c.l.b16 %v6740
      %v7256 = vunpack.c.h.b16 %v6740
      %v7257 = vunpack.c.l.b16 %v6741
      %v7258 = vunpack.c.h.b16 %v6741
      %v7259 = vunpack.c.l.b16 %v6742
      %v7260 = vunpack.c.h.b16 %v6742
      %v7261 = vunpack.c.l.b16 %v6743
      %v7262 = vunpack.c.h.b16 %v6743
      %v7263 = vunpack.c.l.b16 %v6744
      %v7264 = vunpack.c.h.b16 %v6744
      %v7265 = vunpack.c.l.b16 %v6745
      %v7266 = vunpack.c.h.b16 %v6745
      %v7267 = vunpack.c.l.b16 %v6746
      %v7268 = vunpack.c.h.b16 %v6746
      %v7269 = vunpack.c.l.b16 %v6747
      %v7270 = vunpack.c.h.b16 %v6747
      %v7271 = vunpack.c.l.b16 %v6748
      %v7272 = vunpack.c.h.b16 %v6748
      %v7273 = vunpack.c.l.b16 %v6749
      %v7274 = vunpack.c.h.b16 %v6749
      %v7275 = vunpack.c.l.b16 %v6750
      %v7276 = vunpack.c.h.b16 %v6750
      %v7277 = vunpack.c.l.b16 %v6751
      %v7278 = vunpack.c.h.b16 %v6751
      %v7279 = vunpack.c.l.b16 %v6752
      %v7280 = vunpack.c.h.b16 %v6752
      %v7281 = vunpack.c.l.b16 %v6753
      %v7282 = vunpack.c.h.b16 %v6753
      %v7283 = vunpack.c.l.b16 %v6754
      %v7284 = vunpack.c.h.b16 %v6754
      %v7285 = vunpack.c.l.b16 %v6755
      %v7286 = vunpack.c.h.b16 %v6755
      %v7287 = vunpack.c.l.b16 %v6756
      %v7288 = vunpack.c.h.b16 %v6756
      %v7289 = vunpack.c.l.b16 %v6757
      %v7290 = vunpack.c.h.b16 %v6757
      %v7291 = vunpack.c.l.b16 %v6758
      %v7292 = vunpack.c.h.b16 %v6758
      %v7293 = vunpack.c.l.b16 %v6759
      %v7294 = vunpack.c.h.b16 %v6759
      %v7295 = vunpack.c.l.b16 %v6760
      %v7296 = vunpack.c.h.b16 %v6760
      %v7297 = vunpack.c.l.b16 %v6761
      %v7298 = vunpack.c.h.b16 %v6761
      %v7299 = vunpack.c.l.b16 %v6762
      %v7300 = vunpack.c.h.b16 %v6762
      %v7301 = vunpack.c.l.b16 %v6763
      %v7302 = vunpack.c.h.b16 %v6763
      %v7303 = vunpack.c.l.b16 %v6764
      %v7304 = vunpack.c.h.b16 %v6764
      %v7305 = vunpack.c.l.b16 %v6765
      %v7306 = vunpack.c.h.b16 %v6765
      %v7307 = vunpack.c.l.b16 %v6766
      %v7308 = vunpack.c.h.b16 %v6766
      %v7309 = vunpack.c.l.b16 %v6767
      %v7310 = vunpack.c.h.b16 %v6767
      %v7311 = vunpack.c.l.b16 %v6768
      %v7312 = vunpack.c.h.b16 %v6768
      %v7313 = vunpack.c.l.b16 %v6769
      %v7314 = vunpack.c.h.b16 %v6769
      %v7315 = vunpack.c.l.b16 %v6770
      %v7316 = vunpack.c.h.b16 %v6770
      %v7317 = vunpack.c.l.b16 %v6771
      %v7318 = vunpack.c.h.b16 %v6771
      %v7319 = vunpack.c.l.b16 %v6772
      %v7320 = vunpack.c.h.b16 %v6772
      %v7321 = vunpack.c.l.b16 %v6773
      %v7322 = vunpack.c.h.b16 %v6773
      %v7323 = vunpack.c.l.b16 %v6774
      %v7324 = vunpack.c.h.b16 %v6774
      %v7325 = vunpack.c.l.b16 %v6775
      %v7326 = vunpack.c.h.b16 %v6775
      %v7327 = vunpack.c.l.b16 %v6776
      %v7328 = vunpack.c.h.b16 %v6776
      %v7329 = vunpack.c.l.b16 %v6777
      %v7330 = vunpack.c.h.b16 %v6777
      %v7331 = vunpack.c.l.b16 %v6778
      %v7332 = vunpack.c.h.b16 %v6778
      %v7333 = vunpack.c.l.b16 %v6779
      %v7334 = vunpack.c.h.b16 %v6779
      %v7335 = vunpack.c.l.b16 %v6780
      %v7336 = vunpack.c.h.b16 %v6780
      %v7337 = vunpack.c.l.b16 %v6781
      %v7338 = vunpack.c.h.b16 %v6781
      %v7339 = vunpack.c.l.b16 %v6782
      %v7340 = vunpack.c.h.b16 %v6782
      %v7341 = vunpack.c.l.b16 %v6783
      %v7342 = vunpack.c.h.b16 %v6783
      %v7343 = vunpack.c.l.b16 %v6784
      %v7344 = vunpack.c.h.b16 %v6784
      %v7345 = vunpack.c.l.b16 %v6785
      %v7346 = vunpack.c.h.b16 %v6785
      %v7347 = vunpack.c.l.b16 %v6786
      %v7348 = vunpack.c.h.b16 %v6786
      %v7349 = vunpack.c.l.b16 %v6787
      %v7350 = vunpack.c.h.b16 %v6787
      %v7351 = vunpack.c.l.b16 %v6788
      %v7352 = vunpack.c.h.b16 %v6788
      %v7353 = vunpack.c.l.b16 %v6789
      %v7354 = vunpack.c.h.b16 %v6789
      %v7355 = vunpack.c.l.b16 %v6790
      %v7356 = vunpack.c.h.b16 %v6790
      %v7357 = vunpack.c.l.b16 %v6791
      %v7358 = vunpack.c.h.b16 %v6791
      %v7359 = vunpack.c.l.b16 %v6792
      %v7360 = vunpack.c.h.b16 %v6792
      %v7361 = vunpack.c.l.b16 %v6793
      %v7362 = vunpack.c.h.b16 %v6793
      %v7363 = vunpack.c.l.b16 %v6794
      %v7364 = vunpack.c.h.b16 %v6794
      %v7365 = vunpack.c.l.b16 %v6795
      %v7366 = vunpack.c.h.b16 %v6795
      %v7367 = vunpack.c.l.b16 %v6796
      %v7368 = vunpack.c.h.b16 %v6796
      %v7369 = vunpack.c.l.b16 %v6797
      %v7370 = vunpack.c.h.b16 %v6797
      %v7371 = vunpack.c.l.b16 %v6798
      %v7372 = vunpack.c.h.b16 %v6798
      %v7373 = vunpack.c.l.b16 %v6799
      %v7374 = vunpack.c.h.b16 %v6799
      %v7375 = vunpack.c.l.b16 %v6800
      %v7376 = vunpack.c.h.b16 %v6800
      %v7377 = vunpack.c.l.b16 %v6801
      %v7378 = vunpack.c.h.b16 %v6801
      %v7379 = vunpack.c.l.b16 %v6802
      %v7380 = vunpack.c.h.b16 %v6802
      %v7381 = vunpack.c.l.b16 %v6803
      %v7382 = vunpack.c.h.b16 %v6803
      %v7383 = vunpack.c.l.b16 %v6804
      %v7384 = vunpack.c.h.b16 %v6804
      %v7385 = vunpack.c.l.b16 %v6805
      %v7386 = vunpack.c.h.b16 %v6805
      %v7387 = vunpack.c.l.b16 %v6806
      %v7388 = vunpack.c.h.b16 %v6806
      %v7389 = vunpack.c.l.b16 %v6807
      %v7390 = vunpack.c.h.b16 %v6807
      %v7391 = vunpack.c.l.b16 %v6808
      %v7392 = vunpack.c.h.b16 %v6808
      %v7393 = vunpack.c.l.b16 %v6809
      %v7394 = vunpack.c.h.b16 %v6809
      %v7395 = vunpack.c.l.b16 %v6810
      %v7396 = vunpack.c.h.b16 %v6810
      %v7397 = vpack.c.b16 %v7017, %v7013
      %v7398 = vpack.c.b16 %v7018, %v7014
      %v7399 = vpack.c.b16 %v7019, %v7015
      %v7400 = vpack.c.b16 %v7020, %v7016
      %v7401 = vpack.c.b16 %v7025, %v7021
      %v7402 = vpack.c.b16 %v7026, %v7022
      %v7403 = vpack.c.b16 %v7027, %v7023
      %v7404 = vpack.c.b16 %v7028, %v7024
      %v7405 = vpack.c.b16 %v7033, %v7029
      %v7406 = vpack.c.b16 %v7034, %v7030
      %v7407 = vpack.c.b16 %v7035, %v7031
      %v7408 = vpack.c.b16 %v7036, %v7032
      %v7409 = vpack.c.b16 %v7041, %v7037
      %v7410 = vpack.c.b16 %v7042, %v7038
      %v7411 = vpack.c.b16 %v7043, %v7039
      %v7412 = vpack.c.b16 %v7044, %v7040
      %v7413 = vpack.c.b16 %v7049, %v7045
      %v7414 = vpack.c.b16 %v7050, %v7046
      %v7415 = vpack.c.b16 %v7051, %v7047
      %v7416 = vpack.c.b16 %v7052, %v7048
      %v7417 = vpack.c.b16 %v7057, %v7053
      %v7418 = vpack.c.b16 %v7058, %v7054
      %v7419 = vpack.c.b16 %v7059, %v7055
      %v7420 = vpack.c.b16 %v7060, %v7056
      %v7421 = vpack.c.b16 %v7065, %v7061
      %v7422 = vpack.c.b16 %v7066, %v7062
      %v7423 = vpack.c.b16 %v7067, %v7063
      %v7424 = vpack.c.b16 %v7068, %v7064
      %v7425 = vpack.c.b16 %v7073, %v7069
      %v7426 = vpack.c.b16 %v7074, %v7070
      %v7427 = vpack.c.b16 %v7075, %v7071
      %v7428 = vpack.c.b16 %v7076, %v7072
      %v7429 = vpack.c.b16 %v7081, %v7077
      %v7430 = vpack.c.b16 %v7082, %v7078
      %v7431 = vpack.c.b16 %v7083, %v7079
      %v7432 = vpack.c.b16 %v7084, %v7080
      %v7433 = vpack.c.b16 %v7089, %v7085
      %v7434 = vpack.c.b16 %v7090, %v7086
      %v7435 = vpack.c.b16 %v7091, %v7087
      %v7436 = vpack.c.b16 %v7092, %v7088
      %v7437 = vpack.c.b16 %v7097, %v7093
      %v7438 = vpack.c.b16 %v7098, %v7094
      %v7439 = vpack.c.b16 %v7099, %v7095
      %v7440 = vpack.c.b16 %v7100, %v7096
      %v7441 = vpack.c.b16 %v7105, %v7101
      %v7442 = vpack.c.b16 %v7106, %v7102
      %v7443 = vpack.c.b16 %v7107, %v7103
      %v7444 = vpack.c.b16 %v7108, %v7104
      %v7445 = vpack.c.b16 %v7113, %v7109
      %v7446 = vpack.c.b16 %v7114, %v7110
      %v7447 = vpack.c.b16 %v7115, %v7111
      %v7448 = vpack.c.b16 %v7116, %v7112
      %v7449 = vpack.c.b16 %v7121, %v7117
      %v7450 = vpack.c.b16 %v7122, %v7118
      %v7451 = vpack.c.b16 %v7123, %v7119
      %v7452 = vpack.c.b16 %v7124, %v7120
      %v7453 = vpack.c.b16 %v7129, %v7125
      %v7454 = vpack.c.b16 %v7130, %v7126
      %v7455 = vpack.c.b16 %v7131, %v7127
      %v7456 = vpack.c.b16 %v7132, %v7128
      %v7457 = vpack.c.b16 %v7137, %v7133
      %v7458 = vpack.c.b16 %v7138, %v7134
      %v7459 = vpack.c.b16 %v7139, %v7135
      %v7460 = vpack.c.b16 %v7140, %v7136
      %v7461 = vpack.c.b16 %v7145, %v7141
      %v7462 = vpack.c.b16 %v7146, %v7142
      %v7463 = vpack.c.b16 %v7147, %v7143
      %v7464 = vpack.c.b16 %v7148, %v7144
      %v7465 = vpack.c.b16 %v7153, %v7149
      %v7466 = vpack.c.b16 %v7154, %v7150
      %v7467 = vpack.c.b16 %v7155, %v7151
      %v7468 = vpack.c.b16 %v7156, %v7152
      %v7469 = vpack.c.b16 %v7161, %v7157
      %v7470 = vpack.c.b16 %v7162, %v7158
      %v7471 = vpack.c.b16 %v7163, %v7159
      %v7472 = vpack.c.b16 %v7164, %v7160
      %v7473 = vpack.c.b16 %v7169, %v7165
      %v7474 = vpack.c.b16 %v7170, %v7166
      %v7475 = vpack.c.b16 %v7171, %v7167
      %v7476 = vpack.c.b16 %v7172, %v7168
      %v7477 = vpack.c.b16 %v7177, %v7173
      %v7478 = vpack.c.b16 %v7178, %v7174
      %v7479 = vpack.c.b16 %v7179, %v7175
      %v7480 = vpack.c.b16 %v7180, %v7176
      %v7481 = vpack.c.b16 %v7185, %v7181
      %v7482 = vpack.c.b16 %v7186, %v7182
      %v7483 = vpack.c.b16 %v7187, %v7183
      %v7484 = vpack.c.b16 %v7188, %v7184
      %v7485 = vpack.c.b16 %v7193, %v7189
      %v7486 = vpack.c.b16 %v7194, %v7190
      %v7487 = vpack.c.b16 %v7195, %v7191
      %v7488 = vpack.c.b16 %v7196, %v7192
      %v7489 = vpack.c.b16 %v7201, %v7197
      %v7490 = vpack.c.b16 %v7202, %v7198
      %v7491 = vpack.c.b16 %v7203, %v7199
      %v7492 = vpack.c.b16 %v7204, %v7200
      %v7493 = vpack.c.b16 %v7209, %v7205
      %v7494 = vpack.c.b16 %v7210, %v7206
      %v7495 = vpack.c.b16 %v7211, %v7207
      %v7496 = vpack.c.b16 %v7212, %v7208
      %v7497 = vpack.c.b16 %v7217, %v7213
      %v7498 = vpack.c.b16 %v7218, %v7214
      %v7499 = vpack.c.b16 %v7219, %v7215
      %v7500 = vpack.c.b16 %v7220, %v7216
      %v7501 = vpack.c.b16 %v7225, %v7221
      %v7502 = vpack.c.b16 %v7226, %v7222
      %v7503 = vpack.c.b16 %v7227, %v7223
      %v7504 = vpack.c.b16 %v7228, %v7224
      %v7505 = vpack.c.b16 %v7233, %v7229
      %v7506 = vpack.c.b16 %v7234, %v7230
      %v7507 = vpack.c.b16 %v7235, %v7231
      %v7508 = vpack.c.b16 %v7236, %v7232
      %v7509 = vpack.c.b16 %v7241, %v7237
      %v7510 = vpack.c.b16 %v7242, %v7238
      %v7511 = vpack.c.b16 %v7243, %v7239
      %v7512 = vpack.c.b16 %v7244, %v7240
      %v7513 = vpack.c.b16 %v7249, %v7245
      %v7514 = vpack.c.b16 %v7250, %v7246
      %v7515 = vpack.c.b16 %v7251, %v7247
      %v7516 = vpack.c.b16 %v7252, %v7248
      %v7517 = vpack.c.b16 %v7257, %v7253
      %v7518 = vpack.c.b16 %v7258, %v7254
      %v7519 = vpack.c.b16 %v7259, %v7255
      %v7520 = vpack.c.b16 %v7260, %v7256
      %v7521 = vpack.c.b16 %v7265, %v7261
      %v7522 = vpack.c.b16 %v7266, %v7262
      %v7523 = vpack.c.b16 %v7267, %v7263
      %v7524 = vpack.c.b16 %v7268, %v7264
      %v7525 = vpack.c.b16 %v7273, %v7269
      %v7526 = vpack.c.b16 %v7274, %v7270
      %v7527 = vpack.c.b16 %v7275, %v7271
      %v7528 = vpack.c.b16 %v7276, %v7272
      %v7529 = vpack.c.b16 %v7281, %v7277
      %v7530 = vpack.c.b16 %v7282, %v7278
      %v7531 = vpack.c.b16 %v7283, %v7279
      %v7532 = vpack.c.b16 %v7284, %v7280
      %v7533 = vpack.c.b16 %v7289, %v7285
      %v7534 = vpack.c.b16 %v7290, %v7286
      %v7535 = vpack.c.b16 %v7291, %v7287
      %v7536 = vpack.c.b16 %v7292, %v7288
      %v7537 = vpack.c.b16 %v7297, %v7293
      %v7538 = vpack.c.b16 %v7298, %v7294
      %v7539 = vpack.c.b16 %v7299, %v7295
      %v7540 = vpack.c.b16 %v7300, %v7296
      %v7541 = vpack.c.b16 %v7305, %v7301
      %v7542 = vpack.c.b16 %v7306, %v7302
      %v7543 = vpack.c.b16 %v7307, %v7303
      %v7544 = vpack.c.b16 %v7308, %v7304
      %v7545 = vpack.c.b16 %v7313, %v7309
      %v7546 = vpack.c.b16 %v7314, %v7310
      %v7547 = vpack.c.b16 %v7315, %v7311
      %v7548 = vpack.c.b16 %v7316, %v7312
      %v7549 = vpack.c.b16 %v7321, %v7317
      %v7550 = vpack.c.b16 %v7322, %v7318
      %v7551 = vpack.c.b16 %v7323, %v7319
      %v7552 = vpack.c.b16 %v7324, %v7320
      %v7553 = vpack.c.b16 %v7329, %v7325
      %v7554 = vpack.c.b16 %v7330, %v7326
      %v7555 = vpack.c.b16 %v7331, %v7327
      %v7556 = vpack.c.b16 %v7332, %v7328
      %v7557 = vpack.c.b16 %v7337, %v7333
      %v7558 = vpack.c.b16 %v7338, %v7334
      %v7559 = vpack.c.b16 %v7339, %v7335
      %v7560 = vpack.c.b16 %v7340, %v7336
      %v7561 = vpack.c.b16 %v7345, %v7341
      %v7562 = vpack.c.b16 %v7346, %v7342
      %v7563 = vpack.c.b16 %v7347, %v7343
      %v7564 = vpack.c.b16 %v7348, %v7344
      %v7565 = vpack.c.b16 %v7353, %v7349
      %v7566 = vpack.c.b16 %v7354, %v7350
      %v7567 = vpack.c.b16 %v7355, %v7351
      %v7568 = vpack.c.b16 %v7356, %v7352
      %v7569 = vpack.c.b16 %v7361, %v7357
      %v7570 = vpack.c.b16 %v7362, %v7358
      %v7571 = vpack.c.b16 %v7363, %v7359
      %v7572 = vpack.c.b16 %v7364, %v7360
      %v7573 = vpack.c.b16 %v7369, %v7365
      %v7574 = vpack.c.b16 %v7370, %v7366
      %v7575 = vpack.c.b16 %v7371, %v7367
      %v7576 = vpack.c.b16 %v7372, %v7368
      %v7577 = vpack.c.b16 %v7377, %v7373
      %v7578 = vpack.c.b16 %v7378, %v7374
      %v7579 = vpack.c.b16 %v7379, %v7375
      %v7580 = vpack.c.b16 %v7380, %v7376
      %v7581 = vpack.c.b16 %v7385, %v7381
      %v7582 = vpack.c.b16 %v7386, %v7382
      %v7583 = vpack.c.b16 %v7387, %v7383
      %v7584 = vpack.c.b16 %v7388, %v7384
      %v7585 = vpack.c.b16 %v7393, %v7389
      %v7586 = vpack.c.b16 %v7394, %v7390
      %v7587 = vpack.c.b16 %v7395, %v7391
      %v7588 = vpack.c.b16 %v7396, %v7392
      %7781 = vmatpush.bf16.msra.mxu0 %v7425
      %7782 = vmatpush.bf16.msra.mxu0 %v7421
      %7783 = vmatpush.bf16.msra.mxu0 %v7417
      %7784 = vmatpush.bf16.msra.mxu0 %v7413
      %7785 = vmatpush.bf16.msra.mxu0 %v7409
      %7786 = vmatpush.bf16.msra.mxu0 %v7405
      %7787 = vmatpush.bf16.msra.mxu0 %v7401
      %7788 = vmatpush.bf16.msra.mxu0 %v7397
      %7789 = vmatmul.bf16.gmra.mxu0 %v6613
      %v7790 = vpop.f32.mrf.mxu0
      %v7791 = vadd.f32 %v6813, %v7790
      %v7792 = vpop.f32.mrf.mxu0
      %7793 = vdwg.mxu0
      %7794 = vmatpush.bf16.msra.mxu0 %v7457
      %7795 = vmatpush.bf16.msra.mxu0 %v7453
      %7796 = vmatpush.bf16.msra.mxu0 %v7449
      %7797 = vmatpush.bf16.msra.mxu0 %v7445
      %7798 = vmatpush.bf16.msra.mxu0 %v7441
      %7799 = vmatpush.bf16.msra.mxu0 %v7437
      %7800 = vmatpush.bf16.msra.mxu0 %v7433
      %7801 = vmatpush.bf16.msra.mxu0 %v7429
      %7802 = vmatmul.bf16.gmra.mxu0 %v6614
      %v7803 = vpop.f32.mrf.mxu0
      %v7804 = vadd.f32 %v7791, %v7803
      %v7805 = vpop.f32.mrf.mxu0
      %7806 = vdwg.mxu0
      %7807 = vmatpush.bf16.msra.mxu0 %v7489
      %7808 = vmatpush.bf16.msra.mxu0 %v7485
      %7809 = vmatpush.bf16.msra.mxu0 %v7481
      %7810 = vmatpush.bf16.msra.mxu0 %v7477
      %7811 = vmatpush.bf16.msra.mxu0 %v7473
      %7812 = vmatpush.bf16.msra.mxu0 %v7469
      %7813 = vmatpush.bf16.msra.mxu0 %v7465
      %7814 = vmatpush.bf16.msra.mxu0 %v7461
      %7815 = vmatmul.bf16.gmra.mxu0 %v6615
      %v7816 = vpop.f32.mrf.mxu0
      %v7817 = vadd.f32 %v7804, %v7816
      %v7818 = vpop.f32.mrf.mxu0
      %7819 = vdwg.mxu0
      %7820 = vmatpush.bf16.msra.mxu0 %v7521
      %7821 = vmatpush.bf16.msra.mxu0 %v7517
      %7822 = vmatpush.bf16.msra.mxu0 %v7513
      %7823 = vmatpush.bf16.msra.mxu0 %v7509
      %7824 = vmatpush.bf16.msra.mxu0 %v7505
      %7825 = vmatpush.bf16.msra.mxu0 %v7501
      %7826 = vmatpush.bf16.msra.mxu0 %v7497
      %7827 = vmatpush.bf16.msra.mxu0 %v7493
      %7828 = vmatmul.bf16.gmra.mxu0 %v6616
      %v7829 = vpop.f32.mrf.mxu0
      %v7830 = vadd.f32 %v7817, %v7829
      %v7831 = vpop.f32.mrf.mxu0
      %7832 = vdwg.mxu0
      %7833 = vmatpush.bf16.msra.mxu0 %v7553
      %7834 = vmatpush.bf16.msra.mxu0 %v7549
      %7835 = vmatpush.bf16.msra.mxu0 %v7545
      %7836 = vmatpush.bf16.msra.mxu0 %v7541
      %7837 = vmatpush.bf16.msra.mxu0 %v7537
      %7838 = vmatpush.bf16.msra.mxu0 %v7533
      %7839 = vmatpush.bf16.msra.mxu0 %v7529
      %7840 = vmatpush.bf16.msra.mxu0 %v7525
      %7841 = vmatmul.bf16.gmra.mxu0 %v6617
      %v7842 = vpop.f32.mrf.mxu0
      %v7843 = vadd.f32 %v7830, %v7842
      %v7844 = vpop.f32.mrf.mxu0
      %7845 = vdwg.mxu0
      %7846 = vmatpush.bf16.msra.mxu0 %v7585
      %7847 = vmatpush.bf16.msra.mxu0 %v7581
      %7848 = vmatpush.bf16.msra.mxu0 %v7577
      %7849 = vmatpush.bf16.msra.mxu0 %v7573
      %7850 = vmatpush.bf16.msra.mxu0 %v7569
      %7851 = vmatpush.bf16.msra.mxu0 %v7565
      %7852 = vmatpush.bf16.msra.mxu0 %v7561
      %7853 = vmatpush.bf16.msra.mxu0 %v7557
      %7854 = vmatmul.bf16.gmra.mxu0 %v6618
      %v7855 = vpop.f32.mrf.mxu0
      %v7856 = vadd.f32 %v7843, %v7855
      %v7857 = vpop.f32.mrf.mxu0
      %7858 = vdwg.mxu0
      %7859 = vmatpush.bf16.msra.mxu0 %v7426
      %7860 = vmatpush.bf16.msra.mxu0 %v7422
      %7861 = vmatpush.bf16.msra.mxu0 %v7418
      %7862 = vmatpush.bf16.msra.mxu0 %v7414
      %7863 = vmatpush.bf16.msra.mxu0 %v7410
      %7864 = vmatpush.bf16.msra.mxu0 %v7406
      %7865 = vmatpush.bf16.msra.mxu0 %v7402
      %7866 = vmatpush.bf16.msra.mxu0 %v7398
      %7867 = vmatmul.bf16.gmra.mxu0 %v6613
      %v7868 = vpop.f32.mrf.mxu0
      %v7869 = vadd.f32 %v6814, %v7868
      %v7870 = vpop.f32.mrf.mxu0
      %7871 = vdwg.mxu0
      %7872 = vmatpush.bf16.msra.mxu0 %v7458
      %7873 = vmatpush.bf16.msra.mxu0 %v7454
      %7874 = vmatpush.bf16.msra.mxu0 %v7450
      %7875 = vmatpush.bf16.msra.mxu0 %v7446
      %7876 = vmatpush.bf16.msra.mxu0 %v7442
      %7877 = vmatpush.bf16.msra.mxu0 %v7438
      %7878 = vmatpush.bf16.msra.mxu0 %v7434
      %7879 = vmatpush.bf16.msra.mxu0 %v7430
      %7880 = vmatmul.bf16.gmra.mxu0 %v6614
      %v7881 = vpop.f32.mrf.mxu0
      %v7882 = vadd.f32 %v7869, %v7881
      %v7883 = vpop.f32.mrf.mxu0
      %7884 = vdwg.mxu0
      %7885 = vmatpush.bf16.msra.mxu0 %v7490
      %7886 = vmatpush.bf16.msra.mxu0 %v7486
      %7887 = vmatpush.bf16.msra.mxu0 %v7482
      %7888 = vmatpush.bf16.msra.mxu0 %v7478
      %7889 = vmatpush.bf16.msra.mxu0 %v7474
      %7890 = vmatpush.bf16.msra.mxu0 %v7470
      %7891 = vmatpush.bf16.msra.mxu0 %v7466
      %7892 = vmatpush.bf16.msra.mxu0 %v7462
      %7893 = vmatmul.bf16.gmra.mxu0 %v6615
      %v7894 = vpop.f32.mrf.mxu0
      %v7895 = vadd.f32 %v7882, %v7894
      %v7896 = vpop.f32.mrf.mxu0
      %7897 = vdwg.mxu0
      %7898 = vmatpush.bf16.msra.mxu0 %v7522
      %7899 = vmatpush.bf16.msra.mxu0 %v7518
      %7900 = vmatpush.bf16.msra.mxu0 %v7514
      %7901 = vmatpush.bf16.msra.mxu0 %v7510
      %7902 = vmatpush.bf16.msra.mxu0 %v7506
      %7903 = vmatpush.bf16.msra.mxu0 %v7502
      %7904 = vmatpush.bf16.msra.mxu0 %v7498
      %7905 = vmatpush.bf16.msra.mxu0 %v7494
      %7906 = vmatmul.bf16.gmra.mxu0 %v6616
      %v7907 = vpop.f32.mrf.mxu0
      %v7908 = vadd.f32 %v7895, %v7907
      %v7909 = vpop.f32.mrf.mxu0
      %7910 = vdwg.mxu0
      %7911 = vmatpush.bf16.msra.mxu0 %v7554
      %7912 = vmatpush.bf16.msra.mxu0 %v7550
      %7913 = vmatpush.bf16.msra.mxu0 %v7546
      %7914 = vmatpush.bf16.msra.mxu0 %v7542
      %7915 = vmatpush.bf16.msra.mxu0 %v7538
      %7916 = vmatpush.bf16.msra.mxu0 %v7534
      %7917 = vmatpush.bf16.msra.mxu0 %v7530
      %7918 = vmatpush.bf16.msra.mxu0 %v7526
      %7919 = vmatmul.bf16.gmra.mxu0 %v6617
      %v7920 = vpop.f32.mrf.mxu0
      %v7921 = vadd.f32 %v7908, %v7920
      %v7922 = vpop.f32.mrf.mxu0
      %7923 = vdwg.mxu0
      %7924 = vmatpush.bf16.msra.mxu0 %v7586
      %7925 = vmatpush.bf16.msra.mxu0 %v7582
      %7926 = vmatpush.bf16.msra.mxu0 %v7578
      %7927 = vmatpush.bf16.msra.mxu0 %v7574
      %7928 = vmatpush.bf16.msra.mxu0 %v7570
      %7929 = vmatpush.bf16.msra.mxu0 %v7566
      %7930 = vmatpush.bf16.msra.mxu0 %v7562
      %7931 = vmatpush.bf16.msra.mxu0 %v7558
      %7932 = vmatmul.bf16.gmra.mxu0 %v6618
      %v7933 = vpop.f32.mrf.mxu0
      %v7934 = vadd.f32 %v7921, %v7933
      %v7935 = vpop.f32.mrf.mxu0
      %7936 = vdwg.mxu0
      %7937 = vmatpush.bf16.msra.mxu0 %v7427
      %7938 = vmatpush.bf16.msra.mxu0 %v7423
      %7939 = vmatpush.bf16.msra.mxu0 %v7419
      %7940 = vmatpush.bf16.msra.mxu0 %v7415
      %7941 = vmatpush.bf16.msra.mxu0 %v7411
      %7942 = vmatpush.bf16.msra.mxu0 %v7407
      %7943 = vmatpush.bf16.msra.mxu0 %v7403
      %7944 = vmatpush.bf16.msra.mxu0 %v7399
      %7945 = vmatmul.bf16.gmra.mxu0 %v6613
      %v7946 = vpop.f32.mrf.mxu0
      %v7947 = vadd.f32 %v6815, %v7946
      %v7948 = vpop.f32.mrf.mxu0
      %7949 = vdwg.mxu0
      %7950 = vmatpush.bf16.msra.mxu0 %v7459
      %7951 = vmatpush.bf16.msra.mxu0 %v7455
      %7952 = vmatpush.bf16.msra.mxu0 %v7451
      %7953 = vmatpush.bf16.msra.mxu0 %v7447
      %7954 = vmatpush.bf16.msra.mxu0 %v7443
      %7955 = vmatpush.bf16.msra.mxu0 %v7439
      %7956 = vmatpush.bf16.msra.mxu0 %v7435
      %7957 = vmatpush.bf16.msra.mxu0 %v7431
      %7958 = vmatmul.bf16.gmra.mxu0 %v6614
      %v7959 = vpop.f32.mrf.mxu0
      %v7960 = vadd.f32 %v7947, %v7959
      %v7961 = vpop.f32.mrf.mxu0
      %7962 = vdwg.mxu0
      %7963 = vmatpush.bf16.msra.mxu0 %v7491
      %7964 = vmatpush.bf16.msra.mxu0 %v7487
      %7965 = vmatpush.bf16.msra.mxu0 %v7483
      %7966 = vmatpush.bf16.msra.mxu0 %v7479
      %7967 = vmatpush.bf16.msra.mxu0 %v7475
      %7968 = vmatpush.bf16.msra.mxu0 %v7471
      %7969 = vmatpush.bf16.msra.mxu0 %v7467
      %7970 = vmatpush.bf16.msra.mxu0 %v7463
      %7971 = vmatmul.bf16.gmra.mxu0 %v6615
      %v7972 = vpop.f32.mrf.mxu0
      %v7973 = vadd.f32 %v7960, %v7972
      %v7974 = vpop.f32.mrf.mxu0
      %7975 = vdwg.mxu0
      %7976 = vmatpush.bf16.msra.mxu0 %v7523
      %7977 = vmatpush.bf16.msra.mxu0 %v7519
      %7978 = vmatpush.bf16.msra.mxu0 %v7515
      %7979 = vmatpush.bf16.msra.mxu0 %v7511
      %7980 = vmatpush.bf16.msra.mxu0 %v7507
      %7981 = vmatpush.bf16.msra.mxu0 %v7503
      %7982 = vmatpush.bf16.msra.mxu0 %v7499
      %7983 = vmatpush.bf16.msra.mxu0 %v7495
      %7984 = vmatmul.bf16.gmra.mxu0 %v6616
      %v7985 = vpop.f32.mrf.mxu0
      %v7986 = vadd.f32 %v7973, %v7985
      %v7987 = vpop.f32.mrf.mxu0
      %7988 = vdwg.mxu0
      %7989 = vmatpush.bf16.msra.mxu0 %v7555
      %7990 = vmatpush.bf16.msra.mxu0 %v7551
      %7991 = vmatpush.bf16.msra.mxu0 %v7547
      %7992 = vmatpush.bf16.msra.mxu0 %v7543
      %7993 = vmatpush.bf16.msra.mxu0 %v7539
      %7994 = vmatpush.bf16.msra.mxu0 %v7535
      %7995 = vmatpush.bf16.msra.mxu0 %v7531
      %7996 = vmatpush.bf16.msra.mxu0 %v7527
      %7997 = vmatmul.bf16.gmra.mxu0 %v6617
      %v7998 = vpop.f32.mrf.mxu0
      %v7999 = vadd.f32 %v7986, %v7998
      %v8000 = vpop.f32.mrf.mxu0
      %8001 = vdwg.mxu0
      %8002 = vmatpush.bf16.msra.mxu0 %v7587
      %8003 = vmatpush.bf16.msra.mxu0 %v7583
      %8004 = vmatpush.bf16.msra.mxu0 %v7579
      %8005 = vmatpush.bf16.msra.mxu0 %v7575
      %8006 = vmatpush.bf16.msra.mxu0 %v7571
      %8007 = vmatpush.bf16.msra.mxu0 %v7567
      %8008 = vmatpush.bf16.msra.mxu0 %v7563
      %8009 = vmatpush.bf16.msra.mxu0 %v7559
      %8010 = vmatmul.bf16.gmra.mxu0 %v6618
      %v8011 = vpop.f32.mrf.mxu0
      %v8012 = vadd.f32 %v7999, %v8011
      %v8013 = vpop.f32.mrf.mxu0
      %8014 = vdwg.mxu0
      %8015 = vmatpush.bf16.msra.mxu0 %v7428
      %8016 = vmatpush.bf16.msra.mxu0 %v7424
      %8017 = vmatpush.bf16.msra.mxu0 %v7420
      %8018 = vmatpush.bf16.msra.mxu0 %v7416
      %8019 = vmatpush.bf16.msra.mxu0 %v7412
      %8020 = vmatpush.bf16.msra.mxu0 %v7408
      %8021 = vmatpush.bf16.msra.mxu0 %v7404
      %8022 = vmatpush.bf16.msra.mxu0 %v7400
      %8023 = vmatmul.bf16.gmra.mxu0 %v6613
      %v8024 = vpop.f32.mrf.mxu0
      %v8025 = vadd.f32 %v6816, %v8024
      %v8026 = vpop.f32.mrf.mxu0
      %8027 = vdwg.mxu0
      %8028 = vmatpush.bf16.msra.mxu0 %v7460
      %8029 = vmatpush.bf16.msra.mxu0 %v7456
      %8030 = vmatpush.bf16.msra.mxu0 %v7452
      %8031 = vmatpush.bf16.msra.mxu0 %v7448
      %8032 = vmatpush.bf16.msra.mxu0 %v7444
      %8033 = vmatpush.bf16.msra.mxu0 %v7440
      %8034 = vmatpush.bf16.msra.mxu0 %v7436
      %8035 = vmatpush.bf16.msra.mxu0 %v7432
      %8036 = vmatmul.bf16.gmra.mxu0 %v6614
      %v8037 = vpop.f32.mrf.mxu0
      %v8038 = vadd.f32 %v8025, %v8037
      %v8039 = vpop.f32.mrf.mxu0
      %8040 = vdwg.mxu0
      %8041 = vmatpush.bf16.msra.mxu0 %v7492
      %8042 = vmatpush.bf16.msra.mxu0 %v7488
      %8043 = vmatpush.bf16.msra.mxu0 %v7484
      %8044 = vmatpush.bf16.msra.mxu0 %v7480
      %8045 = vmatpush.bf16.msra.mxu0 %v7476
      %8046 = vmatpush.bf16.msra.mxu0 %v7472
      %8047 = vmatpush.bf16.msra.mxu0 %v7468
      %8048 = vmatpush.bf16.msra.mxu0 %v7464
      %8049 = vmatmul.bf16.gmra.mxu0 %v6615
      %v8050 = vpop.f32.mrf.mxu0
      %v8051 = vadd.f32 %v8038, %v8050
      %v8052 = vpop.f32.mrf.mxu0
      %8053 = vdwg.mxu0
      %8054 = vmatpush.bf16.msra.mxu0 %v7524
      %8055 = vmatpush.bf16.msra.mxu0 %v7520
      %8056 = vmatpush.bf16.msra.mxu0 %v7516
      %8057 = vmatpush.bf16.msra.mxu0 %v7512
      %8058 = vmatpush.bf16.msra.mxu0 %v7508
      %8059 = vmatpush.bf16.msra.mxu0 %v7504
      %8060 = vmatpush.bf16.msra.mxu0 %v7500
      %8061 = vmatpush.bf16.msra.mxu0 %v7496
      %8062 = vmatmul.bf16.gmra.mxu0 %v6616
      %v8063 = vpop.f32.mrf.mxu0
      %v8064 = vadd.f32 %v8051, %v8063
      %v8065 = vpop.f32.mrf.mxu0
      %8066 = vdwg.mxu0
      %8067 = vmatpush.bf16.msra.mxu0 %v7556
      %8068 = vmatpush.bf16.msra.mxu0 %v7552
      %8069 = vmatpush.bf16.msra.mxu0 %v7548
      %8070 = vmatpush.bf16.msra.mxu0 %v7544
      %8071 = vmatpush.bf16.msra.mxu0 %v7540
      %8072 = vmatpush.bf16.msra.mxu0 %v7536
      %8073 = vmatpush.bf16.msra.mxu0 %v7532
      %8074 = vmatpush.bf16.msra.mxu0 %v7528
      %8075 = vmatmul.bf16.gmra.mxu0 %v6617
      %v8076 = vpop.f32.mrf.mxu0
      %v8077 = vadd.f32 %v8064, %v8076
      %v8078 = vpop.f32.mrf.mxu0
      %8079 = vdwg.mxu0
      %8080 = vmatpush.bf16.msra.mxu0 %v7588
      %8081 = vmatpush.bf16.msra.mxu0 %v7584
      %8082 = vmatpush.bf16.msra.mxu0 %v7580
      %8083 = vmatpush.bf16.msra.mxu0 %v7576
      %8084 = vmatpush.bf16.msra.mxu0 %v7572
      %8085 = vmatpush.bf16.msra.mxu0 %v7568
      %8086 = vmatpush.bf16.msra.mxu0 %v7564
      %8087 = vmatpush.bf16.msra.mxu0 %v7560
      %8088 = vmatmul.bf16.gmra.mxu0 %v6618
      %v8089 = vpop.f32.mrf.mxu0
      %v8090 = vadd.f32 %v8077, %v8089
      %v8091 = vpop.f32.mrf.mxu0
      %8092 = vdwg.mxu0
      %v8093 = vmax.f32 %v7856, 0.0
      %v8094 = vmax.f32 %v7934, 0.0
      %v8095 = vmax.f32 %v8012, 0.0
      %v8096 = vmax.f32 %v8090, 0.0
      %v8097 = vmul.f32 %v8093, %v8093
      %v8098 = vmul.f32 %v8094, %v8094
      %v8099 = vmul.f32 %v8095, %v8095
      %v8100 = vmul.f32 %v8096, %v8096
      %vm8101 = vcmask 1042432
      %v8102 = vsel %vm8101, %v8097, 0.0
      %v8103 = vsel %vm8101, %v8098, 0.0
      %v8104 = vadd.f32 %v8102, %v8103
      %v8105 = vsel %vm8101, %v8099, 0.0
      %v8106 = vadd.f32 %v8104, %v8105
      %v8107 = vsel %vm8101, %v8100, 0.0
      %v8108 = vadd.f32 %v8106, %v8107
      %8109 = vadd.xlane.f32.xlu0 %v8108
      %v8110 = vpop.xlane.xlu0 %8109
      %v8111 = vrsqrt.pop %v8110
      %v8112 = vmul.f32 %v8111, %v8110
      %v8113 = vmul.f32 %v8112, %v8111
      %v8114 = vmul.f32 0.5, %v8113
      %v8115 = vsub.f32 1.5, %v8114
      %v8116 = vmul.f32 %v8111, %v8115
      %v8117 = vmul.f32 %v8110, %v8116
      %vm8118 = vcmp.eq.f32.partialorder %v8110, inf
      %v8119 = vsel %vm8118, %v8110, %v8117
      %vm8120 = vcmp.eq.f32.partialorder %v8110, 0.0
      %v8121 = vand.u32 %v8110, 2147483648
      %v8122 = vsel %vm8120, %v8121, %v8119
      %v8123 = vmax.f32 %v8122, 1e-12
      %v8124 = vmul.f32 %v8123, 2.0
      %v8125 = vrsqrt.pop %v8124
      %v8126 = vmul.f32 %v8125, %v8124
      %v8127 = vmul.f32 %v8126, %v8125
      %v8128 = vmul.f32 0.5, %v8127
      %v8129 = vsub.f32 1.5, %v8128
      %v8130 = vmul.f32 %v8125, %v8129
      %vm8131 = vweird.f32 %v8124
      %vm8132 = vweird.f32 %v8125
      %vm8133 = vmor %vm8131, %vm8132
      %v8134 = vsel %vm8133, %v8125, %v8130
      %v8135 = vmul.f32 %v8093, %v8134
      %v8136 = vmul.f32 %v8094, %v8134
      %v8137 = vmul.f32 %v8095, %v8134
      %v8138 = vmul.f32 %v8096, %v8134
      %v8139 = vld [vmem:[#allocation11] sm:$0xff]
      %v8140 = vld [vmem:[#allocation11 + $0x8] sm:$0xff]
      %v8141 = vld [vmem:[#allocation11 + $0x10] sm:$0xff]
      %v8142 = vld [vmem:[#allocation11 + $0x18] sm:$0xff]
      %v8143 = vld [vmem:[#allocation11 + $0x20] sm:$0xff]
      %v8144 = vld [vmem:[#allocation11 + $0x28] sm:$0xff]
      %v8145 = vld [vmem:[#allocation11 + $0x30] sm:$0xff]
      %v8146 = vld [vmem:[#allocation11 + $0x38] sm:$0xff]
      %v8147 = vld [vmem:[#allocation11 + $0x40] sm:$0xff]
      %v8148 = vld [vmem:[#allocation11 + $0x48] sm:$0xff]
      %v8149 = vld [vmem:[#allocation11 + $0x50] sm:$0xff]
      %v8150 = vld [vmem:[#allocation11 + $0x58] sm:$0xff]
      %v8151 = vld [vmem:[#allocation11 + $0x60] sm:$0xff]
      %v8152 = vld [vmem:[#allocation11 + $0x68] sm:$0xff]
      %v8153 = vld [vmem:[#allocation11 + $0x70] sm:$0xff]
      %v8154 = vld [vmem:[#allocation11 + $0x78] sm:$0xff]
      %v8155 = vld [vmem:[#allocation11 + $0x80] sm:$0xff]
      %v8156 = vld [vmem:[#allocation11 + $0x88] sm:$0xff]
      %v8157 = vld [vmem:[#allocation11 + $0x90] sm:$0xff]
      %v8158 = vld [vmem:[#allocation11 + $0x98] sm:$0xff]
      %v8159 = vld [vmem:[#allocation11 + $0xa0] sm:$0xff]
      %v8160 = vld [vmem:[#allocation11 + $0xa8] sm:$0xff]
      %v8161 = vld [vmem:[#allocation11 + $0xb0] sm:$0xff]
      %v8162 = vld [vmem:[#allocation11 + $0xb8] sm:$0xff]
      %v8163 = vld [vmem:[#allocation11 + $0xc0] sm:$0xff]
      %v8164 = vld [vmem:[#allocation11 + $0xc8] sm:$0xff]
      %v8165 = vld [vmem:[#allocation11 + $0xd0] sm:$0xff]
      %v8166 = vld [vmem:[#allocation11 + $0xd8] sm:$0xff]
      %v8167 = vld [vmem:[#allocation11 + $0xe0] sm:$0xff]
      %v8168 = vld [vmem:[#allocation11 + $0xe8] sm:$0xff]
      %v8169 = vld [vmem:[#allocation11 + $0xf0] sm:$0xff]
      %v8170 = vld [vmem:[#allocation11 + $0xf8] sm:$0xff]
      %v8171 = vld [vmem:[#allocation11 + $0x100] sm:$0xff]
      %v8172 = vld [vmem:[#allocation11 + $0x108] sm:$0xff]
      %v8173 = vld [vmem:[#allocation11 + $0x110] sm:$0xff]
      %v8174 = vld [vmem:[#allocation11 + $0x118] sm:$0xff]
      %v8175 = vld [vmem:[#allocation11 + $0x120] sm:$0xff]
      %v8176 = vld [vmem:[#allocation11 + $0x128] sm:$0xff]
      %v8177 = vld [vmem:[#allocation11 + $0x130] sm:$0xff]
      %v8178 = vld [vmem:[#allocation11 + $0x138] sm:$0xff]
      %v8179 = vld [vmem:[#allocation11 + $0x140] sm:$0xff]
      %v8180 = vld [vmem:[#allocation11 + $0x148] sm:$0xff]
      %v8181 = vld [vmem:[#allocation11 + $0x150] sm:$0xff]
      %v8182 = vld [vmem:[#allocation11 + $0x158] sm:$0xff]
      %v8183 = vld [vmem:[#allocation11 + $0x160] sm:$0xff]
      %v8184 = vld [vmem:[#allocation11 + $0x168] sm:$0xff]
      %v8185 = vld [vmem:[#allocation11 + $0x170] sm:$0xff]
      %v8186 = vld [vmem:[#allocation11 + $0x178] sm:$0xff]
      %v8187 = vld [vmem:[#allocation11 + $0x180] sm:$0xff]
      %v8188 = vld [vmem:[#allocation11 + $0x188] sm:$0xff]
      %v8189 = vld [vmem:[#allocation11 + $0x190] sm:$0xff]
      %v8190 = vld [vmem:[#allocation11 + $0x198] sm:$0xff]
      %v8191 = vld [vmem:[#allocation11 + $0x1a0] sm:$0xff]
      %v8192 = vld [vmem:[#allocation11 + $0x1a8] sm:$0xff]
      %v8193 = vld [vmem:[#allocation11 + $0x1b0] sm:$0xff]
      %v8194 = vld [vmem:[#allocation11 + $0x1b8] sm:$0xff]
      %v8195 = vld [vmem:[#allocation11 + $0x1c0] sm:$0xff]
      %v8196 = vld [vmem:[#allocation11 + $0x1c8] sm:$0xff]
      %v8197 = vld [vmem:[#allocation11 + $0x1d0] sm:$0xff]
      %v8198 = vld [vmem:[#allocation11 + $0x1d8] sm:$0xff]
      %v8199 = vld [vmem:[#allocation11 + $0x1e0] sm:$0xff]
      %v8200 = vld [vmem:[#allocation11 + $0x1e8] sm:$0xff]
      %v8201 = vld [vmem:[#allocation11 + $0x1f0] sm:$0xff]
      %v8202 = vld [vmem:[#allocation11 + $0x1f8] sm:$0xff]
      %v8203 = vld [vmem:[#allocation13] sm:$0x1]
      %v8205 = vperm.slane %v8203, 0
      %8207 = vmatpush.msra.mxu0 %v8154
      %8208 = vmatpush.msra.mxu0 %v8153
      %8209 = vmatpush.msra.mxu0 %v8152
      %8210 = vmatpush.msra.mxu0 %v8151
      %8211 = vmatpush.msra.mxu0 %v8150
      %8212 = vmatpush.msra.mxu0 %v8149
      %8213 = vmatpush.msra.mxu0 %v8148
      %8214 = vmatpush.msra.mxu0 %v8147
      %8215 = vmatpush.msra.mxu0 %v8146
      %8216 = vmatpush.msra.mxu0 %v8145
      %8217 = vmatpush.msra.mxu0 %v8144
      %8218 = vmatpush.msra.mxu0 %v8143
      %8219 = vmatpush.msra.mxu0 %v8142
      %8220 = vmatpush.msra.mxu0 %v8141
      %8221 = vmatpush.msra.mxu0 %v8140
      %8222 = vmatpush.msra.mxu0 %v8139
      %8223 = vmatmul.f32.gmra.mxu0 %v8135
      %v8224 = vpop.f32.mrf.mxu0
      %v8225 = vadd.f32 %v8205, %v8224
      %8226 = vdwg.mxu0
      %8227 = vmatpush.msra.mxu0 %v8170
      %8228 = vmatpush.msra.mxu0 %v8169
      %8229 = vmatpush.msra.mxu0 %v8168
      %8230 = vmatpush.msra.mxu0 %v8167
      %8231 = vmatpush.msra.mxu0 %v8166
      %8232 = vmatpush.msra.mxu0 %v8165
      %8233 = vmatpush.msra.mxu0 %v8164
      %8234 = vmatpush.msra.mxu0 %v8163
      %8235 = vmatpush.msra.mxu0 %v8162
      %8236 = vmatpush.msra.mxu0 %v8161
      %8237 = vmatpush.msra.mxu0 %v8160
      %8238 = vmatpush.msra.mxu0 %v8159
      %8239 = vmatpush.msra.mxu0 %v8158
      %8240 = vmatpush.msra.mxu0 %v8157
      %8241 = vmatpush.msra.mxu0 %v8156
      %8242 = vmatpush.msra.mxu0 %v8155
      %8243 = vmatmul.f32.gmra.mxu0 %v8136
      %v8244 = vpop.f32.mrf.mxu0
      %v8245 = vadd.f32 %v8225, %v8244
      %8246 = vdwg.mxu0
      %8247 = vmatpush.msra.mxu0 %v8186
      %8248 = vmatpush.msra.mxu0 %v8185
      %8249 = vmatpush.msra.mxu0 %v8184
      %8250 = vmatpush.msra.mxu0 %v8183
      %8251 = vmatpush.msra.mxu0 %v8182
      %8252 = vmatpush.msra.mxu0 %v8181
      %8253 = vmatpush.msra.mxu0 %v8180
      %8254 = vmatpush.msra.mxu0 %v8179
      %8255 = vmatpush.msra.mxu0 %v8178
      %8256 = vmatpush.msra.mxu0 %v8177
      %8257 = vmatpush.msra.mxu0 %v8176
      %8258 = vmatpush.msra.mxu0 %v8175
      %8259 = vmatpush.msra.mxu0 %v8174
      %8260 = vmatpush.msra.mxu0 %v8173
      %8261 = vmatpush.msra.mxu0 %v8172
      %8262 = vmatpush.msra.mxu0 %v8171
      %8263 = vmatmul.f32.gmra.mxu0 %v8137
      %v8264 = vpop.f32.mrf.mxu0
      %v8265 = vadd.f32 %v8245, %v8264
      %8266 = vdwg.mxu0
      %8267 = vmatpush.msra.mxu0 %v8202
      %8268 = vmatpush.msra.mxu0 %v8201
      %8269 = vmatpush.msra.mxu0 %v8200
      %8270 = vmatpush.msra.mxu0 %v8199
      %8271 = vmatpush.msra.mxu0 %v8198
      %8272 = vmatpush.msra.mxu0 %v8197
      %8273 = vmatpush.msra.mxu0 %v8196
      %8274 = vmatpush.msra.mxu0 %v8195
      %8275 = vmatpush.msra.mxu0 %v8194
      %8276 = vmatpush.msra.mxu0 %v8193
      %8277 = vmatpush.msra.mxu0 %v8192
      %8278 = vmatpush.msra.mxu0 %v8191
      %8279 = vmatpush.msra.mxu0 %v8190
      %8280 = vmatpush.msra.mxu0 %v8189
      %8281 = vmatpush.msra.mxu0 %v8188
      %8282 = vmatpush.msra.mxu0 %v8187
      %8283 = vmatmul.f32.gmra.mxu0 %v8138
      %v8284 = vpop.f32.mrf.mxu0
      %v8285 = vadd.f32 %v8265, %v8284
      %8286 = vdwg.mxu0
      %v8291 = vrot.slane %v8136, 4
      %v8292 = vrot.slane %v8138, 4
      %v8293 = vsel %vm6543, %v8135, %v8291
      %v8294 = vsel %vm6543, %v8137, %v8292
      %8297 = vst [vmem:[%s8] sm:$0x77] %v8293
      %8298 = vst [vmem:[%s8 + $0x8] sm:$0x77] %v8294
      %8299 = vst [vmem:[%s7] sm:$0x7] %v8285
    $region65: #{tpu_custom_call.1} parent=1 // pred_fallthru
      _
    // Predicated region
    $region66: #{tpu_custom_call.1} parent=1 // pred_check
      _
    $region67: #{tpu_custom_call.1} parent=1 // pred_check_branch
      %8301 = sbr.rel (0) target = $region69
    $region68: #{tpu_custom_call.1} parent=1 // pred_region
      _
    $region69: #{tpu_custom_call.1} parent=1 // pred_fallthru
      _
    // Predicated region
    $region70: #{tpu_custom_call.1} parent=1 // pred_check
      _
    $region71: #{tpu_custom_call.1} parent=1 // pred_check_branch
      %8303 = sbr.rel (0) target = $region73
    $region72: #{tpu_custom_call.1} parent=1 // pred_region
      _
    $region73: #{tpu_custom_call.1} parent=1 // pred_fallthru
      _
    // Predicated region
    $region74: #{tpu_custom_call.1} parent=1 // pred_check
      _
    $region75: #{tpu_custom_call.1} parent=1 // pred_check_branch
      %8305 = sbr.rel (0) target = $region77
    $region76: #{tpu_custom_call.1} parent=1 // pred_region
      _
    $region77: #{tpu_custom_call.1} parent=1 // pred_fallthru
      _
    // Predicated region
    $region78: #{tpu_custom_call.1} parent=1 // pred_check
      _
    $region79: #{tpu_custom_call.1} parent=1 // pred_check_branch
      %8307 = sbr.rel (0) target = $region81
    $region80: #{tpu_custom_call.1} parent=1 // pred_region
      _
    $region81: #{tpu_custom_call.1} parent=1 // pred_fallthru
      _
    %8308 = vsyncpa [#allocation4], 1
    %8309 = vsyncpa [#allocation6], 1
    %8310 = vsyncpa [#allocation9], 1
    %8311 = vsyncpa [#allocation12], 1

</llo_original>
